<compile_context>
chip_gen: v7x
topology: tpu7x:2x2x1
jax: 0.10.0
libtpu: 0.0.40
codegen_flags: <defaults>
</compile_context>

<pallas_src>
import functools
import math

import jax
import jax.numpy as jnp
import numpy as np
from jax.experimental import pallas as pl
from jax.experimental.pallas import tpu as pltpu


def _linear_taps(in_size: int, out_size: int):
    """Per output position: (i0, i1, w0, w1) for 1-D linear interp, align_corners=True."""
    taps = []
    for o in range(out_size):
        if in_size == 1:
            taps.append((0, 0, 1.0, 0.0))
            continue
        src = o * (in_size - 1) / (out_size - 1)
        i0 = min(int(math.floor(src)), in_size - 2)
        w1 = src - i0
        taps.append((i0, i0 + 1, 1.0 - w1, w1))
    return tuple(taps)


def _tap_combine(planes, tap):
    i0, i1, w0, w1 = tap
    if w1 == 0.0:          # exact hit on a source sample -> plain copy
        return planes[i0]
    if w0 == 0.0:
        return planes[i1]
    # python-float weights keep the input dtype (no f32 upcast for bf16).
    return planes[i0] * w0 + planes[i1] * w1


def _up_kernel(x_ref, o_ref, *, h_taps, w_taps):
    # x_ref: (H, W, Cb), o_ref: (2H, 2W, Cb); channels on the lane axis.
    H, W, _ = x_ref.shape
    x = x_ref[...]

    # Width pass (VPU): pull out the W input columns once as (H, Cb) slabs,
    # then each output column is a 2-tap FMA of two of them.
    w_planes = [x[:, w, :] for w in range(W)]
    cols = [_tap_combine(w_planes, t) for t in w_taps]        # 2W x (H, Cb)
    xw = jnp.stack(cols, axis=0)                              # (2W, H, Cb)

    # Height pass (VPU): pull out the H width-interpolated rows as (2W, Cb)
    # slabs, combine two per output row and store that row directly
    # (dense, lane-full (2W, Cb) stores).
    h_planes = [xw[:, h, :] for h in range(H)]                # H x (2W, Cb)
    for oy, t in enumerate(h_taps):
        o_ref[oy] = _tap_combine(h_planes, t).astype(o_ref.dtype)


def _pick_channel_block(nc: int, h: int, w: int, itemsize: int):
    """Channel-block size: as large as a ~12 MiB VMEM budget allows
    (input + 4x output double-buffered + intermediate ~ 12 planes/channel),
    lane-aligned when splitting, and >= 2 grid steps for megacore when NC is big."""
    budget = 12 * 1024 * 1024
    plane = h * w * itemsize
    cb = max(1, budget // (12 * plane))
    if nc >= 256:
        # keep at least 2 grid steps so "parallel" can shard across TensorCores
        cb = min(cb, (((nc + 1) // 2 + 127) // 128) * 128)
    if cb >= nc:
        return nc, 1
    cb = max(128, (cb // 128) * 128)          # (8,128) rule: lane dim multiple of 128
    n_blocks = (nc + cb - 1) // cb
    return cb, n_blocks


@jax.jit
def up_bilinear_2x(x: jnp.ndarray) -> jnp.ndarray:
    """Equivalent of Up(in_channels, bilinear=True).forward(x) on NCHW input."""
    N, C, H, W = x.shape
    Ho, Wo = 2 * H, 2 * W
    NC = N * C
    itemsize = jnp.dtype(x.dtype).itemsize

    cb, n_blocks = _pick_channel_block(NC, H, W, itemsize)
    NC_pad = cb * n_blocks

    # Channels-last, lane-dense layout (wrapper-side layout plumbing).
    x_cl = jnp.transpose(x, (2, 3, 0, 1)).reshape(H, W, NC)
    if NC_pad != NC:
        x_cl = jnp.pad(x_cl, ((0, 0), (0, 0), (0, NC_pad - NC)))

    kernel = functools.partial(
        _up_kernel,
        h_taps=_linear_taps(H, Ho),
        w_taps=_linear_taps(W, Wo),
    )

    out_cl = pl.pallas_call(
        kernel,
        out_shape=jax.ShapeDtypeStruct((Ho, Wo, NC_pad), x.dtype),
        grid_spec=pltpu.PrefetchScalarGridSpec(
            num_scalar_prefetch=0,
            grid=(n_blocks,),
            in_specs=[pl.BlockSpec((H, W, cb), lambda i: (0, 0, i))],
            out_specs=pl.BlockSpec((Ho, Wo, cb), lambda i: (0, 0, i)),
        ),
        compiler_params=pltpu.CompilerParams(
            dimension_semantics=("parallel",),
            vmem_limit_bytes=32 * 1024 * 1024,
        ),
        cost_estimate=pl.CostEstimate(
            flops=18 * H * W * NC_pad,
            transcendentals=0,
            bytes_accessed=5 * H * W * NC_pad * itemsize,
        ),
    )(x_cl)

    out_cl = out_cl[:, :, :NC]
    return out_cl.reshape(Ho, Wo, N, C).transpose(2, 3, 0, 1)


def _reference_upsample_np(x: np.ndarray) -> np.ndarray:
    """Direct per-pixel numpy reference for bilinear, align_corners=True, 2x."""
    N, C, H, W = x.shape
    Ho, Wo = 2 * H, 2 * W
    out = np.zeros((N, C, Ho, Wo), dtype=np.float32)
    for oy in range(Ho):
        sy = oy * (H - 1) / (Ho - 1) if H > 1 else 0.0
        y0 = min(int(np.floor(sy)), H - 2) if H > 1 else 0
        y1 = min(y0 + 1, H - 1)
        wy1 = sy - y0
        wy0 = 1.0 - wy1
        for ox in range(Wo):
            sx = ox * (W - 1) / (Wo - 1) if W > 1 else 0.0
            x0 = min(int(np.floor(sx)), W - 2) if W > 1 else 0
            x1 = min(x0 + 1, W - 1)
            wx1 = sx - x0
            wx0 = 1.0 - wx1
            out[:, :, oy, ox] = (wy0 * wx0 * x[:, :, y0, x0]
                                 + wy0 * wx1 * x[:, :, y0, x1]
                                 + wy1 * wx0 * x[:, :, y1, x0]
                                 + wy1 * wx1 * x[:, :, y1, x1])
    return out


if __name__ == "__main__":
    key = jax.random.PRNGKey(0)
    N, C, H, W = 2, 4, 16, 16
    x = jax.random.normal(key, (N, C, H, W), dtype=jnp.float32)

    out = jax.block_until_ready(up_bilinear_2x(x))
    assert out.shape == (N, C, 2 * H, 2 * W), out.shape

    ref = _reference_upsample_np(np.asarray(x))
    np.testing.assert_allclose(np.asarray(out), ref, atol=1e-5, rtol=1e-5)

    print("KERNEL_OK")
</pallas_src>

<mosaic_0001>
module attributes {stable_mosaic.version = 11 : i64} {
  func.func @_up_kernel(%arg0: i32, %arg1: memref<16x16x8xf32, #tpu.memory_space<vmem>>, %arg2: memref<32x32x8xf32, #tpu.memory_space<vmem>>) attributes {dimension_semantics = [#tpu.dimension_semantics<parallel>], iteration_bounds = array<i64: 1>, scalar_prefetch = 0 : i64, scratch_operands = 0 : i64, tpu.core_type = #tpu.core_type<tc>, window_params = [{transform_indices = @transform_0, window_bounds = array<i64: 16, 16, 8>}, {transform_indices = @transform_1, window_bounds = array<i64: 32, 32, 8>}]} {
    %c0 = arith.constant 0 : index
    %c0_0 = arith.constant 0 : index
    %c0_1 = arith.constant 0 : index
    %0 = vector.load %arg1[%c0, %c0_0, %c0_1] : memref<16x16x8xf32, #tpu.memory_space<vmem>>, vector<16x16x8xf32>
    %1 = vector.extract_strided_slice %0 {offsets = [0, 0, 0], sizes = [16, 1, 8], strides = [1, 1, 1]} : vector<16x16x8xf32> to vector<16x1x8xf32>
    %2 = vector.shape_cast %1 : vector<16x1x8xf32> to vector<16x8xf32>
    %3 = vector.extract_strided_slice %0 {offsets = [0, 1, 0], sizes = [16, 1, 8], strides = [1, 1, 1]} : vector<16x16x8xf32> to vector<16x1x8xf32>
    %4 = vector.shape_cast %3 : vector<16x1x8xf32> to vector<16x8xf32>
    %5 = vector.extract_strided_slice %0 {offsets = [0, 2, 0], sizes = [16, 1, 8], strides = [1, 1, 1]} : vector<16x16x8xf32> to vector<16x1x8xf32>
    %6 = vector.shape_cast %5 : vector<16x1x8xf32> to vector<16x8xf32>
    %7 = vector.extract_strided_slice %0 {offsets = [0, 3, 0], sizes = [16, 1, 8], strides = [1, 1, 1]} : vector<16x16x8xf32> to vector<16x1x8xf32>
    %8 = vector.shape_cast %7 : vector<16x1x8xf32> to vector<16x8xf32>
    %9 = vector.extract_strided_slice %0 {offsets = [0, 4, 0], sizes = [16, 1, 8], strides = [1, 1, 1]} : vector<16x16x8xf32> to vector<16x1x8xf32>
    %10 = vector.shape_cast %9 : vector<16x1x8xf32> to vector<16x8xf32>
    %11 = vector.extract_strided_slice %0 {offsets = [0, 5, 0], sizes = [16, 1, 8], strides = [1, 1, 1]} : vector<16x16x8xf32> to vector<16x1x8xf32>
    %12 = vector.shape_cast %11 : vector<16x1x8xf32> to vector<16x8xf32>
    %13 = vector.extract_strided_slice %0 {offsets = [0, 6, 0], sizes = [16, 1, 8], strides = [1, 1, 1]} : vector<16x16x8xf32> to vector<16x1x8xf32>
    %14 = vector.shape_cast %13 : vector<16x1x8xf32> to vector<16x8xf32>
    %15 = vector.extract_strided_slice %0 {offsets = [0, 7, 0], sizes = [16, 1, 8], strides = [1, 1, 1]} : vector<16x16x8xf32> to vector<16x1x8xf32>
    %16 = vector.shape_cast %15 : vector<16x1x8xf32> to vector<16x8xf32>
    %17 = vector.extract_strided_slice %0 {offsets = [0, 8, 0], sizes = [16, 1, 8], strides = [1, 1, 1]} : vector<16x16x8xf32> to vector<16x1x8xf32>
    %18 = vector.shape_cast %17 : vector<16x1x8xf32> to vector<16x8xf32>
    %19 = vector.extract_strided_slice %0 {offsets = [0, 9, 0], sizes = [16, 1, 8], strides = [1, 1, 1]} : vector<16x16x8xf32> to vector<16x1x8xf32>
    %20 = vector.shape_cast %19 : vector<16x1x8xf32> to vector<16x8xf32>
    %21 = vector.extract_strided_slice %0 {offsets = [0, 10, 0], sizes = [16, 1, 8], strides = [1, 1, 1]} : vector<16x16x8xf32> to vector<16x1x8xf32>
    %22 = vector.shape_cast %21 : vector<16x1x8xf32> to vector<16x8xf32>
    %23 = vector.extract_strided_slice %0 {offsets = [0, 11, 0], sizes = [16, 1, 8], strides = [1, 1, 1]} : vector<16x16x8xf32> to vector<16x1x8xf32>
    %24 = vector.shape_cast %23 : vector<16x1x8xf32> to vector<16x8xf32>
    %25 = vector.extract_strided_slice %0 {offsets = [0, 12, 0], sizes = [16, 1, 8], strides = [1, 1, 1]} : vector<16x16x8xf32> to vector<16x1x8xf32>
    %26 = vector.shape_cast %25 : vector<16x1x8xf32> to vector<16x8xf32>
    %27 = vector.extract_strided_slice %0 {offsets = [0, 13, 0], sizes = [16, 1, 8], strides = [1, 1, 1]} : vector<16x16x8xf32> to vector<16x1x8xf32>
    %28 = vector.shape_cast %27 : vector<16x1x8xf32> to vector<16x8xf32>
    %29 = vector.extract_strided_slice %0 {offsets = [0, 14, 0], sizes = [16, 1, 8], strides = [1, 1, 1]} : vector<16x16x8xf32> to vector<16x1x8xf32>
    %30 = vector.shape_cast %29 : vector<16x1x8xf32> to vector<16x8xf32>
    %31 = vector.extract_strided_slice %0 {offsets = [0, 15, 0], sizes = [16, 1, 8], strides = [1, 1, 1]} : vector<16x16x8xf32> to vector<16x1x8xf32>
    %32 = vector.shape_cast %31 : vector<16x1x8xf32> to vector<16x8xf32>
    %cst = arith.constant 5.161290e-01 : f32
    %33 = vector.broadcast %cst : f32 to vector<16x8xf32>
    %34 = arith.mulf %2, %33 : vector<16x8xf32>
    %cst_2 = arith.constant 0.483870953 : f32
    %35 = vector.broadcast %cst_2 : f32 to vector<16x8xf32>
    %36 = arith.mulf %4, %35 : vector<16x8xf32>
    %37 = arith.addf %34, %36 : vector<16x8xf32>
    %cst_3 = arith.constant 0.0322580636 : f32
    %38 = vector.broadcast %cst_3 : f32 to vector<16x8xf32>
    %39 = arith.mulf %2, %38 : vector<16x8xf32>
    %cst_4 = arith.constant 0.967741906 : f32
    %40 = vector.broadcast %cst_4 : f32 to vector<16x8xf32>
    %41 = arith.mulf %4, %40 : vector<16x8xf32>
    %42 = arith.addf %39, %41 : vector<16x8xf32>
    %cst_5 = arith.constant 0.54838711 : f32
    %43 = vector.broadcast %cst_5 : f32 to vector<16x8xf32>
    %44 = arith.mulf %4, %43 : vector<16x8xf32>
    %cst_6 = arith.constant 0.45161289 : f32
    %45 = vector.broadcast %cst_6 : f32 to vector<16x8xf32>
    %46 = arith.mulf %6, %45 : vector<16x8xf32>
    %47 = arith.addf %44, %46 : vector<16x8xf32>
    %cst_7 = arith.constant 0.0645161271 : f32
    %48 = vector.broadcast %cst_7 : f32 to vector<16x8xf32>
    %49 = arith.mulf %4, %48 : vector<16x8xf32>
    %cst_8 = arith.constant 0.935483872 : f32
    %50 = vector.broadcast %cst_8 : f32 to vector<16x8xf32>
    %51 = arith.mulf %6, %50 : vector<16x8xf32>
    %52 = arith.addf %49, %51 : vector<16x8xf32>
    %cst_9 = arith.constant 0.580645144 : f32
    %53 = vector.broadcast %cst_9 : f32 to vector<16x8xf32>
    %54 = arith.mulf %6, %53 : vector<16x8xf32>
    %cst_10 = arith.constant 0.419354826 : f32
    %55 = vector.broadcast %cst_10 : f32 to vector<16x8xf32>
    %56 = arith.mulf %8, %55 : vector<16x8xf32>
    %57 = arith.addf %54, %56 : vector<16x8xf32>
    %cst_11 = arith.constant 0.0967741906 : f32
    %58 = vector.broadcast %cst_11 : f32 to vector<16x8xf32>
    %59 = arith.mulf %6, %58 : vector<16x8xf32>
    %cst_12 = arith.constant 0.903225779 : f32
    %60 = vector.broadcast %cst_12 : f32 to vector<16x8xf32>
    %61 = arith.mulf %8, %60 : vector<16x8xf32>
    %62 = arith.addf %59, %61 : vector<16x8xf32>
    %cst_13 = arith.constant 0.612903237 : f32
    %63 = vector.broadcast %cst_13 : f32 to vector<16x8xf32>
    %64 = arith.mulf %8, %63 : vector<16x8xf32>
    %cst_14 = arith.constant 0.387096763 : f32
    %65 = vector.broadcast %cst_14 : f32 to vector<16x8xf32>
    %66 = arith.mulf %10, %65 : vector<16x8xf32>
    %67 = arith.addf %64, %66 : vector<16x8xf32>
    %cst_15 = arith.constant 0.129032254 : f32
    %68 = vector.broadcast %cst_15 : f32 to vector<16x8xf32>
    %69 = arith.mulf %8, %68 : vector<16x8xf32>
    %cst_16 = arith.constant 0.870967745 : f32
    %70 = vector.broadcast %cst_16 : f32 to vector<16x8xf32>
    %71 = arith.mulf %10, %70 : vector<16x8xf32>
    %72 = arith.addf %69, %71 : vector<16x8xf32>
    %cst_17 = arith.constant 0.645161271 : f32
    %73 = vector.broadcast %cst_17 : f32 to vector<16x8xf32>
    %74 = arith.mulf %10, %73 : vector<16x8xf32>
    %cst_18 = arith.constant 0.354838699 : f32
    %75 = vector.broadcast %cst_18 : f32 to vector<16x8xf32>
    %76 = arith.mulf %12, %75 : vector<16x8xf32>
    %77 = arith.addf %74, %76 : vector<16x8xf32>
    %cst_19 = arith.constant 0.161290318 : f32
    %78 = vector.broadcast %cst_19 : f32 to vector<16x8xf32>
    %79 = arith.mulf %10, %78 : vector<16x8xf32>
    %cst_20 = arith.constant 0.838709652 : f32
    %80 = vector.broadcast %cst_20 : f32 to vector<16x8xf32>
    %81 = arith.mulf %12, %80 : vector<16x8xf32>
    %82 = arith.addf %79, %81 : vector<16x8xf32>
    %cst_21 = arith.constant 0.677419364 : f32
    %83 = vector.broadcast %cst_21 : f32 to vector<16x8xf32>
    %84 = arith.mulf %12, %83 : vector<16x8xf32>
    %cst_22 = arith.constant 0.322580636 : f32
    %85 = vector.broadcast %cst_22 : f32 to vector<16x8xf32>
    %86 = arith.mulf %14, %85 : vector<16x8xf32>
    %87 = arith.addf %84, %86 : vector<16x8xf32>
    %cst_23 = arith.constant 0.193548381 : f32
    %88 = vector.broadcast %cst_23 : f32 to vector<16x8xf32>
    %89 = arith.mulf %12, %88 : vector<16x8xf32>
    %cst_24 = arith.constant 0.806451618 : f32
    %90 = vector.broadcast %cst_24 : f32 to vector<16x8xf32>
    %91 = arith.mulf %14, %90 : vector<16x8xf32>
    %92 = arith.addf %89, %91 : vector<16x8xf32>
    %cst_25 = arith.constant 0.709677398 : f32
    %93 = vector.broadcast %cst_25 : f32 to vector<16x8xf32>
    %94 = arith.mulf %14, %93 : vector<16x8xf32>
    %cst_26 = arith.constant 0.290322572 : f32
    %95 = vector.broadcast %cst_26 : f32 to vector<16x8xf32>
    %96 = arith.mulf %16, %95 : vector<16x8xf32>
    %97 = arith.addf %94, %96 : vector<16x8xf32>
    %cst_27 = arith.constant 0.225806445 : f32
    %98 = vector.broadcast %cst_27 : f32 to vector<16x8xf32>
    %99 = arith.mulf %14, %98 : vector<16x8xf32>
    %cst_28 = arith.constant 0.774193525 : f32
    %100 = vector.broadcast %cst_28 : f32 to vector<16x8xf32>
    %101 = arith.mulf %16, %100 : vector<16x8xf32>
    %102 = arith.addf %99, %101 : vector<16x8xf32>
    %cst_29 = arith.constant 0.741935492 : f32
    %103 = vector.broadcast %cst_29 : f32 to vector<16x8xf32>
    %104 = arith.mulf %16, %103 : vector<16x8xf32>
    %cst_30 = arith.constant 0.258064508 : f32
    %105 = vector.broadcast %cst_30 : f32 to vector<16x8xf32>
    %106 = arith.mulf %18, %105 : vector<16x8xf32>
    %107 = arith.addf %104, %106 : vector<16x8xf32>
    %cst_31 = arith.constant 0.258064508 : f32
    %108 = vector.broadcast %cst_31 : f32 to vector<16x8xf32>
    %109 = arith.mulf %16, %108 : vector<16x8xf32>
    %cst_32 = arith.constant 0.741935492 : f32
    %110 = vector.broadcast %cst_32 : f32 to vector<16x8xf32>
    %111 = arith.mulf %18, %110 : vector<16x8xf32>
    %112 = arith.addf %109, %111 : vector<16x8xf32>
    %cst_33 = arith.constant 0.774193525 : f32
    %113 = vector.broadcast %cst_33 : f32 to vector<16x8xf32>
    %114 = arith.mulf %18, %113 : vector<16x8xf32>
    %cst_34 = arith.constant 0.225806445 : f32
    %115 = vector.broadcast %cst_34 : f32 to vector<16x8xf32>
    %116 = arith.mulf %20, %115 : vector<16x8xf32>
    %117 = arith.addf %114, %116 : vector<16x8xf32>
    %cst_35 = arith.constant 0.290322572 : f32
    %118 = vector.broadcast %cst_35 : f32 to vector<16x8xf32>
    %119 = arith.mulf %18, %118 : vector<16x8xf32>
    %cst_36 = arith.constant 0.709677398 : f32
    %120 = vector.broadcast %cst_36 : f32 to vector<16x8xf32>
    %121 = arith.mulf %20, %120 : vector<16x8xf32>
    %122 = arith.addf %119, %121 : vector<16x8xf32>
    %cst_37 = arith.constant 0.806451618 : f32
    %123 = vector.broadcast %cst_37 : f32 to vector<16x8xf32>
    %124 = arith.mulf %20, %123 : vector<16x8xf32>
    %cst_38 = arith.constant 0.193548381 : f32
    %125 = vector.broadcast %cst_38 : f32 to vector<16x8xf32>
    %126 = arith.mulf %22, %125 : vector<16x8xf32>
    %127 = arith.addf %124, %126 : vector<16x8xf32>
    %cst_39 = arith.constant 0.322580636 : f32
    %128 = vector.broadcast %cst_39 : f32 to vector<16x8xf32>
    %129 = arith.mulf %20, %128 : vector<16x8xf32>
    %cst_40 = arith.constant 0.677419364 : f32
    %130 = vector.broadcast %cst_40 : f32 to vector<16x8xf32>
    %131 = arith.mulf %22, %130 : vector<16x8xf32>
    %132 = arith.addf %129, %131 : vector<16x8xf32>
    %cst_41 = arith.constant 0.838709652 : f32
    %133 = vector.broadcast %cst_41 : f32 to vector<16x8xf32>
    %134 = arith.mulf %22, %133 : vector<16x8xf32>
    %cst_42 = arith.constant 0.161290318 : f32
    %135 = vector.broadcast %cst_42 : f32 to vector<16x8xf32>
    %136 = arith.mulf %24, %135 : vector<16x8xf32>
    %137 = arith.addf %134, %136 : vector<16x8xf32>
    %cst_43 = arith.constant 0.354838699 : f32
    %138 = vector.broadcast %cst_43 : f32 to vector<16x8xf32>
    %139 = arith.mulf %22, %138 : vector<16x8xf32>
    %cst_44 = arith.constant 0.645161271 : f32
    %140 = vector.broadcast %cst_44 : f32 to vector<16x8xf32>
    %141 = arith.mulf %24, %140 : vector<16x8xf32>
    %142 = arith.addf %139, %141 : vector<16x8xf32>
    %cst_45 = arith.constant 0.870967745 : f32
    %143 = vector.broadcast %cst_45 : f32 to vector<16x8xf32>
    %144 = arith.mulf %24, %143 : vector<16x8xf32>
    %cst_46 = arith.constant 0.129032254 : f32
    %145 = vector.broadcast %cst_46 : f32 to vector<16x8xf32>
    %146 = arith.mulf %26, %145 : vector<16x8xf32>
    %147 = arith.addf %144, %146 : vector<16x8xf32>
    %cst_47 = arith.constant 0.387096763 : f32
    %148 = vector.broadcast %cst_47 : f32 to vector<16x8xf32>
    %149 = arith.mulf %24, %148 : vector<16x8xf32>
    %cst_48 = arith.constant 0.612903237 : f32
    %150 = vector.broadcast %cst_48 : f32 to vector<16x8xf32>
    %151 = arith.mulf %26, %150 : vector<16x8xf32>
    %152 = arith.addf %149, %151 : vector<16x8xf32>
    %cst_49 = arith.constant 0.903225779 : f32
    %153 = vector.broadcast %cst_49 : f32 to vector<16x8xf32>
    %154 = arith.mulf %26, %153 : vector<16x8xf32>
    %cst_50 = arith.constant 0.0967741906 : f32
    %155 = vector.broadcast %cst_50 : f32 to vector<16x8xf32>
    %156 = arith.mulf %28, %155 : vector<16x8xf32>
    %157 = arith.addf %154, %156 : vector<16x8xf32>
    %cst_51 = arith.constant 0.419354826 : f32
    %158 = vector.broadcast %cst_51 : f32 to vector<16x8xf32>
    %159 = arith.mulf %26, %158 : vector<16x8xf32>
    %cst_52 = arith.constant 0.580645144 : f32
    %160 = vector.broadcast %cst_52 : f32 to vector<16x8xf32>
    %161 = arith.mulf %28, %160 : vector<16x8xf32>
    %162 = arith.addf %159, %161 : vector<16x8xf32>
    %cst_53 = arith.constant 0.935483872 : f32
    %163 = vector.broadcast %cst_53 : f32 to vector<16x8xf32>
    %164 = arith.mulf %28, %163 : vector<16x8xf32>
    %cst_54 = arith.constant 0.0645161271 : f32
    %165 = vector.broadcast %cst_54 : f32 to vector<16x8xf32>
    %166 = arith.mulf %30, %165 : vector<16x8xf32>
    %167 = arith.addf %164, %166 : vector<16x8xf32>
    %cst_55 = arith.constant 0.45161289 : f32
    %168 = vector.broadcast %cst_55 : f32 to vector<16x8xf32>
    %169 = arith.mulf %28, %168 : vector<16x8xf32>
    %cst_56 = arith.constant 0.54838711 : f32
    %170 = vector.broadcast %cst_56 : f32 to vector<16x8xf32>
    %171 = arith.mulf %30, %170 : vector<16x8xf32>
    %172 = arith.addf %169, %171 : vector<16x8xf32>
    %cst_57 = arith.constant 0.967741906 : f32
    %173 = vector.broadcast %cst_57 : f32 to vector<16x8xf32>
    %174 = arith.mulf %30, %173 : vector<16x8xf32>
    %cst_58 = arith.constant 0.0322580636 : f32
    %175 = vector.broadcast %cst_58 : f32 to vector<16x8xf32>
    %176 = arith.mulf %32, %175 : vector<16x8xf32>
    %177 = arith.addf %174, %176 : vector<16x8xf32>
    %cst_59 = arith.constant 0.483870953 : f32
    %178 = vector.broadcast %cst_59 : f32 to vector<16x8xf32>
    %179 = arith.mulf %30, %178 : vector<16x8xf32>
    %cst_60 = arith.constant 5.161290e-01 : f32
    %180 = vector.broadcast %cst_60 : f32 to vector<16x8xf32>
    %181 = arith.mulf %32, %180 : vector<16x8xf32>
    %182 = arith.addf %179, %181 : vector<16x8xf32>
    %183 = vector.shape_cast %2 : vector<16x8xf32> to vector<1x16x8xf32>
    %184 = vector.shape_cast %37 : vector<16x8xf32> to vector<1x16x8xf32>
    %185 = vector.shape_cast %42 : vector<16x8xf32> to vector<1x16x8xf32>
    %186 = vector.shape_cast %47 : vector<16x8xf32> to vector<1x16x8xf32>
    %187 = vector.shape_cast %52 : vector<16x8xf32> to vector<1x16x8xf32>
    %188 = vector.shape_cast %57 : vector<16x8xf32> to vector<1x16x8xf32>
    %189 = vector.shape_cast %62 : vector<16x8xf32> to vector<1x16x8xf32>
    %190 = vector.shape_cast %67 : vector<16x8xf32> to vector<1x16x8xf32>
    %191 = vector.shape_cast %72 : vector<16x8xf32> to vector<1x16x8xf32>
    %192 = vector.shape_cast %77 : vector<16x8xf32> to vector<1x16x8xf32>
    %193 = vector.shape_cast %82 : vector<16x8xf32> to vector<1x16x8xf32>
    %194 = vector.shape_cast %87 : vector<16x8xf32> to vector<1x16x8xf32>
    %195 = vector.shape_cast %92 : vector<16x8xf32> to vector<1x16x8xf32>
    %196 = vector.shape_cast %97 : vector<16x8xf32> to vector<1x16x8xf32>
    %197 = vector.shape_cast %102 : vector<16x8xf32> to vector<1x16x8xf32>
    %198 = vector.shape_cast %107 : vector<16x8xf32> to vector<1x16x8xf32>
    %199 = vector.shape_cast %112 : vector<16x8xf32> to vector<1x16x8xf32>
    %200 = vector.shape_cast %117 : vector<16x8xf32> to vector<1x16x8xf32>
    %201 = vector.shape_cast %122 : vector<16x8xf32> to vector<1x16x8xf32>
    %202 = vector.shape_cast %127 : vector<16x8xf32> to vector<1x16x8xf32>
    %203 = vector.shape_cast %132 : vector<16x8xf32> to vector<1x16x8xf32>
    %204 = vector.shape_cast %137 : vector<16x8xf32> to vector<1x16x8xf32>
    %205 = vector.shape_cast %142 : vector<16x8xf32> to vector<1x16x8xf32>
    %206 = vector.shape_cast %147 : vector<16x8xf32> to vector<1x16x8xf32>
    %207 = vector.shape_cast %152 : vector<16x8xf32> to vector<1x16x8xf32>
    %208 = vector.shape_cast %157 : vector<16x8xf32> to vector<1x16x8xf32>
    %209 = vector.shape_cast %162 : vector<16x8xf32> to vector<1x16x8xf32>
    %210 = vector.shape_cast %167 : vector<16x8xf32> to vector<1x16x8xf32>
    %211 = vector.shape_cast %172 : vector<16x8xf32> to vector<1x16x8xf32>
    %212 = vector.shape_cast %177 : vector<16x8xf32> to vector<1x16x8xf32>
    %213 = vector.shape_cast %182 : vector<16x8xf32> to vector<1x16x8xf32>
    %214 = vector.shape_cast %32 : vector<16x8xf32> to vector<1x16x8xf32>
    %215 = tpu.concatenate %183, %184, %185, %186, %187, %188, %189, %190, %191, %192, %193, %194, %195, %196, %197, %198 in 0 : vector<1x16x8xf32>, vector<1x16x8xf32>, vector<1x16x8xf32>, vector<1x16x8xf32>, vector<1x16x8xf32>, vector<1x16x8xf32>, vector<1x16x8xf32>, vector<1x16x8xf32>, vector<1x16x8xf32>, vector<1x16x8xf32>, vector<1x16x8xf32>, vector<1x16x8xf32>, vector<1x16x8xf32>, vector<1x16x8xf32>, vector<1x16x8xf32>, vector<1x16x8xf32> -> vector<16x16x8xf32>
    %216 = tpu.concatenate %199, %200, %201, %202, %203, %204, %205, %206, %207, %208, %209, %210, %211, %212, %213, %214 in 0 : vector<1x16x8xf32>, vector<1x16x8xf32>, vector<1x16x8xf32>, vector<1x16x8xf32>, vector<1x16x8xf32>, vector<1x16x8xf32>, vector<1x16x8xf32>, vector<1x16x8xf32>, vector<1x16x8xf32>, vector<1x16x8xf32>, vector<1x16x8xf32>, vector<1x16x8xf32>, vector<1x16x8xf32>, vector<1x16x8xf32>, vector<1x16x8xf32>, vector<1x16x8xf32> -> vector<16x16x8xf32>
    %217 = tpu.concatenate %215, %216 in 0 : vector<16x16x8xf32>, vector<16x16x8xf32> -> vector<32x16x8xf32>
    %218 = vector.extract_strided_slice %217 {offsets = [0, 0, 0], sizes = [32, 1, 8], strides = [1, 1, 1]} : vector<32x16x8xf32> to vector<32x1x8xf32>
    %219 = vector.shape_cast %218 : vector<32x1x8xf32> to vector<32x8xf32>
    %220 = vector.extract_strided_slice %217 {offsets = [0, 1, 0], sizes = [32, 1, 8], strides = [1, 1, 1]} : vector<32x16x8xf32> to vector<32x1x8xf32>
    %221 = vector.shape_cast %220 : vector<32x1x8xf32> to vector<32x8xf32>
    %222 = vector.extract_strided_slice %217 {offsets = [0, 2, 0], sizes = [32, 1, 8], strides = [1, 1, 1]} : vector<32x16x8xf32> to vector<32x1x8xf32>
    %223 = vector.shape_cast %222 : vector<32x1x8xf32> to vector<32x8xf32>
    %224 = vector.extract_strided_slice %217 {offsets = [0, 3, 0], sizes = [32, 1, 8], strides = [1, 1, 1]} : vector<32x16x8xf32> to vector<32x1x8xf32>
    %225 = vector.shape_cast %224 : vector<32x1x8xf32> to vector<32x8xf32>
    %226 = vector.extract_strided_slice %217 {offsets = [0, 4, 0], sizes = [32, 1, 8], strides = [1, 1, 1]} : vector<32x16x8xf32> to vector<32x1x8xf32>
    %227 = vector.shape_cast %226 : vector<32x1x8xf32> to vector<32x8xf32>
    %228 = vector.extract_strided_slice %217 {offsets = [0, 5, 0], sizes = [32, 1, 8], strides = [1, 1, 1]} : vector<32x16x8xf32> to vector<32x1x8xf32>
    %229 = vector.shape_cast %228 : vector<32x1x8xf32> to vector<32x8xf32>
    %230 = vector.extract_strided_slice %217 {offsets = [0, 6, 0], sizes = [32, 1, 8], strides = [1, 1, 1]} : vector<32x16x8xf32> to vector<32x1x8xf32>
    %231 = vector.shape_cast %230 : vector<32x1x8xf32> to vector<32x8xf32>
    %232 = vector.extract_strided_slice %217 {offsets = [0, 7, 0], sizes = [32, 1, 8], strides = [1, 1, 1]} : vector<32x16x8xf32> to vector<32x1x8xf32>
    %233 = vector.shape_cast %232 : vector<32x1x8xf32> to vector<32x8xf32>
    %234 = vector.extract_strided_slice %217 {offsets = [0, 8, 0], sizes = [32, 1, 8], strides = [1, 1, 1]} : vector<32x16x8xf32> to vector<32x1x8xf32>
    %235 = vector.shape_cast %234 : vector<32x1x8xf32> to vector<32x8xf32>
    %236 = vector.extract_strided_slice %217 {offsets = [0, 9, 0], sizes = [32, 1, 8], strides = [1, 1, 1]} : vector<32x16x8xf32> to vector<32x1x8xf32>
    %237 = vector.shape_cast %236 : vector<32x1x8xf32> to vector<32x8xf32>
    %238 = vector.extract_strided_slice %217 {offsets = [0, 10, 0], sizes = [32, 1, 8], strides = [1, 1, 1]} : vector<32x16x8xf32> to vector<32x1x8xf32>
    %239 = vector.shape_cast %238 : vector<32x1x8xf32> to vector<32x8xf32>
    %240 = vector.extract_strided_slice %217 {offsets = [0, 11, 0], sizes = [32, 1, 8], strides = [1, 1, 1]} : vector<32x16x8xf32> to vector<32x1x8xf32>
    %241 = vector.shape_cast %240 : vector<32x1x8xf32> to vector<32x8xf32>
    %242 = vector.extract_strided_slice %217 {offsets = [0, 12, 0], sizes = [32, 1, 8], strides = [1, 1, 1]} : vector<32x16x8xf32> to vector<32x1x8xf32>
    %243 = vector.shape_cast %242 : vector<32x1x8xf32> to vector<32x8xf32>
    %244 = vector.extract_strided_slice %217 {offsets = [0, 13, 0], sizes = [32, 1, 8], strides = [1, 1, 1]} : vector<32x16x8xf32> to vector<32x1x8xf32>
    %245 = vector.shape_cast %244 : vector<32x1x8xf32> to vector<32x8xf32>
    %246 = vector.extract_strided_slice %217 {offsets = [0, 14, 0], sizes = [32, 1, 8], strides = [1, 1, 1]} : vector<32x16x8xf32> to vector<32x1x8xf32>
    %247 = vector.shape_cast %246 : vector<32x1x8xf32> to vector<32x8xf32>
    %248 = vector.extract_strided_slice %217 {offsets = [0, 15, 0], sizes = [32, 1, 8], strides = [1, 1, 1]} : vector<32x16x8xf32> to vector<32x1x8xf32>
    %249 = vector.shape_cast %248 : vector<32x1x8xf32> to vector<32x8xf32>
    %c0_61 = arith.constant 0 : index
    %c0_62 = arith.constant 0 : index
    %c0_63 = arith.constant 0 : index
    %250 = vector.load %arg2[%c0_61, %c0_62, %c0_63] : memref<32x32x8xf32, #tpu.memory_space<vmem>>, vector<1x32x8xf32>
    %251 = vector.shape_cast %250 : vector<1x32x8xf32> to vector<32x8xf32>
    %252 = vector.shape_cast %219 : vector<32x8xf32> to vector<1x32x8xf32>
    tpu.vector_store %arg2[%c0_61, %c0_62, %c0_63], %252 {strides = array<i32>} : memref<32x32x8xf32, #tpu.memory_space<vmem>>, vector<1x32x8xf32>,
    %cst_64 = arith.constant 5.161290e-01 : f32
    %253 = vector.broadcast %cst_64 : f32 to vector<32x8xf32>
    %254 = arith.mulf %219, %253 : vector<32x8xf32>
    %cst_65 = arith.constant 0.483870953 : f32
    %255 = vector.broadcast %cst_65 : f32 to vector<32x8xf32>
    %256 = arith.mulf %221, %255 : vector<32x8xf32>
    %257 = arith.addf %254, %256 : vector<32x8xf32>
    %c1 = arith.constant 1 : index
    %c0_66 = arith.constant 0 : index
    %c0_67 = arith.constant 0 : index
    %258 = vector.load %arg2[%c1, %c0_66, %c0_67] : memref<32x32x8xf32, #tpu.memory_space<vmem>>, vector<1x32x8xf32>
    %259 = vector.shape_cast %258 : vector<1x32x8xf32> to vector<32x8xf32>
    %260 = vector.shape_cast %257 : vector<32x8xf32> to vector<1x32x8xf32>
    tpu.vector_store %arg2[%c1, %c0_66, %c0_67], %260 {strides = array<i32>} : memref<32x32x8xf32, #tpu.memory_space<vmem>>, vector<1x32x8xf32>,
    %cst_68 = arith.constant 0.0322580636 : f32
    %261 = vector.broadcast %cst_68 : f32 to vector<32x8xf32>
    %262 = arith.mulf %219, %261 : vector<32x8xf32>
    %cst_69 = arith.constant 0.967741906 : f32
    %263 = vector.broadcast %cst_69 : f32 to vector<32x8xf32>
    %264 = arith.mulf %221, %263 : vector<32x8xf32>
    %265 = arith.addf %262, %264 : vector<32x8xf32>
    %c2 = arith.constant 2 : index
    %c0_70 = arith.constant 0 : index
    %c0_71 = arith.constant 0 : index
    %266 = vector.load %arg2[%c2, %c0_70, %c0_71] : memref<32x32x8xf32, #tpu.memory_space<vmem>>, vector<1x32x8xf32>
    %267 = vector.shape_cast %266 : vector<1x32x8xf32> to vector<32x8xf32>
    %268 = vector.shape_cast %265 : vector<32x8xf32> to vector<1x32x8xf32>
    tpu.vector_store %arg2[%c2, %c0_70, %c0_71], %268 {strides = array<i32>} : memref<32x32x8xf32, #tpu.memory_space<vmem>>, vector<1x32x8xf32>,
    %cst_72 = arith.constant 0.54838711 : f32
    %269 = vector.broadcast %cst_72 : f32 to vector<32x8xf32>
    %270 = arith.mulf %221, %269 : vector<32x8xf32>
    %cst_73 = arith.constant 0.45161289 : f32
    %271 = vector.broadcast %cst_73 : f32 to vector<32x8xf32>
    %272 = arith.mulf %223, %271 : vector<32x8xf32>
    %273 = arith.addf %270, %272 : vector<32x8xf32>
    %c3 = arith.constant 3 : index
    %c0_74 = arith.constant 0 : index
    %c0_75 = arith.constant 0 : index
    %274 = vector.load %arg2[%c3, %c0_74, %c0_75] : memref<32x32x8xf32, #tpu.memory_space<vmem>>, vector<1x32x8xf32>
    %275 = vector.shape_cast %274 : vector<1x32x8xf32> to vector<32x8xf32>
    %276 = vector.shape_cast %273 : vector<32x8xf32> to vector<1x32x8xf32>
    tpu.vector_store %arg2[%c3, %c0_74, %c0_75], %276 {strides = array<i32>} : memref<32x32x8xf32, #tpu.memory_space<vmem>>, vector<1x32x8xf32>,
    %cst_76 = arith.constant 0.0645161271 : f32
    %277 = vector.broadcast %cst_76 : f32 to vector<32x8xf32>
    %278 = arith.mulf %221, %277 : vector<32x8xf32>
    %cst_77 = arith.constant 0.935483872 : f32
    %279 = vector.broadcast %cst_77 : f32 to vector<32x8xf32>
    %280 = arith.mulf %223, %279 : vector<32x8xf32>
    %281 = arith.addf %278, %280 : vector<32x8xf32>
    %c4 = arith.constant 4 : index
    %c0_78 = arith.constant 0 : index
    %c0_79 = arith.constant 0 : index
    %282 = vector.load %arg2[%c4, %c0_78, %c0_79] : memref<32x32x8xf32, #tpu.memory_space<vmem>>, vector<1x32x8xf32>
    %283 = vector.shape_cast %282 : vector<1x32x8xf32> to vector<32x8xf32>
    %284 = vector.shape_cast %281 : vector<32x8xf32> to vector<1x32x8xf32>
    tpu.vector_store %arg2[%c4, %c0_78, %c0_79], %284 {strides = array<i32>} : memref<32x32x8xf32, #tpu.memory_space<vmem>>, vector<1x32x8xf32>,
    %cst_80 = arith.constant 0.580645144 : f32
    %285 = vector.broadcast %cst_80 : f32 to vector<32x8xf32>
    %286 = arith.mulf %223, %285 : vector<32x8xf32>
    %cst_81 = arith.constant 0.419354826 : f32
    %287 = vector.broadcast %cst_81 : f32 to vector<32x8xf32>
    %288 = arith.mulf %225, %287 : vector<32x8xf32>
    %289 = arith.addf %286, %288 : vector<32x8xf32>
    %c5 = arith.constant 5 : index
    %c0_82 = arith.constant 0 : index
    %c0_83 = arith.constant 0 : index
    %290 = vector.load %arg2[%c5, %c0_82, %c0_83] : memref<32x32x8xf32, #tpu.memory_space<vmem>>, vector<1x32x8xf32>
    %291 = vector.shape_cast %290 : vector<1x32x8xf32> to vector<32x8xf32>
    %292 = vector.shape_cast %289 : vector<32x8xf32> to vector<1x32x8xf32>
    tpu.vector_store %arg2[%c5, %c0_82, %c0_83], %292 {strides = array<i32>} : memref<32x32x8xf32, #tpu.memory_space<vmem>>, vector<1x32x8xf32>,
    %cst_84 = arith.constant 0.0967741906 : f32
    %293 = vector.broadcast %cst_84 : f32 to vector<32x8xf32>
    %294 = arith.mulf %223, %293 : vector<32x8xf32>
    %cst_85 = arith.constant 0.903225779 : f32
    %295 = vector.broadcast %cst_85 : f32 to vector<32x8xf32>
    %296 = arith.mulf %225, %295 : vector<32x8xf32>
    %297 = arith.addf %294, %296 : vector<32x8xf32>
    %c6 = arith.constant 6 : index
    %c0_86 = arith.constant 0 : index
    %c0_87 = arith.constant 0 : index
    %298 = vector.load %arg2[%c6, %c0_86, %c0_87] : memref<32x32x8xf32, #tpu.memory_space<vmem>>, vector<1x32x8xf32>
    %299 = vector.shape_cast %298 : vector<1x32x8xf32> to vector<32x8xf32>
    %300 = vector.shape_cast %297 : vector<32x8xf32> to vector<1x32x8xf32>
    tpu.vector_store %arg2[%c6, %c0_86, %c0_87], %300 {strides = array<i32>} : memref<32x32x8xf32, #tpu.memory_space<vmem>>, vector<1x32x8xf32>,
    %cst_88 = arith.constant 0.612903237 : f32
    %301 = vector.broadcast %cst_88 : f32 to vector<32x8xf32>
    %302 = arith.mulf %225, %301 : vector<32x8xf32>
    %cst_89 = arith.constant 0.387096763 : f32
    %303 = vector.broadcast %cst_89 : f32 to vector<32x8xf32>
    %304 = arith.mulf %227, %303 : vector<32x8xf32>
    %305 = arith.addf %302, %304 : vector<32x8xf32>
    %c7 = arith.constant 7 : index
    %c0_90 = arith.constant 0 : index
    %c0_91 = arith.constant 0 : index
    %306 = vector.load %arg2[%c7, %c0_90, %c0_91] : memref<32x32x8xf32, #tpu.memory_space<vmem>>, vector<1x32x8xf32>
    %307 = vector.shape_cast %306 : vector<1x32x8xf32> to vector<32x8xf32>
    %308 = vector.shape_cast %305 : vector<32x8xf32> to vector<1x32x8xf32>
    tpu.vector_store %arg2[%c7, %c0_90, %c0_91], %308 {strides = array<i32>} : memref<32x32x8xf32, #tpu.memory_space<vmem>>, vector<1x32x8xf32>,
    %cst_92 = arith.constant 0.129032254 : f32
    %309 = vector.broadcast %cst_92 : f32 to vector<32x8xf32>
    %310 = arith.mulf %225, %309 : vector<32x8xf32>
    %cst_93 = arith.constant 0.870967745 : f32
    %311 = vector.broadcast %cst_93 : f32 to vector<32x8xf32>
    %312 = arith.mulf %227, %311 : vector<32x8xf32>
    %313 = arith.addf %310, %312 : vector<32x8xf32>
    %c8 = arith.constant 8 : index
    %c0_94 = arith.constant 0 : index
    %c0_95 = arith.constant 0 : index
    %314 = vector.load %arg2[%c8, %c0_94, %c0_95] : memref<32x32x8xf32, #tpu.memory_space<vmem>>, vector<1x32x8xf32>
    %315 = vector.shape_cast %314 : vector<1x32x8xf32> to vector<32x8xf32>
    %316 = vector.shape_cast %313 : vector<32x8xf32> to vector<1x32x8xf32>
    tpu.vector_store %arg2[%c8, %c0_94, %c0_95], %316 {strides = array<i32>} : memref<32x32x8xf32, #tpu.memory_space<vmem>>, vector<1x32x8xf32>,
    %cst_96 = arith.constant 0.645161271 : f32
    %317 = vector.broadcast %cst_96 : f32 to vector<32x8xf32>
    %318 = arith.mulf %227, %317 : vector<32x8xf32>
    %cst_97 = arith.constant 0.354838699 : f32
    %319 = vector.broadcast %cst_97 : f32 to vector<32x8xf32>
    %320 = arith.mulf %229, %319 : vector<32x8xf32>
    %321 = arith.addf %318, %320 : vector<32x8xf32>
    %c9 = arith.constant 9 : index
    %c0_98 = arith.constant 0 : index
    %c0_99 = arith.constant 0 : index
    %322 = vector.load %arg2[%c9, %c0_98, %c0_99] : memref<32x32x8xf32, #tpu.memory_space<vmem>>, vector<1x32x8xf32>
    %323 = vector.shape_cast %322 : vector<1x32x8xf32> to vector<32x8xf32>
    %324 = vector.shape_cast %321 : vector<32x8xf32> to vector<1x32x8xf32>
    tpu.vector_store %arg2[%c9, %c0_98, %c0_99], %324 {strides = array<i32>} : memref<32x32x8xf32, #tpu.memory_space<vmem>>, vector<1x32x8xf32>,
    %cst_100 = arith.constant 0.161290318 : f32
    %325 = vector.broadcast %cst_100 : f32 to vector<32x8xf32>
    %326 = arith.mulf %227, %325 : vector<32x8xf32>
    %cst_101 = arith.constant 0.838709652 : f32
    %327 = vector.broadcast %cst_101 : f32 to vector<32x8xf32>
    %328 = arith.mulf %229, %327 : vector<32x8xf32>
    %329 = arith.addf %326, %328 : vector<32x8xf32>
    %c10 = arith.constant 10 : index
    %c0_102 = arith.constant 0 : index
    %c0_103 = arith.constant 0 : index
    %330 = vector.load %arg2[%c10, %c0_102, %c0_103] : memref<32x32x8xf32, #tpu.memory_space<vmem>>, vector<1x32x8xf32>
    %331 = vector.shape_cast %330 : vector<1x32x8xf32> to vector<32x8xf32>
    %332 = vector.shape_cast %329 : vector<32x8xf32> to vector<1x32x8xf32>
    tpu.vector_store %arg2[%c10, %c0_102, %c0_103], %332 {strides = array<i32>} : memref<32x32x8xf32, #tpu.memory_space<vmem>>, vector<1x32x8xf32>,
    %cst_104 = arith.constant 0.677419364 : f32
    %333 = vector.broadcast %cst_104 : f32 to vector<32x8xf32>
    %334 = arith.mulf %229, %333 : vector<32x8xf32>
    %cst_105 = arith.constant 0.322580636 : f32
    %335 = vector.broadcast %cst_105 : f32 to vector<32x8xf32>
    %336 = arith.mulf %231, %335 : vector<32x8xf32>
    %337 = arith.addf %334, %336 : vector<32x8xf32>
    %c11 = arith.constant 11 : index
    %c0_106 = arith.constant 0 : index
    %c0_107 = arith.constant 0 : index
    %338 = vector.load %arg2[%c11, %c0_106, %c0_107] : memref<32x32x8xf32, #tpu.memory_space<vmem>>, vector<1x32x8xf32>
    %339 = vector.shape_cast %338 : vector<1x32x8xf32> to vector<32x8xf32>
    %340 = vector.shape_cast %337 : vector<32x8xf32> to vector<1x32x8xf32>
    tpu.vector_store %arg2[%c11, %c0_106, %c0_107], %340 {strides = array<i32>} : memref<32x32x8xf32, #tpu.memory_space<vmem>>, vector<1x32x8xf32>,
    %cst_108 = arith.constant 0.193548381 : f32
    %341 = vector.broadcast %cst_108 : f32 to vector<32x8xf32>
    %342 = arith.mulf %229, %341 : vector<32x8xf32>
    %cst_109 = arith.constant 0.806451618 : f32
    %343 = vector.broadcast %cst_109 : f32 to vector<32x8xf32>
    %344 = arith.mulf %231, %343 : vector<32x8xf32>
    %345 = arith.addf %342, %344 : vector<32x8xf32>
    %c12 = arith.constant 12 : index
    %c0_110 = arith.constant 0 : index
    %c0_111 = arith.constant 0 : index
    %346 = vector.load %arg2[%c12, %c0_110, %c0_111] : memref<32x32x8xf32, #tpu.memory_space<vmem>>, vector<1x32x8xf32>
    %347 = vector.shape_cast %346 : vector<1x32x8xf32> to vector<32x8xf32>
    %348 = vector.shape_cast %345 : vector<32x8xf32> to vector<1x32x8xf32>
    tpu.vector_store %arg2[%c12, %c0_110, %c0_111], %348 {strides = array<i32>} : memref<32x32x8xf32, #tpu.memory_space<vmem>>, vector<1x32x8xf32>,
    %cst_112 = arith.constant 0.709677398 : f32
    %349 = vector.broadcast %cst_112 : f32 to vector<32x8xf32>
    %350 = arith.mulf %231, %349 : vector<32x8xf32>
    %cst_113 = arith.constant 0.290322572 : f32
    %351 = vector.broadcast %cst_113 : f32 to vector<32x8xf32>
    %352 = arith.mulf %233, %351 : vector<32x8xf32>
    %353 = arith.addf %350, %352 : vector<32x8xf32>
    %c13 = arith.constant 13 : index
    %c0_114 = arith.constant 0 : index
    %c0_115 = arith.constant 0 : index
    %354 = vector.load %arg2[%c13, %c0_114, %c0_115] : memref<32x32x8xf32, #tpu.memory_space<vmem>>, vector<1x32x8xf32>
    %355 = vector.shape_cast %354 : vector<1x32x8xf32> to vector<32x8xf32>
    %356 = vector.shape_cast %353 : vector<32x8xf32> to vector<1x32x8xf32>
    tpu.vector_store %arg2[%c13, %c0_114, %c0_115], %356 {strides = array<i32>} : memref<32x32x8xf32, #tpu.memory_space<vmem>>, vector<1x32x8xf32>,
    %cst_116 = arith.constant 0.225806445 : f32
    %357 = vector.broadcast %cst_116 : f32 to vector<32x8xf32>
    %358 = arith.mulf %231, %357 : vector<32x8xf32>
    %cst_117 = arith.constant 0.774193525 : f32
    %359 = vector.broadcast %cst_117 : f32 to vector<32x8xf32>
    %360 = arith.mulf %233, %359 : vector<32x8xf32>
    %361 = arith.addf %358, %360 : vector<32x8xf32>
    %c14 = arith.constant 14 : index
    %c0_118 = arith.constant 0 : index
    %c0_119 = arith.constant 0 : index
    %362 = vector.load %arg2[%c14, %c0_118, %c0_119] : memref<32x32x8xf32, #tpu.memory_space<vmem>>, vector<1x32x8xf32>
    %363 = vector.shape_cast %362 : vector<1x32x8xf32> to vector<32x8xf32>
    %364 = vector.shape_cast %361 : vector<32x8xf32> to vector<1x32x8xf32>
    tpu.vector_store %arg2[%c14, %c0_118, %c0_119], %364 {strides = array<i32>} : memref<32x32x8xf32, #tpu.memory_space<vmem>>, vector<1x32x8xf32>,
    %cst_120 = arith.constant 0.741935492 : f32
    %365 = vector.broadcast %cst_120 : f32 to vector<32x8xf32>
    %366 = arith.mulf %233, %365 : vector<32x8xf32>
    %cst_121 = arith.constant 0.258064508 : f32
    %367 = vector.broadcast %cst_121 : f32 to vector<32x8xf32>
    %368 = arith.mulf %235, %367 : vector<32x8xf32>
    %369 = arith.addf %366, %368 : vector<32x8xf32>
    %c15 = arith.constant 15 : index
    %c0_122 = arith.constant 0 : index
    %c0_123 = arith.constant 0 : index
    %370 = vector.load %arg2[%c15, %c0_122, %c0_123] : memref<32x32x8xf32, #tpu.memory_space<vmem>>, vector<1x32x8xf32>
    %371 = vector.shape_cast %370 : vector<1x32x8xf32> to vector<32x8xf32>
    %372 = vector.shape_cast %369 : vector<32x8xf32> to vector<1x32x8xf32>
    tpu.vector_store %arg2[%c15, %c0_122, %c0_123], %372 {strides = array<i32>} : memref<32x32x8xf32, #tpu.memory_space<vmem>>, vector<1x32x8xf32>,
    %cst_124 = arith.constant 0.258064508 : f32
    %373 = vector.broadcast %cst_124 : f32 to vector<32x8xf32>
    %374 = arith.mulf %233, %373 : vector<32x8xf32>
    %cst_125 = arith.constant 0.741935492 : f32
    %375 = vector.broadcast %cst_125 : f32 to vector<32x8xf32>
    %376 = arith.mulf %235, %375 : vector<32x8xf32>
    %377 = arith.addf %374, %376 : vector<32x8xf32>
    %c16 = arith.constant 16 : index
    %c0_126 = arith.constant 0 : index
    %c0_127 = arith.constant 0 : index
    %378 = vector.load %arg2[%c16, %c0_126, %c0_127] : memref<32x32x8xf32, #tpu.memory_space<vmem>>, vector<1x32x8xf32>
    %379 = vector.shape_cast %378 : vector<1x32x8xf32> to vector<32x8xf32>
    %380 = vector.shape_cast %377 : vector<32x8xf32> to vector<1x32x8xf32>
    tpu.vector_store %arg2[%c16, %c0_126, %c0_127], %380 {strides = array<i32>} : memref<32x32x8xf32, #tpu.memory_space<vmem>>, vector<1x32x8xf32>,
    %cst_128 = arith.constant 0.774193525 : f32
    %381 = vector.broadcast %cst_128 : f32 to vector<32x8xf32>
    %382 = arith.mulf %235, %381 : vector<32x8xf32>
    %cst_129 = arith.constant 0.225806445 : f32
    %383 = vector.broadcast %cst_129 : f32 to vector<32x8xf32>
    %384 = arith.mulf %237, %383 : vector<32x8xf32>
    %385 = arith.addf %382, %384 : vector<32x8xf32>
    %c17 = arith.constant 17 : index
    %c0_130 = arith.constant 0 : index
    %c0_131 = arith.constant 0 : index
    %386 = vector.load %arg2[%c17, %c0_130, %c0_131] : memref<32x32x8xf32, #tpu.memory_space<vmem>>, vector<1x32x8xf32>
    %387 = vector.shape_cast %386 : vector<1x32x8xf32> to vector<32x8xf32>
    %388 = vector.shape_cast %385 : vector<32x8xf32> to vector<1x32x8xf32>
    tpu.vector_store %arg2[%c17, %c0_130, %c0_131], %388 {strides = array<i32>} : memref<32x32x8xf32, #tpu.memory_space<vmem>>, vector<1x32x8xf32>,
    %cst_132 = arith.constant 0.290322572 : f32
    %389 = vector.broadcast %cst_132 : f32 to vector<32x8xf32>
    %390 = arith.mulf %235, %389 : vector<32x8xf32>
    %cst_133 = arith.constant 0.709677398 : f32
    %391 = vector.broadcast %cst_133 : f32 to vector<32x8xf32>
    %392 = arith.mulf %237, %391 : vector<32x8xf32>
    %393 = arith.addf %390, %392 : vector<32x8xf32>
    %c18 = arith.constant 18 : index
    %c0_134 = arith.constant 0 : index
    %c0_135 = arith.constant 0 : index
    %394 = vector.load %arg2[%c18, %c0_134, %c0_135] : memref<32x32x8xf32, #tpu.memory_space<vmem>>, vector<1x32x8xf32>
    %395 = vector.shape_cast %394 : vector<1x32x8xf32> to vector<32x8xf32>
    %396 = vector.shape_cast %393 : vector<32x8xf32> to vector<1x32x8xf32>
    tpu.vector_store %arg2[%c18, %c0_134, %c0_135], %396 {strides = array<i32>} : memref<32x32x8xf32, #tpu.memory_space<vmem>>, vector<1x32x8xf32>,
    %cst_136 = arith.constant 0.806451618 : f32
    %397 = vector.broadcast %cst_136 : f32 to vector<32x8xf32>
    %398 = arith.mulf %237, %397 : vector<32x8xf32>
    %cst_137 = arith.constant 0.193548381 : f32
    %399 = vector.broadcast %cst_137 : f32 to vector<32x8xf32>
    %400 = arith.mulf %239, %399 : vector<32x8xf32>
    %401 = arith.addf %398, %400 : vector<32x8xf32>
    %c19 = arith.constant 19 : index
    %c0_138 = arith.constant 0 : index
    %c0_139 = arith.constant 0 : index
    %402 = vector.load %arg2[%c19, %c0_138, %c0_139] : memref<32x32x8xf32, #tpu.memory_space<vmem>>, vector<1x32x8xf32>
    %403 = vector.shape_cast %402 : vector<1x32x8xf32> to vector<32x8xf32>
    %404 = vector.shape_cast %401 : vector<32x8xf32> to vector<1x32x8xf32>
    tpu.vector_store %arg2[%c19, %c0_138, %c0_139], %404 {strides = array<i32>} : memref<32x32x8xf32, #tpu.memory_space<vmem>>, vector<1x32x8xf32>,
    %cst_140 = arith.constant 0.322580636 : f32
    %405 = vector.broadcast %cst_140 : f32 to vector<32x8xf32>
    %406 = arith.mulf %237, %405 : vector<32x8xf32>
    %cst_141 = arith.constant 0.677419364 : f32
    %407 = vector.broadcast %cst_141 : f32 to vector<32x8xf32>
    %408 = arith.mulf %239, %407 : vector<32x8xf32>
    %409 = arith.addf %406, %408 : vector<32x8xf32>
    %c20 = arith.constant 20 : index
    %c0_142 = arith.constant 0 : index
    %c0_143 = arith.constant 0 : index
    %410 = vector.load %arg2[%c20, %c0_142, %c0_143] : memref<32x32x8xf32, #tpu.memory_space<vmem>>, vector<1x32x8xf32>
    %411 = vector.shape_cast %410 : vector<1x32x8xf32> to vector<32x8xf32>
    %412 = vector.shape_cast %409 : vector<32x8xf32> to vector<1x32x8xf32>
    tpu.vector_store %arg2[%c20, %c0_142, %c0_143], %412 {strides = array<i32>} : memref<32x32x8xf32, #tpu.memory_space<vmem>>, vector<1x32x8xf32>,
    %cst_144 = arith.constant 0.838709652 : f32
    %413 = vector.broadcast %cst_144 : f32 to vector<32x8xf32>
    %414 = arith.mulf %239, %413 : vector<32x8xf32>
    %cst_145 = arith.constant 0.161290318 : f32
    %415 = vector.broadcast %cst_145 : f32 to vector<32x8xf32>
    %416 = arith.mulf %241, %415 : vector<32x8xf32>
    %417 = arith.addf %414, %416 : vector<32x8xf32>
    %c21 = arith.constant 21 : index
    %c0_146 = arith.constant 0 : index
    %c0_147 = arith.constant 0 : index
    %418 = vector.load %arg2[%c21, %c0_146, %c0_147] : memref<32x32x8xf32, #tpu.memory_space<vmem>>, vector<1x32x8xf32>
    %419 = vector.shape_cast %418 : vector<1x32x8xf32> to vector<32x8xf32>
    %420 = vector.shape_cast %417 : vector<32x8xf32> to vector<1x32x8xf32>
    tpu.vector_store %arg2[%c21, %c0_146, %c0_147], %420 {strides = array<i32>} : memref<32x32x8xf32, #tpu.memory_space<vmem>>, vector<1x32x8xf32>,
    %cst_148 = arith.constant 0.354838699 : f32
    %421 = vector.broadcast %cst_148 : f32 to vector<32x8xf32>
    %422 = arith.mulf %239, %421 : vector<32x8xf32>
    %cst_149 = arith.constant 0.645161271 : f32
    %423 = vector.broadcast %cst_149 : f32 to vector<32x8xf32>
    %424 = arith.mulf %241, %423 : vector<32x8xf32>
    %425 = arith.addf %422, %424 : vector<32x8xf32>
    %c22 = arith.constant 22 : index
    %c0_150 = arith.constant 0 : index
    %c0_151 = arith.constant 0 : index
    %426 = vector.load %arg2[%c22, %c0_150, %c0_151] : memref<32x32x8xf32, #tpu.memory_space<vmem>>, vector<1x32x8xf32>
    %427 = vector.shape_cast %426 : vector<1x32x8xf32> to vector<32x8xf32>
    %428 = vector.shape_cast %425 : vector<32x8xf32> to vector<1x32x8xf32>
    tpu.vector_store %arg2[%c22, %c0_150, %c0_151], %428 {strides = array<i32>} : memref<32x32x8xf32, #tpu.memory_space<vmem>>, vector<1x32x8xf32>,
    %cst_152 = arith.constant 0.870967745 : f32
    %429 = vector.broadcast %cst_152 : f32 to vector<32x8xf32>
    %430 = arith.mulf %241, %429 : vector<32x8xf32>
    %cst_153 = arith.constant 0.129032254 : f32
    %431 = vector.broadcast %cst_153 : f32 to vector<32x8xf32>
    %432 = arith.mulf %243, %431 : vector<32x8xf32>
    %433 = arith.addf %430, %432 : vector<32x8xf32>
    %c23 = arith.constant 23 : index
    %c0_154 = arith.constant 0 : index
    %c0_155 = arith.constant 0 : index
    %434 = vector.load %arg2[%c23, %c0_154, %c0_155] : memref<32x32x8xf32, #tpu.memory_space<vmem>>, vector<1x32x8xf32>
    %435 = vector.shape_cast %434 : vector<1x32x8xf32> to vector<32x8xf32>
    %436 = vector.shape_cast %433 : vector<32x8xf32> to vector<1x32x8xf32>
    tpu.vector_store %arg2[%c23, %c0_154, %c0_155], %436 {strides = array<i32>} : memref<32x32x8xf32, #tpu.memory_space<vmem>>, vector<1x32x8xf32>,
    %cst_156 = arith.constant 0.387096763 : f32
    %437 = vector.broadcast %cst_156 : f32 to vector<32x8xf32>
    %438 = arith.mulf %241, %437 : vector<32x8xf32>
    %cst_157 = arith.constant 0.612903237 : f32
    %439 = vector.broadcast %cst_157 : f32 to vector<32x8xf32>
    %440 = arith.mulf %243, %439 : vector<32x8xf32>
    %441 = arith.addf %438, %440 : vector<32x8xf32>
    %c24 = arith.constant 24 : index
    %c0_158 = arith.constant 0 : index
    %c0_159 = arith.constant 0 : index
    %442 = vector.load %arg2[%c24, %c0_158, %c0_159] : memref<32x32x8xf32, #tpu.memory_space<vmem>>, vector<1x32x8xf32>
    %443 = vector.shape_cast %442 : vector<1x32x8xf32> to vector<32x8xf32>
    %444 = vector.shape_cast %441 : vector<32x8xf32> to vector<1x32x8xf32>
    tpu.vector_store %arg2[%c24, %c0_158, %c0_159], %444 {strides = array<i32>} : memref<32x32x8xf32, #tpu.memory_space<vmem>>, vector<1x32x8xf32>,
    %cst_160 = arith.constant 0.903225779 : f32
    %445 = vector.broadcast %cst_160 : f32 to vector<32x8xf32>
    %446 = arith.mulf %243, %445 : vector<32x8xf32>
    %cst_161 = arith.constant 0.0967741906 : f32
    %447 = vector.broadcast %cst_161 : f32 to vector<32x8xf32>
    %448 = arith.mulf %245, %447 : vector<32x8xf32>
    %449 = arith.addf %446, %448 : vector<32x8xf32>
    %c25 = arith.constant 25 : index
    %c0_162 = arith.constant 0 : index
    %c0_163 = arith.constant 0 : index
    %450 = vector.load %arg2[%c25, %c0_162, %c0_163] : memref<32x32x8xf32, #tpu.memory_space<vmem>>, vector<1x32x8xf32>
    %451 = vector.shape_cast %450 : vector<1x32x8xf32> to vector<32x8xf32>
    %452 = vector.shape_cast %449 : vector<32x8xf32> to vector<1x32x8xf32>
    tpu.vector_store %arg2[%c25, %c0_162, %c0_163], %452 {strides = array<i32>} : memref<32x32x8xf32, #tpu.memory_space<vmem>>, vector<1x32x8xf32>,
    %cst_164 = arith.constant 0.419354826 : f32
    %453 = vector.broadcast %cst_164 : f32 to vector<32x8xf32>
    %454 = arith.mulf %243, %453 : vector<32x8xf32>
    %cst_165 = arith.constant 0.580645144 : f32
    %455 = vector.broadcast %cst_165 : f32 to vector<32x8xf32>
    %456 = arith.mulf %245, %455 : vector<32x8xf32>
    %457 = arith.addf %454, %456 : vector<32x8xf32>
    %c26 = arith.constant 26 : index
    %c0_166 = arith.constant 0 : index
    %c0_167 = arith.constant 0 : index
    %458 = vector.load %arg2[%c26, %c0_166, %c0_167] : memref<32x32x8xf32, #tpu.memory_space<vmem>>, vector<1x32x8xf32>
    %459 = vector.shape_cast %458 : vector<1x32x8xf32> to vector<32x8xf32>
    %460 = vector.shape_cast %457 : vector<32x8xf32> to vector<1x32x8xf32>
    tpu.vector_store %arg2[%c26, %c0_166, %c0_167], %460 {strides = array<i32>} : memref<32x32x8xf32, #tpu.memory_space<vmem>>, vector<1x32x8xf32>,
    %cst_168 = arith.constant 0.935483872 : f32
    %461 = vector.broadcast %cst_168 : f32 to vector<32x8xf32>
    %462 = arith.mulf %245, %461 : vector<32x8xf32>
    %cst_169 = arith.constant 0.0645161271 : f32
    %463 = vector.broadcast %cst_169 : f32 to vector<32x8xf32>
    %464 = arith.mulf %247, %463 : vector<32x8xf32>
    %465 = arith.addf %462, %464 : vector<32x8xf32>
    %c27 = arith.constant 27 : index
    %c0_170 = arith.constant 0 : index
    %c0_171 = arith.constant 0 : index
    %466 = vector.load %arg2[%c27, %c0_170, %c0_171] : memref<32x32x8xf32, #tpu.memory_space<vmem>>, vector<1x32x8xf32>
    %467 = vector.shape_cast %466 : vector<1x32x8xf32> to vector<32x8xf32>
    %468 = vector.shape_cast %465 : vector<32x8xf32> to vector<1x32x8xf32>
    tpu.vector_store %arg2[%c27, %c0_170, %c0_171], %468 {strides = array<i32>} : memref<32x32x8xf32, #tpu.memory_space<vmem>>, vector<1x32x8xf32>,
    %cst_172 = arith.constant 0.45161289 : f32
    %469 = vector.broadcast %cst_172 : f32 to vector<32x8xf32>
    %470 = arith.mulf %245, %469 : vector<32x8xf32>
    %cst_173 = arith.constant 0.54838711 : f32
    %471 = vector.broadcast %cst_173 : f32 to vector<32x8xf32>
    %472 = arith.mulf %247, %471 : vector<32x8xf32>
    %473 = arith.addf %470, %472 : vector<32x8xf32>
    %c28 = arith.constant 28 : index
    %c0_174 = arith.constant 0 : index
    %c0_175 = arith.constant 0 : index
    %474 = vector.load %arg2[%c28, %c0_174, %c0_175] : memref<32x32x8xf32, #tpu.memory_space<vmem>>, vector<1x32x8xf32>
    %475 = vector.shape_cast %474 : vector<1x32x8xf32> to vector<32x8xf32>
    %476 = vector.shape_cast %473 : vector<32x8xf32> to vector<1x32x8xf32>
    tpu.vector_store %arg2[%c28, %c0_174, %c0_175], %476 {strides = array<i32>} : memref<32x32x8xf32, #tpu.memory_space<vmem>>, vector<1x32x8xf32>,
    %cst_176 = arith.constant 0.967741906 : f32
    %477 = vector.broadcast %cst_176 : f32 to vector<32x8xf32>
    %478 = arith.mulf %247, %477 : vector<32x8xf32>
    %cst_177 = arith.constant 0.0322580636 : f32
    %479 = vector.broadcast %cst_177 : f32 to vector<32x8xf32>
    %480 = arith.mulf %249, %479 : vector<32x8xf32>
    %481 = arith.addf %478, %480 : vector<32x8xf32>
    %c29 = arith.constant 29 : index
    %c0_178 = arith.constant 0 : index
    %c0_179 = arith.constant 0 : index
    %482 = vector.load %arg2[%c29, %c0_178, %c0_179] : memref<32x32x8xf32, #tpu.memory_space<vmem>>, vector<1x32x8xf32>
    %483 = vector.shape_cast %482 : vector<1x32x8xf32> to vector<32x8xf32>
    %484 = vector.shape_cast %481 : vector<32x8xf32> to vector<1x32x8xf32>
    tpu.vector_store %arg2[%c29, %c0_178, %c0_179], %484 {strides = array<i32>} : memref<32x32x8xf32, #tpu.memory_space<vmem>>, vector<1x32x8xf32>,
    %cst_180 = arith.constant 0.483870953 : f32
    %485 = vector.broadcast %cst_180 : f32 to vector<32x8xf32>
    %486 = arith.mulf %247, %485 : vector<32x8xf32>
    %cst_181 = arith.constant 5.161290e-01 : f32
    %487 = vector.broadcast %cst_181 : f32 to vector<32x8xf32>
    %488 = arith.mulf %249, %487 : vector<32x8xf32>
    %489 = arith.addf %486, %488 : vector<32x8xf32>
    %c30 = arith.constant 30 : index
    %c0_182 = arith.constant 0 : index
    %c0_183 = arith.constant 0 : index
    %490 = vector.load %arg2[%c30, %c0_182, %c0_183] : memref<32x32x8xf32, #tpu.memory_space<vmem>>, vector<1x32x8xf32>
    %491 = vector.shape_cast %490 : vector<1x32x8xf32> to vector<32x8xf32>
    %492 = vector.shape_cast %489 : vector<32x8xf32> to vector<1x32x8xf32>
    tpu.vector_store %arg2[%c30, %c0_182, %c0_183], %492 {strides = array<i32>} : memref<32x32x8xf32, #tpu.memory_space<vmem>>, vector<1x32x8xf32>,
    %c31 = arith.constant 31 : index
    %c0_184 = arith.constant 0 : index
    %c0_185 = arith.constant 0 : index
    %493 = vector.load %arg2[%c31, %c0_184, %c0_185] : memref<32x32x8xf32, #tpu.memory_space<vmem>>, vector<1x32x8xf32>
    %494 = vector.shape_cast %493 : vector<1x32x8xf32> to vector<32x8xf32>
    %495 = vector.shape_cast %249 : vector<32x8xf32> to vector<1x32x8xf32>
    tpu.vector_store %arg2[%c31, %c0_184, %c0_185], %495 {strides = array<i32>} : memref<32x32x8xf32, #tpu.memory_space<vmem>>, vector<1x32x8xf32>,
    return
  }
  func.func @transform_0(%arg0: i32) -> (i32, i32, i32) {
    %c0_i32 = arith.constant 0 : i32
    %c0_i32_0 = arith.constant 0 : i32
    %c0_i32_1 = arith.constant 0 : i32
    return %c0_i32, %c0_i32_0, %arg0 : i32, i32, i32
  }
  func.func @transform_1(%arg0: i32) -> (i32, i32, i32) {
    %c0_i32 = arith.constant 0 : i32
    %c0_i32_0 = arith.constant 0 : i32
    %c0_i32_1 = arith.constant 0 : i32
    return %c0_i32, %c0_i32_0, %arg0 : i32, i32, i32
  }
}

</mosaic_0001>

<llo_original>
// kernel: up_bilinear_2x.1
$region0: #{up_bilinear_2x.1}
  #allocation0 [shape = 'u32[]', space=smem, size = 0x4, offset = 0x4, fixed_abs, tag = 'smem constant byte address 0x4 - core index']
  #allocation1 [shape = 'u32[144,128]{1,0:T(1,128)}', space=vmem, size = 0x12000, scoped, tag = 'internal scratch']
  %s0 = inlined_call_operand.vmem [shape: f32[16,16,8], index: 0, kind: input, shape index: {}]
  %s1 = inlined_call_operand.vmem [shape: f32[32,32,8], index: 1, kind: output, shape index: {}]
  %s2 = sld [smem:[#allocation0]]
  $region14: #{up_bilinear_2x.1} parent=0
    _
  %s4 = ssub.s32 1, %s2
  %s5 = scalar_select 0, %s4, %s2
  // Predicated region
  $region2: #{up_bilinear_2x.1} parent=0 // pred_check
    _
  $region3: #{up_bilinear_2x.1} parent=0 // pred_check_branch
    %7 = sbr.rel (0) target = $region5
  $region4: #{up_bilinear_2x.1} parent=0 // pred_region
    _
  $region5: #{up_bilinear_2x.1} parent=0 // pred_fallthru
    _
  %v8 = vld [vmem:[%s0] sm:$0xff]
  %v9 = vld [vmem:[%s0 + $0x8] sm:$0xff]
  %v10 = vld [vmem:[%s0 + $0x10] sm:$0xff]
  %v11 = vld [vmem:[%s0 + $0x18] sm:$0xff]
  %v12 = vld [vmem:[%s0 + $0x20] sm:$0xff]
  %v13 = vld [vmem:[%s0 + $0x28] sm:$0xff]
  %v14 = vld [vmem:[%s0 + $0x30] sm:$0xff]
  %v15 = vld [vmem:[%s0 + $0x38] sm:$0xff]
  %v16 = vld [vmem:[%s0 + $0x40] sm:$0xff]
  %v17 = vld [vmem:[%s0 + $0x48] sm:$0xff]
  %v18 = vld [vmem:[%s0 + $0x50] sm:$0xff]
  %v19 = vld [vmem:[%s0 + $0x58] sm:$0xff]
  %v20 = vld [vmem:[%s0 + $0x60] sm:$0xff]
  %v21 = vld [vmem:[%s0 + $0x68] sm:$0xff]
  %v22 = vld [vmem:[%s0 + $0x70] sm:$0xff]
  %v23 = vld [vmem:[%s0 + $0x78] sm:$0xff]
  %v24 = vld [vmem:[%s0 + $0x80] sm:$0xff]
  %v25 = vld [vmem:[%s0 + $0x88] sm:$0xff]
  %v26 = vld [vmem:[%s0 + $0x90] sm:$0xff]
  %v27 = vld [vmem:[%s0 + $0x98] sm:$0xff]
  %v28 = vld [vmem:[%s0 + $0xa0] sm:$0xff]
  %v29 = vld [vmem:[%s0 + $0xa8] sm:$0xff]
  %v30 = vld [vmem:[%s0 + $0xb0] sm:$0xff]
  %v31 = vld [vmem:[%s0 + $0xb8] sm:$0xff]
  %v32 = vld [vmem:[%s0 + $0xc0] sm:$0xff]
  %v33 = vld [vmem:[%s0 + $0xc8] sm:$0xff]
  %v34 = vld [vmem:[%s0 + $0xd0] sm:$0xff]
  %v35 = vld [vmem:[%s0 + $0xd8] sm:$0xff]
  %v36 = vld [vmem:[%s0 + $0xe0] sm:$0xff]
  %v37 = vld [vmem:[%s0 + $0xe8] sm:$0xff]
  %v38 = vld [vmem:[%s0 + $0xf0] sm:$0xff]
  %v39 = vld [vmem:[%s0 + $0xf8] sm:$0xff]
  %v40 = vmul.f32 %v8, 0.516129
  %v41 = vmul.f32 %v10, 0.516129
  %v42 = vmul.f32 %v12, 0.516129
  %v43 = vmul.f32 %v14, 0.516129
  %v44 = vmul.f32 %v16, 0.516129
  %v45 = vmul.f32 %v18, 0.516129
  %v46 = vmul.f32 %v20, 0.516129
  %v47 = vmul.f32 %v22, 0.516129
  %v48 = vmul.f32 %v24, 0.516129
  %v49 = vmul.f32 %v26, 0.516129
  %v50 = vmul.f32 %v28, 0.516129
  %v51 = vmul.f32 %v30, 0.516129
  %v52 = vmul.f32 %v32, 0.516129
  %v53 = vmul.f32 %v34, 0.516129
  %v54 = vmul.f32 %v36, 0.516129
  %v55 = vmul.f32 %v38, 0.516129
  %v56 = vmul.f32 %v8, 0.48387095
  %v57 = vmul.f32 %v10, 0.48387095
  %v58 = vmul.f32 %v12, 0.48387095
  %v59 = vmul.f32 %v14, 0.48387095
  %v60 = vmul.f32 %v16, 0.48387095
  %v61 = vmul.f32 %v18, 0.48387095
  %v62 = vmul.f32 %v20, 0.48387095
  %v63 = vmul.f32 %v22, 0.48387095
  %v64 = vmul.f32 %v24, 0.48387095
  %v65 = vmul.f32 %v26, 0.48387095
  %v66 = vmul.f32 %v28, 0.48387095
  %v67 = vmul.f32 %v30, 0.48387095
  %v68 = vmul.f32 %v32, 0.48387095
  %v69 = vmul.f32 %v34, 0.48387095
  %v70 = vmul.f32 %v36, 0.48387095
  %v71 = vmul.f32 %v38, 0.48387095
  %v88 = vrot.slane %v56, 1
  %v89 = vrot.slane %v57, 1
  %v90 = vrot.slane %v58, 1
  %v91 = vrot.slane %v59, 1
  %v92 = vrot.slane %v60, 1
  %v93 = vrot.slane %v61, 1
  %v94 = vrot.slane %v62, 1
  %v95 = vrot.slane %v63, 1
  %v96 = vrot.slane %v64, 1
  %v97 = vrot.slane %v65, 1
  %v98 = vrot.slane %v66, 1
  %v99 = vrot.slane %v67, 1
  %v100 = vrot.slane %v68, 1
  %v101 = vrot.slane %v69, 1
  %v102 = vrot.slane %v70, 1
  %v103 = vrot.slane %v71, 1
  %v120 = vadd.f32 %v40, %v88
  %v121 = vadd.f32 %v41, %v89
  %v122 = vadd.f32 %v42, %v90
  %v123 = vadd.f32 %v43, %v91
  %v124 = vadd.f32 %v44, %v92
  %v125 = vadd.f32 %v45, %v93
  %v126 = vadd.f32 %v46, %v94
  %v127 = vadd.f32 %v47, %v95
  %v128 = vadd.f32 %v48, %v96
  %v129 = vadd.f32 %v49, %v97
  %v130 = vadd.f32 %v50, %v98
  %v131 = vadd.f32 %v51, %v99
  %v132 = vadd.f32 %v52, %v100
  %v133 = vadd.f32 %v53, %v101
  %v134 = vadd.f32 %v54, %v102
  %v135 = vadd.f32 %v55, %v103
  %v136 = vmul.f32 %v8, 0.032258064
  %v137 = vmul.f32 %v10, 0.032258064
  %v138 = vmul.f32 %v12, 0.032258064
  %v139 = vmul.f32 %v14, 0.032258064
  %v140 = vmul.f32 %v16, 0.032258064
  %v141 = vmul.f32 %v18, 0.032258064
  %v142 = vmul.f32 %v20, 0.032258064
  %v143 = vmul.f32 %v22, 0.032258064
  %v144 = vmul.f32 %v24, 0.032258064
  %v145 = vmul.f32 %v26, 0.032258064
  %v146 = vmul.f32 %v28, 0.032258064
  %v147 = vmul.f32 %v30, 0.032258064
  %v148 = vmul.f32 %v32, 0.032258064
  %v149 = vmul.f32 %v34, 0.032258064
  %v150 = vmul.f32 %v36, 0.032258064
  %v151 = vmul.f32 %v38, 0.032258064
  %v152 = vmul.f32 %v8, 0.9677419
  %v153 = vmul.f32 %v10, 0.9677419
  %v154 = vmul.f32 %v12, 0.9677419
  %v155 = vmul.f32 %v14, 0.9677419
  %v156 = vmul.f32 %v16, 0.9677419
  %v157 = vmul.f32 %v18, 0.9677419
  %v158 = vmul.f32 %v20, 0.9677419
  %v159 = vmul.f32 %v22, 0.9677419
  %v160 = vmul.f32 %v24, 0.9677419
  %v161 = vmul.f32 %v26, 0.9677419
  %v162 = vmul.f32 %v28, 0.9677419
  %v163 = vmul.f32 %v30, 0.9677419
  %v164 = vmul.f32 %v32, 0.9677419
  %v165 = vmul.f32 %v34, 0.9677419
  %v166 = vmul.f32 %v36, 0.9677419
  %v167 = vmul.f32 %v38, 0.9677419
  %v184 = vrot.slane %v152, 1
  %v185 = vrot.slane %v153, 1
  %v186 = vrot.slane %v154, 1
  %v187 = vrot.slane %v155, 1
  %v188 = vrot.slane %v156, 1
  %v189 = vrot.slane %v157, 1
  %v190 = vrot.slane %v158, 1
  %v191 = vrot.slane %v159, 1
  %v192 = vrot.slane %v160, 1
  %v193 = vrot.slane %v161, 1
  %v194 = vrot.slane %v162, 1
  %v195 = vrot.slane %v163, 1
  %v196 = vrot.slane %v164, 1
  %v197 = vrot.slane %v165, 1
  %v198 = vrot.slane %v166, 1
  %v199 = vrot.slane %v167, 1
  %v216 = vadd.f32 %v136, %v184
  %v217 = vadd.f32 %v137, %v185
  %v218 = vadd.f32 %v138, %v186
  %v219 = vadd.f32 %v139, %v187
  %v220 = vadd.f32 %v140, %v188
  %v221 = vadd.f32 %v141, %v189
  %v222 = vadd.f32 %v142, %v190
  %v223 = vadd.f32 %v143, %v191
  %v224 = vadd.f32 %v144, %v192
  %v225 = vadd.f32 %v145, %v193
  %v226 = vadd.f32 %v146, %v194
  %v227 = vadd.f32 %v147, %v195
  %v228 = vadd.f32 %v148, %v196
  %v229 = vadd.f32 %v149, %v197
  %v230 = vadd.f32 %v150, %v198
  %v231 = vadd.f32 %v151, %v199
  %v232 = vmul.f32 %v8, 0.5483871
  %v233 = vmul.f32 %v10, 0.5483871
  %v234 = vmul.f32 %v12, 0.5483871
  %v235 = vmul.f32 %v14, 0.5483871
  %v236 = vmul.f32 %v16, 0.5483871
  %v237 = vmul.f32 %v18, 0.5483871
  %v238 = vmul.f32 %v20, 0.5483871
  %v239 = vmul.f32 %v22, 0.5483871
  %v240 = vmul.f32 %v24, 0.5483871
  %v241 = vmul.f32 %v26, 0.5483871
  %v242 = vmul.f32 %v28, 0.5483871
  %v243 = vmul.f32 %v30, 0.5483871
  %v244 = vmul.f32 %v32, 0.5483871
  %v245 = vmul.f32 %v34, 0.5483871
  %v246 = vmul.f32 %v36, 0.5483871
  %v247 = vmul.f32 %v38, 0.5483871
  %v248 = vmul.f32 %v8, 0.4516129
  %v249 = vmul.f32 %v10, 0.4516129
  %v250 = vmul.f32 %v12, 0.4516129
  %v251 = vmul.f32 %v14, 0.4516129
  %v252 = vmul.f32 %v16, 0.4516129
  %v253 = vmul.f32 %v18, 0.4516129
  %v254 = vmul.f32 %v20, 0.4516129
  %v255 = vmul.f32 %v22, 0.4516129
  %v256 = vmul.f32 %v24, 0.4516129
  %v257 = vmul.f32 %v26, 0.4516129
  %v258 = vmul.f32 %v28, 0.4516129
  %v259 = vmul.f32 %v30, 0.4516129
  %v260 = vmul.f32 %v32, 0.4516129
  %v261 = vmul.f32 %v34, 0.4516129
  %v262 = vmul.f32 %v36, 0.4516129
  %v263 = vmul.f32 %v38, 0.4516129
  %v280 = vrot.slane %v248, 1
  %v281 = vrot.slane %v249, 1
  %v282 = vrot.slane %v250, 1
  %v283 = vrot.slane %v251, 1
  %v284 = vrot.slane %v252, 1
  %v285 = vrot.slane %v253, 1
  %v286 = vrot.slane %v254, 1
  %v287 = vrot.slane %v255, 1
  %v288 = vrot.slane %v256, 1
  %v289 = vrot.slane %v257, 1
  %v290 = vrot.slane %v258, 1
  %v291 = vrot.slane %v259, 1
  %v292 = vrot.slane %v260, 1
  %v293 = vrot.slane %v261, 1
  %v294 = vrot.slane %v262, 1
  %v295 = vrot.slane %v263, 1
  %v312 = vadd.f32 %v232, %v280
  %v313 = vadd.f32 %v233, %v281
  %v314 = vadd.f32 %v234, %v282
  %v315 = vadd.f32 %v235, %v283
  %v316 = vadd.f32 %v236, %v284
  %v317 = vadd.f32 %v237, %v285
  %v318 = vadd.f32 %v238, %v286
  %v319 = vadd.f32 %v239, %v287
  %v320 = vadd.f32 %v240, %v288
  %v321 = vadd.f32 %v241, %v289
  %v322 = vadd.f32 %v242, %v290
  %v323 = vadd.f32 %v243, %v291
  %v324 = vadd.f32 %v244, %v292
  %v325 = vadd.f32 %v245, %v293
  %v326 = vadd.f32 %v246, %v294
  %v327 = vadd.f32 %v247, %v295
  %v328 = vmul.f32 %v8, 0.06451613
  %v329 = vmul.f32 %v10, 0.06451613
  %v330 = vmul.f32 %v12, 0.06451613
  %v331 = vmul.f32 %v14, 0.06451613
  %v332 = vmul.f32 %v16, 0.06451613
  %v333 = vmul.f32 %v18, 0.06451613
  %v334 = vmul.f32 %v20, 0.06451613
  %v335 = vmul.f32 %v22, 0.06451613
  %v336 = vmul.f32 %v24, 0.06451613
  %v337 = vmul.f32 %v26, 0.06451613
  %v338 = vmul.f32 %v28, 0.06451613
  %v339 = vmul.f32 %v30, 0.06451613
  %v340 = vmul.f32 %v32, 0.06451613
  %v341 = vmul.f32 %v34, 0.06451613
  %v342 = vmul.f32 %v36, 0.06451613
  %v343 = vmul.f32 %v38, 0.06451613
  %v344 = vmul.f32 %v8, 0.9354839
  %v345 = vmul.f32 %v10, 0.9354839
  %v346 = vmul.f32 %v12, 0.9354839
  %v347 = vmul.f32 %v14, 0.9354839
  %v348 = vmul.f32 %v16, 0.9354839
  %v349 = vmul.f32 %v18, 0.9354839
  %v350 = vmul.f32 %v20, 0.9354839
  %v351 = vmul.f32 %v22, 0.9354839
  %v352 = vmul.f32 %v24, 0.9354839
  %v353 = vmul.f32 %v26, 0.9354839
  %v354 = vmul.f32 %v28, 0.9354839
  %v355 = vmul.f32 %v30, 0.9354839
  %v356 = vmul.f32 %v32, 0.9354839
  %v357 = vmul.f32 %v34, 0.9354839
  %v358 = vmul.f32 %v36, 0.9354839
  %v359 = vmul.f32 %v38, 0.9354839
  %v376 = vrot.slane %v344, 1
  %v377 = vrot.slane %v345, 1
  %v378 = vrot.slane %v346, 1
  %v379 = vrot.slane %v347, 1
  %v380 = vrot.slane %v348, 1
  %v381 = vrot.slane %v349, 1
  %v382 = vrot.slane %v350, 1
  %v383 = vrot.slane %v351, 1
  %v384 = vrot.slane %v352, 1
  %v385 = vrot.slane %v353, 1
  %v386 = vrot.slane %v354, 1
  %v387 = vrot.slane %v355, 1
  %v388 = vrot.slane %v356, 1
  %v389 = vrot.slane %v357, 1
  %v390 = vrot.slane %v358, 1
  %v391 = vrot.slane %v359, 1
  %v408 = vadd.f32 %v328, %v376
  %v409 = vadd.f32 %v329, %v377
  %v410 = vadd.f32 %v330, %v378
  %v411 = vadd.f32 %v331, %v379
  %v412 = vadd.f32 %v332, %v380
  %v413 = vadd.f32 %v333, %v381
  %v414 = vadd.f32 %v334, %v382
  %v415 = vadd.f32 %v335, %v383
  %v416 = vadd.f32 %v336, %v384
  %v417 = vadd.f32 %v337, %v385
  %v418 = vadd.f32 %v338, %v386
  %v419 = vadd.f32 %v339, %v387
  %v420 = vadd.f32 %v340, %v388
  %v421 = vadd.f32 %v341, %v389
  %v422 = vadd.f32 %v342, %v390
  %v423 = vadd.f32 %v343, %v391
  %v424 = vmul.f32 %v8, 0.58064514
  %v425 = vmul.f32 %v10, 0.58064514
  %v426 = vmul.f32 %v12, 0.58064514
  %v427 = vmul.f32 %v14, 0.58064514
  %v428 = vmul.f32 %v16, 0.58064514
  %v429 = vmul.f32 %v18, 0.58064514
  %v430 = vmul.f32 %v20, 0.58064514
  %v431 = vmul.f32 %v22, 0.58064514
  %v432 = vmul.f32 %v24, 0.58064514
  %v433 = vmul.f32 %v26, 0.58064514
  %v434 = vmul.f32 %v28, 0.58064514
  %v435 = vmul.f32 %v30, 0.58064514
  %v436 = vmul.f32 %v32, 0.58064514
  %v437 = vmul.f32 %v34, 0.58064514
  %v438 = vmul.f32 %v36, 0.58064514
  %v439 = vmul.f32 %v38, 0.58064514
  %v440 = vmul.f32 %v8, 0.41935483
  %v441 = vmul.f32 %v10, 0.41935483
  %v442 = vmul.f32 %v12, 0.41935483
  %v443 = vmul.f32 %v14, 0.41935483
  %v444 = vmul.f32 %v16, 0.41935483
  %v445 = vmul.f32 %v18, 0.41935483
  %v446 = vmul.f32 %v20, 0.41935483
  %v447 = vmul.f32 %v22, 0.41935483
  %v448 = vmul.f32 %v24, 0.41935483
  %v449 = vmul.f32 %v26, 0.41935483
  %v450 = vmul.f32 %v28, 0.41935483
  %v451 = vmul.f32 %v30, 0.41935483
  %v452 = vmul.f32 %v32, 0.41935483
  %v453 = vmul.f32 %v34, 0.41935483
  %v454 = vmul.f32 %v36, 0.41935483
  %v455 = vmul.f32 %v38, 0.41935483
  %v472 = vrot.slane %v440, 1
  %v473 = vrot.slane %v441, 1
  %v474 = vrot.slane %v442, 1
  %v475 = vrot.slane %v443, 1
  %v476 = vrot.slane %v444, 1
  %v477 = vrot.slane %v445, 1
  %v478 = vrot.slane %v446, 1
  %v479 = vrot.slane %v447, 1
  %v480 = vrot.slane %v448, 1
  %v481 = vrot.slane %v449, 1
  %v482 = vrot.slane %v450, 1
  %v483 = vrot.slane %v451, 1
  %v484 = vrot.slane %v452, 1
  %v485 = vrot.slane %v453, 1
  %v486 = vrot.slane %v454, 1
  %v487 = vrot.slane %v455, 1
  %v504 = vadd.f32 %v424, %v472
  %v505 = vadd.f32 %v425, %v473
  %v506 = vadd.f32 %v426, %v474
  %v507 = vadd.f32 %v427, %v475
  %v508 = vadd.f32 %v428, %v476
  %v509 = vadd.f32 %v429, %v477
  %v510 = vadd.f32 %v430, %v478
  %v511 = vadd.f32 %v431, %v479
  %v512 = vadd.f32 %v432, %v480
  %v513 = vadd.f32 %v433, %v481
  %v514 = vadd.f32 %v434, %v482
  %v515 = vadd.f32 %v435, %v483
  %v516 = vadd.f32 %v436, %v484
  %v517 = vadd.f32 %v437, %v485
  %v518 = vadd.f32 %v438, %v486
  %v519 = vadd.f32 %v439, %v487
  %v520 = vmul.f32 %v8, 0.09677419
  %v521 = vmul.f32 %v10, 0.09677419
  %v522 = vmul.f32 %v12, 0.09677419
  %v523 = vmul.f32 %v14, 0.09677419
  %v524 = vmul.f32 %v16, 0.09677419
  %v525 = vmul.f32 %v18, 0.09677419
  %v526 = vmul.f32 %v20, 0.09677419
  %v527 = vmul.f32 %v22, 0.09677419
  %v528 = vmul.f32 %v24, 0.09677419
  %v529 = vmul.f32 %v26, 0.09677419
  %v530 = vmul.f32 %v28, 0.09677419
  %v531 = vmul.f32 %v30, 0.09677419
  %v532 = vmul.f32 %v32, 0.09677419
  %v533 = vmul.f32 %v34, 0.09677419
  %v534 = vmul.f32 %v36, 0.09677419
  %v535 = vmul.f32 %v38, 0.09677419
  %v536 = vmul.f32 %v8, 0.9032258
  %v537 = vmul.f32 %v10, 0.9032258
  %v538 = vmul.f32 %v12, 0.9032258
  %v539 = vmul.f32 %v14, 0.9032258
  %v540 = vmul.f32 %v16, 0.9032258
  %v541 = vmul.f32 %v18, 0.9032258
  %v542 = vmul.f32 %v20, 0.9032258
  %v543 = vmul.f32 %v22, 0.9032258
  %v544 = vmul.f32 %v24, 0.9032258
  %v545 = vmul.f32 %v26, 0.9032258
  %v546 = vmul.f32 %v28, 0.9032258
  %v547 = vmul.f32 %v30, 0.9032258
  %v548 = vmul.f32 %v32, 0.9032258
  %v549 = vmul.f32 %v34, 0.9032258
  %v550 = vmul.f32 %v36, 0.9032258
  %v551 = vmul.f32 %v38, 0.9032258
  %v568 = vrot.slane %v536, 1
  %v569 = vrot.slane %v537, 1
  %v570 = vrot.slane %v538, 1
  %v571 = vrot.slane %v539, 1
  %v572 = vrot.slane %v540, 1
  %v573 = vrot.slane %v541, 1
  %v574 = vrot.slane %v542, 1
  %v575 = vrot.slane %v543, 1
  %v576 = vrot.slane %v544, 1
  %v577 = vrot.slane %v545, 1
  %v578 = vrot.slane %v546, 1
  %v579 = vrot.slane %v547, 1
  %v580 = vrot.slane %v548, 1
  %v581 = vrot.slane %v549, 1
  %v582 = vrot.slane %v550, 1
  %v583 = vrot.slane %v551, 1
  %v600 = vadd.f32 %v520, %v568
  %v601 = vadd.f32 %v521, %v569
  %v602 = vadd.f32 %v522, %v570
  %v603 = vadd.f32 %v523, %v571
  %v604 = vadd.f32 %v524, %v572
  %v605 = vadd.f32 %v525, %v573
  %v606 = vadd.f32 %v526, %v574
  %v607 = vadd.f32 %v527, %v575
  %v608 = vadd.f32 %v528, %v576
  %v609 = vadd.f32 %v529, %v577
  %v610 = vadd.f32 %v530, %v578
  %v611 = vadd.f32 %v531, %v579
  %v612 = vadd.f32 %v532, %v580
  %v613 = vadd.f32 %v533, %v581
  %v614 = vadd.f32 %v534, %v582
  %v615 = vadd.f32 %v535, %v583
  %v616 = vmul.f32 %v8, 0.61290324
  %v617 = vmul.f32 %v10, 0.61290324
  %v618 = vmul.f32 %v12, 0.61290324
  %v619 = vmul.f32 %v14, 0.61290324
  %v620 = vmul.f32 %v16, 0.61290324
  %v621 = vmul.f32 %v18, 0.61290324
  %v622 = vmul.f32 %v20, 0.61290324
  %v623 = vmul.f32 %v22, 0.61290324
  %v624 = vmul.f32 %v24, 0.61290324
  %v625 = vmul.f32 %v26, 0.61290324
  %v626 = vmul.f32 %v28, 0.61290324
  %v627 = vmul.f32 %v30, 0.61290324
  %v628 = vmul.f32 %v32, 0.61290324
  %v629 = vmul.f32 %v34, 0.61290324
  %v630 = vmul.f32 %v36, 0.61290324
  %v631 = vmul.f32 %v38, 0.61290324
  %v632 = vmul.f32 %v8, 0.38709676
  %v633 = vmul.f32 %v10, 0.38709676
  %v634 = vmul.f32 %v12, 0.38709676
  %v635 = vmul.f32 %v14, 0.38709676
  %v636 = vmul.f32 %v16, 0.38709676
  %v637 = vmul.f32 %v18, 0.38709676
  %v638 = vmul.f32 %v20, 0.38709676
  %v639 = vmul.f32 %v22, 0.38709676
  %v640 = vmul.f32 %v24, 0.38709676
  %v641 = vmul.f32 %v26, 0.38709676
  %v642 = vmul.f32 %v28, 0.38709676
  %v643 = vmul.f32 %v30, 0.38709676
  %v644 = vmul.f32 %v32, 0.38709676
  %v645 = vmul.f32 %v34, 0.38709676
  %v646 = vmul.f32 %v36, 0.38709676
  %v647 = vmul.f32 %v38, 0.38709676
  %v664 = vrot.slane %v632, 1
  %v665 = vrot.slane %v633, 1
  %v666 = vrot.slane %v634, 1
  %v667 = vrot.slane %v635, 1
  %v668 = vrot.slane %v636, 1
  %v669 = vrot.slane %v637, 1
  %v670 = vrot.slane %v638, 1
  %v671 = vrot.slane %v639, 1
  %v672 = vrot.slane %v640, 1
  %v673 = vrot.slane %v641, 1
  %v674 = vrot.slane %v642, 1
  %v675 = vrot.slane %v643, 1
  %v676 = vrot.slane %v644, 1
  %v677 = vrot.slane %v645, 1
  %v678 = vrot.slane %v646, 1
  %v679 = vrot.slane %v647, 1
  %v696 = vadd.f32 %v616, %v664
  %v697 = vadd.f32 %v617, %v665
  %v698 = vadd.f32 %v618, %v666
  %v699 = vadd.f32 %v619, %v667
  %v700 = vadd.f32 %v620, %v668
  %v701 = vadd.f32 %v621, %v669
  %v702 = vadd.f32 %v622, %v670
  %v703 = vadd.f32 %v623, %v671
  %v704 = vadd.f32 %v624, %v672
  %v705 = vadd.f32 %v625, %v673
  %v706 = vadd.f32 %v626, %v674
  %v707 = vadd.f32 %v627, %v675
  %v708 = vadd.f32 %v628, %v676
  %v709 = vadd.f32 %v629, %v677
  %v710 = vadd.f32 %v630, %v678
  %v711 = vadd.f32 %v631, %v679
  %v712 = vmul.f32 %v8, 0.12903225
  %v713 = vmul.f32 %v10, 0.12903225
  %v714 = vmul.f32 %v12, 0.12903225
  %v715 = vmul.f32 %v14, 0.12903225
  %v716 = vmul.f32 %v16, 0.12903225
  %v717 = vmul.f32 %v18, 0.12903225
  %v718 = vmul.f32 %v20, 0.12903225
  %v719 = vmul.f32 %v22, 0.12903225
  %v720 = vmul.f32 %v24, 0.12903225
  %v721 = vmul.f32 %v26, 0.12903225
  %v722 = vmul.f32 %v28, 0.12903225
  %v723 = vmul.f32 %v30, 0.12903225
  %v724 = vmul.f32 %v32, 0.12903225
  %v725 = vmul.f32 %v34, 0.12903225
  %v726 = vmul.f32 %v36, 0.12903225
  %v727 = vmul.f32 %v38, 0.12903225
  %v728 = vmul.f32 %v8, 0.87096775
  %v729 = vmul.f32 %v10, 0.87096775
  %v730 = vmul.f32 %v12, 0.87096775
  %v731 = vmul.f32 %v14, 0.87096775
  %v732 = vmul.f32 %v16, 0.87096775
  %v733 = vmul.f32 %v18, 0.87096775
  %v734 = vmul.f32 %v20, 0.87096775
  %v735 = vmul.f32 %v22, 0.87096775
  %v736 = vmul.f32 %v24, 0.87096775
  %v737 = vmul.f32 %v26, 0.87096775
  %v738 = vmul.f32 %v28, 0.87096775
  %v739 = vmul.f32 %v30, 0.87096775
  %v740 = vmul.f32 %v32, 0.87096775
  %v741 = vmul.f32 %v34, 0.87096775
  %v742 = vmul.f32 %v36, 0.87096775
  %v743 = vmul.f32 %v38, 0.87096775
  %v760 = vrot.slane %v728, 1
  %v761 = vrot.slane %v729, 1
  %v762 = vrot.slane %v730, 1
  %v763 = vrot.slane %v731, 1
  %v764 = vrot.slane %v732, 1
  %v765 = vrot.slane %v733, 1
  %v766 = vrot.slane %v734, 1
  %v767 = vrot.slane %v735, 1
  %v768 = vrot.slane %v736, 1
  %v769 = vrot.slane %v737, 1
  %v770 = vrot.slane %v738, 1
  %v771 = vrot.slane %v739, 1
  %v772 = vrot.slane %v740, 1
  %v773 = vrot.slane %v741, 1
  %v774 = vrot.slane %v742, 1
  %v775 = vrot.slane %v743, 1
  %v792 = vadd.f32 %v712, %v760
  %v793 = vadd.f32 %v713, %v761
  %v794 = vadd.f32 %v714, %v762
  %v795 = vadd.f32 %v715, %v763
  %v796 = vadd.f32 %v716, %v764
  %v797 = vadd.f32 %v717, %v765
  %v798 = vadd.f32 %v718, %v766
  %v799 = vadd.f32 %v719, %v767
  %v800 = vadd.f32 %v720, %v768
  %v801 = vadd.f32 %v721, %v769
  %v802 = vadd.f32 %v722, %v770
  %v803 = vadd.f32 %v723, %v771
  %v804 = vadd.f32 %v724, %v772
  %v805 = vadd.f32 %v725, %v773
  %v806 = vadd.f32 %v726, %v774
  %v807 = vadd.f32 %v727, %v775
  %v808 = vmul.f32 %v8, 0.6451613
  %v809 = vmul.f32 %v10, 0.6451613
  %v810 = vmul.f32 %v12, 0.6451613
  %v811 = vmul.f32 %v14, 0.6451613
  %v812 = vmul.f32 %v16, 0.6451613
  %v813 = vmul.f32 %v18, 0.6451613
  %v814 = vmul.f32 %v20, 0.6451613
  %v815 = vmul.f32 %v22, 0.6451613
  %v816 = vmul.f32 %v24, 0.6451613
  %v817 = vmul.f32 %v26, 0.6451613
  %v818 = vmul.f32 %v28, 0.6451613
  %v819 = vmul.f32 %v30, 0.6451613
  %v820 = vmul.f32 %v32, 0.6451613
  %v821 = vmul.f32 %v34, 0.6451613
  %v822 = vmul.f32 %v36, 0.6451613
  %v823 = vmul.f32 %v38, 0.6451613
  %v824 = vmul.f32 %v8, 0.3548387
  %v825 = vmul.f32 %v10, 0.3548387
  %v826 = vmul.f32 %v12, 0.3548387
  %v827 = vmul.f32 %v14, 0.3548387
  %v828 = vmul.f32 %v16, 0.3548387
  %v829 = vmul.f32 %v18, 0.3548387
  %v830 = vmul.f32 %v20, 0.3548387
  %v831 = vmul.f32 %v22, 0.3548387
  %v832 = vmul.f32 %v24, 0.3548387
  %v833 = vmul.f32 %v26, 0.3548387
  %v834 = vmul.f32 %v28, 0.3548387
  %v835 = vmul.f32 %v30, 0.3548387
  %v836 = vmul.f32 %v32, 0.3548387
  %v837 = vmul.f32 %v34, 0.3548387
  %v838 = vmul.f32 %v36, 0.3548387
  %v839 = vmul.f32 %v38, 0.3548387
  %v856 = vrot.slane %v824, 1
  %v857 = vrot.slane %v825, 1
  %v858 = vrot.slane %v826, 1
  %v859 = vrot.slane %v827, 1
  %v860 = vrot.slane %v828, 1
  %v861 = vrot.slane %v829, 1
  %v862 = vrot.slane %v830, 1
  %v863 = vrot.slane %v831, 1
  %v864 = vrot.slane %v832, 1
  %v865 = vrot.slane %v833, 1
  %v866 = vrot.slane %v834, 1
  %v867 = vrot.slane %v835, 1
  %v868 = vrot.slane %v836, 1
  %v869 = vrot.slane %v837, 1
  %v870 = vrot.slane %v838, 1
  %v871 = vrot.slane %v839, 1
  %v888 = vadd.f32 %v808, %v856
  %v889 = vadd.f32 %v809, %v857
  %v890 = vadd.f32 %v810, %v858
  %v891 = vadd.f32 %v811, %v859
  %v892 = vadd.f32 %v812, %v860
  %v893 = vadd.f32 %v813, %v861
  %v894 = vadd.f32 %v814, %v862
  %v895 = vadd.f32 %v815, %v863
  %v896 = vadd.f32 %v816, %v864
  %v897 = vadd.f32 %v817, %v865
  %v898 = vadd.f32 %v818, %v866
  %v899 = vadd.f32 %v819, %v867
  %v900 = vadd.f32 %v820, %v868
  %v901 = vadd.f32 %v821, %v869
  %v902 = vadd.f32 %v822, %v870
  %v903 = vadd.f32 %v823, %v871
  %v904 = vmul.f32 %v8, 0.16129032
  %v905 = vmul.f32 %v10, 0.16129032
  %v906 = vmul.f32 %v12, 0.16129032
  %v907 = vmul.f32 %v14, 0.16129032
  %v908 = vmul.f32 %v16, 0.16129032
  %v909 = vmul.f32 %v18, 0.16129032
  %v910 = vmul.f32 %v20, 0.16129032
  %v911 = vmul.f32 %v22, 0.16129032
  %v912 = vmul.f32 %v24, 0.16129032
  %v913 = vmul.f32 %v26, 0.16129032
  %v914 = vmul.f32 %v28, 0.16129032
  %v915 = vmul.f32 %v30, 0.16129032
  %v916 = vmul.f32 %v32, 0.16129032
  %v917 = vmul.f32 %v34, 0.16129032
  %v918 = vmul.f32 %v36, 0.16129032
  %v919 = vmul.f32 %v38, 0.16129032
  %v920 = vmul.f32 %v8, 0.83870965
  %v921 = vmul.f32 %v10, 0.83870965
  %v922 = vmul.f32 %v12, 0.83870965
  %v923 = vmul.f32 %v14, 0.83870965
  %v924 = vmul.f32 %v16, 0.83870965
  %v925 = vmul.f32 %v18, 0.83870965
  %v926 = vmul.f32 %v20, 0.83870965
  %v927 = vmul.f32 %v22, 0.83870965
  %v928 = vmul.f32 %v24, 0.83870965
  %v929 = vmul.f32 %v26, 0.83870965
  %v930 = vmul.f32 %v28, 0.83870965
  %v931 = vmul.f32 %v30, 0.83870965
  %v932 = vmul.f32 %v32, 0.83870965
  %v933 = vmul.f32 %v34, 0.83870965
  %v934 = vmul.f32 %v36, 0.83870965
  %v935 = vmul.f32 %v38, 0.83870965
  %v952 = vrot.slane %v920, 1
  %v953 = vrot.slane %v921, 1
  %v954 = vrot.slane %v922, 1
  %v955 = vrot.slane %v923, 1
  %v956 = vrot.slane %v924, 1
  %v957 = vrot.slane %v925, 1
  %v958 = vrot.slane %v926, 1
  %v959 = vrot.slane %v927, 1
  %v960 = vrot.slane %v928, 1
  %v961 = vrot.slane %v929, 1
  %v962 = vrot.slane %v930, 1
  %v963 = vrot.slane %v931, 1
  %v964 = vrot.slane %v932, 1
  %v965 = vrot.slane %v933, 1
  %v966 = vrot.slane %v934, 1
  %v967 = vrot.slane %v935, 1
  %v984 = vadd.f32 %v904, %v952
  %v985 = vadd.f32 %v905, %v953
  %v986 = vadd.f32 %v906, %v954
  %v987 = vadd.f32 %v907, %v955
  %v988 = vadd.f32 %v908, %v956
  %v989 = vadd.f32 %v909, %v957
  %v990 = vadd.f32 %v910, %v958
  %v991 = vadd.f32 %v911, %v959
  %v992 = vadd.f32 %v912, %v960
  %v993 = vadd.f32 %v913, %v961
  %v994 = vadd.f32 %v914, %v962
  %v995 = vadd.f32 %v915, %v963
  %v996 = vadd.f32 %v916, %v964
  %v997 = vadd.f32 %v917, %v965
  %v998 = vadd.f32 %v918, %v966
  %v999 = vadd.f32 %v919, %v967
  %v1000 = vmul.f32 %v8, 0.67741936
  %v1001 = vmul.f32 %v10, 0.67741936
  %v1002 = vmul.f32 %v12, 0.67741936
  %v1003 = vmul.f32 %v14, 0.67741936
  %v1004 = vmul.f32 %v16, 0.67741936
  %v1005 = vmul.f32 %v18, 0.67741936
  %v1006 = vmul.f32 %v20, 0.67741936
  %v1007 = vmul.f32 %v22, 0.67741936
  %v1008 = vmul.f32 %v24, 0.67741936
  %v1009 = vmul.f32 %v26, 0.67741936
  %v1010 = vmul.f32 %v28, 0.67741936
  %v1011 = vmul.f32 %v30, 0.67741936
  %v1012 = vmul.f32 %v32, 0.67741936
  %v1013 = vmul.f32 %v34, 0.67741936
  %v1014 = vmul.f32 %v36, 0.67741936
  %v1015 = vmul.f32 %v38, 0.67741936
  %v1016 = vmul.f32 %v8, 0.32258064
  %v1017 = vmul.f32 %v10, 0.32258064
  %v1018 = vmul.f32 %v12, 0.32258064
  %v1019 = vmul.f32 %v14, 0.32258064
  %v1020 = vmul.f32 %v16, 0.32258064
  %v1021 = vmul.f32 %v18, 0.32258064
  %v1022 = vmul.f32 %v20, 0.32258064
  %v1023 = vmul.f32 %v22, 0.32258064
  %v1024 = vmul.f32 %v24, 0.32258064
  %v1025 = vmul.f32 %v26, 0.32258064
  %v1026 = vmul.f32 %v28, 0.32258064
  %v1027 = vmul.f32 %v30, 0.32258064
  %v1028 = vmul.f32 %v32, 0.32258064
  %v1029 = vmul.f32 %v34, 0.32258064
  %v1030 = vmul.f32 %v36, 0.32258064
  %v1031 = vmul.f32 %v38, 0.32258064
  %v1048 = vrot.slane %v1016, 1
  %v1049 = vrot.slane %v1017, 1
  %v1050 = vrot.slane %v1018, 1
  %v1051 = vrot.slane %v1019, 1
  %v1052 = vrot.slane %v1020, 1
  %v1053 = vrot.slane %v1021, 1
  %v1054 = vrot.slane %v1022, 1
  %v1055 = vrot.slane %v1023, 1
  %v1056 = vrot.slane %v1024, 1
  %v1057 = vrot.slane %v1025, 1
  %v1058 = vrot.slane %v1026, 1
  %v1059 = vrot.slane %v1027, 1
  %v1060 = vrot.slane %v1028, 1
  %v1061 = vrot.slane %v1029, 1
  %v1062 = vrot.slane %v1030, 1
  %v1063 = vrot.slane %v1031, 1
  %v1080 = vadd.f32 %v1000, %v1048
  %v1081 = vadd.f32 %v1001, %v1049
  %v1082 = vadd.f32 %v1002, %v1050
  %v1083 = vadd.f32 %v1003, %v1051
  %v1084 = vadd.f32 %v1004, %v1052
  %v1085 = vadd.f32 %v1005, %v1053
  %v1086 = vadd.f32 %v1006, %v1054
  %v1087 = vadd.f32 %v1007, %v1055
  %v1088 = vadd.f32 %v1008, %v1056
  %v1089 = vadd.f32 %v1009, %v1057
  %v1090 = vadd.f32 %v1010, %v1058
  %v1091 = vadd.f32 %v1011, %v1059
  %v1092 = vadd.f32 %v1012, %v1060
  %v1093 = vadd.f32 %v1013, %v1061
  %v1094 = vadd.f32 %v1014, %v1062
  %v1095 = vadd.f32 %v1015, %v1063
  %v1096 = vmul.f32 %v8, 0.19354838
  %v1097 = vmul.f32 %v10, 0.19354838
  %v1098 = vmul.f32 %v12, 0.19354838
  %v1099 = vmul.f32 %v14, 0.19354838
  %v1100 = vmul.f32 %v16, 0.19354838
  %v1101 = vmul.f32 %v18, 0.19354838
  %v1102 = vmul.f32 %v20, 0.19354838
  %v1103 = vmul.f32 %v22, 0.19354838
  %v1104 = vmul.f32 %v24, 0.19354838
  %v1105 = vmul.f32 %v26, 0.19354838
  %v1106 = vmul.f32 %v28, 0.19354838
  %v1107 = vmul.f32 %v30, 0.19354838
  %v1108 = vmul.f32 %v32, 0.19354838
  %v1109 = vmul.f32 %v34, 0.19354838
  %v1110 = vmul.f32 %v36, 0.19354838
  %v1111 = vmul.f32 %v38, 0.19354838
  %v1112 = vmul.f32 %v8, 0.8064516
  %v1113 = vmul.f32 %v10, 0.8064516
  %v1114 = vmul.f32 %v12, 0.8064516
  %v1115 = vmul.f32 %v14, 0.8064516
  %v1116 = vmul.f32 %v16, 0.8064516
  %v1117 = vmul.f32 %v18, 0.8064516
  %v1118 = vmul.f32 %v20, 0.8064516
  %v1119 = vmul.f32 %v22, 0.8064516
  %v1120 = vmul.f32 %v24, 0.8064516
  %v1121 = vmul.f32 %v26, 0.8064516
  %v1122 = vmul.f32 %v28, 0.8064516
  %v1123 = vmul.f32 %v30, 0.8064516
  %v1124 = vmul.f32 %v32, 0.8064516
  %v1125 = vmul.f32 %v34, 0.8064516
  %v1126 = vmul.f32 %v36, 0.8064516
  %v1127 = vmul.f32 %v38, 0.8064516
  %v1144 = vrot.slane %v1112, 1
  %v1145 = vrot.slane %v1113, 1
  %v1146 = vrot.slane %v1114, 1
  %v1147 = vrot.slane %v1115, 1
  %v1148 = vrot.slane %v1116, 1
  %v1149 = vrot.slane %v1117, 1
  %v1150 = vrot.slane %v1118, 1
  %v1151 = vrot.slane %v1119, 1
  %v1152 = vrot.slane %v1120, 1
  %v1153 = vrot.slane %v1121, 1
  %v1154 = vrot.slane %v1122, 1
  %v1155 = vrot.slane %v1123, 1
  %v1156 = vrot.slane %v1124, 1
  %v1157 = vrot.slane %v1125, 1
  %v1158 = vrot.slane %v1126, 1
  %v1159 = vrot.slane %v1127, 1
  %v1176 = vadd.f32 %v1096, %v1144
  %v1177 = vadd.f32 %v1097, %v1145
  %v1178 = vadd.f32 %v1098, %v1146
  %v1179 = vadd.f32 %v1099, %v1147
  %v1180 = vadd.f32 %v1100, %v1148
  %v1181 = vadd.f32 %v1101, %v1149
  %v1182 = vadd.f32 %v1102, %v1150
  %v1183 = vadd.f32 %v1103, %v1151
  %v1184 = vadd.f32 %v1104, %v1152
  %v1185 = vadd.f32 %v1105, %v1153
  %v1186 = vadd.f32 %v1106, %v1154
  %v1187 = vadd.f32 %v1107, %v1155
  %v1188 = vadd.f32 %v1108, %v1156
  %v1189 = vadd.f32 %v1109, %v1157
  %v1190 = vadd.f32 %v1110, %v1158
  %v1191 = vadd.f32 %v1111, %v1159
  %v1192 = vmul.f32 %v8, 0.7096774
  %v1193 = vmul.f32 %v10, 0.7096774
  %v1194 = vmul.f32 %v12, 0.7096774
  %v1195 = vmul.f32 %v14, 0.7096774
  %v1196 = vmul.f32 %v16, 0.7096774
  %v1197 = vmul.f32 %v18, 0.7096774
  %v1198 = vmul.f32 %v20, 0.7096774
  %v1199 = vmul.f32 %v22, 0.7096774
  %v1200 = vmul.f32 %v24, 0.7096774
  %v1201 = vmul.f32 %v26, 0.7096774
  %v1202 = vmul.f32 %v28, 0.7096774
  %v1203 = vmul.f32 %v30, 0.7096774
  %v1204 = vmul.f32 %v32, 0.7096774
  %v1205 = vmul.f32 %v34, 0.7096774
  %v1206 = vmul.f32 %v36, 0.7096774
  %v1207 = vmul.f32 %v38, 0.7096774
  %v1208 = vmul.f32 %v8, 0.29032257
  %v1209 = vmul.f32 %v10, 0.29032257
  %v1210 = vmul.f32 %v12, 0.29032257
  %v1211 = vmul.f32 %v14, 0.29032257
  %v1212 = vmul.f32 %v16, 0.29032257
  %v1213 = vmul.f32 %v18, 0.29032257
  %v1214 = vmul.f32 %v20, 0.29032257
  %v1215 = vmul.f32 %v22, 0.29032257
  %v1216 = vmul.f32 %v24, 0.29032257
  %v1217 = vmul.f32 %v26, 0.29032257
  %v1218 = vmul.f32 %v28, 0.29032257
  %v1219 = vmul.f32 %v30, 0.29032257
  %v1220 = vmul.f32 %v32, 0.29032257
  %v1221 = vmul.f32 %v34, 0.29032257
  %v1222 = vmul.f32 %v36, 0.29032257
  %v1223 = vmul.f32 %v38, 0.29032257
  %v1240 = vrot.slane %v1208, 1
  %v1241 = vrot.slane %v1209, 1
  %v1242 = vrot.slane %v1210, 1
  %v1243 = vrot.slane %v1211, 1
  %v1244 = vrot.slane %v1212, 1
  %v1245 = vrot.slane %v1213, 1
  %v1246 = vrot.slane %v1214, 1
  %v1247 = vrot.slane %v1215, 1
  %v1248 = vrot.slane %v1216, 1
  %v1249 = vrot.slane %v1217, 1
  %v1250 = vrot.slane %v1218, 1
  %v1251 = vrot.slane %v1219, 1
  %v1252 = vrot.slane %v1220, 1
  %v1253 = vrot.slane %v1221, 1
  %v1254 = vrot.slane %v1222, 1
  %v1255 = vrot.slane %v1223, 1
  %v1272 = vadd.f32 %v1192, %v1240
  %v1273 = vadd.f32 %v1193, %v1241
  %v1274 = vadd.f32 %v1194, %v1242
  %v1275 = vadd.f32 %v1195, %v1243
  %v1276 = vadd.f32 %v1196, %v1244
  %v1277 = vadd.f32 %v1197, %v1245
  %v1278 = vadd.f32 %v1198, %v1246
  %v1279 = vadd.f32 %v1199, %v1247
  %v1280 = vadd.f32 %v1200, %v1248
  %v1281 = vadd.f32 %v1201, %v1249
  %v1282 = vadd.f32 %v1202, %v1250
  %v1283 = vadd.f32 %v1203, %v1251
  %v1284 = vadd.f32 %v1204, %v1252
  %v1285 = vadd.f32 %v1205, %v1253
  %v1286 = vadd.f32 %v1206, %v1254
  %v1287 = vadd.f32 %v1207, %v1255
  %v1288 = vmul.f32 %v8, 0.22580644
  %v1289 = vmul.f32 %v10, 0.22580644
  %v1290 = vmul.f32 %v12, 0.22580644
  %v1291 = vmul.f32 %v14, 0.22580644
  %v1292 = vmul.f32 %v16, 0.22580644
  %v1293 = vmul.f32 %v18, 0.22580644
  %v1294 = vmul.f32 %v20, 0.22580644
  %v1295 = vmul.f32 %v22, 0.22580644
  %v1296 = vmul.f32 %v24, 0.22580644
  %v1297 = vmul.f32 %v26, 0.22580644
  %v1298 = vmul.f32 %v28, 0.22580644
  %v1299 = vmul.f32 %v30, 0.22580644
  %v1300 = vmul.f32 %v32, 0.22580644
  %v1301 = vmul.f32 %v34, 0.22580644
  %v1302 = vmul.f32 %v36, 0.22580644
  %v1303 = vmul.f32 %v38, 0.22580644
  %v1304 = vmul.f32 %v8, 0.7741935
  %v1305 = vmul.f32 %v10, 0.7741935
  %v1306 = vmul.f32 %v12, 0.7741935
  %v1307 = vmul.f32 %v14, 0.7741935
  %v1308 = vmul.f32 %v16, 0.7741935
  %v1309 = vmul.f32 %v18, 0.7741935
  %v1310 = vmul.f32 %v20, 0.7741935
  %v1311 = vmul.f32 %v22, 0.7741935
  %v1312 = vmul.f32 %v24, 0.7741935
  %v1313 = vmul.f32 %v26, 0.7741935
  %v1314 = vmul.f32 %v28, 0.7741935
  %v1315 = vmul.f32 %v30, 0.7741935
  %v1316 = vmul.f32 %v32, 0.7741935
  %v1317 = vmul.f32 %v34, 0.7741935
  %v1318 = vmul.f32 %v36, 0.7741935
  %v1319 = vmul.f32 %v38, 0.7741935
  %v1336 = vrot.slane %v1304, 1
  %v1337 = vrot.slane %v1305, 1
  %v1338 = vrot.slane %v1306, 1
  %v1339 = vrot.slane %v1307, 1
  %v1340 = vrot.slane %v1308, 1
  %v1341 = vrot.slane %v1309, 1
  %v1342 = vrot.slane %v1310, 1
  %v1343 = vrot.slane %v1311, 1
  %v1344 = vrot.slane %v1312, 1
  %v1345 = vrot.slane %v1313, 1
  %v1346 = vrot.slane %v1314, 1
  %v1347 = vrot.slane %v1315, 1
  %v1348 = vrot.slane %v1316, 1
  %v1349 = vrot.slane %v1317, 1
  %v1350 = vrot.slane %v1318, 1
  %v1351 = vrot.slane %v1319, 1
  %v1368 = vadd.f32 %v1288, %v1336
  %v1369 = vadd.f32 %v1289, %v1337
  %v1370 = vadd.f32 %v1290, %v1338
  %v1371 = vadd.f32 %v1291, %v1339
  %v1372 = vadd.f32 %v1292, %v1340
  %v1373 = vadd.f32 %v1293, %v1341
  %v1374 = vadd.f32 %v1294, %v1342
  %v1375 = vadd.f32 %v1295, %v1343
  %v1376 = vadd.f32 %v1296, %v1344
  %v1377 = vadd.f32 %v1297, %v1345
  %v1378 = vadd.f32 %v1298, %v1346
  %v1379 = vadd.f32 %v1299, %v1347
  %v1380 = vadd.f32 %v1300, %v1348
  %v1381 = vadd.f32 %v1301, %v1349
  %v1382 = vadd.f32 %v1302, %v1350
  %v1383 = vadd.f32 %v1303, %v1351
  %v1384 = vmul.f32 %v8, 0.7419355
  %v1385 = vmul.f32 %v10, 0.7419355
  %v1386 = vmul.f32 %v12, 0.7419355
  %v1387 = vmul.f32 %v14, 0.7419355
  %v1388 = vmul.f32 %v16, 0.7419355
  %v1389 = vmul.f32 %v18, 0.7419355
  %v1390 = vmul.f32 %v20, 0.7419355
  %v1391 = vmul.f32 %v22, 0.7419355
  %v1392 = vmul.f32 %v24, 0.7419355
  %v1393 = vmul.f32 %v26, 0.7419355
  %v1394 = vmul.f32 %v28, 0.7419355
  %v1395 = vmul.f32 %v30, 0.7419355
  %v1396 = vmul.f32 %v32, 0.7419355
  %v1397 = vmul.f32 %v34, 0.7419355
  %v1398 = vmul.f32 %v36, 0.7419355
  %v1399 = vmul.f32 %v38, 0.7419355
  %v1400 = vmul.f32 %v9, 0.2580645
  %v1401 = vmul.f32 %v11, 0.2580645
  %v1402 = vmul.f32 %v13, 0.2580645
  %v1403 = vmul.f32 %v15, 0.2580645
  %v1404 = vmul.f32 %v17, 0.2580645
  %v1405 = vmul.f32 %v19, 0.2580645
  %v1406 = vmul.f32 %v21, 0.2580645
  %v1407 = vmul.f32 %v23, 0.2580645
  %v1408 = vmul.f32 %v25, 0.2580645
  %v1409 = vmul.f32 %v27, 0.2580645
  %v1410 = vmul.f32 %v29, 0.2580645
  %v1411 = vmul.f32 %v31, 0.2580645
  %v1412 = vmul.f32 %v33, 0.2580645
  %v1413 = vmul.f32 %v35, 0.2580645
  %v1414 = vmul.f32 %v37, 0.2580645
  %v1415 = vmul.f32 %v39, 0.2580645
  %v1432 = vrot.slane %v1400, 1
  %v1433 = vrot.slane %v1401, 1
  %v1434 = vrot.slane %v1402, 1
  %v1435 = vrot.slane %v1403, 1
  %v1436 = vrot.slane %v1404, 1
  %v1437 = vrot.slane %v1405, 1
  %v1438 = vrot.slane %v1406, 1
  %v1439 = vrot.slane %v1407, 1
  %v1440 = vrot.slane %v1408, 1
  %v1441 = vrot.slane %v1409, 1
  %v1442 = vrot.slane %v1410, 1
  %v1443 = vrot.slane %v1411, 1
  %v1444 = vrot.slane %v1412, 1
  %v1445 = vrot.slane %v1413, 1
  %v1446 = vrot.slane %v1414, 1
  %v1447 = vrot.slane %v1415, 1
  %v1464 = vadd.f32 %v1384, %v1432
  %v1465 = vadd.f32 %v1385, %v1433
  %v1466 = vadd.f32 %v1386, %v1434
  %v1467 = vadd.f32 %v1387, %v1435
  %v1468 = vadd.f32 %v1388, %v1436
  %v1469 = vadd.f32 %v1389, %v1437
  %v1470 = vadd.f32 %v1390, %v1438
  %v1471 = vadd.f32 %v1391, %v1439
  %v1472 = vadd.f32 %v1392, %v1440
  %v1473 = vadd.f32 %v1393, %v1441
  %v1474 = vadd.f32 %v1394, %v1442
  %v1475 = vadd.f32 %v1395, %v1443
  %v1476 = vadd.f32 %v1396, %v1444
  %v1477 = vadd.f32 %v1397, %v1445
  %v1478 = vadd.f32 %v1398, %v1446
  %v1479 = vadd.f32 %v1399, %v1447
  %v1480 = vmul.f32 %v8, 0.2580645
  %v1481 = vmul.f32 %v10, 0.2580645
  %v1482 = vmul.f32 %v12, 0.2580645
  %v1483 = vmul.f32 %v14, 0.2580645
  %v1484 = vmul.f32 %v16, 0.2580645
  %v1485 = vmul.f32 %v18, 0.2580645
  %v1486 = vmul.f32 %v20, 0.2580645
  %v1487 = vmul.f32 %v22, 0.2580645
  %v1488 = vmul.f32 %v24, 0.2580645
  %v1489 = vmul.f32 %v26, 0.2580645
  %v1490 = vmul.f32 %v28, 0.2580645
  %v1491 = vmul.f32 %v30, 0.2580645
  %v1492 = vmul.f32 %v32, 0.2580645
  %v1493 = vmul.f32 %v34, 0.2580645
  %v1494 = vmul.f32 %v36, 0.2580645
  %v1495 = vmul.f32 %v38, 0.2580645
  %v1496 = vmul.f32 %v9, 0.7419355
  %v1497 = vmul.f32 %v11, 0.7419355
  %v1498 = vmul.f32 %v13, 0.7419355
  %v1499 = vmul.f32 %v15, 0.7419355
  %v1500 = vmul.f32 %v17, 0.7419355
  %v1501 = vmul.f32 %v19, 0.7419355
  %v1502 = vmul.f32 %v21, 0.7419355
  %v1503 = vmul.f32 %v23, 0.7419355
  %v1504 = vmul.f32 %v25, 0.7419355
  %v1505 = vmul.f32 %v27, 0.7419355
  %v1506 = vmul.f32 %v29, 0.7419355
  %v1507 = vmul.f32 %v31, 0.7419355
  %v1508 = vmul.f32 %v33, 0.7419355
  %v1509 = vmul.f32 %v35, 0.7419355
  %v1510 = vmul.f32 %v37, 0.7419355
  %v1511 = vmul.f32 %v39, 0.7419355
  %v1528 = vrot.slane %v1496, 1
  %v1529 = vrot.slane %v1497, 1
  %v1530 = vrot.slane %v1498, 1
  %v1531 = vrot.slane %v1499, 1
  %v1532 = vrot.slane %v1500, 1
  %v1533 = vrot.slane %v1501, 1
  %v1534 = vrot.slane %v1502, 1
  %v1535 = vrot.slane %v1503, 1
  %v1536 = vrot.slane %v1504, 1
  %v1537 = vrot.slane %v1505, 1
  %v1538 = vrot.slane %v1506, 1
  %v1539 = vrot.slane %v1507, 1
  %v1540 = vrot.slane %v1508, 1
  %v1541 = vrot.slane %v1509, 1
  %v1542 = vrot.slane %v1510, 1
  %v1543 = vrot.slane %v1511, 1
  %v1560 = vadd.f32 %v1480, %v1528
  %v1561 = vadd.f32 %v1481, %v1529
  %v1562 = vadd.f32 %v1482, %v1530
  %v1563 = vadd.f32 %v1483, %v1531
  %v1564 = vadd.f32 %v1484, %v1532
  %v1565 = vadd.f32 %v1485, %v1533
  %v1566 = vadd.f32 %v1486, %v1534
  %v1567 = vadd.f32 %v1487, %v1535
  %v1568 = vadd.f32 %v1488, %v1536
  %v1569 = vadd.f32 %v1489, %v1537
  %v1570 = vadd.f32 %v1490, %v1538
  %v1571 = vadd.f32 %v1491, %v1539
  %v1572 = vadd.f32 %v1492, %v1540
  %v1573 = vadd.f32 %v1493, %v1541
  %v1574 = vadd.f32 %v1494, %v1542
  %v1575 = vadd.f32 %v1495, %v1543
  %v1576 = vmul.f32 %v9, 0.7741935
  %v1577 = vmul.f32 %v11, 0.7741935
  %v1578 = vmul.f32 %v13, 0.7741935
  %v1579 = vmul.f32 %v15, 0.7741935
  %v1580 = vmul.f32 %v17, 0.7741935
  %v1581 = vmul.f32 %v19, 0.7741935
  %v1582 = vmul.f32 %v21, 0.7741935
  %v1583 = vmul.f32 %v23, 0.7741935
  %v1584 = vmul.f32 %v25, 0.7741935
  %v1585 = vmul.f32 %v27, 0.7741935
  %v1586 = vmul.f32 %v29, 0.7741935
  %v1587 = vmul.f32 %v31, 0.7741935
  %v1588 = vmul.f32 %v33, 0.7741935
  %v1589 = vmul.f32 %v35, 0.7741935
  %v1590 = vmul.f32 %v37, 0.7741935
  %v1591 = vmul.f32 %v39, 0.7741935
  %v1592 = vmul.f32 %v9, 0.22580644
  %v1593 = vmul.f32 %v11, 0.22580644
  %v1594 = vmul.f32 %v13, 0.22580644
  %v1595 = vmul.f32 %v15, 0.22580644
  %v1596 = vmul.f32 %v17, 0.22580644
  %v1597 = vmul.f32 %v19, 0.22580644
  %v1598 = vmul.f32 %v21, 0.22580644
  %v1599 = vmul.f32 %v23, 0.22580644
  %v1600 = vmul.f32 %v25, 0.22580644
  %v1601 = vmul.f32 %v27, 0.22580644
  %v1602 = vmul.f32 %v29, 0.22580644
  %v1603 = vmul.f32 %v31, 0.22580644
  %v1604 = vmul.f32 %v33, 0.22580644
  %v1605 = vmul.f32 %v35, 0.22580644
  %v1606 = vmul.f32 %v37, 0.22580644
  %v1607 = vmul.f32 %v39, 0.22580644
  %v1624 = vrot.slane %v1592, 1
  %v1625 = vrot.slane %v1593, 1
  %v1626 = vrot.slane %v1594, 1
  %v1627 = vrot.slane %v1595, 1
  %v1628 = vrot.slane %v1596, 1
  %v1629 = vrot.slane %v1597, 1
  %v1630 = vrot.slane %v1598, 1
  %v1631 = vrot.slane %v1599, 1
  %v1632 = vrot.slane %v1600, 1
  %v1633 = vrot.slane %v1601, 1
  %v1634 = vrot.slane %v1602, 1
  %v1635 = vrot.slane %v1603, 1
  %v1636 = vrot.slane %v1604, 1
  %v1637 = vrot.slane %v1605, 1
  %v1638 = vrot.slane %v1606, 1
  %v1639 = vrot.slane %v1607, 1
  %v1656 = vadd.f32 %v1576, %v1624
  %v1657 = vadd.f32 %v1577, %v1625
  %v1658 = vadd.f32 %v1578, %v1626
  %v1659 = vadd.f32 %v1579, %v1627
  %v1660 = vadd.f32 %v1580, %v1628
  %v1661 = vadd.f32 %v1581, %v1629
  %v1662 = vadd.f32 %v1582, %v1630
  %v1663 = vadd.f32 %v1583, %v1631
  %v1664 = vadd.f32 %v1584, %v1632
  %v1665 = vadd.f32 %v1585, %v1633
  %v1666 = vadd.f32 %v1586, %v1634
  %v1667 = vadd.f32 %v1587, %v1635
  %v1668 = vadd.f32 %v1588, %v1636
  %v1669 = vadd.f32 %v1589, %v1637
  %v1670 = vadd.f32 %v1590, %v1638
  %v1671 = vadd.f32 %v1591, %v1639
  %v1672 = vmul.f32 %v9, 0.29032257
  %v1673 = vmul.f32 %v11, 0.29032257
  %v1674 = vmul.f32 %v13, 0.29032257
  %v1675 = vmul.f32 %v15, 0.29032257
  %v1676 = vmul.f32 %v17, 0.29032257
  %v1677 = vmul.f32 %v19, 0.29032257
  %v1678 = vmul.f32 %v21, 0.29032257
  %v1679 = vmul.f32 %v23, 0.29032257
  %v1680 = vmul.f32 %v25, 0.29032257
  %v1681 = vmul.f32 %v27, 0.29032257
  %v1682 = vmul.f32 %v29, 0.29032257
  %v1683 = vmul.f32 %v31, 0.29032257
  %v1684 = vmul.f32 %v33, 0.29032257
  %v1685 = vmul.f32 %v35, 0.29032257
  %v1686 = vmul.f32 %v37, 0.29032257
  %v1687 = vmul.f32 %v39, 0.29032257
  %v1688 = vmul.f32 %v9, 0.7096774
  %v1689 = vmul.f32 %v11, 0.7096774
  %v1690 = vmul.f32 %v13, 0.7096774
  %v1691 = vmul.f32 %v15, 0.7096774
  %v1692 = vmul.f32 %v17, 0.7096774
  %v1693 = vmul.f32 %v19, 0.7096774
  %v1694 = vmul.f32 %v21, 0.7096774
  %v1695 = vmul.f32 %v23, 0.7096774
  %v1696 = vmul.f32 %v25, 0.7096774
  %v1697 = vmul.f32 %v27, 0.7096774
  %v1698 = vmul.f32 %v29, 0.7096774
  %v1699 = vmul.f32 %v31, 0.7096774
  %v1700 = vmul.f32 %v33, 0.7096774
  %v1701 = vmul.f32 %v35, 0.7096774
  %v1702 = vmul.f32 %v37, 0.7096774
  %v1703 = vmul.f32 %v39, 0.7096774
  %v1720 = vrot.slane %v1688, 1
  %v1721 = vrot.slane %v1689, 1
  %v1722 = vrot.slane %v1690, 1
  %v1723 = vrot.slane %v1691, 1
  %v1724 = vrot.slane %v1692, 1
  %v1725 = vrot.slane %v1693, 1
  %v1726 = vrot.slane %v1694, 1
  %v1727 = vrot.slane %v1695, 1
  %v1728 = vrot.slane %v1696, 1
  %v1729 = vrot.slane %v1697, 1
  %v1730 = vrot.slane %v1698, 1
  %v1731 = vrot.slane %v1699, 1
  %v1732 = vrot.slane %v1700, 1
  %v1733 = vrot.slane %v1701, 1
  %v1734 = vrot.slane %v1702, 1
  %v1735 = vrot.slane %v1703, 1
  %v1752 = vadd.f32 %v1672, %v1720
  %v1753 = vadd.f32 %v1673, %v1721
  %v1754 = vadd.f32 %v1674, %v1722
  %v1755 = vadd.f32 %v1675, %v1723
  %v1756 = vadd.f32 %v1676, %v1724
  %v1757 = vadd.f32 %v1677, %v1725
  %v1758 = vadd.f32 %v1678, %v1726
  %v1759 = vadd.f32 %v1679, %v1727
  %v1760 = vadd.f32 %v1680, %v1728
  %v1761 = vadd.f32 %v1681, %v1729
  %v1762 = vadd.f32 %v1682, %v1730
  %v1763 = vadd.f32 %v1683, %v1731
  %v1764 = vadd.f32 %v1684, %v1732
  %v1765 = vadd.f32 %v1685, %v1733
  %v1766 = vadd.f32 %v1686, %v1734
  %v1767 = vadd.f32 %v1687, %v1735
  %v1768 = vmul.f32 %v9, 0.8064516
  %v1769 = vmul.f32 %v11, 0.8064516
  %v1770 = vmul.f32 %v13, 0.8064516
  %v1771 = vmul.f32 %v15, 0.8064516
  %v1772 = vmul.f32 %v17, 0.8064516
  %v1773 = vmul.f32 %v19, 0.8064516
  %v1774 = vmul.f32 %v21, 0.8064516
  %v1775 = vmul.f32 %v23, 0.8064516
  %v1776 = vmul.f32 %v25, 0.8064516
  %v1777 = vmul.f32 %v27, 0.8064516
  %v1778 = vmul.f32 %v29, 0.8064516
  %v1779 = vmul.f32 %v31, 0.8064516
  %v1780 = vmul.f32 %v33, 0.8064516
  %v1781 = vmul.f32 %v35, 0.8064516
  %v1782 = vmul.f32 %v37, 0.8064516
  %v1783 = vmul.f32 %v39, 0.8064516
  %v1784 = vmul.f32 %v9, 0.19354838
  %v1785 = vmul.f32 %v11, 0.19354838
  %v1786 = vmul.f32 %v13, 0.19354838
  %v1787 = vmul.f32 %v15, 0.19354838
  %v1788 = vmul.f32 %v17, 0.19354838
  %v1789 = vmul.f32 %v19, 0.19354838
  %v1790 = vmul.f32 %v21, 0.19354838
  %v1791 = vmul.f32 %v23, 0.19354838
  %v1792 = vmul.f32 %v25, 0.19354838
  %v1793 = vmul.f32 %v27, 0.19354838
  %v1794 = vmul.f32 %v29, 0.19354838
  %v1795 = vmul.f32 %v31, 0.19354838
  %v1796 = vmul.f32 %v33, 0.19354838
  %v1797 = vmul.f32 %v35, 0.19354838
  %v1798 = vmul.f32 %v37, 0.19354838
  %v1799 = vmul.f32 %v39, 0.19354838
  %v1816 = vrot.slane %v1784, 1
  %v1817 = vrot.slane %v1785, 1
  %v1818 = vrot.slane %v1786, 1
  %v1819 = vrot.slane %v1787, 1
  %v1820 = vrot.slane %v1788, 1
  %v1821 = vrot.slane %v1789, 1
  %v1822 = vrot.slane %v1790, 1
  %v1823 = vrot.slane %v1791, 1
  %v1824 = vrot.slane %v1792, 1
  %v1825 = vrot.slane %v1793, 1
  %v1826 = vrot.slane %v1794, 1
  %v1827 = vrot.slane %v1795, 1
  %v1828 = vrot.slane %v1796, 1
  %v1829 = vrot.slane %v1797, 1
  %v1830 = vrot.slane %v1798, 1
  %v1831 = vrot.slane %v1799, 1
  %v1848 = vadd.f32 %v1768, %v1816
  %v1849 = vadd.f32 %v1769, %v1817
  %v1850 = vadd.f32 %v1770, %v1818
  %v1851 = vadd.f32 %v1771, %v1819
  %v1852 = vadd.f32 %v1772, %v1820
  %v1853 = vadd.f32 %v1773, %v1821
  %v1854 = vadd.f32 %v1774, %v1822
  %v1855 = vadd.f32 %v1775, %v1823
  %v1856 = vadd.f32 %v1776, %v1824
  %v1857 = vadd.f32 %v1777, %v1825
  %v1858 = vadd.f32 %v1778, %v1826
  %v1859 = vadd.f32 %v1779, %v1827
  %v1860 = vadd.f32 %v1780, %v1828
  %v1861 = vadd.f32 %v1781, %v1829
  %v1862 = vadd.f32 %v1782, %v1830
  %v1863 = vadd.f32 %v1783, %v1831
  %v1864 = vmul.f32 %v9, 0.32258064
  %v1865 = vmul.f32 %v11, 0.32258064
  %v1866 = vmul.f32 %v13, 0.32258064
  %v1867 = vmul.f32 %v15, 0.32258064
  %v1868 = vmul.f32 %v17, 0.32258064
  %v1869 = vmul.f32 %v19, 0.32258064
  %v1870 = vmul.f32 %v21, 0.32258064
  %v1871 = vmul.f32 %v23, 0.32258064
  %v1872 = vmul.f32 %v25, 0.32258064
  %v1873 = vmul.f32 %v27, 0.32258064
  %v1874 = vmul.f32 %v29, 0.32258064
  %v1875 = vmul.f32 %v31, 0.32258064
  %v1876 = vmul.f32 %v33, 0.32258064
  %v1877 = vmul.f32 %v35, 0.32258064
  %v1878 = vmul.f32 %v37, 0.32258064
  %v1879 = vmul.f32 %v39, 0.32258064
  %v1880 = vmul.f32 %v9, 0.67741936
  %v1881 = vmul.f32 %v11, 0.67741936
  %v1882 = vmul.f32 %v13, 0.67741936
  %v1883 = vmul.f32 %v15, 0.67741936
  %v1884 = vmul.f32 %v17, 0.67741936
  %v1885 = vmul.f32 %v19, 0.67741936
  %v1886 = vmul.f32 %v21, 0.67741936
  %v1887 = vmul.f32 %v23, 0.67741936
  %v1888 = vmul.f32 %v25, 0.67741936
  %v1889 = vmul.f32 %v27, 0.67741936
  %v1890 = vmul.f32 %v29, 0.67741936
  %v1891 = vmul.f32 %v31, 0.67741936
  %v1892 = vmul.f32 %v33, 0.67741936
  %v1893 = vmul.f32 %v35, 0.67741936
  %v1894 = vmul.f32 %v37, 0.67741936
  %v1895 = vmul.f32 %v39, 0.67741936
  %v1912 = vrot.slane %v1880, 1
  %v1913 = vrot.slane %v1881, 1
  %v1914 = vrot.slane %v1882, 1
  %v1915 = vrot.slane %v1883, 1
  %v1916 = vrot.slane %v1884, 1
  %v1917 = vrot.slane %v1885, 1
  %v1918 = vrot.slane %v1886, 1
  %v1919 = vrot.slane %v1887, 1
  %v1920 = vrot.slane %v1888, 1
  %v1921 = vrot.slane %v1889, 1
  %v1922 = vrot.slane %v1890, 1
  %v1923 = vrot.slane %v1891, 1
  %v1924 = vrot.slane %v1892, 1
  %v1925 = vrot.slane %v1893, 1
  %v1926 = vrot.slane %v1894, 1
  %v1927 = vrot.slane %v1895, 1
  %v1944 = vadd.f32 %v1864, %v1912
  %v1945 = vadd.f32 %v1865, %v1913
  %v1946 = vadd.f32 %v1866, %v1914
  %v1947 = vadd.f32 %v1867, %v1915
  %v1948 = vadd.f32 %v1868, %v1916
  %v1949 = vadd.f32 %v1869, %v1917
  %v1950 = vadd.f32 %v1870, %v1918
  %v1951 = vadd.f32 %v1871, %v1919
  %v1952 = vadd.f32 %v1872, %v1920
  %v1953 = vadd.f32 %v1873, %v1921
  %v1954 = vadd.f32 %v1874, %v1922
  %v1955 = vadd.f32 %v1875, %v1923
  %v1956 = vadd.f32 %v1876, %v1924
  %v1957 = vadd.f32 %v1877, %v1925
  %v1958 = vadd.f32 %v1878, %v1926
  %v1959 = vadd.f32 %v1879, %v1927
  %v1960 = vmul.f32 %v9, 0.83870965
  %v1961 = vmul.f32 %v11, 0.83870965
  %v1962 = vmul.f32 %v13, 0.83870965
  %v1963 = vmul.f32 %v15, 0.83870965
  %v1964 = vmul.f32 %v17, 0.83870965
  %v1965 = vmul.f32 %v19, 0.83870965
  %v1966 = vmul.f32 %v21, 0.83870965
  %v1967 = vmul.f32 %v23, 0.83870965
  %v1968 = vmul.f32 %v25, 0.83870965
  %v1969 = vmul.f32 %v27, 0.83870965
  %v1970 = vmul.f32 %v29, 0.83870965
  %v1971 = vmul.f32 %v31, 0.83870965
  %v1972 = vmul.f32 %v33, 0.83870965
  %v1973 = vmul.f32 %v35, 0.83870965
  %v1974 = vmul.f32 %v37, 0.83870965
  %v1975 = vmul.f32 %v39, 0.83870965
  %v1976 = vmul.f32 %v9, 0.16129032
  %v1977 = vmul.f32 %v11, 0.16129032
  %v1978 = vmul.f32 %v13, 0.16129032
  %v1979 = vmul.f32 %v15, 0.16129032
  %v1980 = vmul.f32 %v17, 0.16129032
  %v1981 = vmul.f32 %v19, 0.16129032
  %v1982 = vmul.f32 %v21, 0.16129032
  %v1983 = vmul.f32 %v23, 0.16129032
  %v1984 = vmul.f32 %v25, 0.16129032
  %v1985 = vmul.f32 %v27, 0.16129032
  %v1986 = vmul.f32 %v29, 0.16129032
  %v1987 = vmul.f32 %v31, 0.16129032
  %v1988 = vmul.f32 %v33, 0.16129032
  %v1989 = vmul.f32 %v35, 0.16129032
  %v1990 = vmul.f32 %v37, 0.16129032
  %v1991 = vmul.f32 %v39, 0.16129032
  %v2008 = vrot.slane %v1976, 1
  %v2009 = vrot.slane %v1977, 1
  %v2010 = vrot.slane %v1978, 1
  %v2011 = vrot.slane %v1979, 1
  %v2012 = vrot.slane %v1980, 1
  %v2013 = vrot.slane %v1981, 1
  %v2014 = vrot.slane %v1982, 1
  %v2015 = vrot.slane %v1983, 1
  %v2016 = vrot.slane %v1984, 1
  %v2017 = vrot.slane %v1985, 1
  %v2018 = vrot.slane %v1986, 1
  %v2019 = vrot.slane %v1987, 1
  %v2020 = vrot.slane %v1988, 1
  %v2021 = vrot.slane %v1989, 1
  %v2022 = vrot.slane %v1990, 1
  %v2023 = vrot.slane %v1991, 1
  %v2040 = vadd.f32 %v1960, %v2008
  %v2041 = vadd.f32 %v1961, %v2009
  %v2042 = vadd.f32 %v1962, %v2010
  %v2043 = vadd.f32 %v1963, %v2011
  %v2044 = vadd.f32 %v1964, %v2012
  %v2045 = vadd.f32 %v1965, %v2013
  %v2046 = vadd.f32 %v1966, %v2014
  %v2047 = vadd.f32 %v1967, %v2015
  %v2048 = vadd.f32 %v1968, %v2016
  %v2049 = vadd.f32 %v1969, %v2017
  %v2050 = vadd.f32 %v1970, %v2018
  %v2051 = vadd.f32 %v1971, %v2019
  %v2052 = vadd.f32 %v1972, %v2020
  %v2053 = vadd.f32 %v1973, %v2021
  %v2054 = vadd.f32 %v1974, %v2022
  %v2055 = vadd.f32 %v1975, %v2023
  %v2056 = vmul.f32 %v9, 0.3548387
  %v2057 = vmul.f32 %v11, 0.3548387
  %v2058 = vmul.f32 %v13, 0.3548387
  %v2059 = vmul.f32 %v15, 0.3548387
  %v2060 = vmul.f32 %v17, 0.3548387
  %v2061 = vmul.f32 %v19, 0.3548387
  %v2062 = vmul.f32 %v21, 0.3548387
  %v2063 = vmul.f32 %v23, 0.3548387
  %v2064 = vmul.f32 %v25, 0.3548387
  %v2065 = vmul.f32 %v27, 0.3548387
  %v2066 = vmul.f32 %v29, 0.3548387
  %v2067 = vmul.f32 %v31, 0.3548387
  %v2068 = vmul.f32 %v33, 0.3548387
  %v2069 = vmul.f32 %v35, 0.3548387
  %v2070 = vmul.f32 %v37, 0.3548387
  %v2071 = vmul.f32 %v39, 0.3548387
  %v2072 = vmul.f32 %v9, 0.6451613
  %v2073 = vmul.f32 %v11, 0.6451613
  %v2074 = vmul.f32 %v13, 0.6451613
  %v2075 = vmul.f32 %v15, 0.6451613
  %v2076 = vmul.f32 %v17, 0.6451613
  %v2077 = vmul.f32 %v19, 0.6451613
  %v2078 = vmul.f32 %v21, 0.6451613
  %v2079 = vmul.f32 %v23, 0.6451613
  %v2080 = vmul.f32 %v25, 0.6451613
  %v2081 = vmul.f32 %v27, 0.6451613
  %v2082 = vmul.f32 %v29, 0.6451613
  %v2083 = vmul.f32 %v31, 0.6451613
  %v2084 = vmul.f32 %v33, 0.6451613
  %v2085 = vmul.f32 %v35, 0.6451613
  %v2086 = vmul.f32 %v37, 0.6451613
  %v2087 = vmul.f32 %v39, 0.6451613
  %v2104 = vrot.slane %v2072, 1
  %v2105 = vrot.slane %v2073, 1
  %v2106 = vrot.slane %v2074, 1
  %v2107 = vrot.slane %v2075, 1
  %v2108 = vrot.slane %v2076, 1
  %v2109 = vrot.slane %v2077, 1
  %v2110 = vrot.slane %v2078, 1
  %v2111 = vrot.slane %v2079, 1
  %v2112 = vrot.slane %v2080, 1
  %v2113 = vrot.slane %v2081, 1
  %v2114 = vrot.slane %v2082, 1
  %v2115 = vrot.slane %v2083, 1
  %v2116 = vrot.slane %v2084, 1
  %v2117 = vrot.slane %v2085, 1
  %v2118 = vrot.slane %v2086, 1
  %v2119 = vrot.slane %v2087, 1
  %v2136 = vadd.f32 %v2056, %v2104
  %v2137 = vadd.f32 %v2057, %v2105
  %v2138 = vadd.f32 %v2058, %v2106
  %v2139 = vadd.f32 %v2059, %v2107
  %v2140 = vadd.f32 %v2060, %v2108
  %v2141 = vadd.f32 %v2061, %v2109
  %v2142 = vadd.f32 %v2062, %v2110
  %v2143 = vadd.f32 %v2063, %v2111
  %v2144 = vadd.f32 %v2064, %v2112
  %v2145 = vadd.f32 %v2065, %v2113
  %v2146 = vadd.f32 %v2066, %v2114
  %v2147 = vadd.f32 %v2067, %v2115
  %v2148 = vadd.f32 %v2068, %v2116
  %v2149 = vadd.f32 %v2069, %v2117
  %v2150 = vadd.f32 %v2070, %v2118
  %v2151 = vadd.f32 %v2071, %v2119
  %v2152 = vmul.f32 %v9, 0.87096775
  %v2153 = vmul.f32 %v11, 0.87096775
  %v2154 = vmul.f32 %v13, 0.87096775
  %v2155 = vmul.f32 %v15, 0.87096775
  %v2156 = vmul.f32 %v17, 0.87096775
  %v2157 = vmul.f32 %v19, 0.87096775
  %v2158 = vmul.f32 %v21, 0.87096775
  %v2159 = vmul.f32 %v23, 0.87096775
  %v2160 = vmul.f32 %v25, 0.87096775
  %v2161 = vmul.f32 %v27, 0.87096775
  %v2162 = vmul.f32 %v29, 0.87096775
  %v2163 = vmul.f32 %v31, 0.87096775
  %v2164 = vmul.f32 %v33, 0.87096775
  %v2165 = vmul.f32 %v35, 0.87096775
  %v2166 = vmul.f32 %v37, 0.87096775
  %v2167 = vmul.f32 %v39, 0.87096775
  %v2168 = vmul.f32 %v9, 0.12903225
  %v2169 = vmul.f32 %v11, 0.12903225
  %v2170 = vmul.f32 %v13, 0.12903225
  %v2171 = vmul.f32 %v15, 0.12903225
  %v2172 = vmul.f32 %v17, 0.12903225
  %v2173 = vmul.f32 %v19, 0.12903225
  %v2174 = vmul.f32 %v21, 0.12903225
  %v2175 = vmul.f32 %v23, 0.12903225
  %v2176 = vmul.f32 %v25, 0.12903225
  %v2177 = vmul.f32 %v27, 0.12903225
  %v2178 = vmul.f32 %v29, 0.12903225
  %v2179 = vmul.f32 %v31, 0.12903225
  %v2180 = vmul.f32 %v33, 0.12903225
  %v2181 = vmul.f32 %v35, 0.12903225
  %v2182 = vmul.f32 %v37, 0.12903225
  %v2183 = vmul.f32 %v39, 0.12903225
  %v2200 = vrot.slane %v2168, 1
  %v2201 = vrot.slane %v2169, 1
  %v2202 = vrot.slane %v2170, 1
  %v2203 = vrot.slane %v2171, 1
  %v2204 = vrot.slane %v2172, 1
  %v2205 = vrot.slane %v2173, 1
  %v2206 = vrot.slane %v2174, 1
  %v2207 = vrot.slane %v2175, 1
  %v2208 = vrot.slane %v2176, 1
  %v2209 = vrot.slane %v2177, 1
  %v2210 = vrot.slane %v2178, 1
  %v2211 = vrot.slane %v2179, 1
  %v2212 = vrot.slane %v2180, 1
  %v2213 = vrot.slane %v2181, 1
  %v2214 = vrot.slane %v2182, 1
  %v2215 = vrot.slane %v2183, 1
  %v2232 = vadd.f32 %v2152, %v2200
  %v2233 = vadd.f32 %v2153, %v2201
  %v2234 = vadd.f32 %v2154, %v2202
  %v2235 = vadd.f32 %v2155, %v2203
  %v2236 = vadd.f32 %v2156, %v2204
  %v2237 = vadd.f32 %v2157, %v2205
  %v2238 = vadd.f32 %v2158, %v2206
  %v2239 = vadd.f32 %v2159, %v2207
  %v2240 = vadd.f32 %v2160, %v2208
  %v2241 = vadd.f32 %v2161, %v2209
  %v2242 = vadd.f32 %v2162, %v2210
  %v2243 = vadd.f32 %v2163, %v2211
  %v2244 = vadd.f32 %v2164, %v2212
  %v2245 = vadd.f32 %v2165, %v2213
  %v2246 = vadd.f32 %v2166, %v2214
  %v2247 = vadd.f32 %v2167, %v2215
  %v2248 = vmul.f32 %v9, 0.38709676
  %v2249 = vmul.f32 %v11, 0.38709676
  %v2250 = vmul.f32 %v13, 0.38709676
  %v2251 = vmul.f32 %v15, 0.38709676
  %v2252 = vmul.f32 %v17, 0.38709676
  %v2253 = vmul.f32 %v19, 0.38709676
  %v2254 = vmul.f32 %v21, 0.38709676
  %v2255 = vmul.f32 %v23, 0.38709676
  %v2256 = vmul.f32 %v25, 0.38709676
  %v2257 = vmul.f32 %v27, 0.38709676
  %v2258 = vmul.f32 %v29, 0.38709676
  %v2259 = vmul.f32 %v31, 0.38709676
  %v2260 = vmul.f32 %v33, 0.38709676
  %v2261 = vmul.f32 %v35, 0.38709676
  %v2262 = vmul.f32 %v37, 0.38709676
  %v2263 = vmul.f32 %v39, 0.38709676
  %v2264 = vmul.f32 %v9, 0.61290324
  %v2265 = vmul.f32 %v11, 0.61290324
  %v2266 = vmul.f32 %v13, 0.61290324
  %v2267 = vmul.f32 %v15, 0.61290324
  %v2268 = vmul.f32 %v17, 0.61290324
  %v2269 = vmul.f32 %v19, 0.61290324
  %v2270 = vmul.f32 %v21, 0.61290324
  %v2271 = vmul.f32 %v23, 0.61290324
  %v2272 = vmul.f32 %v25, 0.61290324
  %v2273 = vmul.f32 %v27, 0.61290324
  %v2274 = vmul.f32 %v29, 0.61290324
  %v2275 = vmul.f32 %v31, 0.61290324
  %v2276 = vmul.f32 %v33, 0.61290324
  %v2277 = vmul.f32 %v35, 0.61290324
  %v2278 = vmul.f32 %v37, 0.61290324
  %v2279 = vmul.f32 %v39, 0.61290324
  %v2296 = vrot.slane %v2264, 1
  %v2297 = vrot.slane %v2265, 1
  %v2298 = vrot.slane %v2266, 1
  %v2299 = vrot.slane %v2267, 1
  %v2300 = vrot.slane %v2268, 1
  %v2301 = vrot.slane %v2269, 1
  %v2302 = vrot.slane %v2270, 1
  %v2303 = vrot.slane %v2271, 1
  %v2304 = vrot.slane %v2272, 1
  %v2305 = vrot.slane %v2273, 1
  %v2306 = vrot.slane %v2274, 1
  %v2307 = vrot.slane %v2275, 1
  %v2308 = vrot.slane %v2276, 1
  %v2309 = vrot.slane %v2277, 1
  %v2310 = vrot.slane %v2278, 1
  %v2311 = vrot.slane %v2279, 1
  %v2328 = vadd.f32 %v2248, %v2296
  %v2329 = vadd.f32 %v2249, %v2297
  %v2330 = vadd.f32 %v2250, %v2298
  %v2331 = vadd.f32 %v2251, %v2299
  %v2332 = vadd.f32 %v2252, %v2300
  %v2333 = vadd.f32 %v2253, %v2301
  %v2334 = vadd.f32 %v2254, %v2302
  %v2335 = vadd.f32 %v2255, %v2303
  %v2336 = vadd.f32 %v2256, %v2304
  %v2337 = vadd.f32 %v2257, %v2305
  %v2338 = vadd.f32 %v2258, %v2306
  %v2339 = vadd.f32 %v2259, %v2307
  %v2340 = vadd.f32 %v2260, %v2308
  %v2341 = vadd.f32 %v2261, %v2309
  %v2342 = vadd.f32 %v2262, %v2310
  %v2343 = vadd.f32 %v2263, %v2311
  %v2344 = vmul.f32 %v9, 0.9032258
  %v2345 = vmul.f32 %v11, 0.9032258
  %v2346 = vmul.f32 %v13, 0.9032258
  %v2347 = vmul.f32 %v15, 0.9032258
  %v2348 = vmul.f32 %v17, 0.9032258
  %v2349 = vmul.f32 %v19, 0.9032258
  %v2350 = vmul.f32 %v21, 0.9032258
  %v2351 = vmul.f32 %v23, 0.9032258
  %v2352 = vmul.f32 %v25, 0.9032258
  %v2353 = vmul.f32 %v27, 0.9032258
  %v2354 = vmul.f32 %v29, 0.9032258
  %v2355 = vmul.f32 %v31, 0.9032258
  %v2356 = vmul.f32 %v33, 0.9032258
  %v2357 = vmul.f32 %v35, 0.9032258
  %v2358 = vmul.f32 %v37, 0.9032258
  %v2359 = vmul.f32 %v39, 0.9032258
  %v2360 = vmul.f32 %v9, 0.09677419
  %v2361 = vmul.f32 %v11, 0.09677419
  %v2362 = vmul.f32 %v13, 0.09677419
  %v2363 = vmul.f32 %v15, 0.09677419
  %v2364 = vmul.f32 %v17, 0.09677419
  %v2365 = vmul.f32 %v19, 0.09677419
  %v2366 = vmul.f32 %v21, 0.09677419
  %v2367 = vmul.f32 %v23, 0.09677419
  %v2368 = vmul.f32 %v25, 0.09677419
  %v2369 = vmul.f32 %v27, 0.09677419
  %v2370 = vmul.f32 %v29, 0.09677419
  %v2371 = vmul.f32 %v31, 0.09677419
  %v2372 = vmul.f32 %v33, 0.09677419
  %v2373 = vmul.f32 %v35, 0.09677419
  %v2374 = vmul.f32 %v37, 0.09677419
  %v2375 = vmul.f32 %v39, 0.09677419
  %v2392 = vrot.slane %v2360, 1
  %v2393 = vrot.slane %v2361, 1
  %v2394 = vrot.slane %v2362, 1
  %v2395 = vrot.slane %v2363, 1
  %v2396 = vrot.slane %v2364, 1
  %v2397 = vrot.slane %v2365, 1
  %v2398 = vrot.slane %v2366, 1
  %v2399 = vrot.slane %v2367, 1
  %v2400 = vrot.slane %v2368, 1
  %v2401 = vrot.slane %v2369, 1
  %v2402 = vrot.slane %v2370, 1
  %v2403 = vrot.slane %v2371, 1
  %v2404 = vrot.slane %v2372, 1
  %v2405 = vrot.slane %v2373, 1
  %v2406 = vrot.slane %v2374, 1
  %v2407 = vrot.slane %v2375, 1
  %v2424 = vadd.f32 %v2344, %v2392
  %v2425 = vadd.f32 %v2345, %v2393
  %v2426 = vadd.f32 %v2346, %v2394
  %v2427 = vadd.f32 %v2347, %v2395
  %v2428 = vadd.f32 %v2348, %v2396
  %v2429 = vadd.f32 %v2349, %v2397
  %v2430 = vadd.f32 %v2350, %v2398
  %v2431 = vadd.f32 %v2351, %v2399
  %v2432 = vadd.f32 %v2352, %v2400
  %v2433 = vadd.f32 %v2353, %v2401
  %v2434 = vadd.f32 %v2354, %v2402
  %v2435 = vadd.f32 %v2355, %v2403
  %v2436 = vadd.f32 %v2356, %v2404
  %v2437 = vadd.f32 %v2357, %v2405
  %v2438 = vadd.f32 %v2358, %v2406
  %v2439 = vadd.f32 %v2359, %v2407
  %v2440 = vmul.f32 %v9, 0.41935483
  %v2441 = vmul.f32 %v11, 0.41935483
  %v2442 = vmul.f32 %v13, 0.41935483
  %v2443 = vmul.f32 %v15, 0.41935483
  %v2444 = vmul.f32 %v17, 0.41935483
  %v2445 = vmul.f32 %v19, 0.41935483
  %v2446 = vmul.f32 %v21, 0.41935483
  %v2447 = vmul.f32 %v23, 0.41935483
  %v2448 = vmul.f32 %v25, 0.41935483
  %v2449 = vmul.f32 %v27, 0.41935483
  %v2450 = vmul.f32 %v29, 0.41935483
  %v2451 = vmul.f32 %v31, 0.41935483
  %v2452 = vmul.f32 %v33, 0.41935483
  %v2453 = vmul.f32 %v35, 0.41935483
  %v2454 = vmul.f32 %v37, 0.41935483
  %v2455 = vmul.f32 %v39, 0.41935483
  %v2456 = vmul.f32 %v9, 0.58064514
  %v2457 = vmul.f32 %v11, 0.58064514
  %v2458 = vmul.f32 %v13, 0.58064514
  %v2459 = vmul.f32 %v15, 0.58064514
  %v2460 = vmul.f32 %v17, 0.58064514
  %v2461 = vmul.f32 %v19, 0.58064514
  %v2462 = vmul.f32 %v21, 0.58064514
  %v2463 = vmul.f32 %v23, 0.58064514
  %v2464 = vmul.f32 %v25, 0.58064514
  %v2465 = vmul.f32 %v27, 0.58064514
  %v2466 = vmul.f32 %v29, 0.58064514
  %v2467 = vmul.f32 %v31, 0.58064514
  %v2468 = vmul.f32 %v33, 0.58064514
  %v2469 = vmul.f32 %v35, 0.58064514
  %v2470 = vmul.f32 %v37, 0.58064514
  %v2471 = vmul.f32 %v39, 0.58064514
  %v2488 = vrot.slane %v2456, 1
  %v2489 = vrot.slane %v2457, 1
  %v2490 = vrot.slane %v2458, 1
  %v2491 = vrot.slane %v2459, 1
  %v2492 = vrot.slane %v2460, 1
  %v2493 = vrot.slane %v2461, 1
  %v2494 = vrot.slane %v2462, 1
  %v2495 = vrot.slane %v2463, 1
  %v2496 = vrot.slane %v2464, 1
  %v2497 = vrot.slane %v2465, 1
  %v2498 = vrot.slane %v2466, 1
  %v2499 = vrot.slane %v2467, 1
  %v2500 = vrot.slane %v2468, 1
  %v2501 = vrot.slane %v2469, 1
  %v2502 = vrot.slane %v2470, 1
  %v2503 = vrot.slane %v2471, 1
  %v2520 = vadd.f32 %v2440, %v2488
  %v2521 = vadd.f32 %v2441, %v2489
  %v2522 = vadd.f32 %v2442, %v2490
  %v2523 = vadd.f32 %v2443, %v2491
  %v2524 = vadd.f32 %v2444, %v2492
  %v2525 = vadd.f32 %v2445, %v2493
  %v2526 = vadd.f32 %v2446, %v2494
  %v2527 = vadd.f32 %v2447, %v2495
  %v2528 = vadd.f32 %v2448, %v2496
  %v2529 = vadd.f32 %v2449, %v2497
  %v2530 = vadd.f32 %v2450, %v2498
  %v2531 = vadd.f32 %v2451, %v2499
  %v2532 = vadd.f32 %v2452, %v2500
  %v2533 = vadd.f32 %v2453, %v2501
  %v2534 = vadd.f32 %v2454, %v2502
  %v2535 = vadd.f32 %v2455, %v2503
  %v2536 = vmul.f32 %v9, 0.9354839
  %v2537 = vmul.f32 %v11, 0.9354839
  %v2538 = vmul.f32 %v13, 0.9354839
  %v2539 = vmul.f32 %v15, 0.9354839
  %v2540 = vmul.f32 %v17, 0.9354839
  %v2541 = vmul.f32 %v19, 0.9354839
  %v2542 = vmul.f32 %v21, 0.9354839
  %v2543 = vmul.f32 %v23, 0.9354839
  %v2544 = vmul.f32 %v25, 0.9354839
  %v2545 = vmul.f32 %v27, 0.9354839
  %v2546 = vmul.f32 %v29, 0.9354839
  %v2547 = vmul.f32 %v31, 0.9354839
  %v2548 = vmul.f32 %v33, 0.9354839
  %v2549 = vmul.f32 %v35, 0.9354839
  %v2550 = vmul.f32 %v37, 0.9354839
  %v2551 = vmul.f32 %v39, 0.9354839
  %v2552 = vmul.f32 %v9, 0.06451613
  %v2553 = vmul.f32 %v11, 0.06451613
  %v2554 = vmul.f32 %v13, 0.06451613
  %v2555 = vmul.f32 %v15, 0.06451613
  %v2556 = vmul.f32 %v17, 0.06451613
  %v2557 = vmul.f32 %v19, 0.06451613
  %v2558 = vmul.f32 %v21, 0.06451613
  %v2559 = vmul.f32 %v23, 0.06451613
  %v2560 = vmul.f32 %v25, 0.06451613
  %v2561 = vmul.f32 %v27, 0.06451613
  %v2562 = vmul.f32 %v29, 0.06451613
  %v2563 = vmul.f32 %v31, 0.06451613
  %v2564 = vmul.f32 %v33, 0.06451613
  %v2565 = vmul.f32 %v35, 0.06451613
  %v2566 = vmul.f32 %v37, 0.06451613
  %v2567 = vmul.f32 %v39, 0.06451613
  %v2584 = vrot.slane %v2552, 1
  %v2585 = vrot.slane %v2553, 1
  %v2586 = vrot.slane %v2554, 1
  %v2587 = vrot.slane %v2555, 1
  %v2588 = vrot.slane %v2556, 1
  %v2589 = vrot.slane %v2557, 1
  %v2590 = vrot.slane %v2558, 1
  %v2591 = vrot.slane %v2559, 1
  %v2592 = vrot.slane %v2560, 1
  %v2593 = vrot.slane %v2561, 1
  %v2594 = vrot.slane %v2562, 1
  %v2595 = vrot.slane %v2563, 1
  %v2596 = vrot.slane %v2564, 1
  %v2597 = vrot.slane %v2565, 1
  %v2598 = vrot.slane %v2566, 1
  %v2599 = vrot.slane %v2567, 1
  %v2616 = vadd.f32 %v2536, %v2584
  %v2617 = vadd.f32 %v2537, %v2585
  %v2618 = vadd.f32 %v2538, %v2586
  %v2619 = vadd.f32 %v2539, %v2587
  %v2620 = vadd.f32 %v2540, %v2588
  %v2621 = vadd.f32 %v2541, %v2589
  %v2622 = vadd.f32 %v2542, %v2590
  %v2623 = vadd.f32 %v2543, %v2591
  %v2624 = vadd.f32 %v2544, %v2592
  %v2625 = vadd.f32 %v2545, %v2593
  %v2626 = vadd.f32 %v2546, %v2594
  %v2627 = vadd.f32 %v2547, %v2595
  %v2628 = vadd.f32 %v2548, %v2596
  %v2629 = vadd.f32 %v2549, %v2597
  %v2630 = vadd.f32 %v2550, %v2598
  %v2631 = vadd.f32 %v2551, %v2599
  %v2632 = vmul.f32 %v9, 0.4516129
  %v2633 = vmul.f32 %v11, 0.4516129
  %v2634 = vmul.f32 %v13, 0.4516129
  %v2635 = vmul.f32 %v15, 0.4516129
  %v2636 = vmul.f32 %v17, 0.4516129
  %v2637 = vmul.f32 %v19, 0.4516129
  %v2638 = vmul.f32 %v21, 0.4516129
  %v2639 = vmul.f32 %v23, 0.4516129
  %v2640 = vmul.f32 %v25, 0.4516129
  %v2641 = vmul.f32 %v27, 0.4516129
  %v2642 = vmul.f32 %v29, 0.4516129
  %v2643 = vmul.f32 %v31, 0.4516129
  %v2644 = vmul.f32 %v33, 0.4516129
  %v2645 = vmul.f32 %v35, 0.4516129
  %v2646 = vmul.f32 %v37, 0.4516129
  %v2647 = vmul.f32 %v39, 0.4516129
  %v2648 = vmul.f32 %v9, 0.5483871
  %v2649 = vmul.f32 %v11, 0.5483871
  %v2650 = vmul.f32 %v13, 0.5483871
  %v2651 = vmul.f32 %v15, 0.5483871
  %v2652 = vmul.f32 %v17, 0.5483871
  %v2653 = vmul.f32 %v19, 0.5483871
  %v2654 = vmul.f32 %v21, 0.5483871
  %v2655 = vmul.f32 %v23, 0.5483871
  %v2656 = vmul.f32 %v25, 0.5483871
  %v2657 = vmul.f32 %v27, 0.5483871
  %v2658 = vmul.f32 %v29, 0.5483871
  %v2659 = vmul.f32 %v31, 0.5483871
  %v2660 = vmul.f32 %v33, 0.5483871
  %v2661 = vmul.f32 %v35, 0.5483871
  %v2662 = vmul.f32 %v37, 0.5483871
  %v2663 = vmul.f32 %v39, 0.5483871
  %v2680 = vrot.slane %v2648, 1
  %v2681 = vrot.slane %v2649, 1
  %v2682 = vrot.slane %v2650, 1
  %v2683 = vrot.slane %v2651, 1
  %v2684 = vrot.slane %v2652, 1
  %v2685 = vrot.slane %v2653, 1
  %v2686 = vrot.slane %v2654, 1
  %v2687 = vrot.slane %v2655, 1
  %v2688 = vrot.slane %v2656, 1
  %v2689 = vrot.slane %v2657, 1
  %v2690 = vrot.slane %v2658, 1
  %v2691 = vrot.slane %v2659, 1
  %v2692 = vrot.slane %v2660, 1
  %v2693 = vrot.slane %v2661, 1
  %v2694 = vrot.slane %v2662, 1
  %v2695 = vrot.slane %v2663, 1
  %v2712 = vadd.f32 %v2632, %v2680
  %v2713 = vadd.f32 %v2633, %v2681
  %v2714 = vadd.f32 %v2634, %v2682
  %v2715 = vadd.f32 %v2635, %v2683
  %v2716 = vadd.f32 %v2636, %v2684
  %v2717 = vadd.f32 %v2637, %v2685
  %v2718 = vadd.f32 %v2638, %v2686
  %v2719 = vadd.f32 %v2639, %v2687
  %v2720 = vadd.f32 %v2640, %v2688
  %v2721 = vadd.f32 %v2641, %v2689
  %v2722 = vadd.f32 %v2642, %v2690
  %v2723 = vadd.f32 %v2643, %v2691
  %v2724 = vadd.f32 %v2644, %v2692
  %v2725 = vadd.f32 %v2645, %v2693
  %v2726 = vadd.f32 %v2646, %v2694
  %v2727 = vadd.f32 %v2647, %v2695
  %v2728 = vmul.f32 %v9, 0.9677419
  %v2729 = vmul.f32 %v11, 0.9677419
  %v2730 = vmul.f32 %v13, 0.9677419
  %v2731 = vmul.f32 %v15, 0.9677419
  %v2732 = vmul.f32 %v17, 0.9677419
  %v2733 = vmul.f32 %v19, 0.9677419
  %v2734 = vmul.f32 %v21, 0.9677419
  %v2735 = vmul.f32 %v23, 0.9677419
  %v2736 = vmul.f32 %v25, 0.9677419
  %v2737 = vmul.f32 %v27, 0.9677419
  %v2738 = vmul.f32 %v29, 0.9677419
  %v2739 = vmul.f32 %v31, 0.9677419
  %v2740 = vmul.f32 %v33, 0.9677419
  %v2741 = vmul.f32 %v35, 0.9677419
  %v2742 = vmul.f32 %v37, 0.9677419
  %v2743 = vmul.f32 %v39, 0.9677419
  %v2744 = vmul.f32 %v9, 0.032258064
  %v2745 = vmul.f32 %v11, 0.032258064
  %v2746 = vmul.f32 %v13, 0.032258064
  %v2747 = vmul.f32 %v15, 0.032258064
  %v2748 = vmul.f32 %v17, 0.032258064
  %v2749 = vmul.f32 %v19, 0.032258064
  %v2750 = vmul.f32 %v21, 0.032258064
  %v2751 = vmul.f32 %v23, 0.032258064
  %v2752 = vmul.f32 %v25, 0.032258064
  %v2753 = vmul.f32 %v27, 0.032258064
  %v2754 = vmul.f32 %v29, 0.032258064
  %v2755 = vmul.f32 %v31, 0.032258064
  %v2756 = vmul.f32 %v33, 0.032258064
  %v2757 = vmul.f32 %v35, 0.032258064
  %v2758 = vmul.f32 %v37, 0.032258064
  %v2759 = vmul.f32 %v39, 0.032258064
  %v2776 = vrot.slane %v2744, 1
  %v2777 = vrot.slane %v2745, 1
  %v2778 = vrot.slane %v2746, 1
  %v2779 = vrot.slane %v2747, 1
  %v2780 = vrot.slane %v2748, 1
  %v2781 = vrot.slane %v2749, 1
  %v2782 = vrot.slane %v2750, 1
  %v2783 = vrot.slane %v2751, 1
  %v2784 = vrot.slane %v2752, 1
  %v2785 = vrot.slane %v2753, 1
  %v2786 = vrot.slane %v2754, 1
  %v2787 = vrot.slane %v2755, 1
  %v2788 = vrot.slane %v2756, 1
  %v2789 = vrot.slane %v2757, 1
  %v2790 = vrot.slane %v2758, 1
  %v2791 = vrot.slane %v2759, 1
  %v2808 = vadd.f32 %v2728, %v2776
  %v2809 = vadd.f32 %v2729, %v2777
  %v2810 = vadd.f32 %v2730, %v2778
  %v2811 = vadd.f32 %v2731, %v2779
  %v2812 = vadd.f32 %v2732, %v2780
  %v2813 = vadd.f32 %v2733, %v2781
  %v2814 = vadd.f32 %v2734, %v2782
  %v2815 = vadd.f32 %v2735, %v2783
  %v2816 = vadd.f32 %v2736, %v2784
  %v2817 = vadd.f32 %v2737, %v2785
  %v2818 = vadd.f32 %v2738, %v2786
  %v2819 = vadd.f32 %v2739, %v2787
  %v2820 = vadd.f32 %v2740, %v2788
  %v2821 = vadd.f32 %v2741, %v2789
  %v2822 = vadd.f32 %v2742, %v2790
  %v2823 = vadd.f32 %v2743, %v2791
  %v2824 = vmul.f32 %v9, 0.48387095
  %v2825 = vmul.f32 %v11, 0.48387095
  %v2826 = vmul.f32 %v13, 0.48387095
  %v2827 = vmul.f32 %v15, 0.48387095
  %v2828 = vmul.f32 %v17, 0.48387095
  %v2829 = vmul.f32 %v19, 0.48387095
  %v2830 = vmul.f32 %v21, 0.48387095
  %v2831 = vmul.f32 %v23, 0.48387095
  %v2832 = vmul.f32 %v25, 0.48387095
  %v2833 = vmul.f32 %v27, 0.48387095
  %v2834 = vmul.f32 %v29, 0.48387095
  %v2835 = vmul.f32 %v31, 0.48387095
  %v2836 = vmul.f32 %v33, 0.48387095
  %v2837 = vmul.f32 %v35, 0.48387095
  %v2838 = vmul.f32 %v37, 0.48387095
  %v2839 = vmul.f32 %v39, 0.48387095
  %v2840 = vmul.f32 %v9, 0.516129
  %v2841 = vmul.f32 %v11, 0.516129
  %v2842 = vmul.f32 %v13, 0.516129
  %v2843 = vmul.f32 %v15, 0.516129
  %v2844 = vmul.f32 %v17, 0.516129
  %v2845 = vmul.f32 %v19, 0.516129
  %v2846 = vmul.f32 %v21, 0.516129
  %v2847 = vmul.f32 %v23, 0.516129
  %v2848 = vmul.f32 %v25, 0.516129
  %v2849 = vmul.f32 %v27, 0.516129
  %v2850 = vmul.f32 %v29, 0.516129
  %v2851 = vmul.f32 %v31, 0.516129
  %v2852 = vmul.f32 %v33, 0.516129
  %v2853 = vmul.f32 %v35, 0.516129
  %v2854 = vmul.f32 %v37, 0.516129
  %v2855 = vmul.f32 %v39, 0.516129
  %v2872 = vrot.slane %v2840, 1
  %v2873 = vrot.slane %v2841, 1
  %v2874 = vrot.slane %v2842, 1
  %v2875 = vrot.slane %v2843, 1
  %v2876 = vrot.slane %v2844, 1
  %v2877 = vrot.slane %v2845, 1
  %v2878 = vrot.slane %v2846, 1
  %v2879 = vrot.slane %v2847, 1
  %v2880 = vrot.slane %v2848, 1
  %v2881 = vrot.slane %v2849, 1
  %v2882 = vrot.slane %v2850, 1
  %v2883 = vrot.slane %v2851, 1
  %v2884 = vrot.slane %v2852, 1
  %v2885 = vrot.slane %v2853, 1
  %v2886 = vrot.slane %v2854, 1
  %v2887 = vrot.slane %v2855, 1
  %v2904 = vadd.f32 %v2824, %v2872
  %v2905 = vadd.f32 %v2825, %v2873
  %v2906 = vadd.f32 %v2826, %v2874
  %v2907 = vadd.f32 %v2827, %v2875
  %v2908 = vadd.f32 %v2828, %v2876
  %v2909 = vadd.f32 %v2829, %v2877
  %v2910 = vadd.f32 %v2830, %v2878
  %v2911 = vadd.f32 %v2831, %v2879
  %v2912 = vadd.f32 %v2832, %v2880
  %v2913 = vadd.f32 %v2833, %v2881
  %v2914 = vadd.f32 %v2834, %v2882
  %v2915 = vadd.f32 %v2835, %v2883
  %v2916 = vadd.f32 %v2836, %v2884
  %v2917 = vadd.f32 %v2837, %v2885
  %v2918 = vadd.f32 %v2838, %v2886
  %v2919 = vadd.f32 %v2839, %v2887
  %v2936 = vrot.slane %v312, 1
  %v2937 = vrot.slane %v313, 1
  %v2938 = vrot.slane %v314, 1
  %v2939 = vrot.slane %v315, 1
  %v2940 = vrot.slane %v316, 1
  %v2941 = vrot.slane %v317, 1
  %v2942 = vrot.slane %v318, 1
  %v2943 = vrot.slane %v319, 1
  %v2944 = vrot.slane %v320, 1
  %v2945 = vrot.slane %v321, 1
  %v2946 = vrot.slane %v322, 1
  %v2947 = vrot.slane %v323, 1
  %v2948 = vrot.slane %v324, 1
  %v2949 = vrot.slane %v325, 1
  %v2950 = vrot.slane %v326, 1
  %v2951 = vrot.slane %v327, 1
  %v2984 = vrot.slane %v408, 1
  %v2985 = vrot.slane %v409, 1
  %v2986 = vrot.slane %v410, 1
  %v2987 = vrot.slane %v411, 1
  %v2988 = vrot.slane %v412, 1
  %v2989 = vrot.slane %v413, 1
  %v2990 = vrot.slane %v414, 1
  %v2991 = vrot.slane %v415, 1
  %v2992 = vrot.slane %v416, 1
  %v2993 = vrot.slane %v417, 1
  %v2994 = vrot.slane %v418, 1
  %v2995 = vrot.slane %v419, 1
  %v2996 = vrot.slane %v420, 1
  %v2997 = vrot.slane %v421, 1
  %v2998 = vrot.slane %v422, 1
  %v2999 = vrot.slane %v423, 1
  %v3032 = vrot.slane %v504, 2
  %v3033 = vrot.slane %v505, 2
  %v3034 = vrot.slane %v506, 2
  %v3035 = vrot.slane %v507, 2
  %v3036 = vrot.slane %v508, 2
  %v3037 = vrot.slane %v509, 2
  %v3038 = vrot.slane %v510, 2
  %v3039 = vrot.slane %v511, 2
  %v3040 = vrot.slane %v512, 2
  %v3041 = vrot.slane %v513, 2
  %v3042 = vrot.slane %v514, 2
  %v3043 = vrot.slane %v515, 2
  %v3044 = vrot.slane %v516, 2
  %v3045 = vrot.slane %v517, 2
  %v3046 = vrot.slane %v518, 2
  %v3047 = vrot.slane %v519, 2
  %v3080 = vrot.slane %v600, 2
  %v3081 = vrot.slane %v601, 2
  %v3082 = vrot.slane %v602, 2
  %v3083 = vrot.slane %v603, 2
  %v3084 = vrot.slane %v604, 2
  %v3085 = vrot.slane %v605, 2
  %v3086 = vrot.slane %v606, 2
  %v3087 = vrot.slane %v607, 2
  %v3088 = vrot.slane %v608, 2
  %v3089 = vrot.slane %v609, 2
  %v3090 = vrot.slane %v610, 2
  %v3091 = vrot.slane %v611, 2
  %v3092 = vrot.slane %v612, 2
  %v3093 = vrot.slane %v613, 2
  %v3094 = vrot.slane %v614, 2
  %v3095 = vrot.slane %v615, 2
  %v3128 = vrot.slane %v696, 3
  %v3129 = vrot.slane %v697, 3
  %v3130 = vrot.slane %v698, 3
  %v3131 = vrot.slane %v699, 3
  %v3132 = vrot.slane %v700, 3
  %v3133 = vrot.slane %v701, 3
  %v3134 = vrot.slane %v702, 3
  %v3135 = vrot.slane %v703, 3
  %v3136 = vrot.slane %v704, 3
  %v3137 = vrot.slane %v705, 3
  %v3138 = vrot.slane %v706, 3
  %v3139 = vrot.slane %v707, 3
  %v3140 = vrot.slane %v708, 3
  %v3141 = vrot.slane %v709, 3
  %v3142 = vrot.slane %v710, 3
  %v3143 = vrot.slane %v711, 3
  %v3176 = vrot.slane %v792, 3
  %v3177 = vrot.slane %v793, 3
  %v3178 = vrot.slane %v794, 3
  %v3179 = vrot.slane %v795, 3
  %v3180 = vrot.slane %v796, 3
  %v3181 = vrot.slane %v797, 3
  %v3182 = vrot.slane %v798, 3
  %v3183 = vrot.slane %v799, 3
  %v3184 = vrot.slane %v800, 3
  %v3185 = vrot.slane %v801, 3
  %v3186 = vrot.slane %v802, 3
  %v3187 = vrot.slane %v803, 3
  %v3188 = vrot.slane %v804, 3
  %v3189 = vrot.slane %v805, 3
  %v3190 = vrot.slane %v806, 3
  %v3191 = vrot.slane %v807, 3
  %v3224 = vrot.slane %v888, 4
  %v3225 = vrot.slane %v889, 4
  %v3226 = vrot.slane %v890, 4
  %v3227 = vrot.slane %v891, 4
  %v3228 = vrot.slane %v892, 4
  %v3229 = vrot.slane %v893, 4
  %v3230 = vrot.slane %v894, 4
  %v3231 = vrot.slane %v895, 4
  %v3232 = vrot.slane %v896, 4
  %v3233 = vrot.slane %v897, 4
  %v3234 = vrot.slane %v898, 4
  %v3235 = vrot.slane %v899, 4
  %v3236 = vrot.slane %v900, 4
  %v3237 = vrot.slane %v901, 4
  %v3238 = vrot.slane %v902, 4
  %v3239 = vrot.slane %v903, 4
  %v3272 = vrot.slane %v984, 4
  %v3273 = vrot.slane %v985, 4
  %v3274 = vrot.slane %v986, 4
  %v3275 = vrot.slane %v987, 4
  %v3276 = vrot.slane %v988, 4
  %v3277 = vrot.slane %v989, 4
  %v3278 = vrot.slane %v990, 4
  %v3279 = vrot.slane %v991, 4
  %v3280 = vrot.slane %v992, 4
  %v3281 = vrot.slane %v993, 4
  %v3282 = vrot.slane %v994, 4
  %v3283 = vrot.slane %v995, 4
  %v3284 = vrot.slane %v996, 4
  %v3285 = vrot.slane %v997, 4
  %v3286 = vrot.slane %v998, 4
  %v3287 = vrot.slane %v999, 4
  %v3320 = vrot.slane %v1080, 5
  %v3321 = vrot.slane %v1081, 5
  %v3322 = vrot.slane %v1082, 5
  %v3323 = vrot.slane %v1083, 5
  %v3324 = vrot.slane %v1084, 5
  %v3325 = vrot.slane %v1085, 5
  %v3326 = vrot.slane %v1086, 5
  %v3327 = vrot.slane %v1087, 5
  %v3328 = vrot.slane %v1088, 5
  %v3329 = vrot.slane %v1089, 5
  %v3330 = vrot.slane %v1090, 5
  %v3331 = vrot.slane %v1091, 5
  %v3332 = vrot.slane %v1092, 5
  %v3333 = vrot.slane %v1093, 5
  %v3334 = vrot.slane %v1094, 5
  %v3335 = vrot.slane %v1095, 5
  %v3368 = vrot.slane %v1176, 5
  %v3369 = vrot.slane %v1177, 5
  %v3370 = vrot.slane %v1178, 5
  %v3371 = vrot.slane %v1179, 5
  %v3372 = vrot.slane %v1180, 5
  %v3373 = vrot.slane %v1181, 5
  %v3374 = vrot.slane %v1182, 5
  %v3375 = vrot.slane %v1183, 5
  %v3376 = vrot.slane %v1184, 5
  %v3377 = vrot.slane %v1185, 5
  %v3378 = vrot.slane %v1186, 5
  %v3379 = vrot.slane %v1187, 5
  %v3380 = vrot.slane %v1188, 5
  %v3381 = vrot.slane %v1189, 5
  %v3382 = vrot.slane %v1190, 5
  %v3383 = vrot.slane %v1191, 5
  %v3416 = vrot.slane %v1272, 6
  %v3417 = vrot.slane %v1273, 6
  %v3418 = vrot.slane %v1274, 6
  %v3419 = vrot.slane %v1275, 6
  %v3420 = vrot.slane %v1276, 6
  %v3421 = vrot.slane %v1277, 6
  %v3422 = vrot.slane %v1278, 6
  %v3423 = vrot.slane %v1279, 6
  %v3424 = vrot.slane %v1280, 6
  %v3425 = vrot.slane %v1281, 6
  %v3426 = vrot.slane %v1282, 6
  %v3427 = vrot.slane %v1283, 6
  %v3428 = vrot.slane %v1284, 6
  %v3429 = vrot.slane %v1285, 6
  %v3430 = vrot.slane %v1286, 6
  %v3431 = vrot.slane %v1287, 6
  %v3464 = vrot.slane %v1368, 6
  %v3465 = vrot.slane %v1369, 6
  %v3466 = vrot.slane %v1370, 6
  %v3467 = vrot.slane %v1371, 6
  %v3468 = vrot.slane %v1372, 6
  %v3469 = vrot.slane %v1373, 6
  %v3470 = vrot.slane %v1374, 6
  %v3471 = vrot.slane %v1375, 6
  %v3472 = vrot.slane %v1376, 6
  %v3473 = vrot.slane %v1377, 6
  %v3474 = vrot.slane %v1378, 6
  %v3475 = vrot.slane %v1379, 6
  %v3476 = vrot.slane %v1380, 6
  %v3477 = vrot.slane %v1381, 6
  %v3478 = vrot.slane %v1382, 6
  %v3479 = vrot.slane %v1383, 6
  %v3512 = vrot.slane %v1464, 7
  %v3513 = vrot.slane %v1465, 7
  %v3514 = vrot.slane %v1466, 7
  %v3515 = vrot.slane %v1467, 7
  %v3516 = vrot.slane %v1468, 7
  %v3517 = vrot.slane %v1469, 7
  %v3518 = vrot.slane %v1470, 7
  %v3519 = vrot.slane %v1471, 7
  %v3520 = vrot.slane %v1472, 7
  %v3521 = vrot.slane %v1473, 7
  %v3522 = vrot.slane %v1474, 7
  %v3523 = vrot.slane %v1475, 7
  %v3524 = vrot.slane %v1476, 7
  %v3525 = vrot.slane %v1477, 7
  %v3526 = vrot.slane %v1478, 7
  %v3527 = vrot.slane %v1479, 7
  %v3560 = vrot.slane %v1656, 1
  %v3561 = vrot.slane %v1657, 1
  %v3562 = vrot.slane %v1658, 1
  %v3563 = vrot.slane %v1659, 1
  %v3564 = vrot.slane %v1660, 1
  %v3565 = vrot.slane %v1661, 1
  %v3566 = vrot.slane %v1662, 1
  %v3567 = vrot.slane %v1663, 1
  %v3568 = vrot.slane %v1664, 1
  %v3569 = vrot.slane %v1665, 1
  %v3570 = vrot.slane %v1666, 1
  %v3571 = vrot.slane %v1667, 1
  %v3572 = vrot.slane %v1668, 1
  %v3573 = vrot.slane %v1669, 1
  %v3574 = vrot.slane %v1670, 1
  %v3575 = vrot.slane %v1671, 1
  %v3592 = vrot.slane %v1752, 1
  %v3593 = vrot.slane %v1753, 1
  %v3594 = vrot.slane %v1754, 1
  %v3595 = vrot.slane %v1755, 1
  %v3596 = vrot.slane %v1756, 1
  %v3597 = vrot.slane %v1757, 1
  %v3598 = vrot.slane %v1758, 1
  %v3599 = vrot.slane %v1759, 1
  %v3600 = vrot.slane %v1760, 1
  %v3601 = vrot.slane %v1761, 1
  %v3602 = vrot.slane %v1762, 1
  %v3603 = vrot.slane %v1763, 1
  %v3604 = vrot.slane %v1764, 1
  %v3605 = vrot.slane %v1765, 1
  %v3606 = vrot.slane %v1766, 1
  %v3607 = vrot.slane %v1767, 1
  %v3624 = vrot.slane %v1848, 2
  %v3625 = vrot.slane %v1849, 2
  %v3626 = vrot.slane %v1850, 2
  %v3627 = vrot.slane %v1851, 2
  %v3628 = vrot.slane %v1852, 2
  %v3629 = vrot.slane %v1853, 2
  %v3630 = vrot.slane %v1854, 2
  %v3631 = vrot.slane %v1855, 2
  %v3632 = vrot.slane %v1856, 2
  %v3633 = vrot.slane %v1857, 2
  %v3634 = vrot.slane %v1858, 2
  %v3635 = vrot.slane %v1859, 2
  %v3636 = vrot.slane %v1860, 2
  %v3637 = vrot.slane %v1861, 2
  %v3638 = vrot.slane %v1862, 2
  %v3639 = vrot.slane %v1863, 2
  %v3656 = vrot.slane %v1944, 2
  %v3657 = vrot.slane %v1945, 2
  %v3658 = vrot.slane %v1946, 2
  %v3659 = vrot.slane %v1947, 2
  %v3660 = vrot.slane %v1948, 2
  %v3661 = vrot.slane %v1949, 2
  %v3662 = vrot.slane %v1950, 2
  %v3663 = vrot.slane %v1951, 2
  %v3664 = vrot.slane %v1952, 2
  %v3665 = vrot.slane %v1953, 2
  %v3666 = vrot.slane %v1954, 2
  %v3667 = vrot.slane %v1955, 2
  %v3668 = vrot.slane %v1956, 2
  %v3669 = vrot.slane %v1957, 2
  %v3670 = vrot.slane %v1958, 2
  %v3671 = vrot.slane %v1959, 2
  %v3688 = vrot.slane %v2040, 3
  %v3689 = vrot.slane %v2041, 3
  %v3690 = vrot.slane %v2042, 3
  %v3691 = vrot.slane %v2043, 3
  %v3692 = vrot.slane %v2044, 3
  %v3693 = vrot.slane %v2045, 3
  %v3694 = vrot.slane %v2046, 3
  %v3695 = vrot.slane %v2047, 3
  %v3696 = vrot.slane %v2048, 3
  %v3697 = vrot.slane %v2049, 3
  %v3698 = vrot.slane %v2050, 3
  %v3699 = vrot.slane %v2051, 3
  %v3700 = vrot.slane %v2052, 3
  %v3701 = vrot.slane %v2053, 3
  %v3702 = vrot.slane %v2054, 3
  %v3703 = vrot.slane %v2055, 3
  %v3720 = vrot.slane %v2136, 3
  %v3721 = vrot.slane %v2137, 3
  %v3722 = vrot.slane %v2138, 3
  %v3723 = vrot.slane %v2139, 3
  %v3724 = vrot.slane %v2140, 3
  %v3725 = vrot.slane %v2141, 3
  %v3726 = vrot.slane %v2142, 3
  %v3727 = vrot.slane %v2143, 3
  %v3728 = vrot.slane %v2144, 3
  %v3729 = vrot.slane %v2145, 3
  %v3730 = vrot.slane %v2146, 3
  %v3731 = vrot.slane %v2147, 3
  %v3732 = vrot.slane %v2148, 3
  %v3733 = vrot.slane %v2149, 3
  %v3734 = vrot.slane %v2150, 3
  %v3735 = vrot.slane %v2151, 3
  %v3752 = vrot.slane %v2232, 4
  %v3753 = vrot.slane %v2233, 4
  %v3754 = vrot.slane %v2234, 4
  %v3755 = vrot.slane %v2235, 4
  %v3756 = vrot.slane %v2236, 4
  %v3757 = vrot.slane %v2237, 4
  %v3758 = vrot.slane %v2238, 4
  %v3759 = vrot.slane %v2239, 4
  %v3760 = vrot.slane %v2240, 4
  %v3761 = vrot.slane %v2241, 4
  %v3762 = vrot.slane %v2242, 4
  %v3763 = vrot.slane %v2243, 4
  %v3764 = vrot.slane %v2244, 4
  %v3765 = vrot.slane %v2245, 4
  %v3766 = vrot.slane %v2246, 4
  %v3767 = vrot.slane %v2247, 4
  %v3784 = vrot.slane %v2328, 4
  %v3785 = vrot.slane %v2329, 4
  %v3786 = vrot.slane %v2330, 4
  %v3787 = vrot.slane %v2331, 4
  %v3788 = vrot.slane %v2332, 4
  %v3789 = vrot.slane %v2333, 4
  %v3790 = vrot.slane %v2334, 4
  %v3791 = vrot.slane %v2335, 4
  %v3792 = vrot.slane %v2336, 4
  %v3793 = vrot.slane %v2337, 4
  %v3794 = vrot.slane %v2338, 4
  %v3795 = vrot.slane %v2339, 4
  %v3796 = vrot.slane %v2340, 4
  %v3797 = vrot.slane %v2341, 4
  %v3798 = vrot.slane %v2342, 4
  %v3799 = vrot.slane %v2343, 4
  %v3816 = vrot.slane %v2424, 5
  %v3817 = vrot.slane %v2425, 5
  %v3818 = vrot.slane %v2426, 5
  %v3819 = vrot.slane %v2427, 5
  %v3820 = vrot.slane %v2428, 5
  %v3821 = vrot.slane %v2429, 5
  %v3822 = vrot.slane %v2430, 5
  %v3823 = vrot.slane %v2431, 5
  %v3824 = vrot.slane %v2432, 5
  %v3825 = vrot.slane %v2433, 5
  %v3826 = vrot.slane %v2434, 5
  %v3827 = vrot.slane %v2435, 5
  %v3828 = vrot.slane %v2436, 5
  %v3829 = vrot.slane %v2437, 5
  %v3830 = vrot.slane %v2438, 5
  %v3831 = vrot.slane %v2439, 5
  %v3848 = vrot.slane %v2520, 5
  %v3849 = vrot.slane %v2521, 5
  %v3850 = vrot.slane %v2522, 5
  %v3851 = vrot.slane %v2523, 5
  %v3852 = vrot.slane %v2524, 5
  %v3853 = vrot.slane %v2525, 5
  %v3854 = vrot.slane %v2526, 5
  %v3855 = vrot.slane %v2527, 5
  %v3856 = vrot.slane %v2528, 5
  %v3857 = vrot.slane %v2529, 5
  %v3858 = vrot.slane %v2530, 5
  %v3859 = vrot.slane %v2531, 5
  %v3860 = vrot.slane %v2532, 5
  %v3861 = vrot.slane %v2533, 5
  %v3862 = vrot.slane %v2534, 5
  %v3863 = vrot.slane %v2535, 5
  %v3880 = vrot.slane %v2616, 6
  %v3881 = vrot.slane %v2617, 6
  %v3882 = vrot.slane %v2618, 6
  %v3883 = vrot.slane %v2619, 6
  %v3884 = vrot.slane %v2620, 6
  %v3885 = vrot.slane %v2621, 6
  %v3886 = vrot.slane %v2622, 6
  %v3887 = vrot.slane %v2623, 6
  %v3888 = vrot.slane %v2624, 6
  %v3889 = vrot.slane %v2625, 6
  %v3890 = vrot.slane %v2626, 6
  %v3891 = vrot.slane %v2627, 6
  %v3892 = vrot.slane %v2628, 6
  %v3893 = vrot.slane %v2629, 6
  %v3894 = vrot.slane %v2630, 6
  %v3895 = vrot.slane %v2631, 6
  %v3912 = vrot.slane %v2712, 6
  %v3913 = vrot.slane %v2713, 6
  %v3914 = vrot.slane %v2714, 6
  %v3915 = vrot.slane %v2715, 6
  %v3916 = vrot.slane %v2716, 6
  %v3917 = vrot.slane %v2717, 6
  %v3918 = vrot.slane %v2718, 6
  %v3919 = vrot.slane %v2719, 6
  %v3920 = vrot.slane %v2720, 6
  %v3921 = vrot.slane %v2721, 6
  %v3922 = vrot.slane %v2722, 6
  %v3923 = vrot.slane %v2723, 6
  %v3924 = vrot.slane %v2724, 6
  %v3925 = vrot.slane %v2725, 6
  %v3926 = vrot.slane %v2726, 6
  %v3927 = vrot.slane %v2727, 6
  %v3944 = vrot.slane %v2808, 7
  %v3945 = vrot.slane %v2809, 7
  %v3946 = vrot.slane %v2810, 7
  %v3947 = vrot.slane %v2811, 7
  %v3948 = vrot.slane %v2812, 7
  %v3949 = vrot.slane %v2813, 7
  %v3950 = vrot.slane %v2814, 7
  %v3951 = vrot.slane %v2815, 7
  %v3952 = vrot.slane %v2816, 7
  %v3953 = vrot.slane %v2817, 7
  %v3954 = vrot.slane %v2818, 7
  %v3955 = vrot.slane %v2819, 7
  %v3956 = vrot.slane %v2820, 7
  %v3957 = vrot.slane %v2821, 7
  %v3958 = vrot.slane %v2822, 7
  %v3959 = vrot.slane %v2823, 7
  %v3976 = vrot.slane %v2904, 7
  %v3977 = vrot.slane %v2905, 7
  %v3978 = vrot.slane %v2906, 7
  %v3979 = vrot.slane %v2907, 7
  %v3980 = vrot.slane %v2908, 7
  %v3981 = vrot.slane %v2909, 7
  %v3982 = vrot.slane %v2910, 7
  %v3983 = vrot.slane %v2911, 7
  %v3984 = vrot.slane %v2912, 7
  %v3985 = vrot.slane %v2913, 7
  %v3986 = vrot.slane %v2914, 7
  %v3987 = vrot.slane %v2915, 7
  %v3988 = vrot.slane %v2916, 7
  %v3989 = vrot.slane %v2917, 7
  %v3990 = vrot.slane %v2918, 7
  %v3991 = vrot.slane %v2919, 7
  %v4024 = vrot.slane %v1560, 7
  %v4025 = vrot.slane %v1561, 7
  %v4026 = vrot.slane %v1562, 7
  %v4027 = vrot.slane %v1563, 7
  %v4028 = vrot.slane %v1564, 7
  %v4029 = vrot.slane %v1565, 7
  %v4030 = vrot.slane %v1566, 7
  %v4031 = vrot.slane %v1567, 7
  %v4032 = vrot.slane %v1568, 7
  %v4033 = vrot.slane %v1569, 7
  %v4034 = vrot.slane %v1570, 7
  %v4035 = vrot.slane %v1571, 7
  %v4036 = vrot.slane %v1572, 7
  %v4037 = vrot.slane %v1573, 7
  %v4038 = vrot.slane %v1574, 7
  %v4039 = vrot.slane %v1575, 7
  %v4040 = vrot.slane %v3560, 7
  %v4041 = vrot.slane %v3561, 7
  %v4042 = vrot.slane %v3562, 7
  %v4043 = vrot.slane %v3563, 7
  %v4044 = vrot.slane %v3564, 7
  %v4045 = vrot.slane %v3565, 7
  %v4046 = vrot.slane %v3566, 7
  %v4047 = vrot.slane %v3567, 7
  %v4048 = vrot.slane %v3568, 7
  %v4049 = vrot.slane %v3569, 7
  %v4050 = vrot.slane %v3570, 7
  %v4051 = vrot.slane %v3571, 7
  %v4052 = vrot.slane %v3572, 7
  %v4053 = vrot.slane %v3573, 7
  %v4054 = vrot.slane %v3574, 7
  %v4055 = vrot.slane %v3575, 7
  %v4056 = vrot.slane %v3592, 7
  %v4057 = vrot.slane %v3593, 7
  %v4058 = vrot.slane %v3594, 7
  %v4059 = vrot.slane %v3595, 7
  %v4060 = vrot.slane %v3596, 7
  %v4061 = vrot.slane %v3597, 7
  %v4062 = vrot.slane %v3598, 7
  %v4063 = vrot.slane %v3599, 7
  %v4064 = vrot.slane %v3600, 7
  %v4065 = vrot.slane %v3601, 7
  %v4066 = vrot.slane %v3602, 7
  %v4067 = vrot.slane %v3603, 7
  %v4068 = vrot.slane %v3604, 7
  %v4069 = vrot.slane %v3605, 7
  %v4070 = vrot.slane %v3606, 7
  %v4071 = vrot.slane %v3607, 7
  %v4072 = vrot.slane %v3624, 7
  %v4073 = vrot.slane %v3625, 7
  %v4074 = vrot.slane %v3626, 7
  %v4075 = vrot.slane %v3627, 7
  %v4076 = vrot.slane %v3628, 7
  %v4077 = vrot.slane %v3629, 7
  %v4078 = vrot.slane %v3630, 7
  %v4079 = vrot.slane %v3631, 7
  %v4080 = vrot.slane %v3632, 7
  %v4081 = vrot.slane %v3633, 7
  %v4082 = vrot.slane %v3634, 7
  %v4083 = vrot.slane %v3635, 7
  %v4084 = vrot.slane %v3636, 7
  %v4085 = vrot.slane %v3637, 7
  %v4086 = vrot.slane %v3638, 7
  %v4087 = vrot.slane %v3639, 7
  %v4088 = vrot.slane %v3656, 7
  %v4089 = vrot.slane %v3657, 7
  %v4090 = vrot.slane %v3658, 7
  %v4091 = vrot.slane %v3659, 7
  %v4092 = vrot.slane %v3660, 7
  %v4093 = vrot.slane %v3661, 7
  %v4094 = vrot.slane %v3662, 7
  %v4095 = vrot.slane %v3663, 7
  %v4096 = vrot.slane %v3664, 7
  %v4097 = vrot.slane %v3665, 7
  %v4098 = vrot.slane %v3666, 7
  %v4099 = vrot.slane %v3667, 7
  %v4100 = vrot.slane %v3668, 7
  %v4101 = vrot.slane %v3669, 7
  %v4102 = vrot.slane %v3670, 7
  %v4103 = vrot.slane %v3671, 7
  %v4104 = vrot.slane %v3688, 7
  %v4105 = vrot.slane %v3689, 7
  %v4106 = vrot.slane %v3690, 7
  %v4107 = vrot.slane %v3691, 7
  %v4108 = vrot.slane %v3692, 7
  %v4109 = vrot.slane %v3693, 7
  %v4110 = vrot.slane %v3694, 7
  %v4111 = vrot.slane %v3695, 7
  %v4112 = vrot.slane %v3696, 7
  %v4113 = vrot.slane %v3697, 7
  %v4114 = vrot.slane %v3698, 7
  %v4115 = vrot.slane %v3699, 7
  %v4116 = vrot.slane %v3700, 7
  %v4117 = vrot.slane %v3701, 7
  %v4118 = vrot.slane %v3702, 7
  %v4119 = vrot.slane %v3703, 7
  %v4120 = vrot.slane %v3720, 7
  %v4121 = vrot.slane %v3721, 7
  %v4122 = vrot.slane %v3722, 7
  %v4123 = vrot.slane %v3723, 7
  %v4124 = vrot.slane %v3724, 7
  %v4125 = vrot.slane %v3725, 7
  %v4126 = vrot.slane %v3726, 7
  %v4127 = vrot.slane %v3727, 7
  %v4128 = vrot.slane %v3728, 7
  %v4129 = vrot.slane %v3729, 7
  %v4130 = vrot.slane %v3730, 7
  %v4131 = vrot.slane %v3731, 7
  %v4132 = vrot.slane %v3732, 7
  %v4133 = vrot.slane %v3733, 7
  %v4134 = vrot.slane %v3734, 7
  %v4135 = vrot.slane %v3735, 7
  %v4136 = vrot.slane %v3752, 7
  %v4137 = vrot.slane %v3753, 7
  %v4138 = vrot.slane %v3754, 7
  %v4139 = vrot.slane %v3755, 7
  %v4140 = vrot.slane %v3756, 7
  %v4141 = vrot.slane %v3757, 7
  %v4142 = vrot.slane %v3758, 7
  %v4143 = vrot.slane %v3759, 7
  %v4144 = vrot.slane %v3760, 7
  %v4145 = vrot.slane %v3761, 7
  %v4146 = vrot.slane %v3762, 7
  %v4147 = vrot.slane %v3763, 7
  %v4148 = vrot.slane %v3764, 7
  %v4149 = vrot.slane %v3765, 7
  %v4150 = vrot.slane %v3766, 7
  %v4151 = vrot.slane %v3767, 7
  %v4152 = vrot.slane %v3784, 7
  %v4153 = vrot.slane %v3785, 7
  %v4154 = vrot.slane %v3786, 7
  %v4155 = vrot.slane %v3787, 7
  %v4156 = vrot.slane %v3788, 7
  %v4157 = vrot.slane %v3789, 7
  %v4158 = vrot.slane %v3790, 7
  %v4159 = vrot.slane %v3791, 7
  %v4160 = vrot.slane %v3792, 7
  %v4161 = vrot.slane %v3793, 7
  %v4162 = vrot.slane %v3794, 7
  %v4163 = vrot.slane %v3795, 7
  %v4164 = vrot.slane %v3796, 7
  %v4165 = vrot.slane %v3797, 7
  %v4166 = vrot.slane %v3798, 7
  %v4167 = vrot.slane %v3799, 7
  %v4168 = vrot.slane %v3816, 7
  %v4169 = vrot.slane %v3817, 7
  %v4170 = vrot.slane %v3818, 7
  %v4171 = vrot.slane %v3819, 7
  %v4172 = vrot.slane %v3820, 7
  %v4173 = vrot.slane %v3821, 7
  %v4174 = vrot.slane %v3822, 7
  %v4175 = vrot.slane %v3823, 7
  %v4176 = vrot.slane %v3824, 7
  %v4177 = vrot.slane %v3825, 7
  %v4178 = vrot.slane %v3826, 7
  %v4179 = vrot.slane %v3827, 7
  %v4180 = vrot.slane %v3828, 7
  %v4181 = vrot.slane %v3829, 7
  %v4182 = vrot.slane %v3830, 7
  %v4183 = vrot.slane %v3831, 7
  %v4184 = vrot.slane %v3848, 7
  %v4185 = vrot.slane %v3849, 7
  %v4186 = vrot.slane %v3850, 7
  %v4187 = vrot.slane %v3851, 7
  %v4188 = vrot.slane %v3852, 7
  %v4189 = vrot.slane %v3853, 7
  %v4190 = vrot.slane %v3854, 7
  %v4191 = vrot.slane %v3855, 7
  %v4192 = vrot.slane %v3856, 7
  %v4193 = vrot.slane %v3857, 7
  %v4194 = vrot.slane %v3858, 7
  %v4195 = vrot.slane %v3859, 7
  %v4196 = vrot.slane %v3860, 7
  %v4197 = vrot.slane %v3861, 7
  %v4198 = vrot.slane %v3862, 7
  %v4199 = vrot.slane %v3863, 7
  %v4200 = vrot.slane %v3880, 7
  %v4201 = vrot.slane %v3881, 7
  %v4202 = vrot.slane %v3882, 7
  %v4203 = vrot.slane %v3883, 7
  %v4204 = vrot.slane %v3884, 7
  %v4205 = vrot.slane %v3885, 7
  %v4206 = vrot.slane %v3886, 7
  %v4207 = vrot.slane %v3887, 7
  %v4208 = vrot.slane %v3888, 7
  %v4209 = vrot.slane %v3889, 7
  %v4210 = vrot.slane %v3890, 7
  %v4211 = vrot.slane %v3891, 7
  %v4212 = vrot.slane %v3892, 7
  %v4213 = vrot.slane %v3893, 7
  %v4214 = vrot.slane %v3894, 7
  %v4215 = vrot.slane %v3895, 7
  %v4216 = vrot.slane %v3912, 7
  %v4217 = vrot.slane %v3913, 7
  %v4218 = vrot.slane %v3914, 7
  %v4219 = vrot.slane %v3915, 7
  %v4220 = vrot.slane %v3916, 7
  %v4221 = vrot.slane %v3917, 7
  %v4222 = vrot.slane %v3918, 7
  %v4223 = vrot.slane %v3919, 7
  %v4224 = vrot.slane %v3920, 7
  %v4225 = vrot.slane %v3921, 7
  %v4226 = vrot.slane %v3922, 7
  %v4227 = vrot.slane %v3923, 7
  %v4228 = vrot.slane %v3924, 7
  %v4229 = vrot.slane %v3925, 7
  %v4230 = vrot.slane %v3926, 7
  %v4231 = vrot.slane %v3927, 7
  %v4232 = vrot.slane %v3944, 7
  %v4233 = vrot.slane %v3945, 7
  %v4234 = vrot.slane %v3946, 7
  %v4235 = vrot.slane %v3947, 7
  %v4236 = vrot.slane %v3948, 7
  %v4237 = vrot.slane %v3949, 7
  %v4238 = vrot.slane %v3950, 7
  %v4239 = vrot.slane %v3951, 7
  %v4240 = vrot.slane %v3952, 7
  %v4241 = vrot.slane %v3953, 7
  %v4242 = vrot.slane %v3954, 7
  %v4243 = vrot.slane %v3955, 7
  %v4244 = vrot.slane %v3956, 7
  %v4245 = vrot.slane %v3957, 7
  %v4246 = vrot.slane %v3958, 7
  %v4247 = vrot.slane %v3959, 7
  %v4248 = vrot.slane %v3976, 7
  %v4249 = vrot.slane %v3977, 7
  %v4250 = vrot.slane %v3978, 7
  %v4251 = vrot.slane %v3979, 7
  %v4252 = vrot.slane %v3980, 7
  %v4253 = vrot.slane %v3981, 7
  %v4254 = vrot.slane %v3982, 7
  %v4255 = vrot.slane %v3983, 7
  %v4256 = vrot.slane %v3984, 7
  %v4257 = vrot.slane %v3985, 7
  %v4258 = vrot.slane %v3986, 7
  %v4259 = vrot.slane %v3987, 7
  %v4260 = vrot.slane %v3988, 7
  %v4261 = vrot.slane %v3989, 7
  %v4262 = vrot.slane %v3990, 7
  %v4263 = vrot.slane %v3991, 7
  %v4264 = vrot.slane %v9, 7
  %v4265 = vrot.slane %v11, 7
  %v4266 = vrot.slane %v13, 7
  %v4267 = vrot.slane %v15, 7
  %v4268 = vrot.slane %v17, 7
  %v4269 = vrot.slane %v19, 7
  %v4270 = vrot.slane %v21, 7
  %v4271 = vrot.slane %v23, 7
  %v4272 = vrot.slane %v25, 7
  %v4273 = vrot.slane %v27, 7
  %v4274 = vrot.slane %v29, 7
  %v4275 = vrot.slane %v31, 7
  %v4276 = vrot.slane %v33, 7
  %v4277 = vrot.slane %v35, 7
  %v4278 = vrot.slane %v37, 7
  %v4279 = vrot.slane %v39, 7
  %v4539 = vrot.slane %v120, 7
  %vm4540 = vcmask 1041409
  %v4541 = vsel %vm4540, %v4539, %v8
  %v4542 = vrot.slane %v216, 6
  %vm4543 = vcmask 1042434
  %v4544 = vsel %vm4543, %v4542, %v4541
  %v4545 = vrot.slane %v2936, 5
  %vm4546 = vcmask 1043459
  %v4547 = vsel %vm4546, %v4545, %v4544
  %v4548 = vrot.slane %v2984, 4
  %vm4549 = vcmask 1044484
  %v4550 = vsel %vm4549, %v4548, %v4547
  %v4551 = vrot.slane %v3032, 3
  %vm4552 = vcmask 1045509
  %v4553 = vsel %vm4552, %v4551, %v4550
  %v4554 = vrot.slane %v3080, 2
  %vm4555 = vcmask 1046534
  %v4556 = vsel %vm4555, %v4554, %v4553
  %v4557 = vrot.slane %v3128, 1
  %vm4558 = vcmask 1047559
  %v4559 = vsel %vm4558, %v4557, %v4556
  %v4560 = vrot.slane %v3224, 7
  %v4561 = vsel %vm4540, %v4560, %v3176
  %v4562 = vrot.slane %v3272, 6
  %v4563 = vsel %vm4543, %v4562, %v4561
  %v4564 = vrot.slane %v3320, 5
  %v4565 = vsel %vm4546, %v4564, %v4563
  %v4566 = vrot.slane %v3368, 4
  %v4567 = vsel %vm4549, %v4566, %v4565
  %v4568 = vrot.slane %v3416, 3
  %v4569 = vsel %vm4552, %v4568, %v4567
  %v4570 = vrot.slane %v3464, 2
  %v4571 = vsel %vm4555, %v4570, %v4569
  %v4572 = vrot.slane %v3512, 1
  %v4573 = vsel %vm4558, %v4572, %v4571
  %v4574 = vrot.slane %v4040, 7
  %v4575 = vsel %vm4540, %v4574, %v4024
  %v4576 = vrot.slane %v4056, 6
  %v4577 = vsel %vm4543, %v4576, %v4575
  %v4578 = vrot.slane %v4072, 5
  %v4579 = vsel %vm4546, %v4578, %v4577
  %v4580 = vrot.slane %v4088, 4
  %v4581 = vsel %vm4549, %v4580, %v4579
  %v4582 = vrot.slane %v4104, 3
  %v4583 = vsel %vm4552, %v4582, %v4581
  %v4584 = vrot.slane %v4120, 2
  %v4585 = vsel %vm4555, %v4584, %v4583
  %v4586 = vrot.slane %v4136, 1
  %v4587 = vsel %vm4558, %v4586, %v4585
  %v4588 = vrot.slane %v4168, 7
  %v4589 = vsel %vm4540, %v4588, %v4152
  %v4590 = vrot.slane %v4184, 6
  %v4591 = vsel %vm4543, %v4590, %v4589
  %v4592 = vrot.slane %v4200, 5
  %v4593 = vsel %vm4546, %v4592, %v4591
  %v4594 = vrot.slane %v4216, 4
  %v4595 = vsel %vm4549, %v4594, %v4593
  %v4596 = vrot.slane %v4232, 3
  %v4597 = vsel %vm4552, %v4596, %v4595
  %v4598 = vrot.slane %v4248, 2
  %v4599 = vsel %vm4555, %v4598, %v4597
  %v4600 = vrot.slane %v4264, 1
  %v4601 = vsel %vm4558, %v4600, %v4599
  %vm4606 = vcmask 64512
  %4607 = vst.msk [vmem:[%s1] sm:$0xff] %vm4606, %v4559
  %4608 = vst.msk [vmem:[%s1 + $0x8] sm:$0xff] %vm4606, %v4573
  %4609 = vst.msk [vmem:[%s1 + $0x10] sm:$0xff] %vm4606, %v4587
  %4610 = vst.msk [vmem:[%s1 + $0x18] sm:$0xff] %vm4606, %v4601
  %v4611 = vmul.f32 %v120, 0.516129
  %v4612 = vmul.f32 %v216, 0.516129
  %v4613 = vmul.f32 %v2936, 0.516129
  %v4614 = vmul.f32 %v2984, 0.516129
  %v4615 = vmul.f32 %v3032, 0.516129
  %v4616 = vmul.f32 %v3080, 0.516129
  %v4617 = vmul.f32 %v3128, 0.516129
  %v4618 = vmul.f32 %v3176, 0.516129
  %v4619 = vmul.f32 %v3224, 0.516129
  %v4620 = vmul.f32 %v3272, 0.516129
  %v4621 = vmul.f32 %v3320, 0.516129
  %v4622 = vmul.f32 %v3368, 0.516129
  %v4623 = vmul.f32 %v3416, 0.516129
  %v4624 = vmul.f32 %v3464, 0.516129
  %v4625 = vmul.f32 %v3512, 0.516129
  %v4626 = vmul.f32 %v4024, 0.516129
  %v4627 = vmul.f32 %v4040, 0.516129
  %v4628 = vmul.f32 %v4056, 0.516129
  %v4629 = vmul.f32 %v4072, 0.516129
  %v4630 = vmul.f32 %v4088, 0.516129
  %v4631 = vmul.f32 %v4104, 0.516129
  %v4632 = vmul.f32 %v4120, 0.516129
  %v4633 = vmul.f32 %v4136, 0.516129
  %v4634 = vmul.f32 %v4152, 0.516129
  %v4635 = vmul.f32 %v4168, 0.516129
  %v4636 = vmul.f32 %v4184, 0.516129
  %v4637 = vmul.f32 %v4200, 0.516129
  %v4638 = vmul.f32 %v4216, 0.516129
  %v4639 = vmul.f32 %v4232, 0.516129
  %v4640 = vmul.f32 %v4248, 0.516129
  %v4641 = vmul.f32 %v4264, 0.516129
  %v4642 = vmul.f32 %v121, 0.48387095
  %v4643 = vmul.f32 %v217, 0.48387095
  %v4644 = vmul.f32 %v2937, 0.48387095
  %v4645 = vmul.f32 %v2985, 0.48387095
  %v4646 = vmul.f32 %v3033, 0.48387095
  %v4647 = vmul.f32 %v3081, 0.48387095
  %v4648 = vmul.f32 %v3129, 0.48387095
  %v4649 = vmul.f32 %v3177, 0.48387095
  %v4650 = vmul.f32 %v3225, 0.48387095
  %v4651 = vmul.f32 %v3273, 0.48387095
  %v4652 = vmul.f32 %v3321, 0.48387095
  %v4653 = vmul.f32 %v3369, 0.48387095
  %v4654 = vmul.f32 %v3417, 0.48387095
  %v4655 = vmul.f32 %v3465, 0.48387095
  %v4656 = vmul.f32 %v3513, 0.48387095
  %v4657 = vmul.f32 %v4025, 0.48387095
  %v4658 = vmul.f32 %v4041, 0.48387095
  %v4659 = vmul.f32 %v4057, 0.48387095
  %v4660 = vmul.f32 %v4073, 0.48387095
  %v4661 = vmul.f32 %v4089, 0.48387095
  %v4662 = vmul.f32 %v4105, 0.48387095
  %v4663 = vmul.f32 %v4121, 0.48387095
  %v4664 = vmul.f32 %v4137, 0.48387095
  %v4665 = vmul.f32 %v4153, 0.48387095
  %v4666 = vmul.f32 %v4169, 0.48387095
  %v4667 = vmul.f32 %v4185, 0.48387095
  %v4668 = vmul.f32 %v4201, 0.48387095
  %v4669 = vmul.f32 %v4217, 0.48387095
  %v4670 = vmul.f32 %v4233, 0.48387095
  %v4671 = vmul.f32 %v4249, 0.48387095
  %v4672 = vmul.f32 %v4265, 0.48387095
  %v4673 = vadd.f32 %v40, %v57
  %v4674 = vadd.f32 %v4611, %v4642
  %v4675 = vadd.f32 %v4612, %v4643
  %v4676 = vadd.f32 %v4613, %v4644
  %v4677 = vadd.f32 %v4614, %v4645
  %v4678 = vadd.f32 %v4615, %v4646
  %v4679 = vadd.f32 %v4616, %v4647
  %v4680 = vadd.f32 %v4617, %v4648
  %v4681 = vadd.f32 %v4618, %v4649
  %v4682 = vadd.f32 %v4619, %v4650
  %v4683 = vadd.f32 %v4620, %v4651
  %v4684 = vadd.f32 %v4621, %v4652
  %v4685 = vadd.f32 %v4622, %v4653
  %v4686 = vadd.f32 %v4623, %v4654
  %v4687 = vadd.f32 %v4624, %v4655
  %v4688 = vadd.f32 %v4625, %v4656
  %v4689 = vadd.f32 %v4626, %v4657
  %v4690 = vadd.f32 %v4627, %v4658
  %v4691 = vadd.f32 %v4628, %v4659
  %v4692 = vadd.f32 %v4629, %v4660
  %v4693 = vadd.f32 %v4630, %v4661
  %v4694 = vadd.f32 %v4631, %v4662
  %v4695 = vadd.f32 %v4632, %v4663
  %v4696 = vadd.f32 %v4633, %v4664
  %v4697 = vadd.f32 %v4634, %v4665
  %v4698 = vadd.f32 %v4635, %v4666
  %v4699 = vadd.f32 %v4636, %v4667
  %v4700 = vadd.f32 %v4637, %v4668
  %v4701 = vadd.f32 %v4638, %v4669
  %v4702 = vadd.f32 %v4639, %v4670
  %v4703 = vadd.f32 %v4640, %v4671
  %v4704 = vadd.f32 %v4641, %v4672
  %v4737 = vrot.slane %v4674, 7
  %v4738 = vsel %vm4540, %v4737, %v4673
  %v4739 = vrot.slane %v4675, 6
  %v4740 = vsel %vm4543, %v4739, %v4738
  %v4741 = vrot.slane %v4676, 5
  %v4742 = vsel %vm4546, %v4741, %v4740
  %v4743 = vrot.slane %v4677, 4
  %v4744 = vsel %vm4549, %v4743, %v4742
  %v4745 = vrot.slane %v4678, 3
  %v4746 = vsel %vm4552, %v4745, %v4744
  %v4747 = vrot.slane %v4679, 2
  %v4748 = vsel %vm4555, %v4747, %v4746
  %v4749 = vrot.slane %v4680, 1
  %v4750 = vsel %vm4558, %v4749, %v4748
  %v4751 = vrot.slane %v4682, 7
  %v4752 = vsel %vm4540, %v4751, %v4681
  %v4753 = vrot.slane %v4683, 6
  %v4754 = vsel %vm4543, %v4753, %v4752
  %v4755 = vrot.slane %v4684, 5
  %v4756 = vsel %vm4546, %v4755, %v4754
  %v4757 = vrot.slane %v4685, 4
  %v4758 = vsel %vm4549, %v4757, %v4756
  %v4759 = vrot.slane %v4686, 3
  %v4760 = vsel %vm4552, %v4759, %v4758
  %v4761 = vrot.slane %v4687, 2
  %v4762 = vsel %vm4555, %v4761, %v4760
  %v4763 = vrot.slane %v4688, 1
  %v4764 = vsel %vm4558, %v4763, %v4762
  %v4765 = vrot.slane %v4690, 7
  %v4766 = vsel %vm4540, %v4765, %v4689
  %v4767 = vrot.slane %v4691, 6
  %v4768 = vsel %vm4543, %v4767, %v4766
  %v4769 = vrot.slane %v4692, 5
  %v4770 = vsel %vm4546, %v4769, %v4768
  %v4771 = vrot.slane %v4693, 4
  %v4772 = vsel %vm4549, %v4771, %v4770
  %v4773 = vrot.slane %v4694, 3
  %v4774 = vsel %vm4552, %v4773, %v4772
  %v4775 = vrot.slane %v4695, 2
  %v4776 = vsel %vm4555, %v4775, %v4774
  %v4777 = vrot.slane %v4696, 1
  %v4778 = vsel %vm4558, %v4777, %v4776
  %v4779 = vrot.slane %v4698, 7
  %v4780 = vsel %vm4540, %v4779, %v4697
  %v4781 = vrot.slane %v4699, 6
  %v4782 = vsel %vm4543, %v4781, %v4780
  %v4783 = vrot.slane %v4700, 5
  %v4784 = vsel %vm4546, %v4783, %v4782
  %v4785 = vrot.slane %v4701, 4
  %v4786 = vsel %vm4549, %v4785, %v4784
  %v4787 = vrot.slane %v4702, 3
  %v4788 = vsel %vm4552, %v4787, %v4786
  %v4789 = vrot.slane %v4703, 2
  %v4790 = vsel %vm4555, %v4789, %v4788
  %v4791 = vrot.slane %v4704, 1
  %v4792 = vsel %vm4558, %v4791, %v4790
  %s4797 = scalar_lea.vmem %s1, 32
  %4798 = vst.msk [vmem:[%s4797] sm:$0xff] %vm4606, %v4750
  %4799 = vst.msk [vmem:[%s4797 + $0x8] sm:$0xff] %vm4606, %v4764
  %4800 = vst.msk [vmem:[%s4797 + $0x10] sm:$0xff] %vm4606, %v4778
  %4801 = vst.msk [vmem:[%s4797 + $0x18] sm:$0xff] %vm4606, %v4792
  %v4802 = vmul.f32 %v120, 0.032258064
  %v4803 = vmul.f32 %v216, 0.032258064
  %v4804 = vmul.f32 %v2936, 0.032258064
  %v4805 = vmul.f32 %v2984, 0.032258064
  %v4806 = vmul.f32 %v3032, 0.032258064
  %v4807 = vmul.f32 %v3080, 0.032258064
  %v4808 = vmul.f32 %v3128, 0.032258064
  %v4809 = vmul.f32 %v3176, 0.032258064
  %v4810 = vmul.f32 %v3224, 0.032258064
  %v4811 = vmul.f32 %v3272, 0.032258064
  %v4812 = vmul.f32 %v3320, 0.032258064
  %v4813 = vmul.f32 %v3368, 0.032258064
  %v4814 = vmul.f32 %v3416, 0.032258064
  %v4815 = vmul.f32 %v3464, 0.032258064
  %v4816 = vmul.f32 %v3512, 0.032258064
  %v4817 = vmul.f32 %v4024, 0.032258064
  %v4818 = vmul.f32 %v4040, 0.032258064
  %v4819 = vmul.f32 %v4056, 0.032258064
  %v4820 = vmul.f32 %v4072, 0.032258064
  %v4821 = vmul.f32 %v4088, 0.032258064
  %v4822 = vmul.f32 %v4104, 0.032258064
  %v4823 = vmul.f32 %v4120, 0.032258064
  %v4824 = vmul.f32 %v4136, 0.032258064
  %v4825 = vmul.f32 %v4152, 0.032258064
  %v4826 = vmul.f32 %v4168, 0.032258064
  %v4827 = vmul.f32 %v4184, 0.032258064
  %v4828 = vmul.f32 %v4200, 0.032258064
  %v4829 = vmul.f32 %v4216, 0.032258064
  %v4830 = vmul.f32 %v4232, 0.032258064
  %v4831 = vmul.f32 %v4248, 0.032258064
  %v4832 = vmul.f32 %v4264, 0.032258064
  %v4833 = vmul.f32 %v121, 0.9677419
  %v4834 = vmul.f32 %v217, 0.9677419
  %v4835 = vmul.f32 %v2937, 0.9677419
  %v4836 = vmul.f32 %v2985, 0.9677419
  %v4837 = vmul.f32 %v3033, 0.9677419
  %v4838 = vmul.f32 %v3081, 0.9677419
  %v4839 = vmul.f32 %v3129, 0.9677419
  %v4840 = vmul.f32 %v3177, 0.9677419
  %v4841 = vmul.f32 %v3225, 0.9677419
  %v4842 = vmul.f32 %v3273, 0.9677419
  %v4843 = vmul.f32 %v3321, 0.9677419
  %v4844 = vmul.f32 %v3369, 0.9677419
  %v4845 = vmul.f32 %v3417, 0.9677419
  %v4846 = vmul.f32 %v3465, 0.9677419
  %v4847 = vmul.f32 %v3513, 0.9677419
  %v4848 = vmul.f32 %v4025, 0.9677419
  %v4849 = vmul.f32 %v4041, 0.9677419
  %v4850 = vmul.f32 %v4057, 0.9677419
  %v4851 = vmul.f32 %v4073, 0.9677419
  %v4852 = vmul.f32 %v4089, 0.9677419
  %v4853 = vmul.f32 %v4105, 0.9677419
  %v4854 = vmul.f32 %v4121, 0.9677419
  %v4855 = vmul.f32 %v4137, 0.9677419
  %v4856 = vmul.f32 %v4153, 0.9677419
  %v4857 = vmul.f32 %v4169, 0.9677419
  %v4858 = vmul.f32 %v4185, 0.9677419
  %v4859 = vmul.f32 %v4201, 0.9677419
  %v4860 = vmul.f32 %v4217, 0.9677419
  %v4861 = vmul.f32 %v4233, 0.9677419
  %v4862 = vmul.f32 %v4249, 0.9677419
  %v4863 = vmul.f32 %v4265, 0.9677419
  %v4864 = vadd.f32 %v136, %v153
  %v4865 = vadd.f32 %v4802, %v4833
  %v4866 = vadd.f32 %v4803, %v4834
  %v4867 = vadd.f32 %v4804, %v4835
  %v4868 = vadd.f32 %v4805, %v4836
  %v4869 = vadd.f32 %v4806, %v4837
  %v4870 = vadd.f32 %v4807, %v4838
  %v4871 = vadd.f32 %v4808, %v4839
  %v4872 = vadd.f32 %v4809, %v4840
  %v4873 = vadd.f32 %v4810, %v4841
  %v4874 = vadd.f32 %v4811, %v4842
  %v4875 = vadd.f32 %v4812, %v4843
  %v4876 = vadd.f32 %v4813, %v4844
  %v4877 = vadd.f32 %v4814, %v4845
  %v4878 = vadd.f32 %v4815, %v4846
  %v4879 = vadd.f32 %v4816, %v4847
  %v4880 = vadd.f32 %v4817, %v4848
  %v4881 = vadd.f32 %v4818, %v4849
  %v4882 = vadd.f32 %v4819, %v4850
  %v4883 = vadd.f32 %v4820, %v4851
  %v4884 = vadd.f32 %v4821, %v4852
  %v4885 = vadd.f32 %v4822, %v4853
  %v4886 = vadd.f32 %v4823, %v4854
  %v4887 = vadd.f32 %v4824, %v4855
  %v4888 = vadd.f32 %v4825, %v4856
  %v4889 = vadd.f32 %v4826, %v4857
  %v4890 = vadd.f32 %v4827, %v4858
  %v4891 = vadd.f32 %v4828, %v4859
  %v4892 = vadd.f32 %v4829, %v4860
  %v4893 = vadd.f32 %v4830, %v4861
  %v4894 = vadd.f32 %v4831, %v4862
  %v4895 = vadd.f32 %v4832, %v4863
  %v4928 = vrot.slane %v4865, 7
  %v4929 = vsel %vm4540, %v4928, %v4864
  %v4930 = vrot.slane %v4866, 6
  %v4931 = vsel %vm4543, %v4930, %v4929
  %v4932 = vrot.slane %v4867, 5
  %v4933 = vsel %vm4546, %v4932, %v4931
  %v4934 = vrot.slane %v4868, 4
  %v4935 = vsel %vm4549, %v4934, %v4933
  %v4936 = vrot.slane %v4869, 3
  %v4937 = vsel %vm4552, %v4936, %v4935
  %v4938 = vrot.slane %v4870, 2
  %v4939 = vsel %vm4555, %v4938, %v4937
  %v4940 = vrot.slane %v4871, 1
  %v4941 = vsel %vm4558, %v4940, %v4939
  %v4942 = vrot.slane %v4873, 7
  %v4943 = vsel %vm4540, %v4942, %v4872
  %v4944 = vrot.slane %v4874, 6
  %v4945 = vsel %vm4543, %v4944, %v4943
  %v4946 = vrot.slane %v4875, 5
  %v4947 = vsel %vm4546, %v4946, %v4945
  %v4948 = vrot.slane %v4876, 4
  %v4949 = vsel %vm4549, %v4948, %v4947
  %v4950 = vrot.slane %v4877, 3
  %v4951 = vsel %vm4552, %v4950, %v4949
  %v4952 = vrot.slane %v4878, 2
  %v4953 = vsel %vm4555, %v4952, %v4951
  %v4954 = vrot.slane %v4879, 1
  %v4955 = vsel %vm4558, %v4954, %v4953
  %v4956 = vrot.slane %v4881, 7
  %v4957 = vsel %vm4540, %v4956, %v4880
  %v4958 = vrot.slane %v4882, 6
  %v4959 = vsel %vm4543, %v4958, %v4957
  %v4960 = vrot.slane %v4883, 5
  %v4961 = vsel %vm4546, %v4960, %v4959
  %v4962 = vrot.slane %v4884, 4
  %v4963 = vsel %vm4549, %v4962, %v4961
  %v4964 = vrot.slane %v4885, 3
  %v4965 = vsel %vm4552, %v4964, %v4963
  %v4966 = vrot.slane %v4886, 2
  %v4967 = vsel %vm4555, %v4966, %v4965
  %v4968 = vrot.slane %v4887, 1
  %v4969 = vsel %vm4558, %v4968, %v4967
  %v4970 = vrot.slane %v4889, 7
  %v4971 = vsel %vm4540, %v4970, %v4888
  %v4972 = vrot.slane %v4890, 6
  %v4973 = vsel %vm4543, %v4972, %v4971
  %v4974 = vrot.slane %v4891, 5
  %v4975 = vsel %vm4546, %v4974, %v4973
  %v4976 = vrot.slane %v4892, 4
  %v4977 = vsel %vm4549, %v4976, %v4975
  %v4978 = vrot.slane %v4893, 3
  %v4979 = vsel %vm4552, %v4978, %v4977
  %v4980 = vrot.slane %v4894, 2
  %v4981 = vsel %vm4555, %v4980, %v4979
  %v4982 = vrot.slane %v4895, 1
  %v4983 = vsel %vm4558, %v4982, %v4981
  %s4988 = scalar_lea.vmem %s1, 64
  %4989 = vst.msk [vmem:[%s4988] sm:$0xff] %vm4606, %v4941
  %4990 = vst.msk [vmem:[%s4988 + $0x8] sm:$0xff] %vm4606, %v4955
  %4991 = vst.msk [vmem:[%s4988 + $0x10] sm:$0xff] %vm4606, %v4969
  %4992 = vst.msk [vmem:[%s4988 + $0x18] sm:$0xff] %vm4606, %v4983
  %v4993 = vmul.f32 %v121, 0.5483871
  %v4994 = vmul.f32 %v217, 0.5483871
  %v4995 = vmul.f32 %v2937, 0.5483871
  %v4996 = vmul.f32 %v2985, 0.5483871
  %v4997 = vmul.f32 %v3033, 0.5483871
  %v4998 = vmul.f32 %v3081, 0.5483871
  %v4999 = vmul.f32 %v3129, 0.5483871
  %v5000 = vmul.f32 %v3177, 0.5483871
  %v5001 = vmul.f32 %v3225, 0.5483871
  %v5002 = vmul.f32 %v3273, 0.5483871
  %v5003 = vmul.f32 %v3321, 0.5483871
  %v5004 = vmul.f32 %v3369, 0.5483871
  %v5005 = vmul.f32 %v3417, 0.5483871
  %v5006 = vmul.f32 %v3465, 0.5483871
  %v5007 = vmul.f32 %v3513, 0.5483871
  %v5008 = vmul.f32 %v4025, 0.5483871
  %v5009 = vmul.f32 %v4041, 0.5483871
  %v5010 = vmul.f32 %v4057, 0.5483871
  %v5011 = vmul.f32 %v4073, 0.5483871
  %v5012 = vmul.f32 %v4089, 0.5483871
  %v5013 = vmul.f32 %v4105, 0.5483871
  %v5014 = vmul.f32 %v4121, 0.5483871
  %v5015 = vmul.f32 %v4137, 0.5483871
  %v5016 = vmul.f32 %v4153, 0.5483871
  %v5017 = vmul.f32 %v4169, 0.5483871
  %v5018 = vmul.f32 %v4185, 0.5483871
  %v5019 = vmul.f32 %v4201, 0.5483871
  %v5020 = vmul.f32 %v4217, 0.5483871
  %v5021 = vmul.f32 %v4233, 0.5483871
  %v5022 = vmul.f32 %v4249, 0.5483871
  %v5023 = vmul.f32 %v4265, 0.5483871
  %v5024 = vmul.f32 %v122, 0.4516129
  %v5025 = vmul.f32 %v218, 0.4516129
  %v5026 = vmul.f32 %v2938, 0.4516129
  %v5027 = vmul.f32 %v2986, 0.4516129
  %v5028 = vmul.f32 %v3034, 0.4516129
  %v5029 = vmul.f32 %v3082, 0.4516129
  %v5030 = vmul.f32 %v3130, 0.4516129
  %v5031 = vmul.f32 %v3178, 0.4516129
  %v5032 = vmul.f32 %v3226, 0.4516129
  %v5033 = vmul.f32 %v3274, 0.4516129
  %v5034 = vmul.f32 %v3322, 0.4516129
  %v5035 = vmul.f32 %v3370, 0.4516129
  %v5036 = vmul.f32 %v3418, 0.4516129
  %v5037 = vmul.f32 %v3466, 0.4516129
  %v5038 = vmul.f32 %v3514, 0.4516129
  %v5039 = vmul.f32 %v4026, 0.4516129
  %v5040 = vmul.f32 %v4042, 0.4516129
  %v5041 = vmul.f32 %v4058, 0.4516129
  %v5042 = vmul.f32 %v4074, 0.4516129
  %v5043 = vmul.f32 %v4090, 0.4516129
  %v5044 = vmul.f32 %v4106, 0.4516129
  %v5045 = vmul.f32 %v4122, 0.4516129
  %v5046 = vmul.f32 %v4138, 0.4516129
  %v5047 = vmul.f32 %v4154, 0.4516129
  %v5048 = vmul.f32 %v4170, 0.4516129
  %v5049 = vmul.f32 %v4186, 0.4516129
  %v5050 = vmul.f32 %v4202, 0.4516129
  %v5051 = vmul.f32 %v4218, 0.4516129
  %v5052 = vmul.f32 %v4234, 0.4516129
  %v5053 = vmul.f32 %v4250, 0.4516129
  %v5054 = vmul.f32 %v4266, 0.4516129
  %v5055 = vadd.f32 %v233, %v250
  %v5056 = vadd.f32 %v4993, %v5024
  %v5057 = vadd.f32 %v4994, %v5025
  %v5058 = vadd.f32 %v4995, %v5026
  %v5059 = vadd.f32 %v4996, %v5027
  %v5060 = vadd.f32 %v4997, %v5028
  %v5061 = vadd.f32 %v4998, %v5029
  %v5062 = vadd.f32 %v4999, %v5030
  %v5063 = vadd.f32 %v5000, %v5031
  %v5064 = vadd.f32 %v5001, %v5032
  %v5065 = vadd.f32 %v5002, %v5033
  %v5066 = vadd.f32 %v5003, %v5034
  %v5067 = vadd.f32 %v5004, %v5035
  %v5068 = vadd.f32 %v5005, %v5036
  %v5069 = vadd.f32 %v5006, %v5037
  %v5070 = vadd.f32 %v5007, %v5038
  %v5071 = vadd.f32 %v5008, %v5039
  %v5072 = vadd.f32 %v5009, %v5040
  %v5073 = vadd.f32 %v5010, %v5041
  %v5074 = vadd.f32 %v5011, %v5042
  %v5075 = vadd.f32 %v5012, %v5043
  %v5076 = vadd.f32 %v5013, %v5044
  %v5077 = vadd.f32 %v5014, %v5045
  %v5078 = vadd.f32 %v5015, %v5046
  %v5079 = vadd.f32 %v5016, %v5047
  %v5080 = vadd.f32 %v5017, %v5048
  %v5081 = vadd.f32 %v5018, %v5049
  %v5082 = vadd.f32 %v5019, %v5050
  %v5083 = vadd.f32 %v5020, %v5051
  %v5084 = vadd.f32 %v5021, %v5052
  %v5085 = vadd.f32 %v5022, %v5053
  %v5086 = vadd.f32 %v5023, %v5054
  %v5119 = vrot.slane %v5056, 7
  %v5120 = vsel %vm4540, %v5119, %v5055
  %v5121 = vrot.slane %v5057, 6
  %v5122 = vsel %vm4543, %v5121, %v5120
  %v5123 = vrot.slane %v5058, 5
  %v5124 = vsel %vm4546, %v5123, %v5122
  %v5125 = vrot.slane %v5059, 4
  %v5126 = vsel %vm4549, %v5125, %v5124
  %v5127 = vrot.slane %v5060, 3
  %v5128 = vsel %vm4552, %v5127, %v5126
  %v5129 = vrot.slane %v5061, 2
  %v5130 = vsel %vm4555, %v5129, %v5128
  %v5131 = vrot.slane %v5062, 1
  %v5132 = vsel %vm4558, %v5131, %v5130
  %v5133 = vrot.slane %v5064, 7
  %v5134 = vsel %vm4540, %v5133, %v5063
  %v5135 = vrot.slane %v5065, 6
  %v5136 = vsel %vm4543, %v5135, %v5134
  %v5137 = vrot.slane %v5066, 5
  %v5138 = vsel %vm4546, %v5137, %v5136
  %v5139 = vrot.slane %v5067, 4
  %v5140 = vsel %vm4549, %v5139, %v5138
  %v5141 = vrot.slane %v5068, 3
  %v5142 = vsel %vm4552, %v5141, %v5140
  %v5143 = vrot.slane %v5069, 2
  %v5144 = vsel %vm4555, %v5143, %v5142
  %v5145 = vrot.slane %v5070, 1
  %v5146 = vsel %vm4558, %v5145, %v5144
  %v5147 = vrot.slane %v5072, 7
  %v5148 = vsel %vm4540, %v5147, %v5071
  %v5149 = vrot.slane %v5073, 6
  %v5150 = vsel %vm4543, %v5149, %v5148
  %v5151 = vrot.slane %v5074, 5
  %v5152 = vsel %vm4546, %v5151, %v5150
  %v5153 = vrot.slane %v5075, 4
  %v5154 = vsel %vm4549, %v5153, %v5152
  %v5155 = vrot.slane %v5076, 3
  %v5156 = vsel %vm4552, %v5155, %v5154
  %v5157 = vrot.slane %v5077, 2
  %v5158 = vsel %vm4555, %v5157, %v5156
  %v5159 = vrot.slane %v5078, 1
  %v5160 = vsel %vm4558, %v5159, %v5158
  %v5161 = vrot.slane %v5080, 7
  %v5162 = vsel %vm4540, %v5161, %v5079
  %v5163 = vrot.slane %v5081, 6
  %v5164 = vsel %vm4543, %v5163, %v5162
  %v5165 = vrot.slane %v5082, 5
  %v5166 = vsel %vm4546, %v5165, %v5164
  %v5167 = vrot.slane %v5083, 4
  %v5168 = vsel %vm4549, %v5167, %v5166
  %v5169 = vrot.slane %v5084, 3
  %v5170 = vsel %vm4552, %v5169, %v5168
  %v5171 = vrot.slane %v5085, 2
  %v5172 = vsel %vm4555, %v5171, %v5170
  %v5173 = vrot.slane %v5086, 1
  %v5174 = vsel %vm4558, %v5173, %v5172
  %s5179 = scalar_lea.vmem %s1, 96
  %5180 = vst.msk [vmem:[%s5179] sm:$0xff] %vm4606, %v5132
  %5181 = vst.msk [vmem:[%s5179 + $0x8] sm:$0xff] %vm4606, %v5146
  %5182 = vst.msk [vmem:[%s5179 + $0x10] sm:$0xff] %vm4606, %v5160
  %5183 = vst.msk [vmem:[%s5179 + $0x18] sm:$0xff] %vm4606, %v5174
  %v5184 = vmul.f32 %v121, 0.06451613
  %v5185 = vmul.f32 %v217, 0.06451613
  %v5186 = vmul.f32 %v2937, 0.06451613
  %v5187 = vmul.f32 %v2985, 0.06451613
  %v5188 = vmul.f32 %v3033, 0.06451613
  %v5189 = vmul.f32 %v3081, 0.06451613
  %v5190 = vmul.f32 %v3129, 0.06451613
  %v5191 = vmul.f32 %v3177, 0.06451613
  %v5192 = vmul.f32 %v3225, 0.06451613
  %v5193 = vmul.f32 %v3273, 0.06451613
  %v5194 = vmul.f32 %v3321, 0.06451613
  %v5195 = vmul.f32 %v3369, 0.06451613
  %v5196 = vmul.f32 %v3417, 0.06451613
  %v5197 = vmul.f32 %v3465, 0.06451613
  %v5198 = vmul.f32 %v3513, 0.06451613
  %v5199 = vmul.f32 %v4025, 0.06451613
  %v5200 = vmul.f32 %v4041, 0.06451613
  %v5201 = vmul.f32 %v4057, 0.06451613
  %v5202 = vmul.f32 %v4073, 0.06451613
  %v5203 = vmul.f32 %v4089, 0.06451613
  %v5204 = vmul.f32 %v4105, 0.06451613
  %v5205 = vmul.f32 %v4121, 0.06451613
  %v5206 = vmul.f32 %v4137, 0.06451613
  %v5207 = vmul.f32 %v4153, 0.06451613
  %v5208 = vmul.f32 %v4169, 0.06451613
  %v5209 = vmul.f32 %v4185, 0.06451613
  %v5210 = vmul.f32 %v4201, 0.06451613
  %v5211 = vmul.f32 %v4217, 0.06451613
  %v5212 = vmul.f32 %v4233, 0.06451613
  %v5213 = vmul.f32 %v4249, 0.06451613
  %v5214 = vmul.f32 %v4265, 0.06451613
  %v5215 = vmul.f32 %v122, 0.9354839
  %v5216 = vmul.f32 %v218, 0.9354839
  %v5217 = vmul.f32 %v2938, 0.9354839
  %v5218 = vmul.f32 %v2986, 0.9354839
  %v5219 = vmul.f32 %v3034, 0.9354839
  %v5220 = vmul.f32 %v3082, 0.9354839
  %v5221 = vmul.f32 %v3130, 0.9354839
  %v5222 = vmul.f32 %v3178, 0.9354839
  %v5223 = vmul.f32 %v3226, 0.9354839
  %v5224 = vmul.f32 %v3274, 0.9354839
  %v5225 = vmul.f32 %v3322, 0.9354839
  %v5226 = vmul.f32 %v3370, 0.9354839
  %v5227 = vmul.f32 %v3418, 0.9354839
  %v5228 = vmul.f32 %v3466, 0.9354839
  %v5229 = vmul.f32 %v3514, 0.9354839
  %v5230 = vmul.f32 %v4026, 0.9354839
  %v5231 = vmul.f32 %v4042, 0.9354839
  %v5232 = vmul.f32 %v4058, 0.9354839
  %v5233 = vmul.f32 %v4074, 0.9354839
  %v5234 = vmul.f32 %v4090, 0.9354839
  %v5235 = vmul.f32 %v4106, 0.9354839
  %v5236 = vmul.f32 %v4122, 0.9354839
  %v5237 = vmul.f32 %v4138, 0.9354839
  %v5238 = vmul.f32 %v4154, 0.9354839
  %v5239 = vmul.f32 %v4170, 0.9354839
  %v5240 = vmul.f32 %v4186, 0.9354839
  %v5241 = vmul.f32 %v4202, 0.9354839
  %v5242 = vmul.f32 %v4218, 0.9354839
  %v5243 = vmul.f32 %v4234, 0.9354839
  %v5244 = vmul.f32 %v4250, 0.9354839
  %v5245 = vmul.f32 %v4266, 0.9354839
  %v5246 = vadd.f32 %v329, %v346
  %v5247 = vadd.f32 %v5184, %v5215
  %v5248 = vadd.f32 %v5185, %v5216
  %v5249 = vadd.f32 %v5186, %v5217
  %v5250 = vadd.f32 %v5187, %v5218
  %v5251 = vadd.f32 %v5188, %v5219
  %v5252 = vadd.f32 %v5189, %v5220
  %v5253 = vadd.f32 %v5190, %v5221
  %v5254 = vadd.f32 %v5191, %v5222
  %v5255 = vadd.f32 %v5192, %v5223
  %v5256 = vadd.f32 %v5193, %v5224
  %v5257 = vadd.f32 %v5194, %v5225
  %v5258 = vadd.f32 %v5195, %v5226
  %v5259 = vadd.f32 %v5196, %v5227
  %v5260 = vadd.f32 %v5197, %v5228
  %v5261 = vadd.f32 %v5198, %v5229
  %v5262 = vadd.f32 %v5199, %v5230
  %v5263 = vadd.f32 %v5200, %v5231
  %v5264 = vadd.f32 %v5201, %v5232
  %v5265 = vadd.f32 %v5202, %v5233
  %v5266 = vadd.f32 %v5203, %v5234
  %v5267 = vadd.f32 %v5204, %v5235
  %v5268 = vadd.f32 %v5205, %v5236
  %v5269 = vadd.f32 %v5206, %v5237
  %v5270 = vadd.f32 %v5207, %v5238
  %v5271 = vadd.f32 %v5208, %v5239
  %v5272 = vadd.f32 %v5209, %v5240
  %v5273 = vadd.f32 %v5210, %v5241
  %v5274 = vadd.f32 %v5211, %v5242
  %v5275 = vadd.f32 %v5212, %v5243
  %v5276 = vadd.f32 %v5213, %v5244
  %v5277 = vadd.f32 %v5214, %v5245
  %v5310 = vrot.slane %v5247, 7
  %v5311 = vsel %vm4540, %v5310, %v5246
  %v5312 = vrot.slane %v5248, 6
  %v5313 = vsel %vm4543, %v5312, %v5311
  %v5314 = vrot.slane %v5249, 5
  %v5315 = vsel %vm4546, %v5314, %v5313
  %v5316 = vrot.slane %v5250, 4
  %v5317 = vsel %vm4549, %v5316, %v5315
  %v5318 = vrot.slane %v5251, 3
  %v5319 = vsel %vm4552, %v5318, %v5317
  %v5320 = vrot.slane %v5252, 2
  %v5321 = vsel %vm4555, %v5320, %v5319
  %v5322 = vrot.slane %v5253, 1
  %v5323 = vsel %vm4558, %v5322, %v5321
  %v5324 = vrot.slane %v5255, 7
  %v5325 = vsel %vm4540, %v5324, %v5254
  %v5326 = vrot.slane %v5256, 6
  %v5327 = vsel %vm4543, %v5326, %v5325
  %v5328 = vrot.slane %v5257, 5
  %v5329 = vsel %vm4546, %v5328, %v5327
  %v5330 = vrot.slane %v5258, 4
  %v5331 = vsel %vm4549, %v5330, %v5329
  %v5332 = vrot.slane %v5259, 3
  %v5333 = vsel %vm4552, %v5332, %v5331
  %v5334 = vrot.slane %v5260, 2
  %v5335 = vsel %vm4555, %v5334, %v5333
  %v5336 = vrot.slane %v5261, 1
  %v5337 = vsel %vm4558, %v5336, %v5335
  %v5338 = vrot.slane %v5263, 7
  %v5339 = vsel %vm4540, %v5338, %v5262
  %v5340 = vrot.slane %v5264, 6
  %v5341 = vsel %vm4543, %v5340, %v5339
  %v5342 = vrot.slane %v5265, 5
  %v5343 = vsel %vm4546, %v5342, %v5341
  %v5344 = vrot.slane %v5266, 4
  %v5345 = vsel %vm4549, %v5344, %v5343
  %v5346 = vrot.slane %v5267, 3
  %v5347 = vsel %vm4552, %v5346, %v5345
  %v5348 = vrot.slane %v5268, 2
  %v5349 = vsel %vm4555, %v5348, %v5347
  %v5350 = vrot.slane %v5269, 1
  %v5351 = vsel %vm4558, %v5350, %v5349
  %v5352 = vrot.slane %v5271, 7
  %v5353 = vsel %vm4540, %v5352, %v5270
  %v5354 = vrot.slane %v5272, 6
  %v5355 = vsel %vm4543, %v5354, %v5353
  %v5356 = vrot.slane %v5273, 5
  %v5357 = vsel %vm4546, %v5356, %v5355
  %v5358 = vrot.slane %v5274, 4
  %v5359 = vsel %vm4549, %v5358, %v5357
  %v5360 = vrot.slane %v5275, 3
  %v5361 = vsel %vm4552, %v5360, %v5359
  %v5362 = vrot.slane %v5276, 2
  %v5363 = vsel %vm4555, %v5362, %v5361
  %v5364 = vrot.slane %v5277, 1
  %v5365 = vsel %vm4558, %v5364, %v5363
  %s5370 = scalar_lea.vmem %s1, 128
  %5371 = vst.msk [vmem:[%s5370] sm:$0xff] %vm4606, %v5323
  %5372 = vst.msk [vmem:[%s5370 + $0x8] sm:$0xff] %vm4606, %v5337
  %5373 = vst.msk [vmem:[%s5370 + $0x10] sm:$0xff] %vm4606, %v5351
  %5374 = vst.msk [vmem:[%s5370 + $0x18] sm:$0xff] %vm4606, %v5365
  %v5375 = vmul.f32 %v122, 0.58064514
  %v5376 = vmul.f32 %v218, 0.58064514
  %v5377 = vmul.f32 %v2938, 0.58064514
  %v5378 = vmul.f32 %v2986, 0.58064514
  %v5379 = vmul.f32 %v3034, 0.58064514
  %v5380 = vmul.f32 %v3082, 0.58064514
  %v5381 = vmul.f32 %v3130, 0.58064514
  %v5382 = vmul.f32 %v3178, 0.58064514
  %v5383 = vmul.f32 %v3226, 0.58064514
  %v5384 = vmul.f32 %v3274, 0.58064514
  %v5385 = vmul.f32 %v3322, 0.58064514
  %v5386 = vmul.f32 %v3370, 0.58064514
  %v5387 = vmul.f32 %v3418, 0.58064514
  %v5388 = vmul.f32 %v3466, 0.58064514
  %v5389 = vmul.f32 %v3514, 0.58064514
  %v5390 = vmul.f32 %v4026, 0.58064514
  %v5391 = vmul.f32 %v4042, 0.58064514
  %v5392 = vmul.f32 %v4058, 0.58064514
  %v5393 = vmul.f32 %v4074, 0.58064514
  %v5394 = vmul.f32 %v4090, 0.58064514
  %v5395 = vmul.f32 %v4106, 0.58064514
  %v5396 = vmul.f32 %v4122, 0.58064514
  %v5397 = vmul.f32 %v4138, 0.58064514
  %v5398 = vmul.f32 %v4154, 0.58064514
  %v5399 = vmul.f32 %v4170, 0.58064514
  %v5400 = vmul.f32 %v4186, 0.58064514
  %v5401 = vmul.f32 %v4202, 0.58064514
  %v5402 = vmul.f32 %v4218, 0.58064514
  %v5403 = vmul.f32 %v4234, 0.58064514
  %v5404 = vmul.f32 %v4250, 0.58064514
  %v5405 = vmul.f32 %v4266, 0.58064514
  %v5406 = vmul.f32 %v123, 0.41935483
  %v5407 = vmul.f32 %v219, 0.41935483
  %v5408 = vmul.f32 %v2939, 0.41935483
  %v5409 = vmul.f32 %v2987, 0.41935483
  %v5410 = vmul.f32 %v3035, 0.41935483
  %v5411 = vmul.f32 %v3083, 0.41935483
  %v5412 = vmul.f32 %v3131, 0.41935483
  %v5413 = vmul.f32 %v3179, 0.41935483
  %v5414 = vmul.f32 %v3227, 0.41935483
  %v5415 = vmul.f32 %v3275, 0.41935483
  %v5416 = vmul.f32 %v3323, 0.41935483
  %v5417 = vmul.f32 %v3371, 0.41935483
  %v5418 = vmul.f32 %v3419, 0.41935483
  %v5419 = vmul.f32 %v3467, 0.41935483
  %v5420 = vmul.f32 %v3515, 0.41935483
  %v5421 = vmul.f32 %v4027, 0.41935483
  %v5422 = vmul.f32 %v4043, 0.41935483
  %v5423 = vmul.f32 %v4059, 0.41935483
  %v5424 = vmul.f32 %v4075, 0.41935483
  %v5425 = vmul.f32 %v4091, 0.41935483
  %v5426 = vmul.f32 %v4107, 0.41935483
  %v5427 = vmul.f32 %v4123, 0.41935483
  %v5428 = vmul.f32 %v4139, 0.41935483
  %v5429 = vmul.f32 %v4155, 0.41935483
  %v5430 = vmul.f32 %v4171, 0.41935483
  %v5431 = vmul.f32 %v4187, 0.41935483
  %v5432 = vmul.f32 %v4203, 0.41935483
  %v5433 = vmul.f32 %v4219, 0.41935483
  %v5434 = vmul.f32 %v4235, 0.41935483
  %v5435 = vmul.f32 %v4251, 0.41935483
  %v5436 = vmul.f32 %v4267, 0.41935483
  %v5437 = vadd.f32 %v426, %v443
  %v5438 = vadd.f32 %v5375, %v5406
  %v5439 = vadd.f32 %v5376, %v5407
  %v5440 = vadd.f32 %v5377, %v5408
  %v5441 = vadd.f32 %v5378, %v5409
  %v5442 = vadd.f32 %v5379, %v5410
  %v5443 = vadd.f32 %v5380, %v5411
  %v5444 = vadd.f32 %v5381, %v5412
  %v5445 = vadd.f32 %v5382, %v5413
  %v5446 = vadd.f32 %v5383, %v5414
  %v5447 = vadd.f32 %v5384, %v5415
  %v5448 = vadd.f32 %v5385, %v5416
  %v5449 = vadd.f32 %v5386, %v5417
  %v5450 = vadd.f32 %v5387, %v5418
  %v5451 = vadd.f32 %v5388, %v5419
  %v5452 = vadd.f32 %v5389, %v5420
  %v5453 = vadd.f32 %v5390, %v5421
  %v5454 = vadd.f32 %v5391, %v5422
  %v5455 = vadd.f32 %v5392, %v5423
  %v5456 = vadd.f32 %v5393, %v5424
  %v5457 = vadd.f32 %v5394, %v5425
  %v5458 = vadd.f32 %v5395, %v5426
  %v5459 = vadd.f32 %v5396, %v5427
  %v5460 = vadd.f32 %v5397, %v5428
  %v5461 = vadd.f32 %v5398, %v5429
  %v5462 = vadd.f32 %v5399, %v5430
  %v5463 = vadd.f32 %v5400, %v5431
  %v5464 = vadd.f32 %v5401, %v5432
  %v5465 = vadd.f32 %v5402, %v5433
  %v5466 = vadd.f32 %v5403, %v5434
  %v5467 = vadd.f32 %v5404, %v5435
  %v5468 = vadd.f32 %v5405, %v5436
  %v5501 = vrot.slane %v5438, 7
  %v5502 = vsel %vm4540, %v5501, %v5437
  %v5503 = vrot.slane %v5439, 6
  %v5504 = vsel %vm4543, %v5503, %v5502
  %v5505 = vrot.slane %v5440, 5
  %v5506 = vsel %vm4546, %v5505, %v5504
  %v5507 = vrot.slane %v5441, 4
  %v5508 = vsel %vm4549, %v5507, %v5506
  %v5509 = vrot.slane %v5442, 3
  %v5510 = vsel %vm4552, %v5509, %v5508
  %v5511 = vrot.slane %v5443, 2
  %v5512 = vsel %vm4555, %v5511, %v5510
  %v5513 = vrot.slane %v5444, 1
  %v5514 = vsel %vm4558, %v5513, %v5512
  %v5515 = vrot.slane %v5446, 7
  %v5516 = vsel %vm4540, %v5515, %v5445
  %v5517 = vrot.slane %v5447, 6
  %v5518 = vsel %vm4543, %v5517, %v5516
  %v5519 = vrot.slane %v5448, 5
  %v5520 = vsel %vm4546, %v5519, %v5518
  %v5521 = vrot.slane %v5449, 4
  %v5522 = vsel %vm4549, %v5521, %v5520
  %v5523 = vrot.slane %v5450, 3
  %v5524 = vsel %vm4552, %v5523, %v5522
  %v5525 = vrot.slane %v5451, 2
  %v5526 = vsel %vm4555, %v5525, %v5524
  %v5527 = vrot.slane %v5452, 1
  %v5528 = vsel %vm4558, %v5527, %v5526
  %v5529 = vrot.slane %v5454, 7
  %v5530 = vsel %vm4540, %v5529, %v5453
  %v5531 = vrot.slane %v5455, 6
  %v5532 = vsel %vm4543, %v5531, %v5530
  %v5533 = vrot.slane %v5456, 5
  %v5534 = vsel %vm4546, %v5533, %v5532
  %v5535 = vrot.slane %v5457, 4
  %v5536 = vsel %vm4549, %v5535, %v5534
  %v5537 = vrot.slane %v5458, 3
  %v5538 = vsel %vm4552, %v5537, %v5536
  %v5539 = vrot.slane %v5459, 2
  %v5540 = vsel %vm4555, %v5539, %v5538
  %v5541 = vrot.slane %v5460, 1
  %v5542 = vsel %vm4558, %v5541, %v5540
  %v5543 = vrot.slane %v5462, 7
  %v5544 = vsel %vm4540, %v5543, %v5461
  %v5545 = vrot.slane %v5463, 6
  %v5546 = vsel %vm4543, %v5545, %v5544
  %v5547 = vrot.slane %v5464, 5
  %v5548 = vsel %vm4546, %v5547, %v5546
  %v5549 = vrot.slane %v5465, 4
  %v5550 = vsel %vm4549, %v5549, %v5548
  %v5551 = vrot.slane %v5466, 3
  %v5552 = vsel %vm4552, %v5551, %v5550
  %v5553 = vrot.slane %v5467, 2
  %v5554 = vsel %vm4555, %v5553, %v5552
  %v5555 = vrot.slane %v5468, 1
  %v5556 = vsel %vm4558, %v5555, %v5554
  %s5561 = scalar_lea.vmem %s1, 160
  %5562 = vst.msk [vmem:[%s5561] sm:$0xff] %vm4606, %v5514
  %5563 = vst.msk [vmem:[%s5561 + $0x8] sm:$0xff] %vm4606, %v5528
  %5564 = vst.msk [vmem:[%s5561 + $0x10] sm:$0xff] %vm4606, %v5542
  %5565 = vst.msk [vmem:[%s5561 + $0x18] sm:$0xff] %vm4606, %v5556
  %v5566 = vmul.f32 %v122, 0.09677419
  %v5567 = vmul.f32 %v218, 0.09677419
  %v5568 = vmul.f32 %v2938, 0.09677419
  %v5569 = vmul.f32 %v2986, 0.09677419
  %v5570 = vmul.f32 %v3034, 0.09677419
  %v5571 = vmul.f32 %v3082, 0.09677419
  %v5572 = vmul.f32 %v3130, 0.09677419
  %v5573 = vmul.f32 %v3178, 0.09677419
  %v5574 = vmul.f32 %v3226, 0.09677419
  %v5575 = vmul.f32 %v3274, 0.09677419
  %v5576 = vmul.f32 %v3322, 0.09677419
  %v5577 = vmul.f32 %v3370, 0.09677419
  %v5578 = vmul.f32 %v3418, 0.09677419
  %v5579 = vmul.f32 %v3466, 0.09677419
  %v5580 = vmul.f32 %v3514, 0.09677419
  %v5581 = vmul.f32 %v4026, 0.09677419
  %v5582 = vmul.f32 %v4042, 0.09677419
  %v5583 = vmul.f32 %v4058, 0.09677419
  %v5584 = vmul.f32 %v4074, 0.09677419
  %v5585 = vmul.f32 %v4090, 0.09677419
  %v5586 = vmul.f32 %v4106, 0.09677419
  %v5587 = vmul.f32 %v4122, 0.09677419
  %v5588 = vmul.f32 %v4138, 0.09677419
  %v5589 = vmul.f32 %v4154, 0.09677419
  %v5590 = vmul.f32 %v4170, 0.09677419
  %v5591 = vmul.f32 %v4186, 0.09677419
  %v5592 = vmul.f32 %v4202, 0.09677419
  %v5593 = vmul.f32 %v4218, 0.09677419
  %v5594 = vmul.f32 %v4234, 0.09677419
  %v5595 = vmul.f32 %v4250, 0.09677419
  %v5596 = vmul.f32 %v4266, 0.09677419
  %v5597 = vmul.f32 %v123, 0.9032258
  %v5598 = vmul.f32 %v219, 0.9032258
  %v5599 = vmul.f32 %v2939, 0.9032258
  %v5600 = vmul.f32 %v2987, 0.9032258
  %v5601 = vmul.f32 %v3035, 0.9032258
  %v5602 = vmul.f32 %v3083, 0.9032258
  %v5603 = vmul.f32 %v3131, 0.9032258
  %v5604 = vmul.f32 %v3179, 0.9032258
  %v5605 = vmul.f32 %v3227, 0.9032258
  %v5606 = vmul.f32 %v3275, 0.9032258
  %v5607 = vmul.f32 %v3323, 0.9032258
  %v5608 = vmul.f32 %v3371, 0.9032258
  %v5609 = vmul.f32 %v3419, 0.9032258
  %v5610 = vmul.f32 %v3467, 0.9032258
  %v5611 = vmul.f32 %v3515, 0.9032258
  %v5612 = vmul.f32 %v4027, 0.9032258
  %v5613 = vmul.f32 %v4043, 0.9032258
  %v5614 = vmul.f32 %v4059, 0.9032258
  %v5615 = vmul.f32 %v4075, 0.9032258
  %v5616 = vmul.f32 %v4091, 0.9032258
  %v5617 = vmul.f32 %v4107, 0.9032258
  %v5618 = vmul.f32 %v4123, 0.9032258
  %v5619 = vmul.f32 %v4139, 0.9032258
  %v5620 = vmul.f32 %v4155, 0.9032258
  %v5621 = vmul.f32 %v4171, 0.9032258
  %v5622 = vmul.f32 %v4187, 0.9032258
  %v5623 = vmul.f32 %v4203, 0.9032258
  %v5624 = vmul.f32 %v4219, 0.9032258
  %v5625 = vmul.f32 %v4235, 0.9032258
  %v5626 = vmul.f32 %v4251, 0.9032258
  %v5627 = vmul.f32 %v4267, 0.9032258
  %v5628 = vadd.f32 %v522, %v539
  %v5629 = vadd.f32 %v5566, %v5597
  %v5630 = vadd.f32 %v5567, %v5598
  %v5631 = vadd.f32 %v5568, %v5599
  %v5632 = vadd.f32 %v5569, %v5600
  %v5633 = vadd.f32 %v5570, %v5601
  %v5634 = vadd.f32 %v5571, %v5602
  %v5635 = vadd.f32 %v5572, %v5603
  %v5636 = vadd.f32 %v5573, %v5604
  %v5637 = vadd.f32 %v5574, %v5605
  %v5638 = vadd.f32 %v5575, %v5606
  %v5639 = vadd.f32 %v5576, %v5607
  %v5640 = vadd.f32 %v5577, %v5608
  %v5641 = vadd.f32 %v5578, %v5609
  %v5642 = vadd.f32 %v5579, %v5610
  %v5643 = vadd.f32 %v5580, %v5611
  %v5644 = vadd.f32 %v5581, %v5612
  %v5645 = vadd.f32 %v5582, %v5613
  %v5646 = vadd.f32 %v5583, %v5614
  %v5647 = vadd.f32 %v5584, %v5615
  %v5648 = vadd.f32 %v5585, %v5616
  %v5649 = vadd.f32 %v5586, %v5617
  %v5650 = vadd.f32 %v5587, %v5618
  %v5651 = vadd.f32 %v5588, %v5619
  %v5652 = vadd.f32 %v5589, %v5620
  %v5653 = vadd.f32 %v5590, %v5621
  %v5654 = vadd.f32 %v5591, %v5622
  %v5655 = vadd.f32 %v5592, %v5623
  %v5656 = vadd.f32 %v5593, %v5624
  %v5657 = vadd.f32 %v5594, %v5625
  %v5658 = vadd.f32 %v5595, %v5626
  %v5659 = vadd.f32 %v5596, %v5627
  %v5692 = vrot.slane %v5629, 7
  %v5693 = vsel %vm4540, %v5692, %v5628
  %v5694 = vrot.slane %v5630, 6
  %v5695 = vsel %vm4543, %v5694, %v5693
  %v5696 = vrot.slane %v5631, 5
  %v5697 = vsel %vm4546, %v5696, %v5695
  %v5698 = vrot.slane %v5632, 4
  %v5699 = vsel %vm4549, %v5698, %v5697
  %v5700 = vrot.slane %v5633, 3
  %v5701 = vsel %vm4552, %v5700, %v5699
  %v5702 = vrot.slane %v5634, 2
  %v5703 = vsel %vm4555, %v5702, %v5701
  %v5704 = vrot.slane %v5635, 1
  %v5705 = vsel %vm4558, %v5704, %v5703
  %v5706 = vrot.slane %v5637, 7
  %v5707 = vsel %vm4540, %v5706, %v5636
  %v5708 = vrot.slane %v5638, 6
  %v5709 = vsel %vm4543, %v5708, %v5707
  %v5710 = vrot.slane %v5639, 5
  %v5711 = vsel %vm4546, %v5710, %v5709
  %v5712 = vrot.slane %v5640, 4
  %v5713 = vsel %vm4549, %v5712, %v5711
  %v5714 = vrot.slane %v5641, 3
  %v5715 = vsel %vm4552, %v5714, %v5713
  %v5716 = vrot.slane %v5642, 2
  %v5717 = vsel %vm4555, %v5716, %v5715
  %v5718 = vrot.slane %v5643, 1
  %v5719 = vsel %vm4558, %v5718, %v5717
  %v5720 = vrot.slane %v5645, 7
  %v5721 = vsel %vm4540, %v5720, %v5644
  %v5722 = vrot.slane %v5646, 6
  %v5723 = vsel %vm4543, %v5722, %v5721
  %v5724 = vrot.slane %v5647, 5
  %v5725 = vsel %vm4546, %v5724, %v5723
  %v5726 = vrot.slane %v5648, 4
  %v5727 = vsel %vm4549, %v5726, %v5725
  %v5728 = vrot.slane %v5649, 3
  %v5729 = vsel %vm4552, %v5728, %v5727
  %v5730 = vrot.slane %v5650, 2
  %v5731 = vsel %vm4555, %v5730, %v5729
  %v5732 = vrot.slane %v5651, 1
  %v5733 = vsel %vm4558, %v5732, %v5731
  %v5734 = vrot.slane %v5653, 7
  %v5735 = vsel %vm4540, %v5734, %v5652
  %v5736 = vrot.slane %v5654, 6
  %v5737 = vsel %vm4543, %v5736, %v5735
  %v5738 = vrot.slane %v5655, 5
  %v5739 = vsel %vm4546, %v5738, %v5737
  %v5740 = vrot.slane %v5656, 4
  %v5741 = vsel %vm4549, %v5740, %v5739
  %v5742 = vrot.slane %v5657, 3
  %v5743 = vsel %vm4552, %v5742, %v5741
  %v5744 = vrot.slane %v5658, 2
  %v5745 = vsel %vm4555, %v5744, %v5743
  %v5746 = vrot.slane %v5659, 1
  %v5747 = vsel %vm4558, %v5746, %v5745
  %s5752 = scalar_lea.vmem %s1, 192
  %5753 = vst.msk [vmem:[%s5752] sm:$0xff] %vm4606, %v5705
  %5754 = vst.msk [vmem:[%s5752 + $0x8] sm:$0xff] %vm4606, %v5719
  %5755 = vst.msk [vmem:[%s5752 + $0x10] sm:$0xff] %vm4606, %v5733
  %5756 = vst.msk [vmem:[%s5752 + $0x18] sm:$0xff] %vm4606, %v5747
  %v5757 = vmul.f32 %v123, 0.61290324
  %v5758 = vmul.f32 %v219, 0.61290324
  %v5759 = vmul.f32 %v2939, 0.61290324
  %v5760 = vmul.f32 %v2987, 0.61290324
  %v5761 = vmul.f32 %v3035, 0.61290324
  %v5762 = vmul.f32 %v3083, 0.61290324
  %v5763 = vmul.f32 %v3131, 0.61290324
  %v5764 = vmul.f32 %v3179, 0.61290324
  %v5765 = vmul.f32 %v3227, 0.61290324
  %v5766 = vmul.f32 %v3275, 0.61290324
  %v5767 = vmul.f32 %v3323, 0.61290324
  %v5768 = vmul.f32 %v3371, 0.61290324
  %v5769 = vmul.f32 %v3419, 0.61290324
  %v5770 = vmul.f32 %v3467, 0.61290324
  %v5771 = vmul.f32 %v3515, 0.61290324
  %v5772 = vmul.f32 %v4027, 0.61290324
  %v5773 = vmul.f32 %v4043, 0.61290324
  %v5774 = vmul.f32 %v4059, 0.61290324
  %v5775 = vmul.f32 %v4075, 0.61290324
  %v5776 = vmul.f32 %v4091, 0.61290324
  %v5777 = vmul.f32 %v4107, 0.61290324
  %v5778 = vmul.f32 %v4123, 0.61290324
  %v5779 = vmul.f32 %v4139, 0.61290324
  %v5780 = vmul.f32 %v4155, 0.61290324
  %v5781 = vmul.f32 %v4171, 0.61290324
  %v5782 = vmul.f32 %v4187, 0.61290324
  %v5783 = vmul.f32 %v4203, 0.61290324
  %v5784 = vmul.f32 %v4219, 0.61290324
  %v5785 = vmul.f32 %v4235, 0.61290324
  %v5786 = vmul.f32 %v4251, 0.61290324
  %v5787 = vmul.f32 %v4267, 0.61290324
  %v5788 = vmul.f32 %v124, 0.38709676
  %v5789 = vmul.f32 %v220, 0.38709676
  %v5790 = vmul.f32 %v2940, 0.38709676
  %v5791 = vmul.f32 %v2988, 0.38709676
  %v5792 = vmul.f32 %v3036, 0.38709676
  %v5793 = vmul.f32 %v3084, 0.38709676
  %v5794 = vmul.f32 %v3132, 0.38709676
  %v5795 = vmul.f32 %v3180, 0.38709676
  %v5796 = vmul.f32 %v3228, 0.38709676
  %v5797 = vmul.f32 %v3276, 0.38709676
  %v5798 = vmul.f32 %v3324, 0.38709676
  %v5799 = vmul.f32 %v3372, 0.38709676
  %v5800 = vmul.f32 %v3420, 0.38709676
  %v5801 = vmul.f32 %v3468, 0.38709676
  %v5802 = vmul.f32 %v3516, 0.38709676
  %v5803 = vmul.f32 %v4028, 0.38709676
  %v5804 = vmul.f32 %v4044, 0.38709676
  %v5805 = vmul.f32 %v4060, 0.38709676
  %v5806 = vmul.f32 %v4076, 0.38709676
  %v5807 = vmul.f32 %v4092, 0.38709676
  %v5808 = vmul.f32 %v4108, 0.38709676
  %v5809 = vmul.f32 %v4124, 0.38709676
  %v5810 = vmul.f32 %v4140, 0.38709676
  %v5811 = vmul.f32 %v4156, 0.38709676
  %v5812 = vmul.f32 %v4172, 0.38709676
  %v5813 = vmul.f32 %v4188, 0.38709676
  %v5814 = vmul.f32 %v4204, 0.38709676
  %v5815 = vmul.f32 %v4220, 0.38709676
  %v5816 = vmul.f32 %v4236, 0.38709676
  %v5817 = vmul.f32 %v4252, 0.38709676
  %v5818 = vmul.f32 %v4268, 0.38709676
  %v5819 = vadd.f32 %v619, %v636
  %v5820 = vadd.f32 %v5757, %v5788
  %v5821 = vadd.f32 %v5758, %v5789
  %v5822 = vadd.f32 %v5759, %v5790
  %v5823 = vadd.f32 %v5760, %v5791
  %v5824 = vadd.f32 %v5761, %v5792
  %v5825 = vadd.f32 %v5762, %v5793
  %v5826 = vadd.f32 %v5763, %v5794
  %v5827 = vadd.f32 %v5764, %v5795
  %v5828 = vadd.f32 %v5765, %v5796
  %v5829 = vadd.f32 %v5766, %v5797
  %v5830 = vadd.f32 %v5767, %v5798
  %v5831 = vadd.f32 %v5768, %v5799
  %v5832 = vadd.f32 %v5769, %v5800
  %v5833 = vadd.f32 %v5770, %v5801
  %v5834 = vadd.f32 %v5771, %v5802
  %v5835 = vadd.f32 %v5772, %v5803
  %v5836 = vadd.f32 %v5773, %v5804
  %v5837 = vadd.f32 %v5774, %v5805
  %v5838 = vadd.f32 %v5775, %v5806
  %v5839 = vadd.f32 %v5776, %v5807
  %v5840 = vadd.f32 %v5777, %v5808
  %v5841 = vadd.f32 %v5778, %v5809
  %v5842 = vadd.f32 %v5779, %v5810
  %v5843 = vadd.f32 %v5780, %v5811
  %v5844 = vadd.f32 %v5781, %v5812
  %v5845 = vadd.f32 %v5782, %v5813
  %v5846 = vadd.f32 %v5783, %v5814
  %v5847 = vadd.f32 %v5784, %v5815
  %v5848 = vadd.f32 %v5785, %v5816
  %v5849 = vadd.f32 %v5786, %v5817
  %v5850 = vadd.f32 %v5787, %v5818
  %v5883 = vrot.slane %v5820, 7
  %v5884 = vsel %vm4540, %v5883, %v5819
  %v5885 = vrot.slane %v5821, 6
  %v5886 = vsel %vm4543, %v5885, %v5884
  %v5887 = vrot.slane %v5822, 5
  %v5888 = vsel %vm4546, %v5887, %v5886
  %v5889 = vrot.slane %v5823, 4
  %v5890 = vsel %vm4549, %v5889, %v5888
  %v5891 = vrot.slane %v5824, 3
  %v5892 = vsel %vm4552, %v5891, %v5890
  %v5893 = vrot.slane %v5825, 2
  %v5894 = vsel %vm4555, %v5893, %v5892
  %v5895 = vrot.slane %v5826, 1
  %v5896 = vsel %vm4558, %v5895, %v5894
  %v5897 = vrot.slane %v5828, 7
  %v5898 = vsel %vm4540, %v5897, %v5827
  %v5899 = vrot.slane %v5829, 6
  %v5900 = vsel %vm4543, %v5899, %v5898
  %v5901 = vrot.slane %v5830, 5
  %v5902 = vsel %vm4546, %v5901, %v5900
  %v5903 = vrot.slane %v5831, 4
  %v5904 = vsel %vm4549, %v5903, %v5902
  %v5905 = vrot.slane %v5832, 3
  %v5906 = vsel %vm4552, %v5905, %v5904
  %v5907 = vrot.slane %v5833, 2
  %v5908 = vsel %vm4555, %v5907, %v5906
  %v5909 = vrot.slane %v5834, 1
  %v5910 = vsel %vm4558, %v5909, %v5908
  %v5911 = vrot.slane %v5836, 7
  %v5912 = vsel %vm4540, %v5911, %v5835
  %v5913 = vrot.slane %v5837, 6
  %v5914 = vsel %vm4543, %v5913, %v5912
  %v5915 = vrot.slane %v5838, 5
  %v5916 = vsel %vm4546, %v5915, %v5914
  %v5917 = vrot.slane %v5839, 4
  %v5918 = vsel %vm4549, %v5917, %v5916
  %v5919 = vrot.slane %v5840, 3
  %v5920 = vsel %vm4552, %v5919, %v5918
  %v5921 = vrot.slane %v5841, 2
  %v5922 = vsel %vm4555, %v5921, %v5920
  %v5923 = vrot.slane %v5842, 1
  %v5924 = vsel %vm4558, %v5923, %v5922
  %v5925 = vrot.slane %v5844, 7
  %v5926 = vsel %vm4540, %v5925, %v5843
  %v5927 = vrot.slane %v5845, 6
  %v5928 = vsel %vm4543, %v5927, %v5926
  %v5929 = vrot.slane %v5846, 5
  %v5930 = vsel %vm4546, %v5929, %v5928
  %v5931 = vrot.slane %v5847, 4
  %v5932 = vsel %vm4549, %v5931, %v5930
  %v5933 = vrot.slane %v5848, 3
  %v5934 = vsel %vm4552, %v5933, %v5932
  %v5935 = vrot.slane %v5849, 2
  %v5936 = vsel %vm4555, %v5935, %v5934
  %v5937 = vrot.slane %v5850, 1
  %v5938 = vsel %vm4558, %v5937, %v5936
  %s5943 = scalar_lea.vmem %s1, 224
  %5944 = vst.msk [vmem:[%s5943] sm:$0xff] %vm4606, %v5896
  %5945 = vst.msk [vmem:[%s5943 + $0x8] sm:$0xff] %vm4606, %v5910
  %5946 = vst.msk [vmem:[%s5943 + $0x10] sm:$0xff] %vm4606, %v5924
  %5947 = vst.msk [vmem:[%s5943 + $0x18] sm:$0xff] %vm4606, %v5938
  %v5948 = vmul.f32 %v123, 0.12903225
  %v5949 = vmul.f32 %v219, 0.12903225
  %v5950 = vmul.f32 %v2939, 0.12903225
  %v5951 = vmul.f32 %v2987, 0.12903225
  %v5952 = vmul.f32 %v3035, 0.12903225
  %v5953 = vmul.f32 %v3083, 0.12903225
  %v5954 = vmul.f32 %v3131, 0.12903225
  %v5955 = vmul.f32 %v3179, 0.12903225
  %v5956 = vmul.f32 %v3227, 0.12903225
  %v5957 = vmul.f32 %v3275, 0.12903225
  %v5958 = vmul.f32 %v3323, 0.12903225
  %v5959 = vmul.f32 %v3371, 0.12903225
  %v5960 = vmul.f32 %v3419, 0.12903225
  %v5961 = vmul.f32 %v3467, 0.12903225
  %v5962 = vmul.f32 %v3515, 0.12903225
  %v5963 = vmul.f32 %v4027, 0.12903225
  %v5964 = vmul.f32 %v4043, 0.12903225
  %v5965 = vmul.f32 %v4059, 0.12903225
  %v5966 = vmul.f32 %v4075, 0.12903225
  %v5967 = vmul.f32 %v4091, 0.12903225
  %v5968 = vmul.f32 %v4107, 0.12903225
  %v5969 = vmul.f32 %v4123, 0.12903225
  %v5970 = vmul.f32 %v4139, 0.12903225
  %v5971 = vmul.f32 %v4155, 0.12903225
  %v5972 = vmul.f32 %v4171, 0.12903225
  %v5973 = vmul.f32 %v4187, 0.12903225
  %v5974 = vmul.f32 %v4203, 0.12903225
  %v5975 = vmul.f32 %v4219, 0.12903225
  %v5976 = vmul.f32 %v4235, 0.12903225
  %v5977 = vmul.f32 %v4251, 0.12903225
  %v5978 = vmul.f32 %v4267, 0.12903225
  %v5979 = vmul.f32 %v124, 0.87096775
  %v5980 = vmul.f32 %v220, 0.87096775
  %v5981 = vmul.f32 %v2940, 0.87096775
  %v5982 = vmul.f32 %v2988, 0.87096775
  %v5983 = vmul.f32 %v3036, 0.87096775
  %v5984 = vmul.f32 %v3084, 0.87096775
  %v5985 = vmul.f32 %v3132, 0.87096775
  %v5986 = vmul.f32 %v3180, 0.87096775
  %v5987 = vmul.f32 %v3228, 0.87096775
  %v5988 = vmul.f32 %v3276, 0.87096775
  %v5989 = vmul.f32 %v3324, 0.87096775
  %v5990 = vmul.f32 %v3372, 0.87096775
  %v5991 = vmul.f32 %v3420, 0.87096775
  %v5992 = vmul.f32 %v3468, 0.87096775
  %v5993 = vmul.f32 %v3516, 0.87096775
  %v5994 = vmul.f32 %v4028, 0.87096775
  %v5995 = vmul.f32 %v4044, 0.87096775
  %v5996 = vmul.f32 %v4060, 0.87096775
  %v5997 = vmul.f32 %v4076, 0.87096775
  %v5998 = vmul.f32 %v4092, 0.87096775
  %v5999 = vmul.f32 %v4108, 0.87096775
  %v6000 = vmul.f32 %v4124, 0.87096775
  %v6001 = vmul.f32 %v4140, 0.87096775
  %v6002 = vmul.f32 %v4156, 0.87096775
  %v6003 = vmul.f32 %v4172, 0.87096775
  %v6004 = vmul.f32 %v4188, 0.87096775
  %v6005 = vmul.f32 %v4204, 0.87096775
  %v6006 = vmul.f32 %v4220, 0.87096775
  %v6007 = vmul.f32 %v4236, 0.87096775
  %v6008 = vmul.f32 %v4252, 0.87096775
  %v6009 = vmul.f32 %v4268, 0.87096775
  %v6010 = vadd.f32 %v715, %v732
  %v6011 = vadd.f32 %v5948, %v5979
  %v6012 = vadd.f32 %v5949, %v5980
  %v6013 = vadd.f32 %v5950, %v5981
  %v6014 = vadd.f32 %v5951, %v5982
  %v6015 = vadd.f32 %v5952, %v5983
  %v6016 = vadd.f32 %v5953, %v5984
  %v6017 = vadd.f32 %v5954, %v5985
  %v6018 = vadd.f32 %v5955, %v5986
  %v6019 = vadd.f32 %v5956, %v5987
  %v6020 = vadd.f32 %v5957, %v5988
  %v6021 = vadd.f32 %v5958, %v5989
  %v6022 = vadd.f32 %v5959, %v5990
  %v6023 = vadd.f32 %v5960, %v5991
  %v6024 = vadd.f32 %v5961, %v5992
  %v6025 = vadd.f32 %v5962, %v5993
  %v6026 = vadd.f32 %v5963, %v5994
  %v6027 = vadd.f32 %v5964, %v5995
  %v6028 = vadd.f32 %v5965, %v5996
  %v6029 = vadd.f32 %v5966, %v5997
  %v6030 = vadd.f32 %v5967, %v5998
  %v6031 = vadd.f32 %v5968, %v5999
  %v6032 = vadd.f32 %v5969, %v6000
  %v6033 = vadd.f32 %v5970, %v6001
  %v6034 = vadd.f32 %v5971, %v6002
  %v6035 = vadd.f32 %v5972, %v6003
  %v6036 = vadd.f32 %v5973, %v6004
  %v6037 = vadd.f32 %v5974, %v6005
  %v6038 = vadd.f32 %v5975, %v6006
  %v6039 = vadd.f32 %v5976, %v6007
  %v6040 = vadd.f32 %v5977, %v6008
  %v6041 = vadd.f32 %v5978, %v6009
  %v6074 = vrot.slane %v6011, 7
  %v6075 = vsel %vm4540, %v6074, %v6010
  %v6076 = vrot.slane %v6012, 6
  %v6077 = vsel %vm4543, %v6076, %v6075
  %v6078 = vrot.slane %v6013, 5
  %v6079 = vsel %vm4546, %v6078, %v6077
  %v6080 = vrot.slane %v6014, 4
  %v6081 = vsel %vm4549, %v6080, %v6079
  %v6082 = vrot.slane %v6015, 3
  %v6083 = vsel %vm4552, %v6082, %v6081
  %v6084 = vrot.slane %v6016, 2
  %v6085 = vsel %vm4555, %v6084, %v6083
  %v6086 = vrot.slane %v6017, 1
  %v6087 = vsel %vm4558, %v6086, %v6085
  %v6088 = vrot.slane %v6019, 7
  %v6089 = vsel %vm4540, %v6088, %v6018
  %v6090 = vrot.slane %v6020, 6
  %v6091 = vsel %vm4543, %v6090, %v6089
  %v6092 = vrot.slane %v6021, 5
  %v6093 = vsel %vm4546, %v6092, %v6091
  %v6094 = vrot.slane %v6022, 4
  %v6095 = vsel %vm4549, %v6094, %v6093
  %v6096 = vrot.slane %v6023, 3
  %v6097 = vsel %vm4552, %v6096, %v6095
  %v6098 = vrot.slane %v6024, 2
  %v6099 = vsel %vm4555, %v6098, %v6097
  %v6100 = vrot.slane %v6025, 1
  %v6101 = vsel %vm4558, %v6100, %v6099
  %v6102 = vrot.slane %v6027, 7
  %v6103 = vsel %vm4540, %v6102, %v6026
  %v6104 = vrot.slane %v6028, 6
  %v6105 = vsel %vm4543, %v6104, %v6103
  %v6106 = vrot.slane %v6029, 5
  %v6107 = vsel %vm4546, %v6106, %v6105
  %v6108 = vrot.slane %v6030, 4
  %v6109 = vsel %vm4549, %v6108, %v6107
  %v6110 = vrot.slane %v6031, 3
  %v6111 = vsel %vm4552, %v6110, %v6109
  %v6112 = vrot.slane %v6032, 2
  %v6113 = vsel %vm4555, %v6112, %v6111
  %v6114 = vrot.slane %v6033, 1
  %v6115 = vsel %vm4558, %v6114, %v6113
  %v6116 = vrot.slane %v6035, 7
  %v6117 = vsel %vm4540, %v6116, %v6034
  %v6118 = vrot.slane %v6036, 6
  %v6119 = vsel %vm4543, %v6118, %v6117
  %v6120 = vrot.slane %v6037, 5
  %v6121 = vsel %vm4546, %v6120, %v6119
  %v6122 = vrot.slane %v6038, 4
  %v6123 = vsel %vm4549, %v6122, %v6121
  %v6124 = vrot.slane %v6039, 3
  %v6125 = vsel %vm4552, %v6124, %v6123
  %v6126 = vrot.slane %v6040, 2
  %v6127 = vsel %vm4555, %v6126, %v6125
  %v6128 = vrot.slane %v6041, 1
  %v6129 = vsel %vm4558, %v6128, %v6127
  %s6134 = scalar_lea.vmem %s1, 256
  %6135 = vst.msk [vmem:[%s6134] sm:$0xff] %vm4606, %v6087
  %6136 = vst.msk [vmem:[%s6134 + $0x8] sm:$0xff] %vm4606, %v6101
  %6137 = vst.msk [vmem:[%s6134 + $0x10] sm:$0xff] %vm4606, %v6115
  %6138 = vst.msk [vmem:[%s6134 + $0x18] sm:$0xff] %vm4606, %v6129
  %v6139 = vmul.f32 %v124, 0.6451613
  %v6140 = vmul.f32 %v220, 0.6451613
  %v6141 = vmul.f32 %v2940, 0.6451613
  %v6142 = vmul.f32 %v2988, 0.6451613
  %v6143 = vmul.f32 %v3036, 0.6451613
  %v6144 = vmul.f32 %v3084, 0.6451613
  %v6145 = vmul.f32 %v3132, 0.6451613
  %v6146 = vmul.f32 %v3180, 0.6451613
  %v6147 = vmul.f32 %v3228, 0.6451613
  %v6148 = vmul.f32 %v3276, 0.6451613
  %v6149 = vmul.f32 %v3324, 0.6451613
  %v6150 = vmul.f32 %v3372, 0.6451613
  %v6151 = vmul.f32 %v3420, 0.6451613
  %v6152 = vmul.f32 %v3468, 0.6451613
  %v6153 = vmul.f32 %v3516, 0.6451613
  %v6154 = vmul.f32 %v4028, 0.6451613
  %v6155 = vmul.f32 %v4044, 0.6451613
  %v6156 = vmul.f32 %v4060, 0.6451613
  %v6157 = vmul.f32 %v4076, 0.6451613
  %v6158 = vmul.f32 %v4092, 0.6451613
  %v6159 = vmul.f32 %v4108, 0.6451613
  %v6160 = vmul.f32 %v4124, 0.6451613
  %v6161 = vmul.f32 %v4140, 0.6451613
  %v6162 = vmul.f32 %v4156, 0.6451613
  %v6163 = vmul.f32 %v4172, 0.6451613
  %v6164 = vmul.f32 %v4188, 0.6451613
  %v6165 = vmul.f32 %v4204, 0.6451613
  %v6166 = vmul.f32 %v4220, 0.6451613
  %v6167 = vmul.f32 %v4236, 0.6451613
  %v6168 = vmul.f32 %v4252, 0.6451613
  %v6169 = vmul.f32 %v4268, 0.6451613
  %v6170 = vmul.f32 %v125, 0.3548387
  %v6171 = vmul.f32 %v221, 0.3548387
  %v6172 = vmul.f32 %v2941, 0.3548387
  %v6173 = vmul.f32 %v2989, 0.3548387
  %v6174 = vmul.f32 %v3037, 0.3548387
  %v6175 = vmul.f32 %v3085, 0.3548387
  %v6176 = vmul.f32 %v3133, 0.3548387
  %v6177 = vmul.f32 %v3181, 0.3548387
  %v6178 = vmul.f32 %v3229, 0.3548387
  %v6179 = vmul.f32 %v3277, 0.3548387
  %v6180 = vmul.f32 %v3325, 0.3548387
  %v6181 = vmul.f32 %v3373, 0.3548387
  %v6182 = vmul.f32 %v3421, 0.3548387
  %v6183 = vmul.f32 %v3469, 0.3548387
  %v6184 = vmul.f32 %v3517, 0.3548387
  %v6185 = vmul.f32 %v4029, 0.3548387
  %v6186 = vmul.f32 %v4045, 0.3548387
  %v6187 = vmul.f32 %v4061, 0.3548387
  %v6188 = vmul.f32 %v4077, 0.3548387
  %v6189 = vmul.f32 %v4093, 0.3548387
  %v6190 = vmul.f32 %v4109, 0.3548387
  %v6191 = vmul.f32 %v4125, 0.3548387
  %v6192 = vmul.f32 %v4141, 0.3548387
  %v6193 = vmul.f32 %v4157, 0.3548387
  %v6194 = vmul.f32 %v4173, 0.3548387
  %v6195 = vmul.f32 %v4189, 0.3548387
  %v6196 = vmul.f32 %v4205, 0.3548387
  %v6197 = vmul.f32 %v4221, 0.3548387
  %v6198 = vmul.f32 %v4237, 0.3548387
  %v6199 = vmul.f32 %v4253, 0.3548387
  %v6200 = vmul.f32 %v4269, 0.3548387
  %v6201 = vadd.f32 %v812, %v829
  %v6202 = vadd.f32 %v6139, %v6170
  %v6203 = vadd.f32 %v6140, %v6171
  %v6204 = vadd.f32 %v6141, %v6172
  %v6205 = vadd.f32 %v6142, %v6173
  %v6206 = vadd.f32 %v6143, %v6174
  %v6207 = vadd.f32 %v6144, %v6175
  %v6208 = vadd.f32 %v6145, %v6176
  %v6209 = vadd.f32 %v6146, %v6177
  %v6210 = vadd.f32 %v6147, %v6178
  %v6211 = vadd.f32 %v6148, %v6179
  %v6212 = vadd.f32 %v6149, %v6180
  %v6213 = vadd.f32 %v6150, %v6181
  %v6214 = vadd.f32 %v6151, %v6182
  %v6215 = vadd.f32 %v6152, %v6183
  %v6216 = vadd.f32 %v6153, %v6184
  %v6217 = vadd.f32 %v6154, %v6185
  %v6218 = vadd.f32 %v6155, %v6186
  %v6219 = vadd.f32 %v6156, %v6187
  %v6220 = vadd.f32 %v6157, %v6188
  %v6221 = vadd.f32 %v6158, %v6189
  %v6222 = vadd.f32 %v6159, %v6190
  %v6223 = vadd.f32 %v6160, %v6191
  %v6224 = vadd.f32 %v6161, %v6192
  %v6225 = vadd.f32 %v6162, %v6193
  %v6226 = vadd.f32 %v6163, %v6194
  %v6227 = vadd.f32 %v6164, %v6195
  %v6228 = vadd.f32 %v6165, %v6196
  %v6229 = vadd.f32 %v6166, %v6197
  %v6230 = vadd.f32 %v6167, %v6198
  %v6231 = vadd.f32 %v6168, %v6199
  %v6232 = vadd.f32 %v6169, %v6200
  %v6265 = vrot.slane %v6202, 7
  %v6266 = vsel %vm4540, %v6265, %v6201
  %v6267 = vrot.slane %v6203, 6
  %v6268 = vsel %vm4543, %v6267, %v6266
  %v6269 = vrot.slane %v6204, 5
  %v6270 = vsel %vm4546, %v6269, %v6268
  %v6271 = vrot.slane %v6205, 4
  %v6272 = vsel %vm4549, %v6271, %v6270
  %v6273 = vrot.slane %v6206, 3
  %v6274 = vsel %vm4552, %v6273, %v6272
  %v6275 = vrot.slane %v6207, 2
  %v6276 = vsel %vm4555, %v6275, %v6274
  %v6277 = vrot.slane %v6208, 1
  %v6278 = vsel %vm4558, %v6277, %v6276
  %v6279 = vrot.slane %v6210, 7
  %v6280 = vsel %vm4540, %v6279, %v6209
  %v6281 = vrot.slane %v6211, 6
  %v6282 = vsel %vm4543, %v6281, %v6280
  %v6283 = vrot.slane %v6212, 5
  %v6284 = vsel %vm4546, %v6283, %v6282
  %v6285 = vrot.slane %v6213, 4
  %v6286 = vsel %vm4549, %v6285, %v6284
  %v6287 = vrot.slane %v6214, 3
  %v6288 = vsel %vm4552, %v6287, %v6286
  %v6289 = vrot.slane %v6215, 2
  %v6290 = vsel %vm4555, %v6289, %v6288
  %v6291 = vrot.slane %v6216, 1
  %v6292 = vsel %vm4558, %v6291, %v6290
  %v6293 = vrot.slane %v6218, 7
  %v6294 = vsel %vm4540, %v6293, %v6217
  %v6295 = vrot.slane %v6219, 6
  %v6296 = vsel %vm4543, %v6295, %v6294
  %v6297 = vrot.slane %v6220, 5
  %v6298 = vsel %vm4546, %v6297, %v6296
  %v6299 = vrot.slane %v6221, 4
  %v6300 = vsel %vm4549, %v6299, %v6298
  %v6301 = vrot.slane %v6222, 3
  %v6302 = vsel %vm4552, %v6301, %v6300
  %v6303 = vrot.slane %v6223, 2
  %v6304 = vsel %vm4555, %v6303, %v6302
  %v6305 = vrot.slane %v6224, 1
  %v6306 = vsel %vm4558, %v6305, %v6304
  %v6307 = vrot.slane %v6226, 7
  %v6308 = vsel %vm4540, %v6307, %v6225
  %v6309 = vrot.slane %v6227, 6
  %v6310 = vsel %vm4543, %v6309, %v6308
  %v6311 = vrot.slane %v6228, 5
  %v6312 = vsel %vm4546, %v6311, %v6310
  %v6313 = vrot.slane %v6229, 4
  %v6314 = vsel %vm4549, %v6313, %v6312
  %v6315 = vrot.slane %v6230, 3
  %v6316 = vsel %vm4552, %v6315, %v6314
  %v6317 = vrot.slane %v6231, 2
  %v6318 = vsel %vm4555, %v6317, %v6316
  %v6319 = vrot.slane %v6232, 1
  %v6320 = vsel %vm4558, %v6319, %v6318
  %s6325 = scalar_lea.vmem %s1, 288
  %6326 = vst.msk [vmem:[%s6325] sm:$0xff] %vm4606, %v6278
  %6327 = vst.msk [vmem:[%s6325 + $0x8] sm:$0xff] %vm4606, %v6292
  %6328 = vst.msk [vmem:[%s6325 + $0x10] sm:$0xff] %vm4606, %v6306
  %6329 = vst.msk [vmem:[%s6325 + $0x18] sm:$0xff] %vm4606, %v6320
  %v6330 = vmul.f32 %v124, 0.16129032
  %v6331 = vmul.f32 %v220, 0.16129032
  %v6332 = vmul.f32 %v2940, 0.16129032
  %v6333 = vmul.f32 %v2988, 0.16129032
  %v6334 = vmul.f32 %v3036, 0.16129032
  %v6335 = vmul.f32 %v3084, 0.16129032
  %v6336 = vmul.f32 %v3132, 0.16129032
  %v6337 = vmul.f32 %v3180, 0.16129032
  %v6338 = vmul.f32 %v3228, 0.16129032
  %v6339 = vmul.f32 %v3276, 0.16129032
  %v6340 = vmul.f32 %v3324, 0.16129032
  %v6341 = vmul.f32 %v3372, 0.16129032
  %v6342 = vmul.f32 %v3420, 0.16129032
  %v6343 = vmul.f32 %v3468, 0.16129032
  %v6344 = vmul.f32 %v3516, 0.16129032
  %v6345 = vmul.f32 %v4028, 0.16129032
  %v6346 = vmul.f32 %v4044, 0.16129032
  %v6347 = vmul.f32 %v4060, 0.16129032
  %v6348 = vmul.f32 %v4076, 0.16129032
  %v6349 = vmul.f32 %v4092, 0.16129032
  %v6350 = vmul.f32 %v4108, 0.16129032
  %v6351 = vmul.f32 %v4124, 0.16129032
  %v6352 = vmul.f32 %v4140, 0.16129032
  %v6353 = vmul.f32 %v4156, 0.16129032
  %v6354 = vmul.f32 %v4172, 0.16129032
  %v6355 = vmul.f32 %v4188, 0.16129032
  %v6356 = vmul.f32 %v4204, 0.16129032
  %v6357 = vmul.f32 %v4220, 0.16129032
  %v6358 = vmul.f32 %v4236, 0.16129032
  %v6359 = vmul.f32 %v4252, 0.16129032
  %v6360 = vmul.f32 %v4268, 0.16129032
  %v6361 = vmul.f32 %v125, 0.83870965
  %v6362 = vmul.f32 %v221, 0.83870965
  %v6363 = vmul.f32 %v2941, 0.83870965
  %v6364 = vmul.f32 %v2989, 0.83870965
  %v6365 = vmul.f32 %v3037, 0.83870965
  %v6366 = vmul.f32 %v3085, 0.83870965
  %v6367 = vmul.f32 %v3133, 0.83870965
  %v6368 = vmul.f32 %v3181, 0.83870965
  %v6369 = vmul.f32 %v3229, 0.83870965
  %v6370 = vmul.f32 %v3277, 0.83870965
  %v6371 = vmul.f32 %v3325, 0.83870965
  %v6372 = vmul.f32 %v3373, 0.83870965
  %v6373 = vmul.f32 %v3421, 0.83870965
  %v6374 = vmul.f32 %v3469, 0.83870965
  %v6375 = vmul.f32 %v3517, 0.83870965
  %v6376 = vmul.f32 %v4029, 0.83870965
  %v6377 = vmul.f32 %v4045, 0.83870965
  %v6378 = vmul.f32 %v4061, 0.83870965
  %v6379 = vmul.f32 %v4077, 0.83870965
  %v6380 = vmul.f32 %v4093, 0.83870965
  %v6381 = vmul.f32 %v4109, 0.83870965
  %v6382 = vmul.f32 %v4125, 0.83870965
  %v6383 = vmul.f32 %v4141, 0.83870965
  %v6384 = vmul.f32 %v4157, 0.83870965
  %v6385 = vmul.f32 %v4173, 0.83870965
  %v6386 = vmul.f32 %v4189, 0.83870965
  %v6387 = vmul.f32 %v4205, 0.83870965
  %v6388 = vmul.f32 %v4221, 0.83870965
  %v6389 = vmul.f32 %v4237, 0.83870965
  %v6390 = vmul.f32 %v4253, 0.83870965
  %v6391 = vmul.f32 %v4269, 0.83870965
  %v6392 = vadd.f32 %v908, %v925
  %v6393 = vadd.f32 %v6330, %v6361
  %v6394 = vadd.f32 %v6331, %v6362
  %v6395 = vadd.f32 %v6332, %v6363
  %v6396 = vadd.f32 %v6333, %v6364
  %v6397 = vadd.f32 %v6334, %v6365
  %v6398 = vadd.f32 %v6335, %v6366
  %v6399 = vadd.f32 %v6336, %v6367
  %v6400 = vadd.f32 %v6337, %v6368
  %v6401 = vadd.f32 %v6338, %v6369
  %v6402 = vadd.f32 %v6339, %v6370
  %v6403 = vadd.f32 %v6340, %v6371
  %v6404 = vadd.f32 %v6341, %v6372
  %v6405 = vadd.f32 %v6342, %v6373
  %v6406 = vadd.f32 %v6343, %v6374
  %v6407 = vadd.f32 %v6344, %v6375
  %v6408 = vadd.f32 %v6345, %v6376
  %v6409 = vadd.f32 %v6346, %v6377
  %v6410 = vadd.f32 %v6347, %v6378
  %v6411 = vadd.f32 %v6348, %v6379
  %v6412 = vadd.f32 %v6349, %v6380
  %v6413 = vadd.f32 %v6350, %v6381
  %v6414 = vadd.f32 %v6351, %v6382
  %v6415 = vadd.f32 %v6352, %v6383
  %v6416 = vadd.f32 %v6353, %v6384
  %v6417 = vadd.f32 %v6354, %v6385
  %v6418 = vadd.f32 %v6355, %v6386
  %v6419 = vadd.f32 %v6356, %v6387
  %v6420 = vadd.f32 %v6357, %v6388
  %v6421 = vadd.f32 %v6358, %v6389
  %v6422 = vadd.f32 %v6359, %v6390
  %v6423 = vadd.f32 %v6360, %v6391
  %v6456 = vrot.slane %v6393, 7
  %v6457 = vsel %vm4540, %v6456, %v6392
  %v6458 = vrot.slane %v6394, 6
  %v6459 = vsel %vm4543, %v6458, %v6457
  %v6460 = vrot.slane %v6395, 5
  %v6461 = vsel %vm4546, %v6460, %v6459
  %v6462 = vrot.slane %v6396, 4
  %v6463 = vsel %vm4549, %v6462, %v6461
  %v6464 = vrot.slane %v6397, 3
  %v6465 = vsel %vm4552, %v6464, %v6463
  %v6466 = vrot.slane %v6398, 2
  %v6467 = vsel %vm4555, %v6466, %v6465
  %v6468 = vrot.slane %v6399, 1
  %v6469 = vsel %vm4558, %v6468, %v6467
  %v6470 = vrot.slane %v6401, 7
  %v6471 = vsel %vm4540, %v6470, %v6400
  %v6472 = vrot.slane %v6402, 6
  %v6473 = vsel %vm4543, %v6472, %v6471
  %v6474 = vrot.slane %v6403, 5
  %v6475 = vsel %vm4546, %v6474, %v6473
  %v6476 = vrot.slane %v6404, 4
  %v6477 = vsel %vm4549, %v6476, %v6475
  %v6478 = vrot.slane %v6405, 3
  %v6479 = vsel %vm4552, %v6478, %v6477
  %v6480 = vrot.slane %v6406, 2
  %v6481 = vsel %vm4555, %v6480, %v6479
  %v6482 = vrot.slane %v6407, 1
  %v6483 = vsel %vm4558, %v6482, %v6481
  %v6484 = vrot.slane %v6409, 7
  %v6485 = vsel %vm4540, %v6484, %v6408
  %v6486 = vrot.slane %v6410, 6
  %v6487 = vsel %vm4543, %v6486, %v6485
  %v6488 = vrot.slane %v6411, 5
  %v6489 = vsel %vm4546, %v6488, %v6487
  %v6490 = vrot.slane %v6412, 4
  %v6491 = vsel %vm4549, %v6490, %v6489
  %v6492 = vrot.slane %v6413, 3
  %v6493 = vsel %vm4552, %v6492, %v6491
  %v6494 = vrot.slane %v6414, 2
  %v6495 = vsel %vm4555, %v6494, %v6493
  %v6496 = vrot.slane %v6415, 1
  %v6497 = vsel %vm4558, %v6496, %v6495
  %v6498 = vrot.slane %v6417, 7
  %v6499 = vsel %vm4540, %v6498, %v6416
  %v6500 = vrot.slane %v6418, 6
  %v6501 = vsel %vm4543, %v6500, %v6499
  %v6502 = vrot.slane %v6419, 5
  %v6503 = vsel %vm4546, %v6502, %v6501
  %v6504 = vrot.slane %v6420, 4
  %v6505 = vsel %vm4549, %v6504, %v6503
  %v6506 = vrot.slane %v6421, 3
  %v6507 = vsel %vm4552, %v6506, %v6505
  %v6508 = vrot.slane %v6422, 2
  %v6509 = vsel %vm4555, %v6508, %v6507
  %v6510 = vrot.slane %v6423, 1
  %v6511 = vsel %vm4558, %v6510, %v6509
  %s6516 = scalar_lea.vmem %s1, 320
  %6517 = vst.msk [vmem:[%s6516] sm:$0xff] %vm4606, %v6469
  %6518 = vst.msk [vmem:[%s6516 + $0x8] sm:$0xff] %vm4606, %v6483
  %6519 = vst.msk [vmem:[%s6516 + $0x10] sm:$0xff] %vm4606, %v6497
  %6520 = vst.msk [vmem:[%s6516 + $0x18] sm:$0xff] %vm4606, %v6511
  %v6521 = vmul.f32 %v125, 0.67741936
  %v6522 = vmul.f32 %v221, 0.67741936
  %v6523 = vmul.f32 %v2941, 0.67741936
  %v6524 = vmul.f32 %v2989, 0.67741936
  %v6525 = vmul.f32 %v3037, 0.67741936
  %v6526 = vmul.f32 %v3085, 0.67741936
  %v6527 = vmul.f32 %v3133, 0.67741936
  %v6528 = vmul.f32 %v3181, 0.67741936
  %v6529 = vmul.f32 %v3229, 0.67741936
  %v6530 = vmul.f32 %v3277, 0.67741936
  %v6531 = vmul.f32 %v3325, 0.67741936
  %v6532 = vmul.f32 %v3373, 0.67741936
  %v6533 = vmul.f32 %v3421, 0.67741936
  %v6534 = vmul.f32 %v3469, 0.67741936
  %v6535 = vmul.f32 %v3517, 0.67741936
  %v6536 = vmul.f32 %v4029, 0.67741936
  %v6537 = vmul.f32 %v4045, 0.67741936
  %v6538 = vmul.f32 %v4061, 0.67741936
  %v6539 = vmul.f32 %v4077, 0.67741936
  %v6540 = vmul.f32 %v4093, 0.67741936
  %v6541 = vmul.f32 %v4109, 0.67741936
  %v6542 = vmul.f32 %v4125, 0.67741936
  %v6543 = vmul.f32 %v4141, 0.67741936
  %v6544 = vmul.f32 %v4157, 0.67741936
  %v6545 = vmul.f32 %v4173, 0.67741936
  %v6546 = vmul.f32 %v4189, 0.67741936
  %v6547 = vmul.f32 %v4205, 0.67741936
  %v6548 = vmul.f32 %v4221, 0.67741936
  %v6549 = vmul.f32 %v4237, 0.67741936
  %v6550 = vmul.f32 %v4253, 0.67741936
  %v6551 = vmul.f32 %v4269, 0.67741936
  %v6552 = vmul.f32 %v126, 0.32258064
  %v6553 = vmul.f32 %v222, 0.32258064
  %v6554 = vmul.f32 %v2942, 0.32258064
  %v6555 = vmul.f32 %v2990, 0.32258064
  %v6556 = vmul.f32 %v3038, 0.32258064
  %v6557 = vmul.f32 %v3086, 0.32258064
  %v6558 = vmul.f32 %v3134, 0.32258064
  %v6559 = vmul.f32 %v3182, 0.32258064
  %v6560 = vmul.f32 %v3230, 0.32258064
  %v6561 = vmul.f32 %v3278, 0.32258064
  %v6562 = vmul.f32 %v3326, 0.32258064
  %v6563 = vmul.f32 %v3374, 0.32258064
  %v6564 = vmul.f32 %v3422, 0.32258064
  %v6565 = vmul.f32 %v3470, 0.32258064
  %v6566 = vmul.f32 %v3518, 0.32258064
  %v6567 = vmul.f32 %v4030, 0.32258064
  %v6568 = vmul.f32 %v4046, 0.32258064
  %v6569 = vmul.f32 %v4062, 0.32258064
  %v6570 = vmul.f32 %v4078, 0.32258064
  %v6571 = vmul.f32 %v4094, 0.32258064
  %v6572 = vmul.f32 %v4110, 0.32258064
  %v6573 = vmul.f32 %v4126, 0.32258064
  %v6574 = vmul.f32 %v4142, 0.32258064
  %v6575 = vmul.f32 %v4158, 0.32258064
  %v6576 = vmul.f32 %v4174, 0.32258064
  %v6577 = vmul.f32 %v4190, 0.32258064
  %v6578 = vmul.f32 %v4206, 0.32258064
  %v6579 = vmul.f32 %v4222, 0.32258064
  %v6580 = vmul.f32 %v4238, 0.32258064
  %v6581 = vmul.f32 %v4254, 0.32258064
  %v6582 = vmul.f32 %v4270, 0.32258064
  %v6583 = vadd.f32 %v1005, %v1022
  %v6584 = vadd.f32 %v6521, %v6552
  %v6585 = vadd.f32 %v6522, %v6553
  %v6586 = vadd.f32 %v6523, %v6554
  %v6587 = vadd.f32 %v6524, %v6555
  %v6588 = vadd.f32 %v6525, %v6556
  %v6589 = vadd.f32 %v6526, %v6557
  %v6590 = vadd.f32 %v6527, %v6558
  %v6591 = vadd.f32 %v6528, %v6559
  %v6592 = vadd.f32 %v6529, %v6560
  %v6593 = vadd.f32 %v6530, %v6561
  %v6594 = vadd.f32 %v6531, %v6562
  %v6595 = vadd.f32 %v6532, %v6563
  %v6596 = vadd.f32 %v6533, %v6564
  %v6597 = vadd.f32 %v6534, %v6565
  %v6598 = vadd.f32 %v6535, %v6566
  %v6599 = vadd.f32 %v6536, %v6567
  %v6600 = vadd.f32 %v6537, %v6568
  %v6601 = vadd.f32 %v6538, %v6569
  %v6602 = vadd.f32 %v6539, %v6570
  %v6603 = vadd.f32 %v6540, %v6571
  %v6604 = vadd.f32 %v6541, %v6572
  %v6605 = vadd.f32 %v6542, %v6573
  %v6606 = vadd.f32 %v6543, %v6574
  %v6607 = vadd.f32 %v6544, %v6575
  %v6608 = vadd.f32 %v6545, %v6576
  %v6609 = vadd.f32 %v6546, %v6577
  %v6610 = vadd.f32 %v6547, %v6578
  %v6611 = vadd.f32 %v6548, %v6579
  %v6612 = vadd.f32 %v6549, %v6580
  %v6613 = vadd.f32 %v6550, %v6581
  %v6614 = vadd.f32 %v6551, %v6582
  %v6647 = vrot.slane %v6584, 7
  %v6648 = vsel %vm4540, %v6647, %v6583
  %v6649 = vrot.slane %v6585, 6
  %v6650 = vsel %vm4543, %v6649, %v6648
  %v6651 = vrot.slane %v6586, 5
  %v6652 = vsel %vm4546, %v6651, %v6650
  %v6653 = vrot.slane %v6587, 4
  %v6654 = vsel %vm4549, %v6653, %v6652
  %v6655 = vrot.slane %v6588, 3
  %v6656 = vsel %vm4552, %v6655, %v6654
  %v6657 = vrot.slane %v6589, 2
  %v6658 = vsel %vm4555, %v6657, %v6656
  %v6659 = vrot.slane %v6590, 1
  %v6660 = vsel %vm4558, %v6659, %v6658
  %v6661 = vrot.slane %v6592, 7
  %v6662 = vsel %vm4540, %v6661, %v6591
  %v6663 = vrot.slane %v6593, 6
  %v6664 = vsel %vm4543, %v6663, %v6662
  %v6665 = vrot.slane %v6594, 5
  %v6666 = vsel %vm4546, %v6665, %v6664
  %v6667 = vrot.slane %v6595, 4
  %v6668 = vsel %vm4549, %v6667, %v6666
  %v6669 = vrot.slane %v6596, 3
  %v6670 = vsel %vm4552, %v6669, %v6668
  %v6671 = vrot.slane %v6597, 2
  %v6672 = vsel %vm4555, %v6671, %v6670
  %v6673 = vrot.slane %v6598, 1
  %v6674 = vsel %vm4558, %v6673, %v6672
  %v6675 = vrot.slane %v6600, 7
  %v6676 = vsel %vm4540, %v6675, %v6599
  %v6677 = vrot.slane %v6601, 6
  %v6678 = vsel %vm4543, %v6677, %v6676
  %v6679 = vrot.slane %v6602, 5
  %v6680 = vsel %vm4546, %v6679, %v6678
  %v6681 = vrot.slane %v6603, 4
  %v6682 = vsel %vm4549, %v6681, %v6680
  %v6683 = vrot.slane %v6604, 3
  %v6684 = vsel %vm4552, %v6683, %v6682
  %v6685 = vrot.slane %v6605, 2
  %v6686 = vsel %vm4555, %v6685, %v6684
  %v6687 = vrot.slane %v6606, 1
  %v6688 = vsel %vm4558, %v6687, %v6686
  %v6689 = vrot.slane %v6608, 7
  %v6690 = vsel %vm4540, %v6689, %v6607
  %v6691 = vrot.slane %v6609, 6
  %v6692 = vsel %vm4543, %v6691, %v6690
  %v6693 = vrot.slane %v6610, 5
  %v6694 = vsel %vm4546, %v6693, %v6692
  %v6695 = vrot.slane %v6611, 4
  %v6696 = vsel %vm4549, %v6695, %v6694
  %v6697 = vrot.slane %v6612, 3
  %v6698 = vsel %vm4552, %v6697, %v6696
  %v6699 = vrot.slane %v6613, 2
  %v6700 = vsel %vm4555, %v6699, %v6698
  %v6701 = vrot.slane %v6614, 1
  %v6702 = vsel %vm4558, %v6701, %v6700
  %s6707 = scalar_lea.vmem %s1, 352
  %6708 = vst.msk [vmem:[%s6707] sm:$0xff] %vm4606, %v6660
  %6709 = vst.msk [vmem:[%s6707 + $0x8] sm:$0xff] %vm4606, %v6674
  %6710 = vst.msk [vmem:[%s6707 + $0x10] sm:$0xff] %vm4606, %v6688
  %6711 = vst.msk [vmem:[%s6707 + $0x18] sm:$0xff] %vm4606, %v6702
  %v6712 = vmul.f32 %v125, 0.19354838
  %v6713 = vmul.f32 %v221, 0.19354838
  %v6714 = vmul.f32 %v2941, 0.19354838
  %v6715 = vmul.f32 %v2989, 0.19354838
  %v6716 = vmul.f32 %v3037, 0.19354838
  %v6717 = vmul.f32 %v3085, 0.19354838
  %v6718 = vmul.f32 %v3133, 0.19354838
  %v6719 = vmul.f32 %v3181, 0.19354838
  %v6720 = vmul.f32 %v3229, 0.19354838
  %v6721 = vmul.f32 %v3277, 0.19354838
  %v6722 = vmul.f32 %v3325, 0.19354838
  %v6723 = vmul.f32 %v3373, 0.19354838
  %v6724 = vmul.f32 %v3421, 0.19354838
  %v6725 = vmul.f32 %v3469, 0.19354838
  %v6726 = vmul.f32 %v3517, 0.19354838
  %v6727 = vmul.f32 %v4029, 0.19354838
  %v6728 = vmul.f32 %v4045, 0.19354838
  %v6729 = vmul.f32 %v4061, 0.19354838
  %v6730 = vmul.f32 %v4077, 0.19354838
  %v6731 = vmul.f32 %v4093, 0.19354838
  %v6732 = vmul.f32 %v4109, 0.19354838
  %v6733 = vmul.f32 %v4125, 0.19354838
  %v6734 = vmul.f32 %v4141, 0.19354838
  %v6735 = vmul.f32 %v4157, 0.19354838
  %v6736 = vmul.f32 %v4173, 0.19354838
  %v6737 = vmul.f32 %v4189, 0.19354838
  %v6738 = vmul.f32 %v4205, 0.19354838
  %v6739 = vmul.f32 %v4221, 0.19354838
  %v6740 = vmul.f32 %v4237, 0.19354838
  %v6741 = vmul.f32 %v4253, 0.19354838
  %v6742 = vmul.f32 %v4269, 0.19354838
  %v6743 = vmul.f32 %v126, 0.8064516
  %v6744 = vmul.f32 %v222, 0.8064516
  %v6745 = vmul.f32 %v2942, 0.8064516
  %v6746 = vmul.f32 %v2990, 0.8064516
  %v6747 = vmul.f32 %v3038, 0.8064516
  %v6748 = vmul.f32 %v3086, 0.8064516
  %v6749 = vmul.f32 %v3134, 0.8064516
  %v6750 = vmul.f32 %v3182, 0.8064516
  %v6751 = vmul.f32 %v3230, 0.8064516
  %v6752 = vmul.f32 %v3278, 0.8064516
  %v6753 = vmul.f32 %v3326, 0.8064516
  %v6754 = vmul.f32 %v3374, 0.8064516
  %v6755 = vmul.f32 %v3422, 0.8064516
  %v6756 = vmul.f32 %v3470, 0.8064516
  %v6757 = vmul.f32 %v3518, 0.8064516
  %v6758 = vmul.f32 %v4030, 0.8064516
  %v6759 = vmul.f32 %v4046, 0.8064516
  %v6760 = vmul.f32 %v4062, 0.8064516
  %v6761 = vmul.f32 %v4078, 0.8064516
  %v6762 = vmul.f32 %v4094, 0.8064516
  %v6763 = vmul.f32 %v4110, 0.8064516
  %v6764 = vmul.f32 %v4126, 0.8064516
  %v6765 = vmul.f32 %v4142, 0.8064516
  %v6766 = vmul.f32 %v4158, 0.8064516
  %v6767 = vmul.f32 %v4174, 0.8064516
  %v6768 = vmul.f32 %v4190, 0.8064516
  %v6769 = vmul.f32 %v4206, 0.8064516
  %v6770 = vmul.f32 %v4222, 0.8064516
  %v6771 = vmul.f32 %v4238, 0.8064516
  %v6772 = vmul.f32 %v4254, 0.8064516
  %v6773 = vmul.f32 %v4270, 0.8064516
  %v6774 = vadd.f32 %v1101, %v1118
  %v6775 = vadd.f32 %v6712, %v6743
  %v6776 = vadd.f32 %v6713, %v6744
  %v6777 = vadd.f32 %v6714, %v6745
  %v6778 = vadd.f32 %v6715, %v6746
  %v6779 = vadd.f32 %v6716, %v6747
  %v6780 = vadd.f32 %v6717, %v6748
  %v6781 = vadd.f32 %v6718, %v6749
  %v6782 = vadd.f32 %v6719, %v6750
  %v6783 = vadd.f32 %v6720, %v6751
  %v6784 = vadd.f32 %v6721, %v6752
  %v6785 = vadd.f32 %v6722, %v6753
  %v6786 = vadd.f32 %v6723, %v6754
  %v6787 = vadd.f32 %v6724, %v6755
  %v6788 = vadd.f32 %v6725, %v6756
  %v6789 = vadd.f32 %v6726, %v6757
  %v6790 = vadd.f32 %v6727, %v6758
  %v6791 = vadd.f32 %v6728, %v6759
  %v6792 = vadd.f32 %v6729, %v6760
  %v6793 = vadd.f32 %v6730, %v6761
  %v6794 = vadd.f32 %v6731, %v6762
  %v6795 = vadd.f32 %v6732, %v6763
  %v6796 = vadd.f32 %v6733, %v6764
  %v6797 = vadd.f32 %v6734, %v6765
  %v6798 = vadd.f32 %v6735, %v6766
  %v6799 = vadd.f32 %v6736, %v6767
  %v6800 = vadd.f32 %v6737, %v6768
  %v6801 = vadd.f32 %v6738, %v6769
  %v6802 = vadd.f32 %v6739, %v6770
  %v6803 = vadd.f32 %v6740, %v6771
  %v6804 = vadd.f32 %v6741, %v6772
  %v6805 = vadd.f32 %v6742, %v6773
  %v6838 = vrot.slane %v6775, 7
  %v6839 = vsel %vm4540, %v6838, %v6774
  %v6840 = vrot.slane %v6776, 6
  %v6841 = vsel %vm4543, %v6840, %v6839
  %v6842 = vrot.slane %v6777, 5
  %v6843 = vsel %vm4546, %v6842, %v6841
  %v6844 = vrot.slane %v6778, 4
  %v6845 = vsel %vm4549, %v6844, %v6843
  %v6846 = vrot.slane %v6779, 3
  %v6847 = vsel %vm4552, %v6846, %v6845
  %v6848 = vrot.slane %v6780, 2
  %v6849 = vsel %vm4555, %v6848, %v6847
  %v6850 = vrot.slane %v6781, 1
  %v6851 = vsel %vm4558, %v6850, %v6849
  %v6852 = vrot.slane %v6783, 7
  %v6853 = vsel %vm4540, %v6852, %v6782
  %v6854 = vrot.slane %v6784, 6
  %v6855 = vsel %vm4543, %v6854, %v6853
  %v6856 = vrot.slane %v6785, 5
  %v6857 = vsel %vm4546, %v6856, %v6855
  %v6858 = vrot.slane %v6786, 4
  %v6859 = vsel %vm4549, %v6858, %v6857
  %v6860 = vrot.slane %v6787, 3
  %v6861 = vsel %vm4552, %v6860, %v6859
  %v6862 = vrot.slane %v6788, 2
  %v6863 = vsel %vm4555, %v6862, %v6861
  %v6864 = vrot.slane %v6789, 1
  %v6865 = vsel %vm4558, %v6864, %v6863
  %v6866 = vrot.slane %v6791, 7
  %v6867 = vsel %vm4540, %v6866, %v6790
  %v6868 = vrot.slane %v6792, 6
  %v6869 = vsel %vm4543, %v6868, %v6867
  %v6870 = vrot.slane %v6793, 5
  %v6871 = vsel %vm4546, %v6870, %v6869
  %v6872 = vrot.slane %v6794, 4
  %v6873 = vsel %vm4549, %v6872, %v6871
  %v6874 = vrot.slane %v6795, 3
  %v6875 = vsel %vm4552, %v6874, %v6873
  %v6876 = vrot.slane %v6796, 2
  %v6877 = vsel %vm4555, %v6876, %v6875
  %v6878 = vrot.slane %v6797, 1
  %v6879 = vsel %vm4558, %v6878, %v6877
  %v6880 = vrot.slane %v6799, 7
  %v6881 = vsel %vm4540, %v6880, %v6798
  %v6882 = vrot.slane %v6800, 6
  %v6883 = vsel %vm4543, %v6882, %v6881
  %v6884 = vrot.slane %v6801, 5
  %v6885 = vsel %vm4546, %v6884, %v6883
  %v6886 = vrot.slane %v6802, 4
  %v6887 = vsel %vm4549, %v6886, %v6885
  %v6888 = vrot.slane %v6803, 3
  %v6889 = vsel %vm4552, %v6888, %v6887
  %v6890 = vrot.slane %v6804, 2
  %v6891 = vsel %vm4555, %v6890, %v6889
  %v6892 = vrot.slane %v6805, 1
  %v6893 = vsel %vm4558, %v6892, %v6891
  %s6898 = scalar_lea.vmem %s1, 384
  %6899 = vst.msk [vmem:[%s6898] sm:$0xff] %vm4606, %v6851
  %6900 = vst.msk [vmem:[%s6898 + $0x8] sm:$0xff] %vm4606, %v6865
  %6901 = vst.msk [vmem:[%s6898 + $0x10] sm:$0xff] %vm4606, %v6879
  %6902 = vst.msk [vmem:[%s6898 + $0x18] sm:$0xff] %vm4606, %v6893
  %v6903 = vmul.f32 %v126, 0.7096774
  %v6904 = vmul.f32 %v222, 0.7096774
  %v6905 = vmul.f32 %v2942, 0.7096774
  %v6906 = vmul.f32 %v2990, 0.7096774
  %v6907 = vmul.f32 %v3038, 0.7096774
  %v6908 = vmul.f32 %v3086, 0.7096774
  %v6909 = vmul.f32 %v3134, 0.7096774
  %v6910 = vmul.f32 %v3182, 0.7096774
  %v6911 = vmul.f32 %v3230, 0.7096774
  %v6912 = vmul.f32 %v3278, 0.7096774
  %v6913 = vmul.f32 %v3326, 0.7096774
  %v6914 = vmul.f32 %v3374, 0.7096774
  %v6915 = vmul.f32 %v3422, 0.7096774
  %v6916 = vmul.f32 %v3470, 0.7096774
  %v6917 = vmul.f32 %v3518, 0.7096774
  %v6918 = vmul.f32 %v4030, 0.7096774
  %v6919 = vmul.f32 %v4046, 0.7096774
  %v6920 = vmul.f32 %v4062, 0.7096774
  %v6921 = vmul.f32 %v4078, 0.7096774
  %v6922 = vmul.f32 %v4094, 0.7096774
  %v6923 = vmul.f32 %v4110, 0.7096774
  %v6924 = vmul.f32 %v4126, 0.7096774
  %v6925 = vmul.f32 %v4142, 0.7096774
  %v6926 = vmul.f32 %v4158, 0.7096774
  %v6927 = vmul.f32 %v4174, 0.7096774
  %v6928 = vmul.f32 %v4190, 0.7096774
  %v6929 = vmul.f32 %v4206, 0.7096774
  %v6930 = vmul.f32 %v4222, 0.7096774
  %v6931 = vmul.f32 %v4238, 0.7096774
  %v6932 = vmul.f32 %v4254, 0.7096774
  %v6933 = vmul.f32 %v4270, 0.7096774
  %v6934 = vmul.f32 %v127, 0.29032257
  %v6935 = vmul.f32 %v223, 0.29032257
  %v6936 = vmul.f32 %v2943, 0.29032257
  %v6937 = vmul.f32 %v2991, 0.29032257
  %v6938 = vmul.f32 %v3039, 0.29032257
  %v6939 = vmul.f32 %v3087, 0.29032257
  %v6940 = vmul.f32 %v3135, 0.29032257
  %v6941 = vmul.f32 %v3183, 0.29032257
  %v6942 = vmul.f32 %v3231, 0.29032257
  %v6943 = vmul.f32 %v3279, 0.29032257
  %v6944 = vmul.f32 %v3327, 0.29032257
  %v6945 = vmul.f32 %v3375, 0.29032257
  %v6946 = vmul.f32 %v3423, 0.29032257
  %v6947 = vmul.f32 %v3471, 0.29032257
  %v6948 = vmul.f32 %v3519, 0.29032257
  %v6949 = vmul.f32 %v4031, 0.29032257
  %v6950 = vmul.f32 %v4047, 0.29032257
  %v6951 = vmul.f32 %v4063, 0.29032257
  %v6952 = vmul.f32 %v4079, 0.29032257
  %v6953 = vmul.f32 %v4095, 0.29032257
  %v6954 = vmul.f32 %v4111, 0.29032257
  %v6955 = vmul.f32 %v4127, 0.29032257
  %v6956 = vmul.f32 %v4143, 0.29032257
  %v6957 = vmul.f32 %v4159, 0.29032257
  %v6958 = vmul.f32 %v4175, 0.29032257
  %v6959 = vmul.f32 %v4191, 0.29032257
  %v6960 = vmul.f32 %v4207, 0.29032257
  %v6961 = vmul.f32 %v4223, 0.29032257
  %v6962 = vmul.f32 %v4239, 0.29032257
  %v6963 = vmul.f32 %v4255, 0.29032257
  %v6964 = vmul.f32 %v4271, 0.29032257
  %v6965 = vadd.f32 %v1198, %v1215
  %v6966 = vadd.f32 %v6903, %v6934
  %v6967 = vadd.f32 %v6904, %v6935
  %v6968 = vadd.f32 %v6905, %v6936
  %v6969 = vadd.f32 %v6906, %v6937
  %v6970 = vadd.f32 %v6907, %v6938
  %v6971 = vadd.f32 %v6908, %v6939
  %v6972 = vadd.f32 %v6909, %v6940
  %v6973 = vadd.f32 %v6910, %v6941
  %v6974 = vadd.f32 %v6911, %v6942
  %v6975 = vadd.f32 %v6912, %v6943
  %v6976 = vadd.f32 %v6913, %v6944
  %v6977 = vadd.f32 %v6914, %v6945
  %v6978 = vadd.f32 %v6915, %v6946
  %v6979 = vadd.f32 %v6916, %v6947
  %v6980 = vadd.f32 %v6917, %v6948
  %v6981 = vadd.f32 %v6918, %v6949
  %v6982 = vadd.f32 %v6919, %v6950
  %v6983 = vadd.f32 %v6920, %v6951
  %v6984 = vadd.f32 %v6921, %v6952
  %v6985 = vadd.f32 %v6922, %v6953
  %v6986 = vadd.f32 %v6923, %v6954
  %v6987 = vadd.f32 %v6924, %v6955
  %v6988 = vadd.f32 %v6925, %v6956
  %v6989 = vadd.f32 %v6926, %v6957
  %v6990 = vadd.f32 %v6927, %v6958
  %v6991 = vadd.f32 %v6928, %v6959
  %v6992 = vadd.f32 %v6929, %v6960
  %v6993 = vadd.f32 %v6930, %v6961
  %v6994 = vadd.f32 %v6931, %v6962
  %v6995 = vadd.f32 %v6932, %v6963
  %v6996 = vadd.f32 %v6933, %v6964
  %v7029 = vrot.slane %v6966, 7
  %v7030 = vsel %vm4540, %v7029, %v6965
  %v7031 = vrot.slane %v6967, 6
  %v7032 = vsel %vm4543, %v7031, %v7030
  %v7033 = vrot.slane %v6968, 5
  %v7034 = vsel %vm4546, %v7033, %v7032
  %v7035 = vrot.slane %v6969, 4
  %v7036 = vsel %vm4549, %v7035, %v7034
  %v7037 = vrot.slane %v6970, 3
  %v7038 = vsel %vm4552, %v7037, %v7036
  %v7039 = vrot.slane %v6971, 2
  %v7040 = vsel %vm4555, %v7039, %v7038
  %v7041 = vrot.slane %v6972, 1
  %v7042 = vsel %vm4558, %v7041, %v7040
  %v7043 = vrot.slane %v6974, 7
  %v7044 = vsel %vm4540, %v7043, %v6973
  %v7045 = vrot.slane %v6975, 6
  %v7046 = vsel %vm4543, %v7045, %v7044
  %v7047 = vrot.slane %v6976, 5
  %v7048 = vsel %vm4546, %v7047, %v7046
  %v7049 = vrot.slane %v6977, 4
  %v7050 = vsel %vm4549, %v7049, %v7048
  %v7051 = vrot.slane %v6978, 3
  %v7052 = vsel %vm4552, %v7051, %v7050
  %v7053 = vrot.slane %v6979, 2
  %v7054 = vsel %vm4555, %v7053, %v7052
  %v7055 = vrot.slane %v6980, 1
  %v7056 = vsel %vm4558, %v7055, %v7054
  %v7057 = vrot.slane %v6982, 7
  %v7058 = vsel %vm4540, %v7057, %v6981
  %v7059 = vrot.slane %v6983, 6
  %v7060 = vsel %vm4543, %v7059, %v7058
  %v7061 = vrot.slane %v6984, 5
  %v7062 = vsel %vm4546, %v7061, %v7060
  %v7063 = vrot.slane %v6985, 4
  %v7064 = vsel %vm4549, %v7063, %v7062
  %v7065 = vrot.slane %v6986, 3
  %v7066 = vsel %vm4552, %v7065, %v7064
  %v7067 = vrot.slane %v6987, 2
  %v7068 = vsel %vm4555, %v7067, %v7066
  %v7069 = vrot.slane %v6988, 1
  %v7070 = vsel %vm4558, %v7069, %v7068
  %v7071 = vrot.slane %v6990, 7
  %v7072 = vsel %vm4540, %v7071, %v6989
  %v7073 = vrot.slane %v6991, 6
  %v7074 = vsel %vm4543, %v7073, %v7072
  %v7075 = vrot.slane %v6992, 5
  %v7076 = vsel %vm4546, %v7075, %v7074
  %v7077 = vrot.slane %v6993, 4
  %v7078 = vsel %vm4549, %v7077, %v7076
  %v7079 = vrot.slane %v6994, 3
  %v7080 = vsel %vm4552, %v7079, %v7078
  %v7081 = vrot.slane %v6995, 2
  %v7082 = vsel %vm4555, %v7081, %v7080
  %v7083 = vrot.slane %v6996, 1
  %v7084 = vsel %vm4558, %v7083, %v7082
  %s7089 = scalar_lea.vmem %s1, 416
  %7090 = vst.msk [vmem:[%s7089] sm:$0xff] %vm4606, %v7042
  %7091 = vst.msk [vmem:[%s7089 + $0x8] sm:$0xff] %vm4606, %v7056
  %7092 = vst.msk [vmem:[%s7089 + $0x10] sm:$0xff] %vm4606, %v7070
  %7093 = vst.msk [vmem:[%s7089 + $0x18] sm:$0xff] %vm4606, %v7084
  %v7094 = vmul.f32 %v126, 0.22580644
  %v7095 = vmul.f32 %v222, 0.22580644
  %v7096 = vmul.f32 %v2942, 0.22580644
  %v7097 = vmul.f32 %v2990, 0.22580644
  %v7098 = vmul.f32 %v3038, 0.22580644
  %v7099 = vmul.f32 %v3086, 0.22580644
  %v7100 = vmul.f32 %v3134, 0.22580644
  %v7101 = vmul.f32 %v3182, 0.22580644
  %v7102 = vmul.f32 %v3230, 0.22580644
  %v7103 = vmul.f32 %v3278, 0.22580644
  %v7104 = vmul.f32 %v3326, 0.22580644
  %v7105 = vmul.f32 %v3374, 0.22580644
  %v7106 = vmul.f32 %v3422, 0.22580644
  %v7107 = vmul.f32 %v3470, 0.22580644
  %v7108 = vmul.f32 %v3518, 0.22580644
  %v7109 = vmul.f32 %v4030, 0.22580644
  %v7110 = vmul.f32 %v4046, 0.22580644
  %v7111 = vmul.f32 %v4062, 0.22580644
  %v7112 = vmul.f32 %v4078, 0.22580644
  %v7113 = vmul.f32 %v4094, 0.22580644
  %v7114 = vmul.f32 %v4110, 0.22580644
  %v7115 = vmul.f32 %v4126, 0.22580644
  %v7116 = vmul.f32 %v4142, 0.22580644
  %v7117 = vmul.f32 %v4158, 0.22580644
  %v7118 = vmul.f32 %v4174, 0.22580644
  %v7119 = vmul.f32 %v4190, 0.22580644
  %v7120 = vmul.f32 %v4206, 0.22580644
  %v7121 = vmul.f32 %v4222, 0.22580644
  %v7122 = vmul.f32 %v4238, 0.22580644
  %v7123 = vmul.f32 %v4254, 0.22580644
  %v7124 = vmul.f32 %v4270, 0.22580644
  %v7125 = vmul.f32 %v127, 0.7741935
  %v7126 = vmul.f32 %v223, 0.7741935
  %v7127 = vmul.f32 %v2943, 0.7741935
  %v7128 = vmul.f32 %v2991, 0.7741935
  %v7129 = vmul.f32 %v3039, 0.7741935
  %v7130 = vmul.f32 %v3087, 0.7741935
  %v7131 = vmul.f32 %v3135, 0.7741935
  %v7132 = vmul.f32 %v3183, 0.7741935
  %v7133 = vmul.f32 %v3231, 0.7741935
  %v7134 = vmul.f32 %v3279, 0.7741935
  %v7135 = vmul.f32 %v3327, 0.7741935
  %v7136 = vmul.f32 %v3375, 0.7741935
  %v7137 = vmul.f32 %v3423, 0.7741935
  %v7138 = vmul.f32 %v3471, 0.7741935
  %v7139 = vmul.f32 %v3519, 0.7741935
  %v7140 = vmul.f32 %v4031, 0.7741935
  %v7141 = vmul.f32 %v4047, 0.7741935
  %v7142 = vmul.f32 %v4063, 0.7741935
  %v7143 = vmul.f32 %v4079, 0.7741935
  %v7144 = vmul.f32 %v4095, 0.7741935
  %v7145 = vmul.f32 %v4111, 0.7741935
  %v7146 = vmul.f32 %v4127, 0.7741935
  %v7147 = vmul.f32 %v4143, 0.7741935
  %v7148 = vmul.f32 %v4159, 0.7741935
  %v7149 = vmul.f32 %v4175, 0.7741935
  %v7150 = vmul.f32 %v4191, 0.7741935
  %v7151 = vmul.f32 %v4207, 0.7741935
  %v7152 = vmul.f32 %v4223, 0.7741935
  %v7153 = vmul.f32 %v4239, 0.7741935
  %v7154 = vmul.f32 %v4255, 0.7741935
  %v7155 = vmul.f32 %v4271, 0.7741935
  %v7156 = vadd.f32 %v1294, %v1311
  %v7157 = vadd.f32 %v7094, %v7125
  %v7158 = vadd.f32 %v7095, %v7126
  %v7159 = vadd.f32 %v7096, %v7127
  %v7160 = vadd.f32 %v7097, %v7128
  %v7161 = vadd.f32 %v7098, %v7129
  %v7162 = vadd.f32 %v7099, %v7130
  %v7163 = vadd.f32 %v7100, %v7131
  %v7164 = vadd.f32 %v7101, %v7132
  %v7165 = vadd.f32 %v7102, %v7133
  %v7166 = vadd.f32 %v7103, %v7134
  %v7167 = vadd.f32 %v7104, %v7135
  %v7168 = vadd.f32 %v7105, %v7136
  %v7169 = vadd.f32 %v7106, %v7137
  %v7170 = vadd.f32 %v7107, %v7138
  %v7171 = vadd.f32 %v7108, %v7139
  %v7172 = vadd.f32 %v7109, %v7140
  %v7173 = vadd.f32 %v7110, %v7141
  %v7174 = vadd.f32 %v7111, %v7142
  %v7175 = vadd.f32 %v7112, %v7143
  %v7176 = vadd.f32 %v7113, %v7144
  %v7177 = vadd.f32 %v7114, %v7145
  %v7178 = vadd.f32 %v7115, %v7146
  %v7179 = vadd.f32 %v7116, %v7147
  %v7180 = vadd.f32 %v7117, %v7148
  %v7181 = vadd.f32 %v7118, %v7149
  %v7182 = vadd.f32 %v7119, %v7150
  %v7183 = vadd.f32 %v7120, %v7151
  %v7184 = vadd.f32 %v7121, %v7152
  %v7185 = vadd.f32 %v7122, %v7153
  %v7186 = vadd.f32 %v7123, %v7154
  %v7187 = vadd.f32 %v7124, %v7155
  %v7220 = vrot.slane %v7157, 7
  %v7221 = vsel %vm4540, %v7220, %v7156
  %v7222 = vrot.slane %v7158, 6
  %v7223 = vsel %vm4543, %v7222, %v7221
  %v7224 = vrot.slane %v7159, 5
  %v7225 = vsel %vm4546, %v7224, %v7223
  %v7226 = vrot.slane %v7160, 4
  %v7227 = vsel %vm4549, %v7226, %v7225
  %v7228 = vrot.slane %v7161, 3
  %v7229 = vsel %vm4552, %v7228, %v7227
  %v7230 = vrot.slane %v7162, 2
  %v7231 = vsel %vm4555, %v7230, %v7229
  %v7232 = vrot.slane %v7163, 1
  %v7233 = vsel %vm4558, %v7232, %v7231
  %v7234 = vrot.slane %v7165, 7
  %v7235 = vsel %vm4540, %v7234, %v7164
  %v7236 = vrot.slane %v7166, 6
  %v7237 = vsel %vm4543, %v7236, %v7235
  %v7238 = vrot.slane %v7167, 5
  %v7239 = vsel %vm4546, %v7238, %v7237
  %v7240 = vrot.slane %v7168, 4
  %v7241 = vsel %vm4549, %v7240, %v7239
  %v7242 = vrot.slane %v7169, 3
  %v7243 = vsel %vm4552, %v7242, %v7241
  %v7244 = vrot.slane %v7170, 2
  %v7245 = vsel %vm4555, %v7244, %v7243
  %v7246 = vrot.slane %v7171, 1
  %v7247 = vsel %vm4558, %v7246, %v7245
  %v7248 = vrot.slane %v7173, 7
  %v7249 = vsel %vm4540, %v7248, %v7172
  %v7250 = vrot.slane %v7174, 6
  %v7251 = vsel %vm4543, %v7250, %v7249
  %v7252 = vrot.slane %v7175, 5
  %v7253 = vsel %vm4546, %v7252, %v7251
  %v7254 = vrot.slane %v7176, 4
  %v7255 = vsel %vm4549, %v7254, %v7253
  %v7256 = vrot.slane %v7177, 3
  %v7257 = vsel %vm4552, %v7256, %v7255
  %v7258 = vrot.slane %v7178, 2
  %v7259 = vsel %vm4555, %v7258, %v7257
  %v7260 = vrot.slane %v7179, 1
  %v7261 = vsel %vm4558, %v7260, %v7259
  %v7262 = vrot.slane %v7181, 7
  %v7263 = vsel %vm4540, %v7262, %v7180
  %v7264 = vrot.slane %v7182, 6
  %v7265 = vsel %vm4543, %v7264, %v7263
  %v7266 = vrot.slane %v7183, 5
  %v7267 = vsel %vm4546, %v7266, %v7265
  %v7268 = vrot.slane %v7184, 4
  %v7269 = vsel %vm4549, %v7268, %v7267
  %v7270 = vrot.slane %v7185, 3
  %v7271 = vsel %vm4552, %v7270, %v7269
  %v7272 = vrot.slane %v7186, 2
  %v7273 = vsel %vm4555, %v7272, %v7271
  %v7274 = vrot.slane %v7187, 1
  %v7275 = vsel %vm4558, %v7274, %v7273
  %s7280 = scalar_lea.vmem %s1, 448
  %7281 = vst.msk [vmem:[%s7280] sm:$0xff] %vm4606, %v7233
  %7282 = vst.msk [vmem:[%s7280 + $0x8] sm:$0xff] %vm4606, %v7247
  %7283 = vst.msk [vmem:[%s7280 + $0x10] sm:$0xff] %vm4606, %v7261
  %7284 = vst.msk [vmem:[%s7280 + $0x18] sm:$0xff] %vm4606, %v7275
  %v7285 = vmul.f32 %v127, 0.7419355
  %v7286 = vmul.f32 %v223, 0.7419355
  %v7287 = vmul.f32 %v2943, 0.7419355
  %v7288 = vmul.f32 %v2991, 0.7419355
  %v7289 = vmul.f32 %v3039, 0.7419355
  %v7290 = vmul.f32 %v3087, 0.7419355
  %v7291 = vmul.f32 %v3135, 0.7419355
  %v7292 = vmul.f32 %v3183, 0.7419355
  %v7293 = vmul.f32 %v3231, 0.7419355
  %v7294 = vmul.f32 %v3279, 0.7419355
  %v7295 = vmul.f32 %v3327, 0.7419355
  %v7296 = vmul.f32 %v3375, 0.7419355
  %v7297 = vmul.f32 %v3423, 0.7419355
  %v7298 = vmul.f32 %v3471, 0.7419355
  %v7299 = vmul.f32 %v3519, 0.7419355
  %v7300 = vmul.f32 %v4031, 0.7419355
  %v7301 = vmul.f32 %v4047, 0.7419355
  %v7302 = vmul.f32 %v4063, 0.7419355
  %v7303 = vmul.f32 %v4079, 0.7419355
  %v7304 = vmul.f32 %v4095, 0.7419355
  %v7305 = vmul.f32 %v4111, 0.7419355
  %v7306 = vmul.f32 %v4127, 0.7419355
  %v7307 = vmul.f32 %v4143, 0.7419355
  %v7308 = vmul.f32 %v4159, 0.7419355
  %v7309 = vmul.f32 %v4175, 0.7419355
  %v7310 = vmul.f32 %v4191, 0.7419355
  %v7311 = vmul.f32 %v4207, 0.7419355
  %v7312 = vmul.f32 %v4223, 0.7419355
  %v7313 = vmul.f32 %v4239, 0.7419355
  %v7314 = vmul.f32 %v4255, 0.7419355
  %v7315 = vmul.f32 %v4271, 0.7419355
  %v7316 = vmul.f32 %v128, 0.2580645
  %v7317 = vmul.f32 %v224, 0.2580645
  %v7318 = vmul.f32 %v2944, 0.2580645
  %v7319 = vmul.f32 %v2992, 0.2580645
  %v7320 = vmul.f32 %v3040, 0.2580645
  %v7321 = vmul.f32 %v3088, 0.2580645
  %v7322 = vmul.f32 %v3136, 0.2580645
  %v7323 = vmul.f32 %v3184, 0.2580645
  %v7324 = vmul.f32 %v3232, 0.2580645
  %v7325 = vmul.f32 %v3280, 0.2580645
  %v7326 = vmul.f32 %v3328, 0.2580645
  %v7327 = vmul.f32 %v3376, 0.2580645
  %v7328 = vmul.f32 %v3424, 0.2580645
  %v7329 = vmul.f32 %v3472, 0.2580645
  %v7330 = vmul.f32 %v3520, 0.2580645
  %v7331 = vmul.f32 %v4032, 0.2580645
  %v7332 = vmul.f32 %v4048, 0.2580645
  %v7333 = vmul.f32 %v4064, 0.2580645
  %v7334 = vmul.f32 %v4080, 0.2580645
  %v7335 = vmul.f32 %v4096, 0.2580645
  %v7336 = vmul.f32 %v4112, 0.2580645
  %v7337 = vmul.f32 %v4128, 0.2580645
  %v7338 = vmul.f32 %v4144, 0.2580645
  %v7339 = vmul.f32 %v4160, 0.2580645
  %v7340 = vmul.f32 %v4176, 0.2580645
  %v7341 = vmul.f32 %v4192, 0.2580645
  %v7342 = vmul.f32 %v4208, 0.2580645
  %v7343 = vmul.f32 %v4224, 0.2580645
  %v7344 = vmul.f32 %v4240, 0.2580645
  %v7345 = vmul.f32 %v4256, 0.2580645
  %v7346 = vmul.f32 %v4272, 0.2580645
  %v7347 = vadd.f32 %v1391, %v1488
  %v7348 = vadd.f32 %v7285, %v7316
  %v7349 = vadd.f32 %v7286, %v7317
  %v7350 = vadd.f32 %v7287, %v7318
  %v7351 = vadd.f32 %v7288, %v7319
  %v7352 = vadd.f32 %v7289, %v7320
  %v7353 = vadd.f32 %v7290, %v7321
  %v7354 = vadd.f32 %v7291, %v7322
  %v7355 = vadd.f32 %v7292, %v7323
  %v7356 = vadd.f32 %v7293, %v7324
  %v7357 = vadd.f32 %v7294, %v7325
  %v7358 = vadd.f32 %v7295, %v7326
  %v7359 = vadd.f32 %v7296, %v7327
  %v7360 = vadd.f32 %v7297, %v7328
  %v7361 = vadd.f32 %v7298, %v7329
  %v7362 = vadd.f32 %v7299, %v7330
  %v7363 = vadd.f32 %v7300, %v7331
  %v7364 = vadd.f32 %v7301, %v7332
  %v7365 = vadd.f32 %v7302, %v7333
  %v7366 = vadd.f32 %v7303, %v7334
  %v7367 = vadd.f32 %v7304, %v7335
  %v7368 = vadd.f32 %v7305, %v7336
  %v7369 = vadd.f32 %v7306, %v7337
  %v7370 = vadd.f32 %v7307, %v7338
  %v7371 = vadd.f32 %v7308, %v7339
  %v7372 = vadd.f32 %v7309, %v7340
  %v7373 = vadd.f32 %v7310, %v7341
  %v7374 = vadd.f32 %v7311, %v7342
  %v7375 = vadd.f32 %v7312, %v7343
  %v7376 = vadd.f32 %v7313, %v7344
  %v7377 = vadd.f32 %v7314, %v7345
  %v7378 = vadd.f32 %v7315, %v7346
  %v7411 = vrot.slane %v7348, 7
  %v7412 = vsel %vm4540, %v7411, %v7347
  %v7413 = vrot.slane %v7349, 6
  %v7414 = vsel %vm4543, %v7413, %v7412
  %v7415 = vrot.slane %v7350, 5
  %v7416 = vsel %vm4546, %v7415, %v7414
  %v7417 = vrot.slane %v7351, 4
  %v7418 = vsel %vm4549, %v7417, %v7416
  %v7419 = vrot.slane %v7352, 3
  %v7420 = vsel %vm4552, %v7419, %v7418
  %v7421 = vrot.slane %v7353, 2
  %v7422 = vsel %vm4555, %v7421, %v7420
  %v7423 = vrot.slane %v7354, 1
  %v7424 = vsel %vm4558, %v7423, %v7422
  %v7425 = vrot.slane %v7356, 7
  %v7426 = vsel %vm4540, %v7425, %v7355
  %v7427 = vrot.slane %v7357, 6
  %v7428 = vsel %vm4543, %v7427, %v7426
  %v7429 = vrot.slane %v7358, 5
  %v7430 = vsel %vm4546, %v7429, %v7428
  %v7431 = vrot.slane %v7359, 4
  %v7432 = vsel %vm4549, %v7431, %v7430
  %v7433 = vrot.slane %v7360, 3
  %v7434 = vsel %vm4552, %v7433, %v7432
  %v7435 = vrot.slane %v7361, 2
  %v7436 = vsel %vm4555, %v7435, %v7434
  %v7437 = vrot.slane %v7362, 1
  %v7438 = vsel %vm4558, %v7437, %v7436
  %v7439 = vrot.slane %v7364, 7
  %v7440 = vsel %vm4540, %v7439, %v7363
  %v7441 = vrot.slane %v7365, 6
  %v7442 = vsel %vm4543, %v7441, %v7440
  %v7443 = vrot.slane %v7366, 5
  %v7444 = vsel %vm4546, %v7443, %v7442
  %v7445 = vrot.slane %v7367, 4
  %v7446 = vsel %vm4549, %v7445, %v7444
  %v7447 = vrot.slane %v7368, 3
  %v7448 = vsel %vm4552, %v7447, %v7446
  %v7449 = vrot.slane %v7369, 2
  %v7450 = vsel %vm4555, %v7449, %v7448
  %v7451 = vrot.slane %v7370, 1
  %v7452 = vsel %vm4558, %v7451, %v7450
  %v7453 = vrot.slane %v7372, 7
  %v7454 = vsel %vm4540, %v7453, %v7371
  %v7455 = vrot.slane %v7373, 6
  %v7456 = vsel %vm4543, %v7455, %v7454
  %v7457 = vrot.slane %v7374, 5
  %v7458 = vsel %vm4546, %v7457, %v7456
  %v7459 = vrot.slane %v7375, 4
  %v7460 = vsel %vm4549, %v7459, %v7458
  %v7461 = vrot.slane %v7376, 3
  %v7462 = vsel %vm4552, %v7461, %v7460
  %v7463 = vrot.slane %v7377, 2
  %v7464 = vsel %vm4555, %v7463, %v7462
  %v7465 = vrot.slane %v7378, 1
  %v7466 = vsel %vm4558, %v7465, %v7464
  %s7471 = scalar_lea.vmem %s1, 480
  %7472 = vst.msk [vmem:[%s7471] sm:$0xff] %vm4606, %v7424
  %7473 = vst.msk [vmem:[%s7471 + $0x8] sm:$0xff] %vm4606, %v7438
  %7474 = vst.msk [vmem:[%s7471 + $0x10] sm:$0xff] %vm4606, %v7452
  %7475 = vst.msk [vmem:[%s7471 + $0x18] sm:$0xff] %vm4606, %v7466
  %v7476 = vmul.f32 %v127, 0.2580645
  %v7477 = vmul.f32 %v223, 0.2580645
  %v7478 = vmul.f32 %v2943, 0.2580645
  %v7479 = vmul.f32 %v2991, 0.2580645
  %v7480 = vmul.f32 %v3039, 0.2580645
  %v7481 = vmul.f32 %v3087, 0.2580645
  %v7482 = vmul.f32 %v3135, 0.2580645
  %v7483 = vmul.f32 %v3183, 0.2580645
  %v7484 = vmul.f32 %v3231, 0.2580645
  %v7485 = vmul.f32 %v3279, 0.2580645
  %v7486 = vmul.f32 %v3327, 0.2580645
  %v7487 = vmul.f32 %v3375, 0.2580645
  %v7488 = vmul.f32 %v3423, 0.2580645
  %v7489 = vmul.f32 %v3471, 0.2580645
  %v7490 = vmul.f32 %v3519, 0.2580645
  %v7491 = vmul.f32 %v4031, 0.2580645
  %v7492 = vmul.f32 %v4047, 0.2580645
  %v7493 = vmul.f32 %v4063, 0.2580645
  %v7494 = vmul.f32 %v4079, 0.2580645
  %v7495 = vmul.f32 %v4095, 0.2580645
  %v7496 = vmul.f32 %v4111, 0.2580645
  %v7497 = vmul.f32 %v4127, 0.2580645
  %v7498 = vmul.f32 %v4143, 0.2580645
  %v7499 = vmul.f32 %v4159, 0.2580645
  %v7500 = vmul.f32 %v4175, 0.2580645
  %v7501 = vmul.f32 %v4191, 0.2580645
  %v7502 = vmul.f32 %v4207, 0.2580645
  %v7503 = vmul.f32 %v4223, 0.2580645
  %v7504 = vmul.f32 %v4239, 0.2580645
  %v7505 = vmul.f32 %v4255, 0.2580645
  %v7506 = vmul.f32 %v4271, 0.2580645
  %v7507 = vmul.f32 %v128, 0.7419355
  %v7508 = vmul.f32 %v224, 0.7419355
  %v7509 = vmul.f32 %v2944, 0.7419355
  %v7510 = vmul.f32 %v2992, 0.7419355
  %v7511 = vmul.f32 %v3040, 0.7419355
  %v7512 = vmul.f32 %v3088, 0.7419355
  %v7513 = vmul.f32 %v3136, 0.7419355
  %v7514 = vmul.f32 %v3184, 0.7419355
  %v7515 = vmul.f32 %v3232, 0.7419355
  %v7516 = vmul.f32 %v3280, 0.7419355
  %v7517 = vmul.f32 %v3328, 0.7419355
  %v7518 = vmul.f32 %v3376, 0.7419355
  %v7519 = vmul.f32 %v3424, 0.7419355
  %v7520 = vmul.f32 %v3472, 0.7419355
  %v7521 = vmul.f32 %v3520, 0.7419355
  %v7522 = vmul.f32 %v4032, 0.7419355
  %v7523 = vmul.f32 %v4048, 0.7419355
  %v7524 = vmul.f32 %v4064, 0.7419355
  %v7525 = vmul.f32 %v4080, 0.7419355
  %v7526 = vmul.f32 %v4096, 0.7419355
  %v7527 = vmul.f32 %v4112, 0.7419355
  %v7528 = vmul.f32 %v4128, 0.7419355
  %v7529 = vmul.f32 %v4144, 0.7419355
  %v7530 = vmul.f32 %v4160, 0.7419355
  %v7531 = vmul.f32 %v4176, 0.7419355
  %v7532 = vmul.f32 %v4192, 0.7419355
  %v7533 = vmul.f32 %v4208, 0.7419355
  %v7534 = vmul.f32 %v4224, 0.7419355
  %v7535 = vmul.f32 %v4240, 0.7419355
  %v7536 = vmul.f32 %v4256, 0.7419355
  %v7537 = vmul.f32 %v4272, 0.7419355
  %v7538 = vadd.f32 %v1487, %v1392
  %v7539 = vadd.f32 %v7476, %v7507
  %v7540 = vadd.f32 %v7477, %v7508
  %v7541 = vadd.f32 %v7478, %v7509
  %v7542 = vadd.f32 %v7479, %v7510
  %v7543 = vadd.f32 %v7480, %v7511
  %v7544 = vadd.f32 %v7481, %v7512
  %v7545 = vadd.f32 %v7482, %v7513
  %v7546 = vadd.f32 %v7483, %v7514
  %v7547 = vadd.f32 %v7484, %v7515
  %v7548 = vadd.f32 %v7485, %v7516
  %v7549 = vadd.f32 %v7486, %v7517
  %v7550 = vadd.f32 %v7487, %v7518
  %v7551 = vadd.f32 %v7488, %v7519
  %v7552 = vadd.f32 %v7489, %v7520
  %v7553 = vadd.f32 %v7490, %v7521
  %v7554 = vadd.f32 %v7491, %v7522
  %v7555 = vadd.f32 %v7492, %v7523
  %v7556 = vadd.f32 %v7493, %v7524
  %v7557 = vadd.f32 %v7494, %v7525
  %v7558 = vadd.f32 %v7495, %v7526
  %v7559 = vadd.f32 %v7496, %v7527
  %v7560 = vadd.f32 %v7497, %v7528
  %v7561 = vadd.f32 %v7498, %v7529
  %v7562 = vadd.f32 %v7499, %v7530
  %v7563 = vadd.f32 %v7500, %v7531
  %v7564 = vadd.f32 %v7501, %v7532
  %v7565 = vadd.f32 %v7502, %v7533
  %v7566 = vadd.f32 %v7503, %v7534
  %v7567 = vadd.f32 %v7504, %v7535
  %v7568 = vadd.f32 %v7505, %v7536
  %v7569 = vadd.f32 %v7506, %v7537
  %v7602 = vrot.slane %v7539, 7
  %v7603 = vsel %vm4540, %v7602, %v7538
  %v7604 = vrot.slane %v7540, 6
  %v7605 = vsel %vm4543, %v7604, %v7603
  %v7606 = vrot.slane %v7541, 5
  %v7607 = vsel %vm4546, %v7606, %v7605
  %v7608 = vrot.slane %v7542, 4
  %v7609 = vsel %vm4549, %v7608, %v7607
  %v7610 = vrot.slane %v7543, 3
  %v7611 = vsel %vm4552, %v7610, %v7609
  %v7612 = vrot.slane %v7544, 2
  %v7613 = vsel %vm4555, %v7612, %v7611
  %v7614 = vrot.slane %v7545, 1
  %v7615 = vsel %vm4558, %v7614, %v7613
  %v7616 = vrot.slane %v7547, 7
  %v7617 = vsel %vm4540, %v7616, %v7546
  %v7618 = vrot.slane %v7548, 6
  %v7619 = vsel %vm4543, %v7618, %v7617
  %v7620 = vrot.slane %v7549, 5
  %v7621 = vsel %vm4546, %v7620, %v7619
  %v7622 = vrot.slane %v7550, 4
  %v7623 = vsel %vm4549, %v7622, %v7621
  %v7624 = vrot.slane %v7551, 3
  %v7625 = vsel %vm4552, %v7624, %v7623
  %v7626 = vrot.slane %v7552, 2
  %v7627 = vsel %vm4555, %v7626, %v7625
  %v7628 = vrot.slane %v7553, 1
  %v7629 = vsel %vm4558, %v7628, %v7627
  %v7630 = vrot.slane %v7555, 7
  %v7631 = vsel %vm4540, %v7630, %v7554
  %v7632 = vrot.slane %v7556, 6
  %v7633 = vsel %vm4543, %v7632, %v7631
  %v7634 = vrot.slane %v7557, 5
  %v7635 = vsel %vm4546, %v7634, %v7633
  %v7636 = vrot.slane %v7558, 4
  %v7637 = vsel %vm4549, %v7636, %v7635
  %v7638 = vrot.slane %v7559, 3
  %v7639 = vsel %vm4552, %v7638, %v7637
  %v7640 = vrot.slane %v7560, 2
  %v7641 = vsel %vm4555, %v7640, %v7639
  %v7642 = vrot.slane %v7561, 1
  %v7643 = vsel %vm4558, %v7642, %v7641
  %v7644 = vrot.slane %v7563, 7
  %v7645 = vsel %vm4540, %v7644, %v7562
  %v7646 = vrot.slane %v7564, 6
  %v7647 = vsel %vm4543, %v7646, %v7645
  %v7648 = vrot.slane %v7565, 5
  %v7649 = vsel %vm4546, %v7648, %v7647
  %v7650 = vrot.slane %v7566, 4
  %v7651 = vsel %vm4549, %v7650, %v7649
  %v7652 = vrot.slane %v7567, 3
  %v7653 = vsel %vm4552, %v7652, %v7651
  %v7654 = vrot.slane %v7568, 2
  %v7655 = vsel %vm4555, %v7654, %v7653
  %v7656 = vrot.slane %v7569, 1
  %v7657 = vsel %vm4558, %v7656, %v7655
  %s7662 = scalar_lea.vmem %s1, 512
  %7663 = vst.msk [vmem:[%s7662] sm:$0xff] %vm4606, %v7615
  %7664 = vst.msk [vmem:[%s7662 + $0x8] sm:$0xff] %vm4606, %v7629
  %7665 = vst.msk [vmem:[%s7662 + $0x10] sm:$0xff] %vm4606, %v7643
  %7666 = vst.msk [vmem:[%s7662 + $0x18] sm:$0xff] %vm4606, %v7657
  %v7667 = vmul.f32 %v128, 0.7741935
  %v7668 = vmul.f32 %v224, 0.7741935
  %v7669 = vmul.f32 %v2944, 0.7741935
  %v7670 = vmul.f32 %v2992, 0.7741935
  %v7671 = vmul.f32 %v3040, 0.7741935
  %v7672 = vmul.f32 %v3088, 0.7741935
  %v7673 = vmul.f32 %v3136, 0.7741935
  %v7674 = vmul.f32 %v3184, 0.7741935
  %v7675 = vmul.f32 %v3232, 0.7741935
  %v7676 = vmul.f32 %v3280, 0.7741935
  %v7677 = vmul.f32 %v3328, 0.7741935
  %v7678 = vmul.f32 %v3376, 0.7741935
  %v7679 = vmul.f32 %v3424, 0.7741935
  %v7680 = vmul.f32 %v3472, 0.7741935
  %v7681 = vmul.f32 %v3520, 0.7741935
  %v7682 = vmul.f32 %v4032, 0.7741935
  %v7683 = vmul.f32 %v4048, 0.7741935
  %v7684 = vmul.f32 %v4064, 0.7741935
  %v7685 = vmul.f32 %v4080, 0.7741935
  %v7686 = vmul.f32 %v4096, 0.7741935
  %v7687 = vmul.f32 %v4112, 0.7741935
  %v7688 = vmul.f32 %v4128, 0.7741935
  %v7689 = vmul.f32 %v4144, 0.7741935
  %v7690 = vmul.f32 %v4160, 0.7741935
  %v7691 = vmul.f32 %v4176, 0.7741935
  %v7692 = vmul.f32 %v4192, 0.7741935
  %v7693 = vmul.f32 %v4208, 0.7741935
  %v7694 = vmul.f32 %v4224, 0.7741935
  %v7695 = vmul.f32 %v4240, 0.7741935
  %v7696 = vmul.f32 %v4256, 0.7741935
  %v7697 = vmul.f32 %v4272, 0.7741935
  %v7698 = vmul.f32 %v129, 0.22580644
  %v7699 = vmul.f32 %v225, 0.22580644
  %v7700 = vmul.f32 %v2945, 0.22580644
  %v7701 = vmul.f32 %v2993, 0.22580644
  %v7702 = vmul.f32 %v3041, 0.22580644
  %v7703 = vmul.f32 %v3089, 0.22580644
  %v7704 = vmul.f32 %v3137, 0.22580644
  %v7705 = vmul.f32 %v3185, 0.22580644
  %v7706 = vmul.f32 %v3233, 0.22580644
  %v7707 = vmul.f32 %v3281, 0.22580644
  %v7708 = vmul.f32 %v3329, 0.22580644
  %v7709 = vmul.f32 %v3377, 0.22580644
  %v7710 = vmul.f32 %v3425, 0.22580644
  %v7711 = vmul.f32 %v3473, 0.22580644
  %v7712 = vmul.f32 %v3521, 0.22580644
  %v7713 = vmul.f32 %v4033, 0.22580644
  %v7714 = vmul.f32 %v4049, 0.22580644
  %v7715 = vmul.f32 %v4065, 0.22580644
  %v7716 = vmul.f32 %v4081, 0.22580644
  %v7717 = vmul.f32 %v4097, 0.22580644
  %v7718 = vmul.f32 %v4113, 0.22580644
  %v7719 = vmul.f32 %v4129, 0.22580644
  %v7720 = vmul.f32 %v4145, 0.22580644
  %v7721 = vmul.f32 %v4161, 0.22580644
  %v7722 = vmul.f32 %v4177, 0.22580644
  %v7723 = vmul.f32 %v4193, 0.22580644
  %v7724 = vmul.f32 %v4209, 0.22580644
  %v7725 = vmul.f32 %v4225, 0.22580644
  %v7726 = vmul.f32 %v4241, 0.22580644
  %v7727 = vmul.f32 %v4257, 0.22580644
  %v7728 = vmul.f32 %v4273, 0.22580644
  %v7729 = vadd.f32 %v1312, %v1297
  %v7730 = vadd.f32 %v7667, %v7698
  %v7731 = vadd.f32 %v7668, %v7699
  %v7732 = vadd.f32 %v7669, %v7700
  %v7733 = vadd.f32 %v7670, %v7701
  %v7734 = vadd.f32 %v7671, %v7702
  %v7735 = vadd.f32 %v7672, %v7703
  %v7736 = vadd.f32 %v7673, %v7704
  %v7737 = vadd.f32 %v7674, %v7705
  %v7738 = vadd.f32 %v7675, %v7706
  %v7739 = vadd.f32 %v7676, %v7707
  %v7740 = vadd.f32 %v7677, %v7708
  %v7741 = vadd.f32 %v7678, %v7709
  %v7742 = vadd.f32 %v7679, %v7710
  %v7743 = vadd.f32 %v7680, %v7711
  %v7744 = vadd.f32 %v7681, %v7712
  %v7745 = vadd.f32 %v7682, %v7713
  %v7746 = vadd.f32 %v7683, %v7714
  %v7747 = vadd.f32 %v7684, %v7715
  %v7748 = vadd.f32 %v7685, %v7716
  %v7749 = vadd.f32 %v7686, %v7717
  %v7750 = vadd.f32 %v7687, %v7718
  %v7751 = vadd.f32 %v7688, %v7719
  %v7752 = vadd.f32 %v7689, %v7720
  %v7753 = vadd.f32 %v7690, %v7721
  %v7754 = vadd.f32 %v7691, %v7722
  %v7755 = vadd.f32 %v7692, %v7723
  %v7756 = vadd.f32 %v7693, %v7724
  %v7757 = vadd.f32 %v7694, %v7725
  %v7758 = vadd.f32 %v7695, %v7726
  %v7759 = vadd.f32 %v7696, %v7727
  %v7760 = vadd.f32 %v7697, %v7728
  %v7793 = vrot.slane %v7730, 7
  %v7794 = vsel %vm4540, %v7793, %v7729
  %v7795 = vrot.slane %v7731, 6
  %v7796 = vsel %vm4543, %v7795, %v7794
  %v7797 = vrot.slane %v7732, 5
  %v7798 = vsel %vm4546, %v7797, %v7796
  %v7799 = vrot.slane %v7733, 4
  %v7800 = vsel %vm4549, %v7799, %v7798
  %v7801 = vrot.slane %v7734, 3
  %v7802 = vsel %vm4552, %v7801, %v7800
  %v7803 = vrot.slane %v7735, 2
  %v7804 = vsel %vm4555, %v7803, %v7802
  %v7805 = vrot.slane %v7736, 1
  %v7806 = vsel %vm4558, %v7805, %v7804
  %v7807 = vrot.slane %v7738, 7
  %v7808 = vsel %vm4540, %v7807, %v7737
  %v7809 = vrot.slane %v7739, 6
  %v7810 = vsel %vm4543, %v7809, %v7808
  %v7811 = vrot.slane %v7740, 5
  %v7812 = vsel %vm4546, %v7811, %v7810
  %v7813 = vrot.slane %v7741, 4
  %v7814 = vsel %vm4549, %v7813, %v7812
  %v7815 = vrot.slane %v7742, 3
  %v7816 = vsel %vm4552, %v7815, %v7814
  %v7817 = vrot.slane %v7743, 2
  %v7818 = vsel %vm4555, %v7817, %v7816
  %v7819 = vrot.slane %v7744, 1
  %v7820 = vsel %vm4558, %v7819, %v7818
  %v7821 = vrot.slane %v7746, 7
  %v7822 = vsel %vm4540, %v7821, %v7745
  %v7823 = vrot.slane %v7747, 6
  %v7824 = vsel %vm4543, %v7823, %v7822
  %v7825 = vrot.slane %v7748, 5
  %v7826 = vsel %vm4546, %v7825, %v7824
  %v7827 = vrot.slane %v7749, 4
  %v7828 = vsel %vm4549, %v7827, %v7826
  %v7829 = vrot.slane %v7750, 3
  %v7830 = vsel %vm4552, %v7829, %v7828
  %v7831 = vrot.slane %v7751, 2
  %v7832 = vsel %vm4555, %v7831, %v7830
  %v7833 = vrot.slane %v7752, 1
  %v7834 = vsel %vm4558, %v7833, %v7832
  %v7835 = vrot.slane %v7754, 7
  %v7836 = vsel %vm4540, %v7835, %v7753
  %v7837 = vrot.slane %v7755, 6
  %v7838 = vsel %vm4543, %v7837, %v7836
  %v7839 = vrot.slane %v7756, 5
  %v7840 = vsel %vm4546, %v7839, %v7838
  %v7841 = vrot.slane %v7757, 4
  %v7842 = vsel %vm4549, %v7841, %v7840
  %v7843 = vrot.slane %v7758, 3
  %v7844 = vsel %vm4552, %v7843, %v7842
  %v7845 = vrot.slane %v7759, 2
  %v7846 = vsel %vm4555, %v7845, %v7844
  %v7847 = vrot.slane %v7760, 1
  %v7848 = vsel %vm4558, %v7847, %v7846
  %s7853 = scalar_lea.vmem %s1, 544
  %7854 = vst.msk [vmem:[%s7853] sm:$0xff] %vm4606, %v7806
  %7855 = vst.msk [vmem:[%s7853 + $0x8] sm:$0xff] %vm4606, %v7820
  %7856 = vst.msk [vmem:[%s7853 + $0x10] sm:$0xff] %vm4606, %v7834
  %7857 = vst.msk [vmem:[%s7853 + $0x18] sm:$0xff] %vm4606, %v7848
  %v7858 = vmul.f32 %v128, 0.29032257
  %v7859 = vmul.f32 %v224, 0.29032257
  %v7860 = vmul.f32 %v2944, 0.29032257
  %v7861 = vmul.f32 %v2992, 0.29032257
  %v7862 = vmul.f32 %v3040, 0.29032257
  %v7863 = vmul.f32 %v3088, 0.29032257
  %v7864 = vmul.f32 %v3136, 0.29032257
  %v7865 = vmul.f32 %v3184, 0.29032257
  %v7866 = vmul.f32 %v3232, 0.29032257
  %v7867 = vmul.f32 %v3280, 0.29032257
  %v7868 = vmul.f32 %v3328, 0.29032257
  %v7869 = vmul.f32 %v3376, 0.29032257
  %v7870 = vmul.f32 %v3424, 0.29032257
  %v7871 = vmul.f32 %v3472, 0.29032257
  %v7872 = vmul.f32 %v3520, 0.29032257
  %v7873 = vmul.f32 %v4032, 0.29032257
  %v7874 = vmul.f32 %v4048, 0.29032257
  %v7875 = vmul.f32 %v4064, 0.29032257
  %v7876 = vmul.f32 %v4080, 0.29032257
  %v7877 = vmul.f32 %v4096, 0.29032257
  %v7878 = vmul.f32 %v4112, 0.29032257
  %v7879 = vmul.f32 %v4128, 0.29032257
  %v7880 = vmul.f32 %v4144, 0.29032257
  %v7881 = vmul.f32 %v4160, 0.29032257
  %v7882 = vmul.f32 %v4176, 0.29032257
  %v7883 = vmul.f32 %v4192, 0.29032257
  %v7884 = vmul.f32 %v4208, 0.29032257
  %v7885 = vmul.f32 %v4224, 0.29032257
  %v7886 = vmul.f32 %v4240, 0.29032257
  %v7887 = vmul.f32 %v4256, 0.29032257
  %v7888 = vmul.f32 %v4272, 0.29032257
  %v7889 = vmul.f32 %v129, 0.7096774
  %v7890 = vmul.f32 %v225, 0.7096774
  %v7891 = vmul.f32 %v2945, 0.7096774
  %v7892 = vmul.f32 %v2993, 0.7096774
  %v7893 = vmul.f32 %v3041, 0.7096774
  %v7894 = vmul.f32 %v3089, 0.7096774
  %v7895 = vmul.f32 %v3137, 0.7096774
  %v7896 = vmul.f32 %v3185, 0.7096774
  %v7897 = vmul.f32 %v3233, 0.7096774
  %v7898 = vmul.f32 %v3281, 0.7096774
  %v7899 = vmul.f32 %v3329, 0.7096774
  %v7900 = vmul.f32 %v3377, 0.7096774
  %v7901 = vmul.f32 %v3425, 0.7096774
  %v7902 = vmul.f32 %v3473, 0.7096774
  %v7903 = vmul.f32 %v3521, 0.7096774
  %v7904 = vmul.f32 %v4033, 0.7096774
  %v7905 = vmul.f32 %v4049, 0.7096774
  %v7906 = vmul.f32 %v4065, 0.7096774
  %v7907 = vmul.f32 %v4081, 0.7096774
  %v7908 = vmul.f32 %v4097, 0.7096774
  %v7909 = vmul.f32 %v4113, 0.7096774
  %v7910 = vmul.f32 %v4129, 0.7096774
  %v7911 = vmul.f32 %v4145, 0.7096774
  %v7912 = vmul.f32 %v4161, 0.7096774
  %v7913 = vmul.f32 %v4177, 0.7096774
  %v7914 = vmul.f32 %v4193, 0.7096774
  %v7915 = vmul.f32 %v4209, 0.7096774
  %v7916 = vmul.f32 %v4225, 0.7096774
  %v7917 = vmul.f32 %v4241, 0.7096774
  %v7918 = vmul.f32 %v4257, 0.7096774
  %v7919 = vmul.f32 %v4273, 0.7096774
  %v7920 = vadd.f32 %v1216, %v1201
  %v7921 = vadd.f32 %v7858, %v7889
  %v7922 = vadd.f32 %v7859, %v7890
  %v7923 = vadd.f32 %v7860, %v7891
  %v7924 = vadd.f32 %v7861, %v7892
  %v7925 = vadd.f32 %v7862, %v7893
  %v7926 = vadd.f32 %v7863, %v7894
  %v7927 = vadd.f32 %v7864, %v7895
  %v7928 = vadd.f32 %v7865, %v7896
  %v7929 = vadd.f32 %v7866, %v7897
  %v7930 = vadd.f32 %v7867, %v7898
  %v7931 = vadd.f32 %v7868, %v7899
  %v7932 = vadd.f32 %v7869, %v7900
  %v7933 = vadd.f32 %v7870, %v7901
  %v7934 = vadd.f32 %v7871, %v7902
  %v7935 = vadd.f32 %v7872, %v7903
  %v7936 = vadd.f32 %v7873, %v7904
  %v7937 = vadd.f32 %v7874, %v7905
  %v7938 = vadd.f32 %v7875, %v7906
  %v7939 = vadd.f32 %v7876, %v7907
  %v7940 = vadd.f32 %v7877, %v7908
  %v7941 = vadd.f32 %v7878, %v7909
  %v7942 = vadd.f32 %v7879, %v7910
  %v7943 = vadd.f32 %v7880, %v7911
  %v7944 = vadd.f32 %v7881, %v7912
  %v7945 = vadd.f32 %v7882, %v7913
  %v7946 = vadd.f32 %v7883, %v7914
  %v7947 = vadd.f32 %v7884, %v7915
  %v7948 = vadd.f32 %v7885, %v7916
  %v7949 = vadd.f32 %v7886, %v7917
  %v7950 = vadd.f32 %v7887, %v7918
  %v7951 = vadd.f32 %v7888, %v7919
  %v7984 = vrot.slane %v7921, 7
  %v7985 = vsel %vm4540, %v7984, %v7920
  %v7986 = vrot.slane %v7922, 6
  %v7987 = vsel %vm4543, %v7986, %v7985
  %v7988 = vrot.slane %v7923, 5
  %v7989 = vsel %vm4546, %v7988, %v7987
  %v7990 = vrot.slane %v7924, 4
  %v7991 = vsel %vm4549, %v7990, %v7989
  %v7992 = vrot.slane %v7925, 3
  %v7993 = vsel %vm4552, %v7992, %v7991
  %v7994 = vrot.slane %v7926, 2
  %v7995 = vsel %vm4555, %v7994, %v7993
  %v7996 = vrot.slane %v7927, 1
  %v7997 = vsel %vm4558, %v7996, %v7995
  %v7998 = vrot.slane %v7929, 7
  %v7999 = vsel %vm4540, %v7998, %v7928
  %v8000 = vrot.slane %v7930, 6
  %v8001 = vsel %vm4543, %v8000, %v7999
  %v8002 = vrot.slane %v7931, 5
  %v8003 = vsel %vm4546, %v8002, %v8001
  %v8004 = vrot.slane %v7932, 4
  %v8005 = vsel %vm4549, %v8004, %v8003
  %v8006 = vrot.slane %v7933, 3
  %v8007 = vsel %vm4552, %v8006, %v8005
  %v8008 = vrot.slane %v7934, 2
  %v8009 = vsel %vm4555, %v8008, %v8007
  %v8010 = vrot.slane %v7935, 1
  %v8011 = vsel %vm4558, %v8010, %v8009
  %v8012 = vrot.slane %v7937, 7
  %v8013 = vsel %vm4540, %v8012, %v7936
  %v8014 = vrot.slane %v7938, 6
  %v8015 = vsel %vm4543, %v8014, %v8013
  %v8016 = vrot.slane %v7939, 5
  %v8017 = vsel %vm4546, %v8016, %v8015
  %v8018 = vrot.slane %v7940, 4
  %v8019 = vsel %vm4549, %v8018, %v8017
  %v8020 = vrot.slane %v7941, 3
  %v8021 = vsel %vm4552, %v8020, %v8019
  %v8022 = vrot.slane %v7942, 2
  %v8023 = vsel %vm4555, %v8022, %v8021
  %v8024 = vrot.slane %v7943, 1
  %v8025 = vsel %vm4558, %v8024, %v8023
  %v8026 = vrot.slane %v7945, 7
  %v8027 = vsel %vm4540, %v8026, %v7944
  %v8028 = vrot.slane %v7946, 6
  %v8029 = vsel %vm4543, %v8028, %v8027
  %v8030 = vrot.slane %v7947, 5
  %v8031 = vsel %vm4546, %v8030, %v8029
  %v8032 = vrot.slane %v7948, 4
  %v8033 = vsel %vm4549, %v8032, %v8031
  %v8034 = vrot.slane %v7949, 3
  %v8035 = vsel %vm4552, %v8034, %v8033
  %v8036 = vrot.slane %v7950, 2
  %v8037 = vsel %vm4555, %v8036, %v8035
  %v8038 = vrot.slane %v7951, 1
  %v8039 = vsel %vm4558, %v8038, %v8037
  %s8044 = scalar_lea.vmem %s1, 576
  %8045 = vst.msk [vmem:[%s8044] sm:$0xff] %vm4606, %v7997
  %8046 = vst.msk [vmem:[%s8044 + $0x8] sm:$0xff] %vm4606, %v8011
  %8047 = vst.msk [vmem:[%s8044 + $0x10] sm:$0xff] %vm4606, %v8025
  %8048 = vst.msk [vmem:[%s8044 + $0x18] sm:$0xff] %vm4606, %v8039
  %v8049 = vmul.f32 %v129, 0.8064516
  %v8050 = vmul.f32 %v225, 0.8064516
  %v8051 = vmul.f32 %v2945, 0.8064516
  %v8052 = vmul.f32 %v2993, 0.8064516
  %v8053 = vmul.f32 %v3041, 0.8064516
  %v8054 = vmul.f32 %v3089, 0.8064516
  %v8055 = vmul.f32 %v3137, 0.8064516
  %v8056 = vmul.f32 %v3185, 0.8064516
  %v8057 = vmul.f32 %v3233, 0.8064516
  %v8058 = vmul.f32 %v3281, 0.8064516
  %v8059 = vmul.f32 %v3329, 0.8064516
  %v8060 = vmul.f32 %v3377, 0.8064516
  %v8061 = vmul.f32 %v3425, 0.8064516
  %v8062 = vmul.f32 %v3473, 0.8064516
  %v8063 = vmul.f32 %v3521, 0.8064516
  %v8064 = vmul.f32 %v4033, 0.8064516
  %v8065 = vmul.f32 %v4049, 0.8064516
  %v8066 = vmul.f32 %v4065, 0.8064516
  %v8067 = vmul.f32 %v4081, 0.8064516
  %v8068 = vmul.f32 %v4097, 0.8064516
  %v8069 = vmul.f32 %v4113, 0.8064516
  %v8070 = vmul.f32 %v4129, 0.8064516
  %v8071 = vmul.f32 %v4145, 0.8064516
  %v8072 = vmul.f32 %v4161, 0.8064516
  %v8073 = vmul.f32 %v4177, 0.8064516
  %v8074 = vmul.f32 %v4193, 0.8064516
  %v8075 = vmul.f32 %v4209, 0.8064516
  %v8076 = vmul.f32 %v4225, 0.8064516
  %v8077 = vmul.f32 %v4241, 0.8064516
  %v8078 = vmul.f32 %v4257, 0.8064516
  %v8079 = vmul.f32 %v4273, 0.8064516
  %v8080 = vmul.f32 %v130, 0.19354838
  %v8081 = vmul.f32 %v226, 0.19354838
  %v8082 = vmul.f32 %v2946, 0.19354838
  %v8083 = vmul.f32 %v2994, 0.19354838
  %v8084 = vmul.f32 %v3042, 0.19354838
  %v8085 = vmul.f32 %v3090, 0.19354838
  %v8086 = vmul.f32 %v3138, 0.19354838
  %v8087 = vmul.f32 %v3186, 0.19354838
  %v8088 = vmul.f32 %v3234, 0.19354838
  %v8089 = vmul.f32 %v3282, 0.19354838
  %v8090 = vmul.f32 %v3330, 0.19354838
  %v8091 = vmul.f32 %v3378, 0.19354838
  %v8092 = vmul.f32 %v3426, 0.19354838
  %v8093 = vmul.f32 %v3474, 0.19354838
  %v8094 = vmul.f32 %v3522, 0.19354838
  %v8095 = vmul.f32 %v4034, 0.19354838
  %v8096 = vmul.f32 %v4050, 0.19354838
  %v8097 = vmul.f32 %v4066, 0.19354838
  %v8098 = vmul.f32 %v4082, 0.19354838
  %v8099 = vmul.f32 %v4098, 0.19354838
  %v8100 = vmul.f32 %v4114, 0.19354838
  %v8101 = vmul.f32 %v4130, 0.19354838
  %v8102 = vmul.f32 %v4146, 0.19354838
  %v8103 = vmul.f32 %v4162, 0.19354838
  %v8104 = vmul.f32 %v4178, 0.19354838
  %v8105 = vmul.f32 %v4194, 0.19354838
  %v8106 = vmul.f32 %v4210, 0.19354838
  %v8107 = vmul.f32 %v4226, 0.19354838
  %v8108 = vmul.f32 %v4242, 0.19354838
  %v8109 = vmul.f32 %v4258, 0.19354838
  %v8110 = vmul.f32 %v4274, 0.19354838
  %v8111 = vadd.f32 %v1121, %v1106
  %v8112 = vadd.f32 %v8049, %v8080
  %v8113 = vadd.f32 %v8050, %v8081
  %v8114 = vadd.f32 %v8051, %v8082
  %v8115 = vadd.f32 %v8052, %v8083
  %v8116 = vadd.f32 %v8053, %v8084
  %v8117 = vadd.f32 %v8054, %v8085
  %v8118 = vadd.f32 %v8055, %v8086
  %v8119 = vadd.f32 %v8056, %v8087
  %v8120 = vadd.f32 %v8057, %v8088
  %v8121 = vadd.f32 %v8058, %v8089
  %v8122 = vadd.f32 %v8059, %v8090
  %v8123 = vadd.f32 %v8060, %v8091
  %v8124 = vadd.f32 %v8061, %v8092
  %v8125 = vadd.f32 %v8062, %v8093
  %v8126 = vadd.f32 %v8063, %v8094
  %v8127 = vadd.f32 %v8064, %v8095
  %v8128 = vadd.f32 %v8065, %v8096
  %v8129 = vadd.f32 %v8066, %v8097
  %v8130 = vadd.f32 %v8067, %v8098
  %v8131 = vadd.f32 %v8068, %v8099
  %v8132 = vadd.f32 %v8069, %v8100
  %v8133 = vadd.f32 %v8070, %v8101
  %v8134 = vadd.f32 %v8071, %v8102
  %v8135 = vadd.f32 %v8072, %v8103
  %v8136 = vadd.f32 %v8073, %v8104
  %v8137 = vadd.f32 %v8074, %v8105
  %v8138 = vadd.f32 %v8075, %v8106
  %v8139 = vadd.f32 %v8076, %v8107
  %v8140 = vadd.f32 %v8077, %v8108
  %v8141 = vadd.f32 %v8078, %v8109
  %v8142 = vadd.f32 %v8079, %v8110
  %v8175 = vrot.slane %v8112, 7
  %v8176 = vsel %vm4540, %v8175, %v8111
  %v8177 = vrot.slane %v8113, 6
  %v8178 = vsel %vm4543, %v8177, %v8176
  %v8179 = vrot.slane %v8114, 5
  %v8180 = vsel %vm4546, %v8179, %v8178
  %v8181 = vrot.slane %v8115, 4
  %v8182 = vsel %vm4549, %v8181, %v8180
  %v8183 = vrot.slane %v8116, 3
  %v8184 = vsel %vm4552, %v8183, %v8182
  %v8185 = vrot.slane %v8117, 2
  %v8186 = vsel %vm4555, %v8185, %v8184
  %v8187 = vrot.slane %v8118, 1
  %v8188 = vsel %vm4558, %v8187, %v8186
  %v8189 = vrot.slane %v8120, 7
  %v8190 = vsel %vm4540, %v8189, %v8119
  %v8191 = vrot.slane %v8121, 6
  %v8192 = vsel %vm4543, %v8191, %v8190
  %v8193 = vrot.slane %v8122, 5
  %v8194 = vsel %vm4546, %v8193, %v8192
  %v8195 = vrot.slane %v8123, 4
  %v8196 = vsel %vm4549, %v8195, %v8194
  %v8197 = vrot.slane %v8124, 3
  %v8198 = vsel %vm4552, %v8197, %v8196
  %v8199 = vrot.slane %v8125, 2
  %v8200 = vsel %vm4555, %v8199, %v8198
  %v8201 = vrot.slane %v8126, 1
  %v8202 = vsel %vm4558, %v8201, %v8200
  %v8203 = vrot.slane %v8128, 7
  %v8204 = vsel %vm4540, %v8203, %v8127
  %v8205 = vrot.slane %v8129, 6
  %v8206 = vsel %vm4543, %v8205, %v8204
  %v8207 = vrot.slane %v8130, 5
  %v8208 = vsel %vm4546, %v8207, %v8206
  %v8209 = vrot.slane %v8131, 4
  %v8210 = vsel %vm4549, %v8209, %v8208
  %v8211 = vrot.slane %v8132, 3
  %v8212 = vsel %vm4552, %v8211, %v8210
  %v8213 = vrot.slane %v8133, 2
  %v8214 = vsel %vm4555, %v8213, %v8212
  %v8215 = vrot.slane %v8134, 1
  %v8216 = vsel %vm4558, %v8215, %v8214
  %v8217 = vrot.slane %v8136, 7
  %v8218 = vsel %vm4540, %v8217, %v8135
  %v8219 = vrot.slane %v8137, 6
  %v8220 = vsel %vm4543, %v8219, %v8218
  %v8221 = vrot.slane %v8138, 5
  %v8222 = vsel %vm4546, %v8221, %v8220
  %v8223 = vrot.slane %v8139, 4
  %v8224 = vsel %vm4549, %v8223, %v8222
  %v8225 = vrot.slane %v8140, 3
  %v8226 = vsel %vm4552, %v8225, %v8224
  %v8227 = vrot.slane %v8141, 2
  %v8228 = vsel %vm4555, %v8227, %v8226
  %v8229 = vrot.slane %v8142, 1
  %v8230 = vsel %vm4558, %v8229, %v8228
  %s8235 = scalar_lea.vmem %s1, 608
  %8236 = vst.msk [vmem:[%s8235] sm:$0xff] %vm4606, %v8188
  %8237 = vst.msk [vmem:[%s8235 + $0x8] sm:$0xff] %vm4606, %v8202
  %8238 = vst.msk [vmem:[%s8235 + $0x10] sm:$0xff] %vm4606, %v8216
  %8239 = vst.msk [vmem:[%s8235 + $0x18] sm:$0xff] %vm4606, %v8230
  %v8240 = vmul.f32 %v129, 0.32258064
  %v8241 = vmul.f32 %v225, 0.32258064
  %v8242 = vmul.f32 %v2945, 0.32258064
  %v8243 = vmul.f32 %v2993, 0.32258064
  %v8244 = vmul.f32 %v3041, 0.32258064
  %v8245 = vmul.f32 %v3089, 0.32258064
  %v8246 = vmul.f32 %v3137, 0.32258064
  %v8247 = vmul.f32 %v3185, 0.32258064
  %v8248 = vmul.f32 %v3233, 0.32258064
  %v8249 = vmul.f32 %v3281, 0.32258064
  %v8250 = vmul.f32 %v3329, 0.32258064
  %v8251 = vmul.f32 %v3377, 0.32258064
  %v8252 = vmul.f32 %v3425, 0.32258064
  %v8253 = vmul.f32 %v3473, 0.32258064
  %v8254 = vmul.f32 %v3521, 0.32258064
  %v8255 = vmul.f32 %v4033, 0.32258064
  %v8256 = vmul.f32 %v4049, 0.32258064
  %v8257 = vmul.f32 %v4065, 0.32258064
  %v8258 = vmul.f32 %v4081, 0.32258064
  %v8259 = vmul.f32 %v4097, 0.32258064
  %v8260 = vmul.f32 %v4113, 0.32258064
  %v8261 = vmul.f32 %v4129, 0.32258064
  %v8262 = vmul.f32 %v4145, 0.32258064
  %v8263 = vmul.f32 %v4161, 0.32258064
  %v8264 = vmul.f32 %v4177, 0.32258064
  %v8265 = vmul.f32 %v4193, 0.32258064
  %v8266 = vmul.f32 %v4209, 0.32258064
  %v8267 = vmul.f32 %v4225, 0.32258064
  %v8268 = vmul.f32 %v4241, 0.32258064
  %v8269 = vmul.f32 %v4257, 0.32258064
  %v8270 = vmul.f32 %v4273, 0.32258064
  %v8271 = vmul.f32 %v130, 0.67741936
  %v8272 = vmul.f32 %v226, 0.67741936
  %v8273 = vmul.f32 %v2946, 0.67741936
  %v8274 = vmul.f32 %v2994, 0.67741936
  %v8275 = vmul.f32 %v3042, 0.67741936
  %v8276 = vmul.f32 %v3090, 0.67741936
  %v8277 = vmul.f32 %v3138, 0.67741936
  %v8278 = vmul.f32 %v3186, 0.67741936
  %v8279 = vmul.f32 %v3234, 0.67741936
  %v8280 = vmul.f32 %v3282, 0.67741936
  %v8281 = vmul.f32 %v3330, 0.67741936
  %v8282 = vmul.f32 %v3378, 0.67741936
  %v8283 = vmul.f32 %v3426, 0.67741936
  %v8284 = vmul.f32 %v3474, 0.67741936
  %v8285 = vmul.f32 %v3522, 0.67741936
  %v8286 = vmul.f32 %v4034, 0.67741936
  %v8287 = vmul.f32 %v4050, 0.67741936
  %v8288 = vmul.f32 %v4066, 0.67741936
  %v8289 = vmul.f32 %v4082, 0.67741936
  %v8290 = vmul.f32 %v4098, 0.67741936
  %v8291 = vmul.f32 %v4114, 0.67741936
  %v8292 = vmul.f32 %v4130, 0.67741936
  %v8293 = vmul.f32 %v4146, 0.67741936
  %v8294 = vmul.f32 %v4162, 0.67741936
  %v8295 = vmul.f32 %v4178, 0.67741936
  %v8296 = vmul.f32 %v4194, 0.67741936
  %v8297 = vmul.f32 %v4210, 0.67741936
  %v8298 = vmul.f32 %v4226, 0.67741936
  %v8299 = vmul.f32 %v4242, 0.67741936
  %v8300 = vmul.f32 %v4258, 0.67741936
  %v8301 = vmul.f32 %v4274, 0.67741936
  %v8302 = vadd.f32 %v1025, %v1010
  %v8303 = vadd.f32 %v8240, %v8271
  %v8304 = vadd.f32 %v8241, %v8272
  %v8305 = vadd.f32 %v8242, %v8273
  %v8306 = vadd.f32 %v8243, %v8274
  %v8307 = vadd.f32 %v8244, %v8275
  %v8308 = vadd.f32 %v8245, %v8276
  %v8309 = vadd.f32 %v8246, %v8277
  %v8310 = vadd.f32 %v8247, %v8278
  %v8311 = vadd.f32 %v8248, %v8279
  %v8312 = vadd.f32 %v8249, %v8280
  %v8313 = vadd.f32 %v8250, %v8281
  %v8314 = vadd.f32 %v8251, %v8282
  %v8315 = vadd.f32 %v8252, %v8283
  %v8316 = vadd.f32 %v8253, %v8284
  %v8317 = vadd.f32 %v8254, %v8285
  %v8318 = vadd.f32 %v8255, %v8286
  %v8319 = vadd.f32 %v8256, %v8287
  %v8320 = vadd.f32 %v8257, %v8288
  %v8321 = vadd.f32 %v8258, %v8289
  %v8322 = vadd.f32 %v8259, %v8290
  %v8323 = vadd.f32 %v8260, %v8291
  %v8324 = vadd.f32 %v8261, %v8292
  %v8325 = vadd.f32 %v8262, %v8293
  %v8326 = vadd.f32 %v8263, %v8294
  %v8327 = vadd.f32 %v8264, %v8295
  %v8328 = vadd.f32 %v8265, %v8296
  %v8329 = vadd.f32 %v8266, %v8297
  %v8330 = vadd.f32 %v8267, %v8298
  %v8331 = vadd.f32 %v8268, %v8299
  %v8332 = vadd.f32 %v8269, %v8300
  %v8333 = vadd.f32 %v8270, %v8301
  %v8366 = vrot.slane %v8303, 7
  %v8367 = vsel %vm4540, %v8366, %v8302
  %v8368 = vrot.slane %v8304, 6
  %v8369 = vsel %vm4543, %v8368, %v8367
  %v8370 = vrot.slane %v8305, 5
  %v8371 = vsel %vm4546, %v8370, %v8369
  %v8372 = vrot.slane %v8306, 4
  %v8373 = vsel %vm4549, %v8372, %v8371
  %v8374 = vrot.slane %v8307, 3
  %v8375 = vsel %vm4552, %v8374, %v8373
  %v8376 = vrot.slane %v8308, 2
  %v8377 = vsel %vm4555, %v8376, %v8375
  %v8378 = vrot.slane %v8309, 1
  %v8379 = vsel %vm4558, %v8378, %v8377
  %v8380 = vrot.slane %v8311, 7
  %v8381 = vsel %vm4540, %v8380, %v8310
  %v8382 = vrot.slane %v8312, 6
  %v8383 = vsel %vm4543, %v8382, %v8381
  %v8384 = vrot.slane %v8313, 5
  %v8385 = vsel %vm4546, %v8384, %v8383
  %v8386 = vrot.slane %v8314, 4
  %v8387 = vsel %vm4549, %v8386, %v8385
  %v8388 = vrot.slane %v8315, 3
  %v8389 = vsel %vm4552, %v8388, %v8387
  %v8390 = vrot.slane %v8316, 2
  %v8391 = vsel %vm4555, %v8390, %v8389
  %v8392 = vrot.slane %v8317, 1
  %v8393 = vsel %vm4558, %v8392, %v8391
  %v8394 = vrot.slane %v8319, 7
  %v8395 = vsel %vm4540, %v8394, %v8318
  %v8396 = vrot.slane %v8320, 6
  %v8397 = vsel %vm4543, %v8396, %v8395
  %v8398 = vrot.slane %v8321, 5
  %v8399 = vsel %vm4546, %v8398, %v8397
  %v8400 = vrot.slane %v8322, 4
  %v8401 = vsel %vm4549, %v8400, %v8399
  %v8402 = vrot.slane %v8323, 3
  %v8403 = vsel %vm4552, %v8402, %v8401
  %v8404 = vrot.slane %v8324, 2
  %v8405 = vsel %vm4555, %v8404, %v8403
  %v8406 = vrot.slane %v8325, 1
  %v8407 = vsel %vm4558, %v8406, %v8405
  %v8408 = vrot.slane %v8327, 7
  %v8409 = vsel %vm4540, %v8408, %v8326
  %v8410 = vrot.slane %v8328, 6
  %v8411 = vsel %vm4543, %v8410, %v8409
  %v8412 = vrot.slane %v8329, 5
  %v8413 = vsel %vm4546, %v8412, %v8411
  %v8414 = vrot.slane %v8330, 4
  %v8415 = vsel %vm4549, %v8414, %v8413
  %v8416 = vrot.slane %v8331, 3
  %v8417 = vsel %vm4552, %v8416, %v8415
  %v8418 = vrot.slane %v8332, 2
  %v8419 = vsel %vm4555, %v8418, %v8417
  %v8420 = vrot.slane %v8333, 1
  %v8421 = vsel %vm4558, %v8420, %v8419
  %s8426 = scalar_lea.vmem %s1, 640
  %8427 = vst.msk [vmem:[%s8426] sm:$0xff] %vm4606, %v8379
  %8428 = vst.msk [vmem:[%s8426 + $0x8] sm:$0xff] %vm4606, %v8393
  %8429 = vst.msk [vmem:[%s8426 + $0x10] sm:$0xff] %vm4606, %v8407
  %8430 = vst.msk [vmem:[%s8426 + $0x18] sm:$0xff] %vm4606, %v8421
  %v8431 = vmul.f32 %v130, 0.83870965
  %v8432 = vmul.f32 %v226, 0.83870965
  %v8433 = vmul.f32 %v2946, 0.83870965
  %v8434 = vmul.f32 %v2994, 0.83870965
  %v8435 = vmul.f32 %v3042, 0.83870965
  %v8436 = vmul.f32 %v3090, 0.83870965
  %v8437 = vmul.f32 %v3138, 0.83870965
  %v8438 = vmul.f32 %v3186, 0.83870965
  %v8439 = vmul.f32 %v3234, 0.83870965
  %v8440 = vmul.f32 %v3282, 0.83870965
  %v8441 = vmul.f32 %v3330, 0.83870965
  %v8442 = vmul.f32 %v3378, 0.83870965
  %v8443 = vmul.f32 %v3426, 0.83870965
  %v8444 = vmul.f32 %v3474, 0.83870965
  %v8445 = vmul.f32 %v3522, 0.83870965
  %v8446 = vmul.f32 %v4034, 0.83870965
  %v8447 = vmul.f32 %v4050, 0.83870965
  %v8448 = vmul.f32 %v4066, 0.83870965
  %v8449 = vmul.f32 %v4082, 0.83870965
  %v8450 = vmul.f32 %v4098, 0.83870965
  %v8451 = vmul.f32 %v4114, 0.83870965
  %v8452 = vmul.f32 %v4130, 0.83870965
  %v8453 = vmul.f32 %v4146, 0.83870965
  %v8454 = vmul.f32 %v4162, 0.83870965
  %v8455 = vmul.f32 %v4178, 0.83870965
  %v8456 = vmul.f32 %v4194, 0.83870965
  %v8457 = vmul.f32 %v4210, 0.83870965
  %v8458 = vmul.f32 %v4226, 0.83870965
  %v8459 = vmul.f32 %v4242, 0.83870965
  %v8460 = vmul.f32 %v4258, 0.83870965
  %v8461 = vmul.f32 %v4274, 0.83870965
  %v8462 = vmul.f32 %v131, 0.16129032
  %v8463 = vmul.f32 %v227, 0.16129032
  %v8464 = vmul.f32 %v2947, 0.16129032
  %v8465 = vmul.f32 %v2995, 0.16129032
  %v8466 = vmul.f32 %v3043, 0.16129032
  %v8467 = vmul.f32 %v3091, 0.16129032
  %v8468 = vmul.f32 %v3139, 0.16129032
  %v8469 = vmul.f32 %v3187, 0.16129032
  %v8470 = vmul.f32 %v3235, 0.16129032
  %v8471 = vmul.f32 %v3283, 0.16129032
  %v8472 = vmul.f32 %v3331, 0.16129032
  %v8473 = vmul.f32 %v3379, 0.16129032
  %v8474 = vmul.f32 %v3427, 0.16129032
  %v8475 = vmul.f32 %v3475, 0.16129032
  %v8476 = vmul.f32 %v3523, 0.16129032
  %v8477 = vmul.f32 %v4035, 0.16129032
  %v8478 = vmul.f32 %v4051, 0.16129032
  %v8479 = vmul.f32 %v4067, 0.16129032
  %v8480 = vmul.f32 %v4083, 0.16129032
  %v8481 = vmul.f32 %v4099, 0.16129032
  %v8482 = vmul.f32 %v4115, 0.16129032
  %v8483 = vmul.f32 %v4131, 0.16129032
  %v8484 = vmul.f32 %v4147, 0.16129032
  %v8485 = vmul.f32 %v4163, 0.16129032
  %v8486 = vmul.f32 %v4179, 0.16129032
  %v8487 = vmul.f32 %v4195, 0.16129032
  %v8488 = vmul.f32 %v4211, 0.16129032
  %v8489 = vmul.f32 %v4227, 0.16129032
  %v8490 = vmul.f32 %v4243, 0.16129032
  %v8491 = vmul.f32 %v4259, 0.16129032
  %v8492 = vmul.f32 %v4275, 0.16129032
  %v8493 = vadd.f32 %v930, %v915
  %v8494 = vadd.f32 %v8431, %v8462
  %v8495 = vadd.f32 %v8432, %v8463
  %v8496 = vadd.f32 %v8433, %v8464
  %v8497 = vadd.f32 %v8434, %v8465
  %v8498 = vadd.f32 %v8435, %v8466
  %v8499 = vadd.f32 %v8436, %v8467
  %v8500 = vadd.f32 %v8437, %v8468
  %v8501 = vadd.f32 %v8438, %v8469
  %v8502 = vadd.f32 %v8439, %v8470
  %v8503 = vadd.f32 %v8440, %v8471
  %v8504 = vadd.f32 %v8441, %v8472
  %v8505 = vadd.f32 %v8442, %v8473
  %v8506 = vadd.f32 %v8443, %v8474
  %v8507 = vadd.f32 %v8444, %v8475
  %v8508 = vadd.f32 %v8445, %v8476
  %v8509 = vadd.f32 %v8446, %v8477
  %v8510 = vadd.f32 %v8447, %v8478
  %v8511 = vadd.f32 %v8448, %v8479
  %v8512 = vadd.f32 %v8449, %v8480
  %v8513 = vadd.f32 %v8450, %v8481
  %v8514 = vadd.f32 %v8451, %v8482
  %v8515 = vadd.f32 %v8452, %v8483
  %v8516 = vadd.f32 %v8453, %v8484
  %v8517 = vadd.f32 %v8454, %v8485
  %v8518 = vadd.f32 %v8455, %v8486
  %v8519 = vadd.f32 %v8456, %v8487
  %v8520 = vadd.f32 %v8457, %v8488
  %v8521 = vadd.f32 %v8458, %v8489
  %v8522 = vadd.f32 %v8459, %v8490
  %v8523 = vadd.f32 %v8460, %v8491
  %v8524 = vadd.f32 %v8461, %v8492
  %v8557 = vrot.slane %v8494, 7
  %v8558 = vsel %vm4540, %v8557, %v8493
  %v8559 = vrot.slane %v8495, 6
  %v8560 = vsel %vm4543, %v8559, %v8558
  %v8561 = vrot.slane %v8496, 5
  %v8562 = vsel %vm4546, %v8561, %v8560
  %v8563 = vrot.slane %v8497, 4
  %v8564 = vsel %vm4549, %v8563, %v8562
  %v8565 = vrot.slane %v8498, 3
  %v8566 = vsel %vm4552, %v8565, %v8564
  %v8567 = vrot.slane %v8499, 2
  %v8568 = vsel %vm4555, %v8567, %v8566
  %v8569 = vrot.slane %v8500, 1
  %v8570 = vsel %vm4558, %v8569, %v8568
  %v8571 = vrot.slane %v8502, 7
  %v8572 = vsel %vm4540, %v8571, %v8501
  %v8573 = vrot.slane %v8503, 6
  %v8574 = vsel %vm4543, %v8573, %v8572
  %v8575 = vrot.slane %v8504, 5
  %v8576 = vsel %vm4546, %v8575, %v8574
  %v8577 = vrot.slane %v8505, 4
  %v8578 = vsel %vm4549, %v8577, %v8576
  %v8579 = vrot.slane %v8506, 3
  %v8580 = vsel %vm4552, %v8579, %v8578
  %v8581 = vrot.slane %v8507, 2
  %v8582 = vsel %vm4555, %v8581, %v8580
  %v8583 = vrot.slane %v8508, 1
  %v8584 = vsel %vm4558, %v8583, %v8582
  %v8585 = vrot.slane %v8510, 7
  %v8586 = vsel %vm4540, %v8585, %v8509
  %v8587 = vrot.slane %v8511, 6
  %v8588 = vsel %vm4543, %v8587, %v8586
  %v8589 = vrot.slane %v8512, 5
  %v8590 = vsel %vm4546, %v8589, %v8588
  %v8591 = vrot.slane %v8513, 4
  %v8592 = vsel %vm4549, %v8591, %v8590
  %v8593 = vrot.slane %v8514, 3
  %v8594 = vsel %vm4552, %v8593, %v8592
  %v8595 = vrot.slane %v8515, 2
  %v8596 = vsel %vm4555, %v8595, %v8594
  %v8597 = vrot.slane %v8516, 1
  %v8598 = vsel %vm4558, %v8597, %v8596
  %v8599 = vrot.slane %v8518, 7
  %v8600 = vsel %vm4540, %v8599, %v8517
  %v8601 = vrot.slane %v8519, 6
  %v8602 = vsel %vm4543, %v8601, %v8600
  %v8603 = vrot.slane %v8520, 5
  %v8604 = vsel %vm4546, %v8603, %v8602
  %v8605 = vrot.slane %v8521, 4
  %v8606 = vsel %vm4549, %v8605, %v8604
  %v8607 = vrot.slane %v8522, 3
  %v8608 = vsel %vm4552, %v8607, %v8606
  %v8609 = vrot.slane %v8523, 2
  %v8610 = vsel %vm4555, %v8609, %v8608
  %v8611 = vrot.slane %v8524, 1
  %v8612 = vsel %vm4558, %v8611, %v8610
  %s8617 = scalar_lea.vmem %s1, 672
  %8618 = vst.msk [vmem:[%s8617] sm:$0xff] %vm4606, %v8570
  %8619 = vst.msk [vmem:[%s8617 + $0x8] sm:$0xff] %vm4606, %v8584
  %8620 = vst.msk [vmem:[%s8617 + $0x10] sm:$0xff] %vm4606, %v8598
  %8621 = vst.msk [vmem:[%s8617 + $0x18] sm:$0xff] %vm4606, %v8612
  %v8622 = vmul.f32 %v130, 0.3548387
  %v8623 = vmul.f32 %v226, 0.3548387
  %v8624 = vmul.f32 %v2946, 0.3548387
  %v8625 = vmul.f32 %v2994, 0.3548387
  %v8626 = vmul.f32 %v3042, 0.3548387
  %v8627 = vmul.f32 %v3090, 0.3548387
  %v8628 = vmul.f32 %v3138, 0.3548387
  %v8629 = vmul.f32 %v3186, 0.3548387
  %v8630 = vmul.f32 %v3234, 0.3548387
  %v8631 = vmul.f32 %v3282, 0.3548387
  %v8632 = vmul.f32 %v3330, 0.3548387
  %v8633 = vmul.f32 %v3378, 0.3548387
  %v8634 = vmul.f32 %v3426, 0.3548387
  %v8635 = vmul.f32 %v3474, 0.3548387
  %v8636 = vmul.f32 %v3522, 0.3548387
  %v8637 = vmul.f32 %v4034, 0.3548387
  %v8638 = vmul.f32 %v4050, 0.3548387
  %v8639 = vmul.f32 %v4066, 0.3548387
  %v8640 = vmul.f32 %v4082, 0.3548387
  %v8641 = vmul.f32 %v4098, 0.3548387
  %v8642 = vmul.f32 %v4114, 0.3548387
  %v8643 = vmul.f32 %v4130, 0.3548387
  %v8644 = vmul.f32 %v4146, 0.3548387
  %v8645 = vmul.f32 %v4162, 0.3548387
  %v8646 = vmul.f32 %v4178, 0.3548387
  %v8647 = vmul.f32 %v4194, 0.3548387
  %v8648 = vmul.f32 %v4210, 0.3548387
  %v8649 = vmul.f32 %v4226, 0.3548387
  %v8650 = vmul.f32 %v4242, 0.3548387
  %v8651 = vmul.f32 %v4258, 0.3548387
  %v8652 = vmul.f32 %v4274, 0.3548387
  %v8653 = vmul.f32 %v131, 0.6451613
  %v8654 = vmul.f32 %v227, 0.6451613
  %v8655 = vmul.f32 %v2947, 0.6451613
  %v8656 = vmul.f32 %v2995, 0.6451613
  %v8657 = vmul.f32 %v3043, 0.6451613
  %v8658 = vmul.f32 %v3091, 0.6451613
  %v8659 = vmul.f32 %v3139, 0.6451613
  %v8660 = vmul.f32 %v3187, 0.6451613
  %v8661 = vmul.f32 %v3235, 0.6451613
  %v8662 = vmul.f32 %v3283, 0.6451613
  %v8663 = vmul.f32 %v3331, 0.6451613
  %v8664 = vmul.f32 %v3379, 0.6451613
  %v8665 = vmul.f32 %v3427, 0.6451613
  %v8666 = vmul.f32 %v3475, 0.6451613
  %v8667 = vmul.f32 %v3523, 0.6451613
  %v8668 = vmul.f32 %v4035, 0.6451613
  %v8669 = vmul.f32 %v4051, 0.6451613
  %v8670 = vmul.f32 %v4067, 0.6451613
  %v8671 = vmul.f32 %v4083, 0.6451613
  %v8672 = vmul.f32 %v4099, 0.6451613
  %v8673 = vmul.f32 %v4115, 0.6451613
  %v8674 = vmul.f32 %v4131, 0.6451613
  %v8675 = vmul.f32 %v4147, 0.6451613
  %v8676 = vmul.f32 %v4163, 0.6451613
  %v8677 = vmul.f32 %v4179, 0.6451613
  %v8678 = vmul.f32 %v4195, 0.6451613
  %v8679 = vmul.f32 %v4211, 0.6451613
  %v8680 = vmul.f32 %v4227, 0.6451613
  %v8681 = vmul.f32 %v4243, 0.6451613
  %v8682 = vmul.f32 %v4259, 0.6451613
  %v8683 = vmul.f32 %v4275, 0.6451613
  %v8684 = vadd.f32 %v834, %v819
  %v8685 = vadd.f32 %v8622, %v8653
  %v8686 = vadd.f32 %v8623, %v8654
  %v8687 = vadd.f32 %v8624, %v8655
  %v8688 = vadd.f32 %v8625, %v8656
  %v8689 = vadd.f32 %v8626, %v8657
  %v8690 = vadd.f32 %v8627, %v8658
  %v8691 = vadd.f32 %v8628, %v8659
  %v8692 = vadd.f32 %v8629, %v8660
  %v8693 = vadd.f32 %v8630, %v8661
  %v8694 = vadd.f32 %v8631, %v8662
  %v8695 = vadd.f32 %v8632, %v8663
  %v8696 = vadd.f32 %v8633, %v8664
  %v8697 = vadd.f32 %v8634, %v8665
  %v8698 = vadd.f32 %v8635, %v8666
  %v8699 = vadd.f32 %v8636, %v8667
  %v8700 = vadd.f32 %v8637, %v8668
  %v8701 = vadd.f32 %v8638, %v8669
  %v8702 = vadd.f32 %v8639, %v8670
  %v8703 = vadd.f32 %v8640, %v8671
  %v8704 = vadd.f32 %v8641, %v8672
  %v8705 = vadd.f32 %v8642, %v8673
  %v8706 = vadd.f32 %v8643, %v8674
  %v8707 = vadd.f32 %v8644, %v8675
  %v8708 = vadd.f32 %v8645, %v8676
  %v8709 = vadd.f32 %v8646, %v8677
  %v8710 = vadd.f32 %v8647, %v8678
  %v8711 = vadd.f32 %v8648, %v8679
  %v8712 = vadd.f32 %v8649, %v8680
  %v8713 = vadd.f32 %v8650, %v8681
  %v8714 = vadd.f32 %v8651, %v8682
  %v8715 = vadd.f32 %v8652, %v8683
  %v8748 = vrot.slane %v8685, 7
  %v8749 = vsel %vm4540, %v8748, %v8684
  %v8750 = vrot.slane %v8686, 6
  %v8751 = vsel %vm4543, %v8750, %v8749
  %v8752 = vrot.slane %v8687, 5
  %v8753 = vsel %vm4546, %v8752, %v8751
  %v8754 = vrot.slane %v8688, 4
  %v8755 = vsel %vm4549, %v8754, %v8753
  %v8756 = vrot.slane %v8689, 3
  %v8757 = vsel %vm4552, %v8756, %v8755
  %v8758 = vrot.slane %v8690, 2
  %v8759 = vsel %vm4555, %v8758, %v8757
  %v8760 = vrot.slane %v8691, 1
  %v8761 = vsel %vm4558, %v8760, %v8759
  %v8762 = vrot.slane %v8693, 7
  %v8763 = vsel %vm4540, %v8762, %v8692
  %v8764 = vrot.slane %v8694, 6
  %v8765 = vsel %vm4543, %v8764, %v8763
  %v8766 = vrot.slane %v8695, 5
  %v8767 = vsel %vm4546, %v8766, %v8765
  %v8768 = vrot.slane %v8696, 4
  %v8769 = vsel %vm4549, %v8768, %v8767
  %v8770 = vrot.slane %v8697, 3
  %v8771 = vsel %vm4552, %v8770, %v8769
  %v8772 = vrot.slane %v8698, 2
  %v8773 = vsel %vm4555, %v8772, %v8771
  %v8774 = vrot.slane %v8699, 1
  %v8775 = vsel %vm4558, %v8774, %v8773
  %v8776 = vrot.slane %v8701, 7
  %v8777 = vsel %vm4540, %v8776, %v8700
  %v8778 = vrot.slane %v8702, 6
  %v8779 = vsel %vm4543, %v8778, %v8777
  %v8780 = vrot.slane %v8703, 5
  %v8781 = vsel %vm4546, %v8780, %v8779
  %v8782 = vrot.slane %v8704, 4
  %v8783 = vsel %vm4549, %v8782, %v8781
  %v8784 = vrot.slane %v8705, 3
  %v8785 = vsel %vm4552, %v8784, %v8783
  %v8786 = vrot.slane %v8706, 2
  %v8787 = vsel %vm4555, %v8786, %v8785
  %v8788 = vrot.slane %v8707, 1
  %v8789 = vsel %vm4558, %v8788, %v8787
  %v8790 = vrot.slane %v8709, 7
  %v8791 = vsel %vm4540, %v8790, %v8708
  %v8792 = vrot.slane %v8710, 6
  %v8793 = vsel %vm4543, %v8792, %v8791
  %v8794 = vrot.slane %v8711, 5
  %v8795 = vsel %vm4546, %v8794, %v8793
  %v8796 = vrot.slane %v8712, 4
  %v8797 = vsel %vm4549, %v8796, %v8795
  %v8798 = vrot.slane %v8713, 3
  %v8799 = vsel %vm4552, %v8798, %v8797
  %v8800 = vrot.slane %v8714, 2
  %v8801 = vsel %vm4555, %v8800, %v8799
  %v8802 = vrot.slane %v8715, 1
  %v8803 = vsel %vm4558, %v8802, %v8801
  %s8808 = scalar_lea.vmem %s1, 704
  %8809 = vst.msk [vmem:[%s8808] sm:$0xff] %vm4606, %v8761
  %8810 = vst.msk [vmem:[%s8808 + $0x8] sm:$0xff] %vm4606, %v8775
  %8811 = vst.msk [vmem:[%s8808 + $0x10] sm:$0xff] %vm4606, %v8789
  %8812 = vst.msk [vmem:[%s8808 + $0x18] sm:$0xff] %vm4606, %v8803
  %v8813 = vmul.f32 %v131, 0.87096775
  %v8814 = vmul.f32 %v227, 0.87096775
  %v8815 = vmul.f32 %v2947, 0.87096775
  %v8816 = vmul.f32 %v2995, 0.87096775
  %v8817 = vmul.f32 %v3043, 0.87096775
  %v8818 = vmul.f32 %v3091, 0.87096775
  %v8819 = vmul.f32 %v3139, 0.87096775
  %v8820 = vmul.f32 %v3187, 0.87096775
  %v8821 = vmul.f32 %v3235, 0.87096775
  %v8822 = vmul.f32 %v3283, 0.87096775
  %v8823 = vmul.f32 %v3331, 0.87096775
  %v8824 = vmul.f32 %v3379, 0.87096775
  %v8825 = vmul.f32 %v3427, 0.87096775
  %v8826 = vmul.f32 %v3475, 0.87096775
  %v8827 = vmul.f32 %v3523, 0.87096775
  %v8828 = vmul.f32 %v4035, 0.87096775
  %v8829 = vmul.f32 %v4051, 0.87096775
  %v8830 = vmul.f32 %v4067, 0.87096775
  %v8831 = vmul.f32 %v4083, 0.87096775
  %v8832 = vmul.f32 %v4099, 0.87096775
  %v8833 = vmul.f32 %v4115, 0.87096775
  %v8834 = vmul.f32 %v4131, 0.87096775
  %v8835 = vmul.f32 %v4147, 0.87096775
  %v8836 = vmul.f32 %v4163, 0.87096775
  %v8837 = vmul.f32 %v4179, 0.87096775
  %v8838 = vmul.f32 %v4195, 0.87096775
  %v8839 = vmul.f32 %v4211, 0.87096775
  %v8840 = vmul.f32 %v4227, 0.87096775
  %v8841 = vmul.f32 %v4243, 0.87096775
  %v8842 = vmul.f32 %v4259, 0.87096775
  %v8843 = vmul.f32 %v4275, 0.87096775
  %v8844 = vmul.f32 %v132, 0.12903225
  %v8845 = vmul.f32 %v228, 0.12903225
  %v8846 = vmul.f32 %v2948, 0.12903225
  %v8847 = vmul.f32 %v2996, 0.12903225
  %v8848 = vmul.f32 %v3044, 0.12903225
  %v8849 = vmul.f32 %v3092, 0.12903225
  %v8850 = vmul.f32 %v3140, 0.12903225
  %v8851 = vmul.f32 %v3188, 0.12903225
  %v8852 = vmul.f32 %v3236, 0.12903225
  %v8853 = vmul.f32 %v3284, 0.12903225
  %v8854 = vmul.f32 %v3332, 0.12903225
  %v8855 = vmul.f32 %v3380, 0.12903225
  %v8856 = vmul.f32 %v3428, 0.12903225
  %v8857 = vmul.f32 %v3476, 0.12903225
  %v8858 = vmul.f32 %v3524, 0.12903225
  %v8859 = vmul.f32 %v4036, 0.12903225
  %v8860 = vmul.f32 %v4052, 0.12903225
  %v8861 = vmul.f32 %v4068, 0.12903225
  %v8862 = vmul.f32 %v4084, 0.12903225
  %v8863 = vmul.f32 %v4100, 0.12903225
  %v8864 = vmul.f32 %v4116, 0.12903225
  %v8865 = vmul.f32 %v4132, 0.12903225
  %v8866 = vmul.f32 %v4148, 0.12903225
  %v8867 = vmul.f32 %v4164, 0.12903225
  %v8868 = vmul.f32 %v4180, 0.12903225
  %v8869 = vmul.f32 %v4196, 0.12903225
  %v8870 = vmul.f32 %v4212, 0.12903225
  %v8871 = vmul.f32 %v4228, 0.12903225
  %v8872 = vmul.f32 %v4244, 0.12903225
  %v8873 = vmul.f32 %v4260, 0.12903225
  %v8874 = vmul.f32 %v4276, 0.12903225
  %v8875 = vadd.f32 %v739, %v724
  %v8876 = vadd.f32 %v8813, %v8844
  %v8877 = vadd.f32 %v8814, %v8845
  %v8878 = vadd.f32 %v8815, %v8846
  %v8879 = vadd.f32 %v8816, %v8847
  %v8880 = vadd.f32 %v8817, %v8848
  %v8881 = vadd.f32 %v8818, %v8849
  %v8882 = vadd.f32 %v8819, %v8850
  %v8883 = vadd.f32 %v8820, %v8851
  %v8884 = vadd.f32 %v8821, %v8852
  %v8885 = vadd.f32 %v8822, %v8853
  %v8886 = vadd.f32 %v8823, %v8854
  %v8887 = vadd.f32 %v8824, %v8855
  %v8888 = vadd.f32 %v8825, %v8856
  %v8889 = vadd.f32 %v8826, %v8857
  %v8890 = vadd.f32 %v8827, %v8858
  %v8891 = vadd.f32 %v8828, %v8859
  %v8892 = vadd.f32 %v8829, %v8860
  %v8893 = vadd.f32 %v8830, %v8861
  %v8894 = vadd.f32 %v8831, %v8862
  %v8895 = vadd.f32 %v8832, %v8863
  %v8896 = vadd.f32 %v8833, %v8864
  %v8897 = vadd.f32 %v8834, %v8865
  %v8898 = vadd.f32 %v8835, %v8866
  %v8899 = vadd.f32 %v8836, %v8867
  %v8900 = vadd.f32 %v8837, %v8868
  %v8901 = vadd.f32 %v8838, %v8869
  %v8902 = vadd.f32 %v8839, %v8870
  %v8903 = vadd.f32 %v8840, %v8871
  %v8904 = vadd.f32 %v8841, %v8872
  %v8905 = vadd.f32 %v8842, %v8873
  %v8906 = vadd.f32 %v8843, %v8874
  %v8939 = vrot.slane %v8876, 7
  %v8940 = vsel %vm4540, %v8939, %v8875
  %v8941 = vrot.slane %v8877, 6
  %v8942 = vsel %vm4543, %v8941, %v8940
  %v8943 = vrot.slane %v8878, 5
  %v8944 = vsel %vm4546, %v8943, %v8942
  %v8945 = vrot.slane %v8879, 4
  %v8946 = vsel %vm4549, %v8945, %v8944
  %v8947 = vrot.slane %v8880, 3
  %v8948 = vsel %vm4552, %v8947, %v8946
  %v8949 = vrot.slane %v8881, 2
  %v8950 = vsel %vm4555, %v8949, %v8948
  %v8951 = vrot.slane %v8882, 1
  %v8952 = vsel %vm4558, %v8951, %v8950
  %v8953 = vrot.slane %v8884, 7
  %v8954 = vsel %vm4540, %v8953, %v8883
  %v8955 = vrot.slane %v8885, 6
  %v8956 = vsel %vm4543, %v8955, %v8954
  %v8957 = vrot.slane %v8886, 5
  %v8958 = vsel %vm4546, %v8957, %v8956
  %v8959 = vrot.slane %v8887, 4
  %v8960 = vsel %vm4549, %v8959, %v8958
  %v8961 = vrot.slane %v8888, 3
  %v8962 = vsel %vm4552, %v8961, %v8960
  %v8963 = vrot.slane %v8889, 2
  %v8964 = vsel %vm4555, %v8963, %v8962
  %v8965 = vrot.slane %v8890, 1
  %v8966 = vsel %vm4558, %v8965, %v8964
  %v8967 = vrot.slane %v8892, 7
  %v8968 = vsel %vm4540, %v8967, %v8891
  %v8969 = vrot.slane %v8893, 6
  %v8970 = vsel %vm4543, %v8969, %v8968
  %v8971 = vrot.slane %v8894, 5
  %v8972 = vsel %vm4546, %v8971, %v8970
  %v8973 = vrot.slane %v8895, 4
  %v8974 = vsel %vm4549, %v8973, %v8972
  %v8975 = vrot.slane %v8896, 3
  %v8976 = vsel %vm4552, %v8975, %v8974
  %v8977 = vrot.slane %v8897, 2
  %v8978 = vsel %vm4555, %v8977, %v8976
  %v8979 = vrot.slane %v8898, 1
  %v8980 = vsel %vm4558, %v8979, %v8978
  %v8981 = vrot.slane %v8900, 7
  %v8982 = vsel %vm4540, %v8981, %v8899
  %v8983 = vrot.slane %v8901, 6
  %v8984 = vsel %vm4543, %v8983, %v8982
  %v8985 = vrot.slane %v8902, 5
  %v8986 = vsel %vm4546, %v8985, %v8984
  %v8987 = vrot.slane %v8903, 4
  %v8988 = vsel %vm4549, %v8987, %v8986
  %v8989 = vrot.slane %v8904, 3
  %v8990 = vsel %vm4552, %v8989, %v8988
  %v8991 = vrot.slane %v8905, 2
  %v8992 = vsel %vm4555, %v8991, %v8990
  %v8993 = vrot.slane %v8906, 1
  %v8994 = vsel %vm4558, %v8993, %v8992
  %s8999 = scalar_lea.vmem %s1, 736
  %9000 = vst.msk [vmem:[%s8999] sm:$0xff] %vm4606, %v8952
  %9001 = vst.msk [vmem:[%s8999 + $0x8] sm:$0xff] %vm4606, %v8966
  %9002 = vst.msk [vmem:[%s8999 + $0x10] sm:$0xff] %vm4606, %v8980
  %9003 = vst.msk [vmem:[%s8999 + $0x18] sm:$0xff] %vm4606, %v8994
  %v9004 = vmul.f32 %v131, 0.38709676
  %v9005 = vmul.f32 %v227, 0.38709676
  %v9006 = vmul.f32 %v2947, 0.38709676
  %v9007 = vmul.f32 %v2995, 0.38709676
  %v9008 = vmul.f32 %v3043, 0.38709676
  %v9009 = vmul.f32 %v3091, 0.38709676
  %v9010 = vmul.f32 %v3139, 0.38709676
  %v9011 = vmul.f32 %v3187, 0.38709676
  %v9012 = vmul.f32 %v3235, 0.38709676
  %v9013 = vmul.f32 %v3283, 0.38709676
  %v9014 = vmul.f32 %v3331, 0.38709676
  %v9015 = vmul.f32 %v3379, 0.38709676
  %v9016 = vmul.f32 %v3427, 0.38709676
  %v9017 = vmul.f32 %v3475, 0.38709676
  %v9018 = vmul.f32 %v3523, 0.38709676
  %v9019 = vmul.f32 %v4035, 0.38709676
  %v9020 = vmul.f32 %v4051, 0.38709676
  %v9021 = vmul.f32 %v4067, 0.38709676
  %v9022 = vmul.f32 %v4083, 0.38709676
  %v9023 = vmul.f32 %v4099, 0.38709676
  %v9024 = vmul.f32 %v4115, 0.38709676
  %v9025 = vmul.f32 %v4131, 0.38709676
  %v9026 = vmul.f32 %v4147, 0.38709676
  %v9027 = vmul.f32 %v4163, 0.38709676
  %v9028 = vmul.f32 %v4179, 0.38709676
  %v9029 = vmul.f32 %v4195, 0.38709676
  %v9030 = vmul.f32 %v4211, 0.38709676
  %v9031 = vmul.f32 %v4227, 0.38709676
  %v9032 = vmul.f32 %v4243, 0.38709676
  %v9033 = vmul.f32 %v4259, 0.38709676
  %v9034 = vmul.f32 %v4275, 0.38709676
  %v9035 = vmul.f32 %v132, 0.61290324
  %v9036 = vmul.f32 %v228, 0.61290324
  %v9037 = vmul.f32 %v2948, 0.61290324
  %v9038 = vmul.f32 %v2996, 0.61290324
  %v9039 = vmul.f32 %v3044, 0.61290324
  %v9040 = vmul.f32 %v3092, 0.61290324
  %v9041 = vmul.f32 %v3140, 0.61290324
  %v9042 = vmul.f32 %v3188, 0.61290324
  %v9043 = vmul.f32 %v3236, 0.61290324
  %v9044 = vmul.f32 %v3284, 0.61290324
  %v9045 = vmul.f32 %v3332, 0.61290324
  %v9046 = vmul.f32 %v3380, 0.61290324
  %v9047 = vmul.f32 %v3428, 0.61290324
  %v9048 = vmul.f32 %v3476, 0.61290324
  %v9049 = vmul.f32 %v3524, 0.61290324
  %v9050 = vmul.f32 %v4036, 0.61290324
  %v9051 = vmul.f32 %v4052, 0.61290324
  %v9052 = vmul.f32 %v4068, 0.61290324
  %v9053 = vmul.f32 %v4084, 0.61290324
  %v9054 = vmul.f32 %v4100, 0.61290324
  %v9055 = vmul.f32 %v4116, 0.61290324
  %v9056 = vmul.f32 %v4132, 0.61290324
  %v9057 = vmul.f32 %v4148, 0.61290324
  %v9058 = vmul.f32 %v4164, 0.61290324
  %v9059 = vmul.f32 %v4180, 0.61290324
  %v9060 = vmul.f32 %v4196, 0.61290324
  %v9061 = vmul.f32 %v4212, 0.61290324
  %v9062 = vmul.f32 %v4228, 0.61290324
  %v9063 = vmul.f32 %v4244, 0.61290324
  %v9064 = vmul.f32 %v4260, 0.61290324
  %v9065 = vmul.f32 %v4276, 0.61290324
  %v9066 = vadd.f32 %v643, %v628
  %v9067 = vadd.f32 %v9004, %v9035
  %v9068 = vadd.f32 %v9005, %v9036
  %v9069 = vadd.f32 %v9006, %v9037
  %v9070 = vadd.f32 %v9007, %v9038
  %v9071 = vadd.f32 %v9008, %v9039
  %v9072 = vadd.f32 %v9009, %v9040
  %v9073 = vadd.f32 %v9010, %v9041
  %v9074 = vadd.f32 %v9011, %v9042
  %v9075 = vadd.f32 %v9012, %v9043
  %v9076 = vadd.f32 %v9013, %v9044
  %v9077 = vadd.f32 %v9014, %v9045
  %v9078 = vadd.f32 %v9015, %v9046
  %v9079 = vadd.f32 %v9016, %v9047
  %v9080 = vadd.f32 %v9017, %v9048
  %v9081 = vadd.f32 %v9018, %v9049
  %v9082 = vadd.f32 %v9019, %v9050
  %v9083 = vadd.f32 %v9020, %v9051
  %v9084 = vadd.f32 %v9021, %v9052
  %v9085 = vadd.f32 %v9022, %v9053
  %v9086 = vadd.f32 %v9023, %v9054
  %v9087 = vadd.f32 %v9024, %v9055
  %v9088 = vadd.f32 %v9025, %v9056
  %v9089 = vadd.f32 %v9026, %v9057
  %v9090 = vadd.f32 %v9027, %v9058
  %v9091 = vadd.f32 %v9028, %v9059
  %v9092 = vadd.f32 %v9029, %v9060
  %v9093 = vadd.f32 %v9030, %v9061
  %v9094 = vadd.f32 %v9031, %v9062
  %v9095 = vadd.f32 %v9032, %v9063
  %v9096 = vadd.f32 %v9033, %v9064
  %v9097 = vadd.f32 %v9034, %v9065
  %v9130 = vrot.slane %v9067, 7
  %v9131 = vsel %vm4540, %v9130, %v9066
  %v9132 = vrot.slane %v9068, 6
  %v9133 = vsel %vm4543, %v9132, %v9131
  %v9134 = vrot.slane %v9069, 5
  %v9135 = vsel %vm4546, %v9134, %v9133
  %v9136 = vrot.slane %v9070, 4
  %v9137 = vsel %vm4549, %v9136, %v9135
  %v9138 = vrot.slane %v9071, 3
  %v9139 = vsel %vm4552, %v9138, %v9137
  %v9140 = vrot.slane %v9072, 2
  %v9141 = vsel %vm4555, %v9140, %v9139
  %v9142 = vrot.slane %v9073, 1
  %v9143 = vsel %vm4558, %v9142, %v9141
  %v9144 = vrot.slane %v9075, 7
  %v9145 = vsel %vm4540, %v9144, %v9074
  %v9146 = vrot.slane %v9076, 6
  %v9147 = vsel %vm4543, %v9146, %v9145
  %v9148 = vrot.slane %v9077, 5
  %v9149 = vsel %vm4546, %v9148, %v9147
  %v9150 = vrot.slane %v9078, 4
  %v9151 = vsel %vm4549, %v9150, %v9149
  %v9152 = vrot.slane %v9079, 3
  %v9153 = vsel %vm4552, %v9152, %v9151
  %v9154 = vrot.slane %v9080, 2
  %v9155 = vsel %vm4555, %v9154, %v9153
  %v9156 = vrot.slane %v9081, 1
  %v9157 = vsel %vm4558, %v9156, %v9155
  %v9158 = vrot.slane %v9083, 7
  %v9159 = vsel %vm4540, %v9158, %v9082
  %v9160 = vrot.slane %v9084, 6
  %v9161 = vsel %vm4543, %v9160, %v9159
  %v9162 = vrot.slane %v9085, 5
  %v9163 = vsel %vm4546, %v9162, %v9161
  %v9164 = vrot.slane %v9086, 4
  %v9165 = vsel %vm4549, %v9164, %v9163
  %v9166 = vrot.slane %v9087, 3
  %v9167 = vsel %vm4552, %v9166, %v9165
  %v9168 = vrot.slane %v9088, 2
  %v9169 = vsel %vm4555, %v9168, %v9167
  %v9170 = vrot.slane %v9089, 1
  %v9171 = vsel %vm4558, %v9170, %v9169
  %v9172 = vrot.slane %v9091, 7
  %v9173 = vsel %vm4540, %v9172, %v9090
  %v9174 = vrot.slane %v9092, 6
  %v9175 = vsel %vm4543, %v9174, %v9173
  %v9176 = vrot.slane %v9093, 5
  %v9177 = vsel %vm4546, %v9176, %v9175
  %v9178 = vrot.slane %v9094, 4
  %v9179 = vsel %vm4549, %v9178, %v9177
  %v9180 = vrot.slane %v9095, 3
  %v9181 = vsel %vm4552, %v9180, %v9179
  %v9182 = vrot.slane %v9096, 2
  %v9183 = vsel %vm4555, %v9182, %v9181
  %v9184 = vrot.slane %v9097, 1
  %v9185 = vsel %vm4558, %v9184, %v9183
  %s9190 = scalar_lea.vmem %s1, 768
  %9191 = vst.msk [vmem:[%s9190] sm:$0xff] %vm4606, %v9143
  %9192 = vst.msk [vmem:[%s9190 + $0x8] sm:$0xff] %vm4606, %v9157
  %9193 = vst.msk [vmem:[%s9190 + $0x10] sm:$0xff] %vm4606, %v9171
  %9194 = vst.msk [vmem:[%s9190 + $0x18] sm:$0xff] %vm4606, %v9185
  %v9195 = vmul.f32 %v132, 0.9032258
  %v9196 = vmul.f32 %v228, 0.9032258
  %v9197 = vmul.f32 %v2948, 0.9032258
  %v9198 = vmul.f32 %v2996, 0.9032258
  %v9199 = vmul.f32 %v3044, 0.9032258
  %v9200 = vmul.f32 %v3092, 0.9032258
  %v9201 = vmul.f32 %v3140, 0.9032258
  %v9202 = vmul.f32 %v3188, 0.9032258
  %v9203 = vmul.f32 %v3236, 0.9032258
  %v9204 = vmul.f32 %v3284, 0.9032258
  %v9205 = vmul.f32 %v3332, 0.9032258
  %v9206 = vmul.f32 %v3380, 0.9032258
  %v9207 = vmul.f32 %v3428, 0.9032258
  %v9208 = vmul.f32 %v3476, 0.9032258
  %v9209 = vmul.f32 %v3524, 0.9032258
  %v9210 = vmul.f32 %v4036, 0.9032258
  %v9211 = vmul.f32 %v4052, 0.9032258
  %v9212 = vmul.f32 %v4068, 0.9032258
  %v9213 = vmul.f32 %v4084, 0.9032258
  %v9214 = vmul.f32 %v4100, 0.9032258
  %v9215 = vmul.f32 %v4116, 0.9032258
  %v9216 = vmul.f32 %v4132, 0.9032258
  %v9217 = vmul.f32 %v4148, 0.9032258
  %v9218 = vmul.f32 %v4164, 0.9032258
  %v9219 = vmul.f32 %v4180, 0.9032258
  %v9220 = vmul.f32 %v4196, 0.9032258
  %v9221 = vmul.f32 %v4212, 0.9032258
  %v9222 = vmul.f32 %v4228, 0.9032258
  %v9223 = vmul.f32 %v4244, 0.9032258
  %v9224 = vmul.f32 %v4260, 0.9032258
  %v9225 = vmul.f32 %v4276, 0.9032258
  %v9226 = vmul.f32 %v133, 0.09677419
  %v9227 = vmul.f32 %v229, 0.09677419
  %v9228 = vmul.f32 %v2949, 0.09677419
  %v9229 = vmul.f32 %v2997, 0.09677419
  %v9230 = vmul.f32 %v3045, 0.09677419
  %v9231 = vmul.f32 %v3093, 0.09677419
  %v9232 = vmul.f32 %v3141, 0.09677419
  %v9233 = vmul.f32 %v3189, 0.09677419
  %v9234 = vmul.f32 %v3237, 0.09677419
  %v9235 = vmul.f32 %v3285, 0.09677419
  %v9236 = vmul.f32 %v3333, 0.09677419
  %v9237 = vmul.f32 %v3381, 0.09677419
  %v9238 = vmul.f32 %v3429, 0.09677419
  %v9239 = vmul.f32 %v3477, 0.09677419
  %v9240 = vmul.f32 %v3525, 0.09677419
  %v9241 = vmul.f32 %v4037, 0.09677419
  %v9242 = vmul.f32 %v4053, 0.09677419
  %v9243 = vmul.f32 %v4069, 0.09677419
  %v9244 = vmul.f32 %v4085, 0.09677419
  %v9245 = vmul.f32 %v4101, 0.09677419
  %v9246 = vmul.f32 %v4117, 0.09677419
  %v9247 = vmul.f32 %v4133, 0.09677419
  %v9248 = vmul.f32 %v4149, 0.09677419
  %v9249 = vmul.f32 %v4165, 0.09677419
  %v9250 = vmul.f32 %v4181, 0.09677419
  %v9251 = vmul.f32 %v4197, 0.09677419
  %v9252 = vmul.f32 %v4213, 0.09677419
  %v9253 = vmul.f32 %v4229, 0.09677419
  %v9254 = vmul.f32 %v4245, 0.09677419
  %v9255 = vmul.f32 %v4261, 0.09677419
  %v9256 = vmul.f32 %v4277, 0.09677419
  %v9257 = vadd.f32 %v548, %v533
  %v9258 = vadd.f32 %v9195, %v9226
  %v9259 = vadd.f32 %v9196, %v9227
  %v9260 = vadd.f32 %v9197, %v9228
  %v9261 = vadd.f32 %v9198, %v9229
  %v9262 = vadd.f32 %v9199, %v9230
  %v9263 = vadd.f32 %v9200, %v9231
  %v9264 = vadd.f32 %v9201, %v9232
  %v9265 = vadd.f32 %v9202, %v9233
  %v9266 = vadd.f32 %v9203, %v9234
  %v9267 = vadd.f32 %v9204, %v9235
  %v9268 = vadd.f32 %v9205, %v9236
  %v9269 = vadd.f32 %v9206, %v9237
  %v9270 = vadd.f32 %v9207, %v9238
  %v9271 = vadd.f32 %v9208, %v9239
  %v9272 = vadd.f32 %v9209, %v9240
  %v9273 = vadd.f32 %v9210, %v9241
  %v9274 = vadd.f32 %v9211, %v9242
  %v9275 = vadd.f32 %v9212, %v9243
  %v9276 = vadd.f32 %v9213, %v9244
  %v9277 = vadd.f32 %v9214, %v9245
  %v9278 = vadd.f32 %v9215, %v9246
  %v9279 = vadd.f32 %v9216, %v9247
  %v9280 = vadd.f32 %v9217, %v9248
  %v9281 = vadd.f32 %v9218, %v9249
  %v9282 = vadd.f32 %v9219, %v9250
  %v9283 = vadd.f32 %v9220, %v9251
  %v9284 = vadd.f32 %v9221, %v9252
  %v9285 = vadd.f32 %v9222, %v9253
  %v9286 = vadd.f32 %v9223, %v9254
  %v9287 = vadd.f32 %v9224, %v9255
  %v9288 = vadd.f32 %v9225, %v9256
  %v9321 = vrot.slane %v9258, 7
  %v9322 = vsel %vm4540, %v9321, %v9257
  %v9323 = vrot.slane %v9259, 6
  %v9324 = vsel %vm4543, %v9323, %v9322
  %v9325 = vrot.slane %v9260, 5
  %v9326 = vsel %vm4546, %v9325, %v9324
  %v9327 = vrot.slane %v9261, 4
  %v9328 = vsel %vm4549, %v9327, %v9326
  %v9329 = vrot.slane %v9262, 3
  %v9330 = vsel %vm4552, %v9329, %v9328
  %v9331 = vrot.slane %v9263, 2
  %v9332 = vsel %vm4555, %v9331, %v9330
  %v9333 = vrot.slane %v9264, 1
  %v9334 = vsel %vm4558, %v9333, %v9332
  %v9335 = vrot.slane %v9266, 7
  %v9336 = vsel %vm4540, %v9335, %v9265
  %v9337 = vrot.slane %v9267, 6
  %v9338 = vsel %vm4543, %v9337, %v9336
  %v9339 = vrot.slane %v9268, 5
  %v9340 = vsel %vm4546, %v9339, %v9338
  %v9341 = vrot.slane %v9269, 4
  %v9342 = vsel %vm4549, %v9341, %v9340
  %v9343 = vrot.slane %v9270, 3
  %v9344 = vsel %vm4552, %v9343, %v9342
  %v9345 = vrot.slane %v9271, 2
  %v9346 = vsel %vm4555, %v9345, %v9344
  %v9347 = vrot.slane %v9272, 1
  %v9348 = vsel %vm4558, %v9347, %v9346
  %v9349 = vrot.slane %v9274, 7
  %v9350 = vsel %vm4540, %v9349, %v9273
  %v9351 = vrot.slane %v9275, 6
  %v9352 = vsel %vm4543, %v9351, %v9350
  %v9353 = vrot.slane %v9276, 5
  %v9354 = vsel %vm4546, %v9353, %v9352
  %v9355 = vrot.slane %v9277, 4
  %v9356 = vsel %vm4549, %v9355, %v9354
  %v9357 = vrot.slane %v9278, 3
  %v9358 = vsel %vm4552, %v9357, %v9356
  %v9359 = vrot.slane %v9279, 2
  %v9360 = vsel %vm4555, %v9359, %v9358
  %v9361 = vrot.slane %v9280, 1
  %v9362 = vsel %vm4558, %v9361, %v9360
  %v9363 = vrot.slane %v9282, 7
  %v9364 = vsel %vm4540, %v9363, %v9281
  %v9365 = vrot.slane %v9283, 6
  %v9366 = vsel %vm4543, %v9365, %v9364
  %v9367 = vrot.slane %v9284, 5
  %v9368 = vsel %vm4546, %v9367, %v9366
  %v9369 = vrot.slane %v9285, 4
  %v9370 = vsel %vm4549, %v9369, %v9368
  %v9371 = vrot.slane %v9286, 3
  %v9372 = vsel %vm4552, %v9371, %v9370
  %v9373 = vrot.slane %v9287, 2
  %v9374 = vsel %vm4555, %v9373, %v9372
  %v9375 = vrot.slane %v9288, 1
  %v9376 = vsel %vm4558, %v9375, %v9374
  %s9381 = scalar_lea.vmem %s1, 800
  %9382 = vst.msk [vmem:[%s9381] sm:$0xff] %vm4606, %v9334
  %9383 = vst.msk [vmem:[%s9381 + $0x8] sm:$0xff] %vm4606, %v9348
  %9384 = vst.msk [vmem:[%s9381 + $0x10] sm:$0xff] %vm4606, %v9362
  %9385 = vst.msk [vmem:[%s9381 + $0x18] sm:$0xff] %vm4606, %v9376
  %v9386 = vmul.f32 %v132, 0.41935483
  %v9387 = vmul.f32 %v228, 0.41935483
  %v9388 = vmul.f32 %v2948, 0.41935483
  %v9389 = vmul.f32 %v2996, 0.41935483
  %v9390 = vmul.f32 %v3044, 0.41935483
  %v9391 = vmul.f32 %v3092, 0.41935483
  %v9392 = vmul.f32 %v3140, 0.41935483
  %v9393 = vmul.f32 %v3188, 0.41935483
  %v9394 = vmul.f32 %v3236, 0.41935483
  %v9395 = vmul.f32 %v3284, 0.41935483
  %v9396 = vmul.f32 %v3332, 0.41935483
  %v9397 = vmul.f32 %v3380, 0.41935483
  %v9398 = vmul.f32 %v3428, 0.41935483
  %v9399 = vmul.f32 %v3476, 0.41935483
  %v9400 = vmul.f32 %v3524, 0.41935483
  %v9401 = vmul.f32 %v4036, 0.41935483
  %v9402 = vmul.f32 %v4052, 0.41935483
  %v9403 = vmul.f32 %v4068, 0.41935483
  %v9404 = vmul.f32 %v4084, 0.41935483
  %v9405 = vmul.f32 %v4100, 0.41935483
  %v9406 = vmul.f32 %v4116, 0.41935483
  %v9407 = vmul.f32 %v4132, 0.41935483
  %v9408 = vmul.f32 %v4148, 0.41935483
  %v9409 = vmul.f32 %v4164, 0.41935483
  %v9410 = vmul.f32 %v4180, 0.41935483
  %v9411 = vmul.f32 %v4196, 0.41935483
  %v9412 = vmul.f32 %v4212, 0.41935483
  %v9413 = vmul.f32 %v4228, 0.41935483
  %v9414 = vmul.f32 %v4244, 0.41935483
  %v9415 = vmul.f32 %v4260, 0.41935483
  %v9416 = vmul.f32 %v4276, 0.41935483
  %v9417 = vmul.f32 %v133, 0.58064514
  %v9418 = vmul.f32 %v229, 0.58064514
  %v9419 = vmul.f32 %v2949, 0.58064514
  %v9420 = vmul.f32 %v2997, 0.58064514
  %v9421 = vmul.f32 %v3045, 0.58064514
  %v9422 = vmul.f32 %v3093, 0.58064514
  %v9423 = vmul.f32 %v3141, 0.58064514
  %v9424 = vmul.f32 %v3189, 0.58064514
  %v9425 = vmul.f32 %v3237, 0.58064514
  %v9426 = vmul.f32 %v3285, 0.58064514
  %v9427 = vmul.f32 %v3333, 0.58064514
  %v9428 = vmul.f32 %v3381, 0.58064514
  %v9429 = vmul.f32 %v3429, 0.58064514
  %v9430 = vmul.f32 %v3477, 0.58064514
  %v9431 = vmul.f32 %v3525, 0.58064514
  %v9432 = vmul.f32 %v4037, 0.58064514
  %v9433 = vmul.f32 %v4053, 0.58064514
  %v9434 = vmul.f32 %v4069, 0.58064514
  %v9435 = vmul.f32 %v4085, 0.58064514
  %v9436 = vmul.f32 %v4101, 0.58064514
  %v9437 = vmul.f32 %v4117, 0.58064514
  %v9438 = vmul.f32 %v4133, 0.58064514
  %v9439 = vmul.f32 %v4149, 0.58064514
  %v9440 = vmul.f32 %v4165, 0.58064514
  %v9441 = vmul.f32 %v4181, 0.58064514
  %v9442 = vmul.f32 %v4197, 0.58064514
  %v9443 = vmul.f32 %v4213, 0.58064514
  %v9444 = vmul.f32 %v4229, 0.58064514
  %v9445 = vmul.f32 %v4245, 0.58064514
  %v9446 = vmul.f32 %v4261, 0.58064514
  %v9447 = vmul.f32 %v4277, 0.58064514
  %v9448 = vadd.f32 %v452, %v437
  %v9449 = vadd.f32 %v9386, %v9417
  %v9450 = vadd.f32 %v9387, %v9418
  %v9451 = vadd.f32 %v9388, %v9419
  %v9452 = vadd.f32 %v9389, %v9420
  %v9453 = vadd.f32 %v9390, %v9421
  %v9454 = vadd.f32 %v9391, %v9422
  %v9455 = vadd.f32 %v9392, %v9423
  %v9456 = vadd.f32 %v9393, %v9424
  %v9457 = vadd.f32 %v9394, %v9425
  %v9458 = vadd.f32 %v9395, %v9426
  %v9459 = vadd.f32 %v9396, %v9427
  %v9460 = vadd.f32 %v9397, %v9428
  %v9461 = vadd.f32 %v9398, %v9429
  %v9462 = vadd.f32 %v9399, %v9430
  %v9463 = vadd.f32 %v9400, %v9431
  %v9464 = vadd.f32 %v9401, %v9432
  %v9465 = vadd.f32 %v9402, %v9433
  %v9466 = vadd.f32 %v9403, %v9434
  %v9467 = vadd.f32 %v9404, %v9435
  %v9468 = vadd.f32 %v9405, %v9436
  %v9469 = vadd.f32 %v9406, %v9437
  %v9470 = vadd.f32 %v9407, %v9438
  %v9471 = vadd.f32 %v9408, %v9439
  %v9472 = vadd.f32 %v9409, %v9440
  %v9473 = vadd.f32 %v9410, %v9441
  %v9474 = vadd.f32 %v9411, %v9442
  %v9475 = vadd.f32 %v9412, %v9443
  %v9476 = vadd.f32 %v9413, %v9444
  %v9477 = vadd.f32 %v9414, %v9445
  %v9478 = vadd.f32 %v9415, %v9446
  %v9479 = vadd.f32 %v9416, %v9447
  %v9512 = vrot.slane %v9449, 7
  %v9513 = vsel %vm4540, %v9512, %v9448
  %v9514 = vrot.slane %v9450, 6
  %v9515 = vsel %vm4543, %v9514, %v9513
  %v9516 = vrot.slane %v9451, 5
  %v9517 = vsel %vm4546, %v9516, %v9515
  %v9518 = vrot.slane %v9452, 4
  %v9519 = vsel %vm4549, %v9518, %v9517
  %v9520 = vrot.slane %v9453, 3
  %v9521 = vsel %vm4552, %v9520, %v9519
  %v9522 = vrot.slane %v9454, 2
  %v9523 = vsel %vm4555, %v9522, %v9521
  %v9524 = vrot.slane %v9455, 1
  %v9525 = vsel %vm4558, %v9524, %v9523
  %v9526 = vrot.slane %v9457, 7
  %v9527 = vsel %vm4540, %v9526, %v9456
  %v9528 = vrot.slane %v9458, 6
  %v9529 = vsel %vm4543, %v9528, %v9527
  %v9530 = vrot.slane %v9459, 5
  %v9531 = vsel %vm4546, %v9530, %v9529
  %v9532 = vrot.slane %v9460, 4
  %v9533 = vsel %vm4549, %v9532, %v9531
  %v9534 = vrot.slane %v9461, 3
  %v9535 = vsel %vm4552, %v9534, %v9533
  %v9536 = vrot.slane %v9462, 2
  %v9537 = vsel %vm4555, %v9536, %v9535
  %v9538 = vrot.slane %v9463, 1
  %v9539 = vsel %vm4558, %v9538, %v9537
  %v9540 = vrot.slane %v9465, 7
  %v9541 = vsel %vm4540, %v9540, %v9464
  %v9542 = vrot.slane %v9466, 6
  %v9543 = vsel %vm4543, %v9542, %v9541
  %v9544 = vrot.slane %v9467, 5
  %v9545 = vsel %vm4546, %v9544, %v9543
  %v9546 = vrot.slane %v9468, 4
  %v9547 = vsel %vm4549, %v9546, %v9545
  %v9548 = vrot.slane %v9469, 3
  %v9549 = vsel %vm4552, %v9548, %v9547
  %v9550 = vrot.slane %v9470, 2
  %v9551 = vsel %vm4555, %v9550, %v9549
  %v9552 = vrot.slane %v9471, 1
  %v9553 = vsel %vm4558, %v9552, %v9551
  %v9554 = vrot.slane %v9473, 7
  %v9555 = vsel %vm4540, %v9554, %v9472
  %v9556 = vrot.slane %v9474, 6
  %v9557 = vsel %vm4543, %v9556, %v9555
  %v9558 = vrot.slane %v9475, 5
  %v9559 = vsel %vm4546, %v9558, %v9557
  %v9560 = vrot.slane %v9476, 4
  %v9561 = vsel %vm4549, %v9560, %v9559
  %v9562 = vrot.slane %v9477, 3
  %v9563 = vsel %vm4552, %v9562, %v9561
  %v9564 = vrot.slane %v9478, 2
  %v9565 = vsel %vm4555, %v9564, %v9563
  %v9566 = vrot.slane %v9479, 1
  %v9567 = vsel %vm4558, %v9566, %v9565
  %s9572 = scalar_lea.vmem %s1, 832
  %9573 = vst.msk [vmem:[%s9572] sm:$0xff] %vm4606, %v9525
  %9574 = vst.msk [vmem:[%s9572 + $0x8] sm:$0xff] %vm4606, %v9539
  %9575 = vst.msk [vmem:[%s9572 + $0x10] sm:$0xff] %vm4606, %v9553
  %9576 = vst.msk [vmem:[%s9572 + $0x18] sm:$0xff] %vm4606, %v9567
  %v9577 = vmul.f32 %v133, 0.9354839
  %v9578 = vmul.f32 %v229, 0.9354839
  %v9579 = vmul.f32 %v2949, 0.9354839
  %v9580 = vmul.f32 %v2997, 0.9354839
  %v9581 = vmul.f32 %v3045, 0.9354839
  %v9582 = vmul.f32 %v3093, 0.9354839
  %v9583 = vmul.f32 %v3141, 0.9354839
  %v9584 = vmul.f32 %v3189, 0.9354839
  %v9585 = vmul.f32 %v3237, 0.9354839
  %v9586 = vmul.f32 %v3285, 0.9354839
  %v9587 = vmul.f32 %v3333, 0.9354839
  %v9588 = vmul.f32 %v3381, 0.9354839
  %v9589 = vmul.f32 %v3429, 0.9354839
  %v9590 = vmul.f32 %v3477, 0.9354839
  %v9591 = vmul.f32 %v3525, 0.9354839
  %v9592 = vmul.f32 %v4037, 0.9354839
  %v9593 = vmul.f32 %v4053, 0.9354839
  %v9594 = vmul.f32 %v4069, 0.9354839
  %v9595 = vmul.f32 %v4085, 0.9354839
  %v9596 = vmul.f32 %v4101, 0.9354839
  %v9597 = vmul.f32 %v4117, 0.9354839
  %v9598 = vmul.f32 %v4133, 0.9354839
  %v9599 = vmul.f32 %v4149, 0.9354839
  %v9600 = vmul.f32 %v4165, 0.9354839
  %v9601 = vmul.f32 %v4181, 0.9354839
  %v9602 = vmul.f32 %v4197, 0.9354839
  %v9603 = vmul.f32 %v4213, 0.9354839
  %v9604 = vmul.f32 %v4229, 0.9354839
  %v9605 = vmul.f32 %v4245, 0.9354839
  %v9606 = vmul.f32 %v4261, 0.9354839
  %v9607 = vmul.f32 %v4277, 0.9354839
  %v9608 = vmul.f32 %v134, 0.06451613
  %v9609 = vmul.f32 %v230, 0.06451613
  %v9610 = vmul.f32 %v2950, 0.06451613
  %v9611 = vmul.f32 %v2998, 0.06451613
  %v9612 = vmul.f32 %v3046, 0.06451613
  %v9613 = vmul.f32 %v3094, 0.06451613
  %v9614 = vmul.f32 %v3142, 0.06451613
  %v9615 = vmul.f32 %v3190, 0.06451613
  %v9616 = vmul.f32 %v3238, 0.06451613
  %v9617 = vmul.f32 %v3286, 0.06451613
  %v9618 = vmul.f32 %v3334, 0.06451613
  %v9619 = vmul.f32 %v3382, 0.06451613
  %v9620 = vmul.f32 %v3430, 0.06451613
  %v9621 = vmul.f32 %v3478, 0.06451613
  %v9622 = vmul.f32 %v3526, 0.06451613
  %v9623 = vmul.f32 %v4038, 0.06451613
  %v9624 = vmul.f32 %v4054, 0.06451613
  %v9625 = vmul.f32 %v4070, 0.06451613
  %v9626 = vmul.f32 %v4086, 0.06451613
  %v9627 = vmul.f32 %v4102, 0.06451613
  %v9628 = vmul.f32 %v4118, 0.06451613
  %v9629 = vmul.f32 %v4134, 0.06451613
  %v9630 = vmul.f32 %v4150, 0.06451613
  %v9631 = vmul.f32 %v4166, 0.06451613
  %v9632 = vmul.f32 %v4182, 0.06451613
  %v9633 = vmul.f32 %v4198, 0.06451613
  %v9634 = vmul.f32 %v4214, 0.06451613
  %v9635 = vmul.f32 %v4230, 0.06451613
  %v9636 = vmul.f32 %v4246, 0.06451613
  %v9637 = vmul.f32 %v4262, 0.06451613
  %v9638 = vmul.f32 %v4278, 0.06451613
  %v9639 = vadd.f32 %v357, %v342
  %v9640 = vadd.f32 %v9577, %v9608
  %v9641 = vadd.f32 %v9578, %v9609
  %v9642 = vadd.f32 %v9579, %v9610
  %v9643 = vadd.f32 %v9580, %v9611
  %v9644 = vadd.f32 %v9581, %v9612
  %v9645 = vadd.f32 %v9582, %v9613
  %v9646 = vadd.f32 %v9583, %v9614
  %v9647 = vadd.f32 %v9584, %v9615
  %v9648 = vadd.f32 %v9585, %v9616
  %v9649 = vadd.f32 %v9586, %v9617
  %v9650 = vadd.f32 %v9587, %v9618
  %v9651 = vadd.f32 %v9588, %v9619
  %v9652 = vadd.f32 %v9589, %v9620
  %v9653 = vadd.f32 %v9590, %v9621
  %v9654 = vadd.f32 %v9591, %v9622
  %v9655 = vadd.f32 %v9592, %v9623
  %v9656 = vadd.f32 %v9593, %v9624
  %v9657 = vadd.f32 %v9594, %v9625
  %v9658 = vadd.f32 %v9595, %v9626
  %v9659 = vadd.f32 %v9596, %v9627
  %v9660 = vadd.f32 %v9597, %v9628
  %v9661 = vadd.f32 %v9598, %v9629
  %v9662 = vadd.f32 %v9599, %v9630
  %v9663 = vadd.f32 %v9600, %v9631
  %v9664 = vadd.f32 %v9601, %v9632
  %v9665 = vadd.f32 %v9602, %v9633
  %v9666 = vadd.f32 %v9603, %v9634
  %v9667 = vadd.f32 %v9604, %v9635
  %v9668 = vadd.f32 %v9605, %v9636
  %v9669 = vadd.f32 %v9606, %v9637
  %v9670 = vadd.f32 %v9607, %v9638
  %v9703 = vrot.slane %v9640, 7
  %v9704 = vsel %vm4540, %v9703, %v9639
  %v9705 = vrot.slane %v9641, 6
  %v9706 = vsel %vm4543, %v9705, %v9704
  %v9707 = vrot.slane %v9642, 5
  %v9708 = vsel %vm4546, %v9707, %v9706
  %v9709 = vrot.slane %v9643, 4
  %v9710 = vsel %vm4549, %v9709, %v9708
  %v9711 = vrot.slane %v9644, 3
  %v9712 = vsel %vm4552, %v9711, %v9710
  %v9713 = vrot.slane %v9645, 2
  %v9714 = vsel %vm4555, %v9713, %v9712
  %v9715 = vrot.slane %v9646, 1
  %v9716 = vsel %vm4558, %v9715, %v9714
  %v9717 = vrot.slane %v9648, 7
  %v9718 = vsel %vm4540, %v9717, %v9647
  %v9719 = vrot.slane %v9649, 6
  %v9720 = vsel %vm4543, %v9719, %v9718
  %v9721 = vrot.slane %v9650, 5
  %v9722 = vsel %vm4546, %v9721, %v9720
  %v9723 = vrot.slane %v9651, 4
  %v9724 = vsel %vm4549, %v9723, %v9722
  %v9725 = vrot.slane %v9652, 3
  %v9726 = vsel %vm4552, %v9725, %v9724
  %v9727 = vrot.slane %v9653, 2
  %v9728 = vsel %vm4555, %v9727, %v9726
  %v9729 = vrot.slane %v9654, 1
  %v9730 = vsel %vm4558, %v9729, %v9728
  %v9731 = vrot.slane %v9656, 7
  %v9732 = vsel %vm4540, %v9731, %v9655
  %v9733 = vrot.slane %v9657, 6
  %v9734 = vsel %vm4543, %v9733, %v9732
  %v9735 = vrot.slane %v9658, 5
  %v9736 = vsel %vm4546, %v9735, %v9734
  %v9737 = vrot.slane %v9659, 4
  %v9738 = vsel %vm4549, %v9737, %v9736
  %v9739 = vrot.slane %v9660, 3
  %v9740 = vsel %vm4552, %v9739, %v9738
  %v9741 = vrot.slane %v9661, 2
  %v9742 = vsel %vm4555, %v9741, %v9740
  %v9743 = vrot.slane %v9662, 1
  %v9744 = vsel %vm4558, %v9743, %v9742
  %v9745 = vrot.slane %v9664, 7
  %v9746 = vsel %vm4540, %v9745, %v9663
  %v9747 = vrot.slane %v9665, 6
  %v9748 = vsel %vm4543, %v9747, %v9746
  %v9749 = vrot.slane %v9666, 5
  %v9750 = vsel %vm4546, %v9749, %v9748
  %v9751 = vrot.slane %v9667, 4
  %v9752 = vsel %vm4549, %v9751, %v9750
  %v9753 = vrot.slane %v9668, 3
  %v9754 = vsel %vm4552, %v9753, %v9752
  %v9755 = vrot.slane %v9669, 2
  %v9756 = vsel %vm4555, %v9755, %v9754
  %v9757 = vrot.slane %v9670, 1
  %v9758 = vsel %vm4558, %v9757, %v9756
  %s9763 = scalar_lea.vmem %s1, 864
  %9764 = vst.msk [vmem:[%s9763] sm:$0xff] %vm4606, %v9716
  %9765 = vst.msk [vmem:[%s9763 + $0x8] sm:$0xff] %vm4606, %v9730
  %9766 = vst.msk [vmem:[%s9763 + $0x10] sm:$0xff] %vm4606, %v9744
  %9767 = vst.msk [vmem:[%s9763 + $0x18] sm:$0xff] %vm4606, %v9758
  %v9768 = vmul.f32 %v133, 0.4516129
  %v9769 = vmul.f32 %v229, 0.4516129
  %v9770 = vmul.f32 %v2949, 0.4516129
  %v9771 = vmul.f32 %v2997, 0.4516129
  %v9772 = vmul.f32 %v3045, 0.4516129
  %v9773 = vmul.f32 %v3093, 0.4516129
  %v9774 = vmul.f32 %v3141, 0.4516129
  %v9775 = vmul.f32 %v3189, 0.4516129
  %v9776 = vmul.f32 %v3237, 0.4516129
  %v9777 = vmul.f32 %v3285, 0.4516129
  %v9778 = vmul.f32 %v3333, 0.4516129
  %v9779 = vmul.f32 %v3381, 0.4516129
  %v9780 = vmul.f32 %v3429, 0.4516129
  %v9781 = vmul.f32 %v3477, 0.4516129
  %v9782 = vmul.f32 %v3525, 0.4516129
  %v9783 = vmul.f32 %v4037, 0.4516129
  %v9784 = vmul.f32 %v4053, 0.4516129
  %v9785 = vmul.f32 %v4069, 0.4516129
  %v9786 = vmul.f32 %v4085, 0.4516129
  %v9787 = vmul.f32 %v4101, 0.4516129
  %v9788 = vmul.f32 %v4117, 0.4516129
  %v9789 = vmul.f32 %v4133, 0.4516129
  %v9790 = vmul.f32 %v4149, 0.4516129
  %v9791 = vmul.f32 %v4165, 0.4516129
  %v9792 = vmul.f32 %v4181, 0.4516129
  %v9793 = vmul.f32 %v4197, 0.4516129
  %v9794 = vmul.f32 %v4213, 0.4516129
  %v9795 = vmul.f32 %v4229, 0.4516129
  %v9796 = vmul.f32 %v4245, 0.4516129
  %v9797 = vmul.f32 %v4261, 0.4516129
  %v9798 = vmul.f32 %v4277, 0.4516129
  %v9799 = vmul.f32 %v134, 0.5483871
  %v9800 = vmul.f32 %v230, 0.5483871
  %v9801 = vmul.f32 %v2950, 0.5483871
  %v9802 = vmul.f32 %v2998, 0.5483871
  %v9803 = vmul.f32 %v3046, 0.5483871
  %v9804 = vmul.f32 %v3094, 0.5483871
  %v9805 = vmul.f32 %v3142, 0.5483871
  %v9806 = vmul.f32 %v3190, 0.5483871
  %v9807 = vmul.f32 %v3238, 0.5483871
  %v9808 = vmul.f32 %v3286, 0.5483871
  %v9809 = vmul.f32 %v3334, 0.5483871
  %v9810 = vmul.f32 %v3382, 0.5483871
  %v9811 = vmul.f32 %v3430, 0.5483871
  %v9812 = vmul.f32 %v3478, 0.5483871
  %v9813 = vmul.f32 %v3526, 0.5483871
  %v9814 = vmul.f32 %v4038, 0.5483871
  %v9815 = vmul.f32 %v4054, 0.5483871
  %v9816 = vmul.f32 %v4070, 0.5483871
  %v9817 = vmul.f32 %v4086, 0.5483871
  %v9818 = vmul.f32 %v4102, 0.5483871
  %v9819 = vmul.f32 %v4118, 0.5483871
  %v9820 = vmul.f32 %v4134, 0.5483871
  %v9821 = vmul.f32 %v4150, 0.5483871
  %v9822 = vmul.f32 %v4166, 0.5483871
  %v9823 = vmul.f32 %v4182, 0.5483871
  %v9824 = vmul.f32 %v4198, 0.5483871
  %v9825 = vmul.f32 %v4214, 0.5483871
  %v9826 = vmul.f32 %v4230, 0.5483871
  %v9827 = vmul.f32 %v4246, 0.5483871
  %v9828 = vmul.f32 %v4262, 0.5483871
  %v9829 = vmul.f32 %v4278, 0.5483871
  %v9830 = vadd.f32 %v261, %v246
  %v9831 = vadd.f32 %v9768, %v9799
  %v9832 = vadd.f32 %v9769, %v9800
  %v9833 = vadd.f32 %v9770, %v9801
  %v9834 = vadd.f32 %v9771, %v9802
  %v9835 = vadd.f32 %v9772, %v9803
  %v9836 = vadd.f32 %v9773, %v9804
  %v9837 = vadd.f32 %v9774, %v9805
  %v9838 = vadd.f32 %v9775, %v9806
  %v9839 = vadd.f32 %v9776, %v9807
  %v9840 = vadd.f32 %v9777, %v9808
  %v9841 = vadd.f32 %v9778, %v9809
  %v9842 = vadd.f32 %v9779, %v9810
  %v9843 = vadd.f32 %v9780, %v9811
  %v9844 = vadd.f32 %v9781, %v9812
  %v9845 = vadd.f32 %v9782, %v9813
  %v9846 = vadd.f32 %v9783, %v9814
  %v9847 = vadd.f32 %v9784, %v9815
  %v9848 = vadd.f32 %v9785, %v9816
  %v9849 = vadd.f32 %v9786, %v9817
  %v9850 = vadd.f32 %v9787, %v9818
  %v9851 = vadd.f32 %v9788, %v9819
  %v9852 = vadd.f32 %v9789, %v9820
  %v9853 = vadd.f32 %v9790, %v9821
  %v9854 = vadd.f32 %v9791, %v9822
  %v9855 = vadd.f32 %v9792, %v9823
  %v9856 = vadd.f32 %v9793, %v9824
  %v9857 = vadd.f32 %v9794, %v9825
  %v9858 = vadd.f32 %v9795, %v9826
  %v9859 = vadd.f32 %v9796, %v9827
  %v9860 = vadd.f32 %v9797, %v9828
  %v9861 = vadd.f32 %v9798, %v9829
  %v9894 = vrot.slane %v9831, 7
  %v9895 = vsel %vm4540, %v9894, %v9830
  %v9896 = vrot.slane %v9832, 6
  %v9897 = vsel %vm4543, %v9896, %v9895
  %v9898 = vrot.slane %v9833, 5
  %v9899 = vsel %vm4546, %v9898, %v9897
  %v9900 = vrot.slane %v9834, 4
  %v9901 = vsel %vm4549, %v9900, %v9899
  %v9902 = vrot.slane %v9835, 3
  %v9903 = vsel %vm4552, %v9902, %v9901
  %v9904 = vrot.slane %v9836, 2
  %v9905 = vsel %vm4555, %v9904, %v9903
  %v9906 = vrot.slane %v9837, 1
  %v9907 = vsel %vm4558, %v9906, %v9905
  %v9908 = vrot.slane %v9839, 7
  %v9909 = vsel %vm4540, %v9908, %v9838
  %v9910 = vrot.slane %v9840, 6
  %v9911 = vsel %vm4543, %v9910, %v9909
  %v9912 = vrot.slane %v9841, 5
  %v9913 = vsel %vm4546, %v9912, %v9911
  %v9914 = vrot.slane %v9842, 4
  %v9915 = vsel %vm4549, %v9914, %v9913
  %v9916 = vrot.slane %v9843, 3
  %v9917 = vsel %vm4552, %v9916, %v9915
  %v9918 = vrot.slane %v9844, 2
  %v9919 = vsel %vm4555, %v9918, %v9917
  %v9920 = vrot.slane %v9845, 1
  %v9921 = vsel %vm4558, %v9920, %v9919
  %v9922 = vrot.slane %v9847, 7
  %v9923 = vsel %vm4540, %v9922, %v9846
  %v9924 = vrot.slane %v9848, 6
  %v9925 = vsel %vm4543, %v9924, %v9923
  %v9926 = vrot.slane %v9849, 5
  %v9927 = vsel %vm4546, %v9926, %v9925
  %v9928 = vrot.slane %v9850, 4
  %v9929 = vsel %vm4549, %v9928, %v9927
  %v9930 = vrot.slane %v9851, 3
  %v9931 = vsel %vm4552, %v9930, %v9929
  %v9932 = vrot.slane %v9852, 2
  %v9933 = vsel %vm4555, %v9932, %v9931
  %v9934 = vrot.slane %v9853, 1
  %v9935 = vsel %vm4558, %v9934, %v9933
  %v9936 = vrot.slane %v9855, 7
  %v9937 = vsel %vm4540, %v9936, %v9854
  %v9938 = vrot.slane %v9856, 6
  %v9939 = vsel %vm4543, %v9938, %v9937
  %v9940 = vrot.slane %v9857, 5
  %v9941 = vsel %vm4546, %v9940, %v9939
  %v9942 = vrot.slane %v9858, 4
  %v9943 = vsel %vm4549, %v9942, %v9941
  %v9944 = vrot.slane %v9859, 3
  %v9945 = vsel %vm4552, %v9944, %v9943
  %v9946 = vrot.slane %v9860, 2
  %v9947 = vsel %vm4555, %v9946, %v9945
  %v9948 = vrot.slane %v9861, 1
  %v9949 = vsel %vm4558, %v9948, %v9947
  %s9954 = scalar_lea.vmem %s1, 896
  %9955 = vst.msk [vmem:[%s9954] sm:$0xff] %vm4606, %v9907
  %9956 = vst.msk [vmem:[%s9954 + $0x8] sm:$0xff] %vm4606, %v9921
  %9957 = vst.msk [vmem:[%s9954 + $0x10] sm:$0xff] %vm4606, %v9935
  %9958 = vst.msk [vmem:[%s9954 + $0x18] sm:$0xff] %vm4606, %v9949
  %v9959 = vmul.f32 %v134, 0.9677419
  %v9960 = vmul.f32 %v230, 0.9677419
  %v9961 = vmul.f32 %v2950, 0.9677419
  %v9962 = vmul.f32 %v2998, 0.9677419
  %v9963 = vmul.f32 %v3046, 0.9677419
  %v9964 = vmul.f32 %v3094, 0.9677419
  %v9965 = vmul.f32 %v3142, 0.9677419
  %v9966 = vmul.f32 %v3190, 0.9677419
  %v9967 = vmul.f32 %v3238, 0.9677419
  %v9968 = vmul.f32 %v3286, 0.9677419
  %v9969 = vmul.f32 %v3334, 0.9677419
  %v9970 = vmul.f32 %v3382, 0.9677419
  %v9971 = vmul.f32 %v3430, 0.9677419
  %v9972 = vmul.f32 %v3478, 0.9677419
  %v9973 = vmul.f32 %v3526, 0.9677419
  %v9974 = vmul.f32 %v4038, 0.9677419
  %v9975 = vmul.f32 %v4054, 0.9677419
  %v9976 = vmul.f32 %v4070, 0.9677419
  %v9977 = vmul.f32 %v4086, 0.9677419
  %v9978 = vmul.f32 %v4102, 0.9677419
  %v9979 = vmul.f32 %v4118, 0.9677419
  %v9980 = vmul.f32 %v4134, 0.9677419
  %v9981 = vmul.f32 %v4150, 0.9677419
  %v9982 = vmul.f32 %v4166, 0.9677419
  %v9983 = vmul.f32 %v4182, 0.9677419
  %v9984 = vmul.f32 %v4198, 0.9677419
  %v9985 = vmul.f32 %v4214, 0.9677419
  %v9986 = vmul.f32 %v4230, 0.9677419
  %v9987 = vmul.f32 %v4246, 0.9677419
  %v9988 = vmul.f32 %v4262, 0.9677419
  %v9989 = vmul.f32 %v4278, 0.9677419
  %v9990 = vmul.f32 %v135, 0.032258064
  %v9991 = vmul.f32 %v231, 0.032258064
  %v9992 = vmul.f32 %v2951, 0.032258064
  %v9993 = vmul.f32 %v2999, 0.032258064
  %v9994 = vmul.f32 %v3047, 0.032258064
  %v9995 = vmul.f32 %v3095, 0.032258064
  %v9996 = vmul.f32 %v3143, 0.032258064
  %v9997 = vmul.f32 %v3191, 0.032258064
  %v9998 = vmul.f32 %v3239, 0.032258064
  %v9999 = vmul.f32 %v3287, 0.032258064
  %v10000 = vmul.f32 %v3335, 0.032258064
  %v10001 = vmul.f32 %v3383, 0.032258064
  %v10002 = vmul.f32 %v3431, 0.032258064
  %v10003 = vmul.f32 %v3479, 0.032258064
  %v10004 = vmul.f32 %v3527, 0.032258064
  %v10005 = vmul.f32 %v4039, 0.032258064
  %v10006 = vmul.f32 %v4055, 0.032258064
  %v10007 = vmul.f32 %v4071, 0.032258064
  %v10008 = vmul.f32 %v4087, 0.032258064
  %v10009 = vmul.f32 %v4103, 0.032258064
  %v10010 = vmul.f32 %v4119, 0.032258064
  %v10011 = vmul.f32 %v4135, 0.032258064
  %v10012 = vmul.f32 %v4151, 0.032258064
  %v10013 = vmul.f32 %v4167, 0.032258064
  %v10014 = vmul.f32 %v4183, 0.032258064
  %v10015 = vmul.f32 %v4199, 0.032258064
  %v10016 = vmul.f32 %v4215, 0.032258064
  %v10017 = vmul.f32 %v4231, 0.032258064
  %v10018 = vmul.f32 %v4247, 0.032258064
  %v10019 = vmul.f32 %v4263, 0.032258064
  %v10020 = vmul.f32 %v4279, 0.032258064
  %v10021 = vadd.f32 %v166, %v151
  %v10022 = vadd.f32 %v9959, %v9990
  %v10023 = vadd.f32 %v9960, %v9991
  %v10024 = vadd.f32 %v9961, %v9992
  %v10025 = vadd.f32 %v9962, %v9993
  %v10026 = vadd.f32 %v9963, %v9994
  %v10027 = vadd.f32 %v9964, %v9995
  %v10028 = vadd.f32 %v9965, %v9996
  %v10029 = vadd.f32 %v9966, %v9997
  %v10030 = vadd.f32 %v9967, %v9998
  %v10031 = vadd.f32 %v9968, %v9999
  %v10032 = vadd.f32 %v9969, %v10000
  %v10033 = vadd.f32 %v9970, %v10001
  %v10034 = vadd.f32 %v9971, %v10002
  %v10035 = vadd.f32 %v9972, %v10003
  %v10036 = vadd.f32 %v9973, %v10004
  %v10037 = vadd.f32 %v9974, %v10005
  %v10038 = vadd.f32 %v9975, %v10006
  %v10039 = vadd.f32 %v9976, %v10007
  %v10040 = vadd.f32 %v9977, %v10008
  %v10041 = vadd.f32 %v9978, %v10009
  %v10042 = vadd.f32 %v9979, %v10010
  %v10043 = vadd.f32 %v9980, %v10011
  %v10044 = vadd.f32 %v9981, %v10012
  %v10045 = vadd.f32 %v9982, %v10013
  %v10046 = vadd.f32 %v9983, %v10014
  %v10047 = vadd.f32 %v9984, %v10015
  %v10048 = vadd.f32 %v9985, %v10016
  %v10049 = vadd.f32 %v9986, %v10017
  %v10050 = vadd.f32 %v9987, %v10018
  %v10051 = vadd.f32 %v9988, %v10019
  %v10052 = vadd.f32 %v9989, %v10020
  %v10085 = vrot.slane %v10022, 7
  %v10086 = vsel %vm4540, %v10085, %v10021
  %v10087 = vrot.slane %v10023, 6
  %v10088 = vsel %vm4543, %v10087, %v10086
  %v10089 = vrot.slane %v10024, 5
  %v10090 = vsel %vm4546, %v10089, %v10088
  %v10091 = vrot.slane %v10025, 4
  %v10092 = vsel %vm4549, %v10091, %v10090
  %v10093 = vrot.slane %v10026, 3
  %v10094 = vsel %vm4552, %v10093, %v10092
  %v10095 = vrot.slane %v10027, 2
  %v10096 = vsel %vm4555, %v10095, %v10094
  %v10097 = vrot.slane %v10028, 1
  %v10098 = vsel %vm4558, %v10097, %v10096
  %v10099 = vrot.slane %v10030, 7
  %v10100 = vsel %vm4540, %v10099, %v10029
  %v10101 = vrot.slane %v10031, 6
  %v10102 = vsel %vm4543, %v10101, %v10100
  %v10103 = vrot.slane %v10032, 5
  %v10104 = vsel %vm4546, %v10103, %v10102
  %v10105 = vrot.slane %v10033, 4
  %v10106 = vsel %vm4549, %v10105, %v10104
  %v10107 = vrot.slane %v10034, 3
  %v10108 = vsel %vm4552, %v10107, %v10106
  %v10109 = vrot.slane %v10035, 2
  %v10110 = vsel %vm4555, %v10109, %v10108
  %v10111 = vrot.slane %v10036, 1
  %v10112 = vsel %vm4558, %v10111, %v10110
  %v10113 = vrot.slane %v10038, 7
  %v10114 = vsel %vm4540, %v10113, %v10037
  %v10115 = vrot.slane %v10039, 6
  %v10116 = vsel %vm4543, %v10115, %v10114
  %v10117 = vrot.slane %v10040, 5
  %v10118 = vsel %vm4546, %v10117, %v10116
  %v10119 = vrot.slane %v10041, 4
  %v10120 = vsel %vm4549, %v10119, %v10118
  %v10121 = vrot.slane %v10042, 3
  %v10122 = vsel %vm4552, %v10121, %v10120
  %v10123 = vrot.slane %v10043, 2
  %v10124 = vsel %vm4555, %v10123, %v10122
  %v10125 = vrot.slane %v10044, 1
  %v10126 = vsel %vm4558, %v10125, %v10124
  %v10127 = vrot.slane %v10046, 7
  %v10128 = vsel %vm4540, %v10127, %v10045
  %v10129 = vrot.slane %v10047, 6
  %v10130 = vsel %vm4543, %v10129, %v10128
  %v10131 = vrot.slane %v10048, 5
  %v10132 = vsel %vm4546, %v10131, %v10130
  %v10133 = vrot.slane %v10049, 4
  %v10134 = vsel %vm4549, %v10133, %v10132
  %v10135 = vrot.slane %v10050, 3
  %v10136 = vsel %vm4552, %v10135, %v10134
  %v10137 = vrot.slane %v10051, 2
  %v10138 = vsel %vm4555, %v10137, %v10136
  %v10139 = vrot.slane %v10052, 1
  %v10140 = vsel %vm4558, %v10139, %v10138
  %s10145 = scalar_lea.vmem %s1, 928
  %10146 = vst.msk [vmem:[%s10145] sm:$0xff] %vm4606, %v10098
  %10147 = vst.msk [vmem:[%s10145 + $0x8] sm:$0xff] %vm4606, %v10112
  %10148 = vst.msk [vmem:[%s10145 + $0x10] sm:$0xff] %vm4606, %v10126
  %10149 = vst.msk [vmem:[%s10145 + $0x18] sm:$0xff] %vm4606, %v10140
  %v10150 = vmul.f32 %v134, 0.48387095
  %v10151 = vmul.f32 %v230, 0.48387095
  %v10152 = vmul.f32 %v2950, 0.48387095
  %v10153 = vmul.f32 %v2998, 0.48387095
  %v10154 = vmul.f32 %v3046, 0.48387095
  %v10155 = vmul.f32 %v3094, 0.48387095
  %v10156 = vmul.f32 %v3142, 0.48387095
  %v10157 = vmul.f32 %v3190, 0.48387095
  %v10158 = vmul.f32 %v3238, 0.48387095
  %v10159 = vmul.f32 %v3286, 0.48387095
  %v10160 = vmul.f32 %v3334, 0.48387095
  %v10161 = vmul.f32 %v3382, 0.48387095
  %v10162 = vmul.f32 %v3430, 0.48387095
  %v10163 = vmul.f32 %v3478, 0.48387095
  %v10164 = vmul.f32 %v3526, 0.48387095
  %v10165 = vmul.f32 %v4038, 0.48387095
  %v10166 = vmul.f32 %v4054, 0.48387095
  %v10167 = vmul.f32 %v4070, 0.48387095
  %v10168 = vmul.f32 %v4086, 0.48387095
  %v10169 = vmul.f32 %v4102, 0.48387095
  %v10170 = vmul.f32 %v4118, 0.48387095
  %v10171 = vmul.f32 %v4134, 0.48387095
  %v10172 = vmul.f32 %v4150, 0.48387095
  %v10173 = vmul.f32 %v4166, 0.48387095
  %v10174 = vmul.f32 %v4182, 0.48387095
  %v10175 = vmul.f32 %v4198, 0.48387095
  %v10176 = vmul.f32 %v4214, 0.48387095
  %v10177 = vmul.f32 %v4230, 0.48387095
  %v10178 = vmul.f32 %v4246, 0.48387095
  %v10179 = vmul.f32 %v4262, 0.48387095
  %v10180 = vmul.f32 %v4278, 0.48387095
  %v10181 = vmul.f32 %v135, 0.516129
  %v10182 = vmul.f32 %v231, 0.516129
  %v10183 = vmul.f32 %v2951, 0.516129
  %v10184 = vmul.f32 %v2999, 0.516129
  %v10185 = vmul.f32 %v3047, 0.516129
  %v10186 = vmul.f32 %v3095, 0.516129
  %v10187 = vmul.f32 %v3143, 0.516129
  %v10188 = vmul.f32 %v3191, 0.516129
  %v10189 = vmul.f32 %v3239, 0.516129
  %v10190 = vmul.f32 %v3287, 0.516129
  %v10191 = vmul.f32 %v3335, 0.516129
  %v10192 = vmul.f32 %v3383, 0.516129
  %v10193 = vmul.f32 %v3431, 0.516129
  %v10194 = vmul.f32 %v3479, 0.516129
  %v10195 = vmul.f32 %v3527, 0.516129
  %v10196 = vmul.f32 %v4039, 0.516129
  %v10197 = vmul.f32 %v4055, 0.516129
  %v10198 = vmul.f32 %v4071, 0.516129
  %v10199 = vmul.f32 %v4087, 0.516129
  %v10200 = vmul.f32 %v4103, 0.516129
  %v10201 = vmul.f32 %v4119, 0.516129
  %v10202 = vmul.f32 %v4135, 0.516129
  %v10203 = vmul.f32 %v4151, 0.516129
  %v10204 = vmul.f32 %v4167, 0.516129
  %v10205 = vmul.f32 %v4183, 0.516129
  %v10206 = vmul.f32 %v4199, 0.516129
  %v10207 = vmul.f32 %v4215, 0.516129
  %v10208 = vmul.f32 %v4231, 0.516129
  %v10209 = vmul.f32 %v4247, 0.516129
  %v10210 = vmul.f32 %v4263, 0.516129
  %v10211 = vmul.f32 %v4279, 0.516129
  %v10212 = vadd.f32 %v70, %v55
  %v10213 = vadd.f32 %v10150, %v10181
  %v10214 = vadd.f32 %v10151, %v10182
  %v10215 = vadd.f32 %v10152, %v10183
  %v10216 = vadd.f32 %v10153, %v10184
  %v10217 = vadd.f32 %v10154, %v10185
  %v10218 = vadd.f32 %v10155, %v10186
  %v10219 = vadd.f32 %v10156, %v10187
  %v10220 = vadd.f32 %v10157, %v10188
  %v10221 = vadd.f32 %v10158, %v10189
  %v10222 = vadd.f32 %v10159, %v10190
  %v10223 = vadd.f32 %v10160, %v10191
  %v10224 = vadd.f32 %v10161, %v10192
  %v10225 = vadd.f32 %v10162, %v10193
  %v10226 = vadd.f32 %v10163, %v10194
  %v10227 = vadd.f32 %v10164, %v10195
  %v10228 = vadd.f32 %v10165, %v10196
  %v10229 = vadd.f32 %v10166, %v10197
  %v10230 = vadd.f32 %v10167, %v10198
  %v10231 = vadd.f32 %v10168, %v10199
  %v10232 = vadd.f32 %v10169, %v10200
  %v10233 = vadd.f32 %v10170, %v10201
  %v10234 = vadd.f32 %v10171, %v10202
  %v10235 = vadd.f32 %v10172, %v10203
  %v10236 = vadd.f32 %v10173, %v10204
  %v10237 = vadd.f32 %v10174, %v10205
  %v10238 = vadd.f32 %v10175, %v10206
  %v10239 = vadd.f32 %v10176, %v10207
  %v10240 = vadd.f32 %v10177, %v10208
  %v10241 = vadd.f32 %v10178, %v10209
  %v10242 = vadd.f32 %v10179, %v10210
  %v10243 = vadd.f32 %v10180, %v10211
  %v10276 = vrot.slane %v10213, 7
  %v10277 = vsel %vm4540, %v10276, %v10212
  %v10278 = vrot.slane %v10214, 6
  %v10279 = vsel %vm4543, %v10278, %v10277
  %v10280 = vrot.slane %v10215, 5
  %v10281 = vsel %vm4546, %v10280, %v10279
  %v10282 = vrot.slane %v10216, 4
  %v10283 = vsel %vm4549, %v10282, %v10281
  %v10284 = vrot.slane %v10217, 3
  %v10285 = vsel %vm4552, %v10284, %v10283
  %v10286 = vrot.slane %v10218, 2
  %v10287 = vsel %vm4555, %v10286, %v10285
  %v10288 = vrot.slane %v10219, 1
  %v10289 = vsel %vm4558, %v10288, %v10287
  %v10290 = vrot.slane %v10221, 7
  %v10291 = vsel %vm4540, %v10290, %v10220
  %v10292 = vrot.slane %v10222, 6
  %v10293 = vsel %vm4543, %v10292, %v10291
  %v10294 = vrot.slane %v10223, 5
  %v10295 = vsel %vm4546, %v10294, %v10293
  %v10296 = vrot.slane %v10224, 4
  %v10297 = vsel %vm4549, %v10296, %v10295
  %v10298 = vrot.slane %v10225, 3
  %v10299 = vsel %vm4552, %v10298, %v10297
  %v10300 = vrot.slane %v10226, 2
  %v10301 = vsel %vm4555, %v10300, %v10299
  %v10302 = vrot.slane %v10227, 1
  %v10303 = vsel %vm4558, %v10302, %v10301
  %v10304 = vrot.slane %v10229, 7
  %v10305 = vsel %vm4540, %v10304, %v10228
  %v10306 = vrot.slane %v10230, 6
  %v10307 = vsel %vm4543, %v10306, %v10305
  %v10308 = vrot.slane %v10231, 5
  %v10309 = vsel %vm4546, %v10308, %v10307
  %v10310 = vrot.slane %v10232, 4
  %v10311 = vsel %vm4549, %v10310, %v10309
  %v10312 = vrot.slane %v10233, 3
  %v10313 = vsel %vm4552, %v10312, %v10311
  %v10314 = vrot.slane %v10234, 2
  %v10315 = vsel %vm4555, %v10314, %v10313
  %v10316 = vrot.slane %v10235, 1
  %v10317 = vsel %vm4558, %v10316, %v10315
  %v10318 = vrot.slane %v10237, 7
  %v10319 = vsel %vm4540, %v10318, %v10236
  %v10320 = vrot.slane %v10238, 6
  %v10321 = vsel %vm4543, %v10320, %v10319
  %v10322 = vrot.slane %v10239, 5
  %v10323 = vsel %vm4546, %v10322, %v10321
  %v10324 = vrot.slane %v10240, 4
  %v10325 = vsel %vm4549, %v10324, %v10323
  %v10326 = vrot.slane %v10241, 3
  %v10327 = vsel %vm4552, %v10326, %v10325
  %v10328 = vrot.slane %v10242, 2
  %v10329 = vsel %vm4555, %v10328, %v10327
  %v10330 = vrot.slane %v10243, 1
  %v10331 = vsel %vm4558, %v10330, %v10329
  %s10336 = scalar_lea.vmem %s1, 960
  %10337 = vst.msk [vmem:[%s10336] sm:$0xff] %vm4606, %v10289
  %10338 = vst.msk [vmem:[%s10336 + $0x8] sm:$0xff] %vm4606, %v10303
  %10339 = vst.msk [vmem:[%s10336 + $0x10] sm:$0xff] %vm4606, %v10317
  %10340 = vst.msk [vmem:[%s10336 + $0x18] sm:$0xff] %vm4606, %v10331
  %v10344 = vrot.slane %v135, 7
  %v10345 = vsel %vm4540, %v10344, %v38
  %v10346 = vrot.slane %v231, 6
  %v10347 = vsel %vm4543, %v10346, %v10345
  %v10348 = vrot.slane %v2951, 5
  %v10349 = vsel %vm4546, %v10348, %v10347
  %v10350 = vrot.slane %v2999, 4
  %v10351 = vsel %vm4549, %v10350, %v10349
  %v10352 = vrot.slane %v3047, 3
  %v10353 = vsel %vm4552, %v10352, %v10351
  %v10354 = vrot.slane %v3095, 2
  %v10355 = vsel %vm4555, %v10354, %v10353
  %v10356 = vrot.slane %v3143, 1
  %v10357 = vsel %vm4558, %v10356, %v10355
  %v10358 = vrot.slane %v3239, 7
  %v10359 = vsel %vm4540, %v10358, %v3191
  %v10360 = vrot.slane %v3287, 6
  %v10361 = vsel %vm4543, %v10360, %v10359
  %v10362 = vrot.slane %v3335, 5
  %v10363 = vsel %vm4546, %v10362, %v10361
  %v10364 = vrot.slane %v3383, 4
  %v10365 = vsel %vm4549, %v10364, %v10363
  %v10366 = vrot.slane %v3431, 3
  %v10367 = vsel %vm4552, %v10366, %v10365
  %v10368 = vrot.slane %v3479, 2
  %v10369 = vsel %vm4555, %v10368, %v10367
  %v10370 = vrot.slane %v3527, 1
  %v10371 = vsel %vm4558, %v10370, %v10369
  %v10372 = vrot.slane %v4055, 7
  %v10373 = vsel %vm4540, %v10372, %v4039
  %v10374 = vrot.slane %v4071, 6
  %v10375 = vsel %vm4543, %v10374, %v10373
  %v10376 = vrot.slane %v4087, 5
  %v10377 = vsel %vm4546, %v10376, %v10375
  %v10378 = vrot.slane %v4103, 4
  %v10379 = vsel %vm4549, %v10378, %v10377
  %v10380 = vrot.slane %v4119, 3
  %v10381 = vsel %vm4552, %v10380, %v10379
  %v10382 = vrot.slane %v4135, 2
  %v10383 = vsel %vm4555, %v10382, %v10381
  %v10384 = vrot.slane %v4151, 1
  %v10385 = vsel %vm4558, %v10384, %v10383
  %v10386 = vrot.slane %v4183, 7
  %v10387 = vsel %vm4540, %v10386, %v4167
  %v10388 = vrot.slane %v4199, 6
  %v10389 = vsel %vm4543, %v10388, %v10387
  %v10390 = vrot.slane %v4215, 5
  %v10391 = vsel %vm4546, %v10390, %v10389
  %v10392 = vrot.slane %v4231, 4
  %v10393 = vsel %vm4549, %v10392, %v10391
  %v10394 = vrot.slane %v4247, 3
  %v10395 = vsel %vm4552, %v10394, %v10393
  %v10396 = vrot.slane %v4263, 2
  %v10397 = vsel %vm4555, %v10396, %v10395
  %v10398 = vrot.slane %v4279, 1
  %v10399 = vsel %vm4558, %v10398, %v10397
  %s10404 = scalar_lea.vmem %s1, 992
  %10405 = vst.msk [vmem:[%s10404] sm:$0xff] %vm4606, %v10357
  %10406 = vst.msk [vmem:[%s10404 + $0x8] sm:$0xff] %vm4606, %v10371
  %10407 = vst.msk [vmem:[%s10404 + $0x10] sm:$0xff] %vm4606, %v10385
  %10408 = vst.msk [vmem:[%s10404 + $0x18] sm:$0xff] %vm4606, %v10399
  // Predicated region
  $region6: #{up_bilinear_2x.1} parent=0 // pred_check
    _
  $region7: #{up_bilinear_2x.1} parent=0 // pred_check_branch
    %10410 = sbr.rel (0) target = $region9
  $region8: #{up_bilinear_2x.1} parent=0 // pred_region
    _
  $region9: #{up_bilinear_2x.1} parent=0 // pred_fallthru
    _
  // Predicated region
  $region10: #{up_bilinear_2x.1} parent=0 // pred_check
    _
  $region11: #{up_bilinear_2x.1} parent=0 // pred_check_branch
    %10412 = sbr.rel (0) target = $region13
  $region12: #{up_bilinear_2x.1} parent=0 // pred_region
    _
  $region13: #{up_bilinear_2x.1} parent=0 // pred_fallthru
    _

</llo_original>
